<compile_context>
chip_gen: v7x
topology: tpu7x:2x2x1
jax: 0.10.0
libtpu: 0.0.40
codegen_flags: <defaults>
</compile_context>

<pallas_src>
import functools

import jax
import jax.numpy as jnp
import numpy as np
from jax.experimental import pallas as pl
from jax.experimental.pallas import tpu as pltpu

BN_EPS = 1e-5
EXPANSION = 4
LANE = 128
SUBLANE = 8
DEFAULT_TILE_M = 512                    # 512-1024 rows ~ 85%+ of HBM roofline
VMEM_LIMIT_BYTES = 48 * 1024 * 1024     # headroom below v7x's 64 MiB physical VMEM


def _round_up(v, m):
    return (v + m - 1) // m * m


def _cparams(n_axes=1):
    return pltpu.CompilerParams(
        dimension_semantics=("parallel",) * n_axes,
        vmem_limit_bytes=VMEM_LIMIT_BYTES)


def _stats_slab(rows, width, n_rows=8):
    """Pack per-tile partial BN statistics into an (8, C) store-friendly slab."""
    parts = list(rows)
    if len(parts) < n_rows:
        parts.append(jnp.zeros((n_rows - len(parts), width), jnp.float32))
    return jnp.concatenate(parts, axis=0)


# ---------------------------------------------------------------------------
# Kernels
# ---------------------------------------------------------------------------
def _conv1_stats_kernel(x_ref, w1_ref, stats_ref):
    """1x1 conv (bf16 MXU, f32 acc) -> per-tile BN partial sums of y1."""
    y = jnp.dot(x_ref[...].astype(jnp.bfloat16), w1_ref[...],
                preferred_element_type=jnp.float32)
    stats_ref[...] = _stats_slab(
        [jnp.sum(y, axis=0, keepdims=True),
         jnp.sum(y * y, axis=0, keepdims=True)], y.shape[1])


def _conv2_fused_kernel(x_ref, w1_ref, sc1_ref, sh1_ref, w2_ref,
                        y2_ref, stats_ref, buf_ref, *, stride, hout, wout):
    """Per image: recompute conv1, apply BN1+ReLU, then the 3x3 conv as 9
    shifted MXU dots over a zero-padded VMEM window (no HBM im2col; y1 never
    stored to HBM). Also emits per-image BN partial sums of y2."""
    _, h, w, cin_p = x_ref.shape
    c_p = w1_ref.shape[1]

    # conv1 (1x1) + BN1 + ReLU, fused
    x2d = x_ref[0].reshape(h * w, cin_p)
    y1 = jnp.dot(x2d.astype(jnp.bfloat16), w1_ref[...],
                 preferred_element_type=jnp.float32)
    y1 = jnp.maximum(y1 * sc1_ref[...] + sh1_ref[...], 0.0)

    # zero-padded (H+2, W+2, C) window in VMEM scratch (border = conv zero-pad)
    buf_ref[...] = jnp.zeros(buf_ref.shape, buf_ref.dtype)
    buf_ref[pl.ds(1, h), pl.ds(1, w), :] = y1.reshape(h, w, c_p)

    # conv2 (3x3, stride, pad=1): 9 shifted (Ho*Wo, C) x (C, C) dots, f32 acc
    acc = jnp.zeros((hout * wout, c_p), jnp.float32)
    for kh in range(3):
        for kw in range(3):
            if stride == 1:
                tap = buf_ref[pl.ds(kh, hout), pl.ds(kw, wout), :]
            else:
                tap = buf_ref[pl.ds(kh, hout, stride), pl.ds(kw, wout, stride), :]
            acc += jnp.dot(tap.reshape(hout * wout, c_p).astype(jnp.bfloat16),
                           w2_ref[kh, kw, :, :],
                           preferred_element_type=jnp.float32)

    y2_ref[0] = acc.reshape(hout, wout, c_p)
    stats_ref[...] = _stats_slab(
        [jnp.sum(acc, axis=0, keepdims=True),
         jnp.sum(acc * acc, axis=0, keepdims=True)], c_p)


def _residual3(y2_ref, sc2_ref, sh2_ref, w3_ref, *, tile=None, m_real=None,
               masked=False):
    """BN2 + ReLU on the y2 tile, then the 1x1 conv3 matmul (bf16 MXU)."""
    a = jnp.maximum(y2_ref[...] * sc2_ref[...] + sh2_ref[...], 0.0)
    if masked:   # zero padded M rows so they cannot pollute the BN statistics
        row = (pl.program_id(0) * tile
               + jax.lax.broadcasted_iota(jnp.int32, (tile, 1), 0))
        a = jnp.where(row < m_real, a, 0.0)
    return jnp.dot(a.astype(jnp.bfloat16), w3_ref[...],
                   preferred_element_type=jnp.float32)


def _conv3_stats_proj_kernel(y2_ref, xs_ref, sc2_ref, sh2_ref, w3_ref, ws_ref,
                             stats_ref, *, tile, m_real, masked):
    r = _residual3(y2_ref, sc2_ref, sh2_ref, w3_ref,
                   tile=tile, m_real=m_real, masked=masked)
    s = jnp.dot(xs_ref[...].astype(jnp.bfloat16), ws_ref[...],
                preferred_element_type=jnp.float32)
    stats_ref[...] = _stats_slab(
        [jnp.sum(r, axis=0, keepdims=True), jnp.sum(r * r, axis=0, keepdims=True),
         jnp.sum(s, axis=0, keepdims=True), jnp.sum(s * s, axis=0, keepdims=True)],
        r.shape[1])


def _conv3_stats_id_kernel(y2_ref, sc2_ref, sh2_ref, w3_ref, stats_ref,
                           *, tile, m_real, masked):
    r = _residual3(y2_ref, sc2_ref, sh2_ref, w3_ref,
                   tile=tile, m_real=m_real, masked=masked)
    stats_ref[...] = _stats_slab(
        [jnp.sum(r, axis=0, keepdims=True), jnp.sum(r * r, axis=0, keepdims=True)],
        r.shape[1])


def _final_proj_kernel(y2_ref, xs_ref, sc2_ref, sh2_ref, w3_ref, ws_ref,
                       sc3_ref, sh3_ref, scs_ref, shs_ref, out_ref):
    r = _residual3(y2_ref, sc2_ref, sh2_ref, w3_ref)
    s = jnp.dot(xs_ref[...].astype(jnp.bfloat16), ws_ref[...],
                preferred_element_type=jnp.float32)
    out_ref[...] = jnp.maximum(r * sc3_ref[...] + sh3_ref[...]
                               + s * scs_ref[...] + shs_ref[...], 0.0)


def _final_id_kernel(y2_ref, xid_ref, sc2_ref, sh2_ref, w3_ref,
                     sc3_ref, sh3_ref, out_ref):
    r = _residual3(y2_ref, sc2_ref, sh2_ref, w3_ref)
    out_ref[...] = jnp.maximum(r * sc3_ref[...] + sh3_ref[...] + xid_ref[...], 0.0)


# ---------------------------------------------------------------------------
# Wrapper helpers
# ---------------------------------------------------------------------------
def _bn_scale_shift(total_sum, total_sq, m, gamma_p, beta_p):
    mean = total_sum / m
    var = jnp.maximum(total_sq / m - mean * mean, 0.0)   # biased batch variance
    scale = gamma_p * jax.lax.rsqrt(var + BN_EPS)
    shift = beta_p - mean * scale
    return scale.reshape(1, -1), shift.reshape(1, -1)


def _pad_vec(v, cp):
    return jnp.pad(v.astype(jnp.float32), (0, cp - v.shape[0]))


# ---------------------------------------------------------------------------
# BottleNeck forward
# ---------------------------------------------------------------------------
def bottleneck_forward(x_nchw, params, *, stride=1, tile_m=DEFAULT_TILE_M):
    n, cin, h, w = x_nchw.shape
    c = params["w1"].shape[0]
    ce = params["w3"].shape[0]
    proj = "ws" in params
    ho = (h - 1) // stride + 1
    wo = (w - 1) // stride + 1
    tile_m = _round_up(tile_m, SUBLANE)

    cin_p = _round_up(cin, LANE)
    c_p = _round_up(c, LANE)
    ce_p = _round_up(ce, LANE)

    # ---- inputs / weights, padded to lane-dense channel counts -------------
    x = jnp.transpose(x_nchw, (0, 2, 3, 1)).astype(jnp.float32)        # NHWC
    x = jnp.pad(x, ((0, 0), (0, 0), (0, 0), (0, cin_p - cin)))

    w1 = jnp.pad(params["w1"][:, :, 0, 0],
                 ((0, c_p - c), (0, cin_p - cin))).T.astype(jnp.bfloat16)
    w2 = jnp.pad(jnp.transpose(params["w2"], (2, 3, 1, 0)),
                 ((0, 0), (0, 0), (0, c_p - c), (0, c_p - c))).astype(jnp.bfloat16)
    w3 = jnp.pad(params["w3"][:, :, 0, 0],
                 ((0, ce_p - ce), (0, c_p - c))).T.astype(jnp.bfloat16)

    g1, b1 = _pad_vec(params["g1"], c_p), _pad_vec(params["b1"], c_p)
    g2, b2 = _pad_vec(params["g2"], c_p), _pad_vec(params["b2"], c_p)
    g3, b3 = _pad_vec(params["g3"], ce_p), _pad_vec(params["b3"], ce_p)

    # ---- stage 1: conv1 (1x1) batch statistics ------------------------------
    m1 = n * h * w
    tile1 = min(tile_m, _round_up(m1, SUBLANE))
    m1p = _round_up(m1, tile1)
    n_t1 = m1p // tile1
    x_flat = x.reshape(m1, cin_p)
    x1 = jnp.pad(x_flat, ((0, m1p - m1), (0, 0)))

    stats1 = pl.pallas_call(
        _conv1_stats_kernel,
        out_shape=jax.ShapeDtypeStruct((n_t1 * 8, c_p), jnp.float32),
        grid_spec=pltpu.PrefetchScalarGridSpec(
            num_scalar_prefetch=0, grid=(n_t1,),
            in_specs=[pl.BlockSpec((tile1, cin_p), lambda i: (i, 0)),
                      pl.BlockSpec((cin_p, c_p), lambda i: (0, 0))],
            out_specs=pl.BlockSpec((8, c_p), lambda i: (i, 0))),
        compiler_params=_cparams(),
    )(x1, w1)
    stats1 = stats1.reshape(n_t1, 8, c_p).sum(axis=0)
    sc1, sh1 = _bn_scale_shift(stats1[0], stats1[1], m1, g1, b1)

    # ---- stage 2: fused conv1 -> BN1/ReLU -> conv2 (3x3), per image ---------
    y2, stats2 = pl.pallas_call(
        functools.partial(_conv2_fused_kernel, stride=stride, hout=ho, wout=wo),
        out_shape=(jax.ShapeDtypeStruct((n, ho, wo, c_p), jnp.float32),
                   jax.ShapeDtypeStruct((n * 8, c_p), jnp.float32)),
        grid_spec=pltpu.PrefetchScalarGridSpec(
            num_scalar_prefetch=0, grid=(n,),
            in_specs=[pl.BlockSpec((1, h, w, cin_p), lambda i: (i, 0, 0, 0)),
                      pl.BlockSpec((cin_p, c_p), lambda i: (0, 0)),
                      pl.BlockSpec((1, c_p), lambda i: (0, 0)),
                      pl.BlockSpec((1, c_p), lambda i: (0, 0)),
                      pl.BlockSpec((3, 3, c_p, c_p), lambda i: (0, 0, 0, 0))],
            out_specs=[pl.BlockSpec((1, ho, wo, c_p), lambda i: (i, 0, 0, 0)),
                       pl.BlockSpec((8, c_p), lambda i: (i, 0))],
            scratch_shapes=[pltpu.VMEM((h + 2, w + 2, c_p), jnp.float32)]),
        compiler_params=_cparams(),
    )(x, w1, sc1, sh1, w2)
    stats2 = stats2.reshape(n, 8, c_p).sum(axis=0)
    sc2, sh2 = _bn_scale_shift(stats2[0], stats2[1], n * ho * wo, g2, b2)

    # ---- stage 3: conv3 (1x1) + shortcut, two tiled passes over M2 ----------
    m2 = n * ho * wo
    tile2 = min(tile_m, _round_up(m2, SUBLANE))
    m2p = _round_up(m2, tile2)
    n_t2 = m2p // tile2
    masked = m2p != m2
    y2_flat = jnp.pad(y2.reshape(m2, c_p), ((0, m2p - m2), (0, 0)))

    spec_y2 = pl.BlockSpec((tile2, c_p), lambda i: (i, 0))
    spec_vc = pl.BlockSpec((1, c_p), lambda i: (0, 0))
    spec_vce = pl.BlockSpec((1, ce_p), lambda i: (0, 0))
    spec_w3 = pl.BlockSpec((c_p, ce_p), lambda i: (0, 0))
    spec_stats = pl.BlockSpec((8, ce_p), lambda i: (i, 0))
    spec_out = pl.BlockSpec((tile2, ce_p), lambda i: (i, 0))
    stats_shape = jax.ShapeDtypeStruct((n_t2 * 8, ce_p), jnp.float32)
    out_shape = jax.ShapeDtypeStruct((m2p, ce_p), jnp.float32)

    if proj:
        ws = jnp.pad(params["ws"][:, :, 0, 0],
                     ((0, ce_p - ce), (0, cin_p - cin))).T.astype(jnp.bfloat16)
        gs, bs = _pad_vec(params["gs"], ce_p), _pad_vec(params["bs"], ce_p)
        # TODO(synk): fold the stride>1 shortcut subsample into the BlockSpec
        # index_map instead of this wrapper-side strided slice.
        xs = (x[:, ::stride, ::stride, :].reshape(m2, cin_p)
              if stride > 1 else x_flat)
        xs = jnp.pad(xs, ((0, m2p - m2), (0, 0)))
        spec_xs = pl.BlockSpec((tile2, cin_p), lambda i: (i, 0))
        spec_ws = pl.BlockSpec((cin_p, ce_p), lambda i: (0, 0))

        stats3 = pl.pallas_call(
            functools.partial(_conv3_stats_proj_kernel, tile=tile2, m_real=m2,
                              masked=masked),
            out_shape=stats_shape,
            grid_spec=pltpu.PrefetchScalarGridSpec(
                num_scalar_prefetch=0, grid=(n_t2,),
                in_specs=[spec_y2, spec_xs, spec_vc, spec_vc, spec_w3, spec_ws],
                out_specs=spec_stats),
            compiler_params=_cparams(),
        )(y2_flat, xs, sc2, sh2, w3, ws)
        stats3 = stats3.reshape(n_t2, 8, ce_p).sum(axis=0)
        sc3, sh3 = _bn_scale_shift(stats3[0], stats3[1], m2, g3, b3)
        scs, shs = _bn_scale_shift(stats3[2], stats3[3], m2, gs, bs)

        out = pl.pallas_call(
            _final_proj_kernel,
            out_shape=out_shape,
            grid_spec=pltpu.PrefetchScalarGridSpec(
                num_scalar_prefetch=0, grid=(n_t2,),
                in_specs=[spec_y2, spec_xs, spec_vc, spec_vc, spec_w3, spec_ws,
                          spec_vce, spec_vce, spec_vce, spec_vce],
                out_specs=spec_out),
            compiler_params=_cparams(),
        )(y2_flat, xs, sc2, sh2, w3, ws, sc3, sh3, scs, shs)
    else:
        # identity shortcut: stride == 1 and cin == ce, so x is directly addable
        xid = jnp.pad(x_flat, ((0, m2p - m2), (0, 0)))
        stats3 = pl.pallas_call(
            functools.partial(_conv3_stats_id_kernel, tile=tile2, m_real=m2,
                              masked=masked),
            out_shape=stats_shape,
            grid_spec=pltpu.PrefetchScalarGridSpec(
                num_scalar_prefetch=0, grid=(n_t2,),
                in_specs=[spec_y2, spec_vc, spec_vc, spec_w3],
                out_specs=spec_stats),
            compiler_params=_cparams(),
        )(y2_flat, sc2, sh2, w3)
        stats3 = stats3.reshape(n_t2, 8, ce_p).sum(axis=0)
        sc3, sh3 = _bn_scale_shift(stats3[0], stats3[1], m2, g3, b3)

        spec_xid = pl.BlockSpec((tile2, ce_p), lambda i: (i, 0))
        out = pl.pallas_call(
            _final_id_kernel,
            out_shape=out_shape,
            grid_spec=pltpu.PrefetchScalarGridSpec(
                num_scalar_prefetch=0, grid=(n_t2,),
                in_specs=[spec_y2, spec_xid, spec_vc, spec_vc, spec_w3,
                          spec_vce, spec_vce],
                out_specs=spec_out),
            compiler_params=_cparams(),
        )(y2_flat, xid, sc2, sh2, w3, sc3, sh3)

    out = out[:m2, :ce].reshape(n, ho, wo, ce)
    return jnp.transpose(out, (0, 3, 1, 2))                            # NCHW


# ---------------------------------------------------------------------------
# Deterministic parameter init (shapes follow the PyTorch module __init__)
# ---------------------------------------------------------------------------
def init_bottleneck_params(key, in_channels, out_channels, stride=1):
    c = out_channels
    ce = out_channels * EXPANSION
    ks = jax.random.split(key, 12)

    def conv_w(k, shape, fan_in):
        return jax.random.normal(k, shape, jnp.float32) / np.sqrt(fan_in)

    params = {
        "w1": conv_w(ks[0], (c, in_channels, 1, 1), in_channels),
        "g1": 1.0 + 0.1 * jax.random.normal(ks[1], (c,), jnp.float32),
        "b1": 0.1 * jax.random.normal(ks[2], (c,), jnp.float32),
        "w2": conv_w(ks[3], (c, c, 3, 3), 9 * c),
        "g2": 1.0 + 0.1 * jax.random.normal(ks[4], (c,), jnp.float32),
        "b2": 0.1 * jax.random.normal(ks[5], (c,), jnp.float32),
        "w3": conv_w(ks[6], (ce, c, 1, 1), c),
        "g3": 1.0 + 0.1 * jax.random.normal(ks[7], (ce,), jnp.float32),
        "b3": 0.1 * jax.random.normal(ks[8], (ce,), jnp.float32),
    }
    if stride != 1 or in_channels != ce:
        params.update({
            "ws": conv_w(ks[9], (ce, in_channels, 1, 1), in_channels),
            "gs": 1.0 + 0.1 * jax.random.normal(ks[10], (ce,), jnp.float32),
            "bs": 0.1 * jax.random.normal(ks[11], (ce,), jnp.float32),
        })
    return params


# ---------------------------------------------------------------------------
# Pure-JAX reference (lax.conv, bf16 MXU inputs to mirror the kernels)
# ---------------------------------------------------------------------------
def _ref_conv(x, w_oihw, stride, padding):
    w = jnp.transpose(w_oihw, (2, 3, 1, 0)).astype(jnp.bfloat16)  # OIHW -> HWIO
    return jax.lax.conv_general_dilated(
        x.astype(jnp.bfloat16), w, window_strides=(stride, stride),
        padding=padding, dimension_numbers=("NHWC", "HWIO", "NHWC"),
        preferred_element_type=jnp.float32)


def _ref_bn(y, gamma, beta):
    mean = jnp.mean(y, axis=(0, 1, 2), keepdims=True)
    var = jnp.mean(jnp.square(y - mean), axis=(0, 1, 2), keepdims=True)
    return (y - mean) * jax.lax.rsqrt(var + BN_EPS) * gamma + beta


def bottleneck_reference(x_nchw, params, *, stride=1):
    x = jnp.transpose(x_nchw, (0, 2, 3, 1)).astype(jnp.float32)
    y = jnp.maximum(_ref_bn(_ref_conv(x, params["w1"], 1, "VALID"),
                            params["g1"], params["b1"]), 0.0)
    y = jnp.maximum(_ref_bn(_ref_conv(y, params["w2"], stride, [(1, 1), (1, 1)]),
                            params["g2"], params["b2"]), 0.0)
    y = _ref_bn(_ref_conv(y, params["w3"], 1, "VALID"), params["g3"], params["b3"])
    if "ws" in params:
        s = _ref_bn(_ref_conv(x, params["ws"], stride, "VALID"),
                    params["gs"], params["bs"])
    else:
        s = x
    out = jnp.maximum(y + s, 0.0)
    return jnp.transpose(out, (0, 3, 1, 2))


if __name__ == "__main__":
    key = jax.random.PRNGKey(0)
    kx, kp = jax.random.split(key)
    N, Cin, H, W = 2, 4, 16, 16
    out_channels, stride = 4, 1
    x = jax.random.normal(kx, (N, Cin, H, W), jnp.float32)
    params = init_bottleneck_params(kp, Cin, out_channels, stride)

    # tile_m=128 exercises a real multi-step (4-tile) pipelined grid at toy size;
    # at production sizes use the default 512(-1024) row tiles.
    fwd = jax.jit(functools.partial(bottleneck_forward, stride=stride, tile_m=128))
    out = jax.block_until_ready(fwd(x, params))

    ho = (H - 1) // stride + 1
    wo = (W - 1) // stride + 1
    assert out.shape == (N, out_channels * EXPANSION, ho, wo), out.shape

    ref = bottleneck_reference(x, params, stride=stride)
    np.testing.assert_allclose(np.asarray(out), np.asarray(ref),
                               rtol=5e-2, atol=5e-2)
    # TODO(synk): BatchNorm running-mean/var buffer updates (training-mode side
    # effect) are not modeled; they do not affect the forward output.
    print("KERNEL_OK")
</pallas_src>

<mosaic_0001>
module attributes {stable_mosaic.version = 11 : i64} {
  func.func @_conv1_stats_kernel(%arg0: i32, %arg1: memref<128x128xf32, #tpu.memory_space<vmem>>, %arg2: memref<128x128xbf16, #tpu.memory_space<vmem>>, %arg3: memref<8x128xf32, #tpu.memory_space<vmem>>) attributes {dimension_semantics = [#tpu.dimension_semantics<parallel>], iteration_bounds = array<i64: 4>, scalar_prefetch = 0 : i64, scratch_operands = 0 : i64, tpu.core_type = #tpu.core_type<tc>, window_params = [{transform_indices = @transform_0, window_bounds = array<i64: 128, 128>}, {pipeline_mode = #tpu.pipeline_mode<synchronous>, transform_indices = @transform_1, window_bounds = array<i64: 128, 128>}, {transform_indices = @transform_2, window_bounds = array<i64: 8, 128>}]} {
    %c0 = arith.constant 0 : index
    %c0_0 = arith.constant 0 : index
    %0 = vector.load %arg1[%c0, %c0_0] : memref<128x128xf32, #tpu.memory_space<vmem>>, vector<128x128xf32>
    %1 = arith.truncf %0 : vector<128x128xf32> to vector<128x128xbf16>
    %c0_1 = arith.constant 0 : index
    %c0_2 = arith.constant 0 : index
    %2 = vector.load %arg2[%c0_1, %c0_2] : memref<128x128xbf16, #tpu.memory_space<vmem>>, vector<128x128xbf16>
    %cst = arith.constant dense<0.000000e+00> : vector<128x128xf32>
    %3 = tpu.matmul %1, %2, %cst {dimension_numbers = #tpu.dot_dimension_numbers<[1], [0], [0], [1], [0, 0, 1, 1], [], []>} : vector<128x128xbf16>, vector<128x128xbf16>, vector<128x128xf32> -> vector<128x128xf32>
    %cst_3 = arith.constant dense<0.000000e+00> : vector<128xf32>
    %4 = vector.multi_reduction <add>, %3, %cst_3 [0] : vector<128x128xf32> to vector<128xf32>
    %5 = vector.shape_cast %4 : vector<128xf32> to vector<1x128xf32>
    %6 = arith.mulf %3, %3 : vector<128x128xf32>
    %cst_4 = arith.constant dense<0.000000e+00> : vector<128xf32>
    %7 = vector.multi_reduction <add>, %6, %cst_4 [0] : vector<128x128xf32> to vector<128xf32>
    %8 = vector.shape_cast %7 : vector<128xf32> to vector<1x128xf32>
    %cst_5 = arith.constant 0.000000e+00 : f32
    %9 = vector.broadcast %cst_5 : f32 to vector<6x128xf32>
    %10 = tpu.concatenate %5, %8, %9 in 0 : vector<1x128xf32>, vector<1x128xf32>, vector<6x128xf32> -> vector<8x128xf32>
    %c0_6 = arith.constant 0 : index
    %c0_7 = arith.constant 0 : index
    %11 = vector.load %arg3[%c0_6, %c0_7] : memref<8x128xf32, #tpu.memory_space<vmem>>, vector<8x128xf32>
    tpu.vector_store %arg3[%c0_6, %c0_7], %10 {strides = array<i32>} : memref<8x128xf32, #tpu.memory_space<vmem>>, vector<8x128xf32>,
    return
  }
  func.func @transform_0(%arg0: i32) -> (i32, i32) {
    %c0_i32 = arith.constant 0 : i32
    %c0_i32_0 = arith.constant 0 : i32
    return %arg0, %c0_i32 : i32, i32
  }
  func.func @transform_1(%arg0: i32) -> (i32, i32) {
    %c0_i32 = arith.constant 0 : i32
    %c0_i32_0 = arith.constant 0 : i32
    %c0_i32_1 = arith.constant 0 : i32
    return %c0_i32, %c0_i32_0 : i32, i32
  }
  func.func @transform_2(%arg0: i32) -> (i32, i32) {
    %c0_i32 = arith.constant 0 : i32
    %c0_i32_0 = arith.constant 0 : i32
    return %arg0, %c0_i32 : i32, i32
  }
}

module attributes {stable_mosaic.version = 11 : i64} {
  func.func @_conv2_fused_kernel(%arg0: i32, %arg1: memref<1x16x16x128xf32, #tpu.memory_space<vmem>>, %arg2: memref<128x128xbf16, #tpu.memory_space<vmem>>, %arg3: memref<1x128xf32, #tpu.memory_space<vmem>>, %arg4: memref<1x128xf32, #tpu.memory_space<vmem>>, %arg5: memref<3x3x128x128xbf16, #tpu.memory_space<vmem>>, %arg6: memref<1x16x16x128xf32, #tpu.memory_space<vmem>>, %arg7: memref<8x128xf32, #tpu.memory_space<vmem>>, %arg8: memref<18x18x128xf32, #tpu.memory_space<vmem>>) attributes {dimension_semantics = [#tpu.dimension_semantics<parallel>], iteration_bounds = array<i64: 2>, scalar_prefetch = 0 : i64, scratch_operands = 1 : i64, tpu.core_type = #tpu.core_type<tc>, window_params = [{transform_indices = @transform_0, window_bounds = array<i64: 1, 16, 16, 128>}, {pipeline_mode = #tpu.pipeline_mode<synchronous>, transform_indices = @transform_1, window_bounds = array<i64: 128, 128>}, {pipeline_mode = #tpu.pipeline_mode<synchronous>, transform_indices = @transform_2, window_bounds = array<i64: 1, 128>}, {pipeline_mode = #tpu.pipeline_mode<synchronous>, transform_indices = @transform_3, window_bounds = array<i64: 1, 128>}, {pipeline_mode = #tpu.pipeline_mode<synchronous>, transform_indices = @transform_4, window_bounds = array<i64: 3, 3, 128, 128>}, {transform_indices = @transform_5, window_bounds = array<i64: 1, 16, 16, 128>}, {transform_indices = @transform_6, window_bounds = array<i64: 8, 128>}]} {
    %c0 = arith.constant 0 : index
    %c0_0 = arith.constant 0 : index
    %c0_1 = arith.constant 0 : index
    %c0_2 = arith.constant 0 : index
    %0 = vector.load %arg1[%c0, %c0_0, %c0_1, %c0_2] : memref<1x16x16x128xf32, #tpu.memory_space<vmem>>, vector<1x16x16x128xf32>
    %1 = vector.shape_cast %0 : vector<1x16x16x128xf32> to vector<16x16x128xf32>
    %2 = vector.shape_cast %1 : vector<16x16x128xf32> to vector<256x128xf32>
    %3 = arith.truncf %2 : vector<256x128xf32> to vector<256x128xbf16>
    %c0_3 = arith.constant 0 : index
    %c0_4 = arith.constant 0 : index
    %4 = vector.load %arg2[%c0_3, %c0_4] : memref<128x128xbf16, #tpu.memory_space<vmem>>, vector<128x128xbf16>
    %cst = arith.constant dense<0.000000e+00> : vector<256x128xf32>
    %5 = tpu.matmul %3, %4, %cst {dimension_numbers = #tpu.dot_dimension_numbers<[1], [0], [0], [1], [0, 0, 1, 1], [], []>} : vector<256x128xbf16>, vector<128x128xbf16>, vector<256x128xf32> -> vector<256x128xf32>
    %c0_5 = arith.constant 0 : index
    %c0_6 = arith.constant 0 : index
    %6 = vector.load %arg3[%c0_5, %c0_6] : memref<1x128xf32, #tpu.memory_space<vmem>>, vector<1x128xf32>
    %7 = vector.broadcast %6 : vector<1x128xf32> to vector<256x128xf32>
    %8 = arith.mulf %5, %7 : vector<256x128xf32>
    %c0_7 = arith.constant 0 : index
    %c0_8 = arith.constant 0 : index
    %9 = vector.load %arg4[%c0_7, %c0_8] : memref<1x128xf32, #tpu.memory_space<vmem>>, vector<1x128xf32>
    %10 = vector.broadcast %9 : vector<1x128xf32> to vector<256x128xf32>
    %11 = arith.addf %8, %10 : vector<256x128xf32>
    %cst_9 = arith.constant 0.000000e+00 : f32
    %12 = vector.broadcast %cst_9 : f32 to vector<256x128xf32>
    %13 = arith.maximumf %11, %12 : vector<256x128xf32>
    %cst_10 = arith.constant 0.000000e+00 : f32
    %14 = vector.broadcast %cst_10 : f32 to vector<18x18x128xf32>
    %c0_11 = arith.constant 0 : index
    %c0_12 = arith.constant 0 : index
    %c0_13 = arith.constant 0 : index
    %15 = vector.load %arg8[%c0_11, %c0_12, %c0_13] : memref<18x18x128xf32, #tpu.memory_space<vmem>>, vector<18x18x128xf32>
    tpu.vector_store %arg8[%c0_11, %c0_12, %c0_13], %14 {strides = array<i32>} : memref<18x18x128xf32, #tpu.memory_space<vmem>>, vector<18x18x128xf32>,
    %16 = vector.shape_cast %13 : vector<256x128xf32> to vector<16x16x128xf32>
    %c1 = arith.constant 1 : index
    %c1_14 = arith.constant 1 : index
    %c0_15 = arith.constant 0 : index
    %17 = vector.load %arg8[%c1, %c1_14, %c0_15] : memref<18x18x128xf32, #tpu.memory_space<vmem>>, vector<16x16x128xf32>
    tpu.vector_store %arg8[%c1, %c1_14, %c0_15], %16 {strides = array<i32>} : memref<18x18x128xf32, #tpu.memory_space<vmem>>, vector<16x16x128xf32>,
    %cst_16 = arith.constant 0.000000e+00 : f32
    %18 = vector.broadcast %cst_16 : f32 to vector<256x128xf32>
    %c0_17 = arith.constant 0 : index
    %c0_18 = arith.constant 0 : index
    %c0_19 = arith.constant 0 : index
    %19 = vector.load %arg8[%c0_17, %c0_18, %c0_19] : memref<18x18x128xf32, #tpu.memory_space<vmem>>, vector<16x16x128xf32>
    %20 = vector.shape_cast %19 : vector<16x16x128xf32> to vector<256x128xf32>
    %21 = arith.truncf %20 : vector<256x128xf32> to vector<256x128xbf16>
    %c0_20 = arith.constant 0 : index
    %c0_21 = arith.constant 0 : index
    %c0_22 = arith.constant 0 : index
    %c0_23 = arith.constant 0 : index
    %22 = vector.load %arg5[%c0_20, %c0_21, %c0_22, %c0_23] : memref<3x3x128x128xbf16, #tpu.memory_space<vmem>>, vector<1x1x128x128xbf16>
    %23 = vector.shape_cast %22 : vector<1x1x128x128xbf16> to vector<128x128xbf16>
    %cst_24 = arith.constant dense<0.000000e+00> : vector<256x128xf32>
    %24 = tpu.matmul %21, %23, %cst_24 {dimension_numbers = #tpu.dot_dimension_numbers<[1], [0], [0], [1], [0, 0, 1, 1], [], []>} : vector<256x128xbf16>, vector<128x128xbf16>, vector<256x128xf32> -> vector<256x128xf32>
    %25 = arith.addf %18, %24 : vector<256x128xf32>
    %c0_25 = arith.constant 0 : index
    %c1_26 = arith.constant 1 : index
    %c0_27 = arith.constant 0 : index
    %26 = vector.load %arg8[%c0_25, %c1_26, %c0_27] : memref<18x18x128xf32, #tpu.memory_space<vmem>>, vector<16x16x128xf32>
    %27 = vector.shape_cast %26 : vector<16x16x128xf32> to vector<256x128xf32>
    %28 = arith.truncf %27 : vector<256x128xf32> to vector<256x128xbf16>
    %c0_28 = arith.constant 0 : index
    %c1_29 = arith.constant 1 : index
    %c0_30 = arith.constant 0 : index
    %c0_31 = arith.constant 0 : index
    %29 = vector.load %arg5[%c0_28, %c1_29, %c0_30, %c0_31] : memref<3x3x128x128xbf16, #tpu.memory_space<vmem>>, vector<1x1x128x128xbf16>
    %30 = vector.shape_cast %29 : vector<1x1x128x128xbf16> to vector<128x128xbf16>
    %cst_32 = arith.constant dense<0.000000e+00> : vector<256x128xf32>
    %31 = tpu.matmul %28, %30, %cst_32 {dimension_numbers = #tpu.dot_dimension_numbers<[1], [0], [0], [1], [0, 0, 1, 1], [], []>} : vector<256x128xbf16>, vector<128x128xbf16>, vector<256x128xf32> -> vector<256x128xf32>
    %32 = arith.addf %25, %31 : vector<256x128xf32>
    %c0_33 = arith.constant 0 : index
    %c2 = arith.constant 2 : index
    %c0_34 = arith.constant 0 : index
    %33 = vector.load %arg8[%c0_33, %c2, %c0_34] : memref<18x18x128xf32, #tpu.memory_space<vmem>>, vector<16x16x128xf32>
    %34 = vector.shape_cast %33 : vector<16x16x128xf32> to vector<256x128xf32>
    %35 = arith.truncf %34 : vector<256x128xf32> to vector<256x128xbf16>
    %c0_35 = arith.constant 0 : index
    %c2_36 = arith.constant 2 : index
    %c0_37 = arith.constant 0 : index
    %c0_38 = arith.constant 0 : index
    %36 = vector.load %arg5[%c0_35, %c2_36, %c0_37, %c0_38] : memref<3x3x128x128xbf16, #tpu.memory_space<vmem>>, vector<1x1x128x128xbf16>
    %37 = vector.shape_cast %36 : vector<1x1x128x128xbf16> to vector<128x128xbf16>
    %cst_39 = arith.constant dense<0.000000e+00> : vector<256x128xf32>
    %38 = tpu.matmul %35, %37, %cst_39 {dimension_numbers = #tpu.dot_dimension_numbers<[1], [0], [0], [1], [0, 0, 1, 1], [], []>} : vector<256x128xbf16>, vector<128x128xbf16>, vector<256x128xf32> -> vector<256x128xf32>
    %39 = arith.addf %32, %38 : vector<256x128xf32>
    %c1_40 = arith.constant 1 : index
    %c0_41 = arith.constant 0 : index
    %c0_42 = arith.constant 0 : index
    %40 = vector.load %arg8[%c1_40, %c0_41, %c0_42] : memref<18x18x128xf32, #tpu.memory_space<vmem>>, vector<16x16x128xf32>
    %41 = vector.shape_cast %40 : vector<16x16x128xf32> to vector<256x128xf32>
    %42 = arith.truncf %41 : vector<256x128xf32> to vector<256x128xbf16>
    %c1_43 = arith.constant 1 : index
    %c0_44 = arith.constant 0 : index
    %c0_45 = arith.constant 0 : index
    %c0_46 = arith.constant 0 : index
    %43 = vector.load %arg5[%c1_43, %c0_44, %c0_45, %c0_46] : memref<3x3x128x128xbf16, #tpu.memory_space<vmem>>, vector<1x1x128x128xbf16>
    %44 = vector.shape_cast %43 : vector<1x1x128x128xbf16> to vector<128x128xbf16>
    %cst_47 = arith.constant dense<0.000000e+00> : vector<256x128xf32>
    %45 = tpu.matmul %42, %44, %cst_47 {dimension_numbers = #tpu.dot_dimension_numbers<[1], [0], [0], [1], [0, 0, 1, 1], [], []>} : vector<256x128xbf16>, vector<128x128xbf16>, vector<256x128xf32> -> vector<256x128xf32>
    %46 = arith.addf %39, %45 : vector<256x128xf32>
    %c1_48 = arith.constant 1 : index
    %c1_49 = arith.constant 1 : index
    %c0_50 = arith.constant 0 : index
    %47 = vector.load %arg8[%c1_48, %c1_49, %c0_50] : memref<18x18x128xf32, #tpu.memory_space<vmem>>, vector<16x16x128xf32>
    %48 = vector.shape_cast %47 : vector<16x16x128xf32> to vector<256x128xf32>
    %49 = arith.truncf %48 : vector<256x128xf32> to vector<256x128xbf16>
    %c1_51 = arith.constant 1 : index
    %c1_52 = arith.constant 1 : index
    %c0_53 = arith.constant 0 : index
    %c0_54 = arith.constant 0 : index
    %50 = vector.load %arg5[%c1_51, %c1_52, %c0_53, %c0_54] : memref<3x3x128x128xbf16, #tpu.memory_space<vmem>>, vector<1x1x128x128xbf16>
    %51 = vector.shape_cast %50 : vector<1x1x128x128xbf16> to vector<128x128xbf16>
    %cst_55 = arith.constant dense<0.000000e+00> : vector<256x128xf32>
    %52 = tpu.matmul %49, %51, %cst_55 {dimension_numbers = #tpu.dot_dimension_numbers<[1], [0], [0], [1], [0, 0, 1, 1], [], []>} : vector<256x128xbf16>, vector<128x128xbf16>, vector<256x128xf32> -> vector<256x128xf32>
    %53 = arith.addf %46, %52 : vector<256x128xf32>
    %c1_56 = arith.constant 1 : index
    %c2_57 = arith.constant 2 : index
    %c0_58 = arith.constant 0 : index
    %54 = vector.load %arg8[%c1_56, %c2_57, %c0_58] : memref<18x18x128xf32, #tpu.memory_space<vmem>>, vector<16x16x128xf32>
    %55 = vector.shape_cast %54 : vector<16x16x128xf32> to vector<256x128xf32>
    %56 = arith.truncf %55 : vector<256x128xf32> to vector<256x128xbf16>
    %c1_59 = arith.constant 1 : index
    %c2_60 = arith.constant 2 : index
    %c0_61 = arith.constant 0 : index
    %c0_62 = arith.constant 0 : index
    %57 = vector.load %arg5[%c1_59, %c2_60, %c0_61, %c0_62] : memref<3x3x128x128xbf16, #tpu.memory_space<vmem>>, vector<1x1x128x128xbf16>
    %58 = vector.shape_cast %57 : vector<1x1x128x128xbf16> to vector<128x128xbf16>
    %cst_63 = arith.constant dense<0.000000e+00> : vector<256x128xf32>
    %59 = tpu.matmul %56, %58, %cst_63 {dimension_numbers = #tpu.dot_dimension_numbers<[1], [0], [0], [1], [0, 0, 1, 1], [], []>} : vector<256x128xbf16>, vector<128x128xbf16>, vector<256x128xf32> -> vector<256x128xf32>
    %60 = arith.addf %53, %59 : vector<256x128xf32>
    %c2_64 = arith.constant 2 : index
    %c0_65 = arith.constant 0 : index
    %c0_66 = arith.constant 0 : index
    %61 = vector.load %arg8[%c2_64, %c0_65, %c0_66] : memref<18x18x128xf32, #tpu.memory_space<vmem>>, vector<16x16x128xf32>
    %62 = vector.shape_cast %61 : vector<16x16x128xf32> to vector<256x128xf32>
    %63 = arith.truncf %62 : vector<256x128xf32> to vector<256x128xbf16>
    %c2_67 = arith.constant 2 : index
    %c0_68 = arith.constant 0 : index
    %c0_69 = arith.constant 0 : index
    %c0_70 = arith.constant 0 : index
    %64 = vector.load %arg5[%c2_67, %c0_68, %c0_69, %c0_70] : memref<3x3x128x128xbf16, #tpu.memory_space<vmem>>, vector<1x1x128x128xbf16>
    %65 = vector.shape_cast %64 : vector<1x1x128x128xbf16> to vector<128x128xbf16>
    %cst_71 = arith.constant dense<0.000000e+00> : vector<256x128xf32>
    %66 = tpu.matmul %63, %65, %cst_71 {dimension_numbers = #tpu.dot_dimension_numbers<[1], [0], [0], [1], [0, 0, 1, 1], [], []>} : vector<256x128xbf16>, vector<128x128xbf16>, vector<256x128xf32> -> vector<256x128xf32>
    %67 = arith.addf %60, %66 : vector<256x128xf32>
    %c2_72 = arith.constant 2 : index
    %c1_73 = arith.constant 1 : index
    %c0_74 = arith.constant 0 : index
    %68 = vector.load %arg8[%c2_72, %c1_73, %c0_74] : memref<18x18x128xf32, #tpu.memory_space<vmem>>, vector<16x16x128xf32>
    %69 = vector.shape_cast %68 : vector<16x16x128xf32> to vector<256x128xf32>
    %70 = arith.truncf %69 : vector<256x128xf32> to vector<256x128xbf16>
    %c2_75 = arith.constant 2 : index
    %c1_76 = arith.constant 1 : index
    %c0_77 = arith.constant 0 : index
    %c0_78 = arith.constant 0 : index
    %71 = vector.load %arg5[%c2_75, %c1_76, %c0_77, %c0_78] : memref<3x3x128x128xbf16, #tpu.memory_space<vmem>>, vector<1x1x128x128xbf16>
    %72 = vector.shape_cast %71 : vector<1x1x128x128xbf16> to vector<128x128xbf16>
    %cst_79 = arith.constant dense<0.000000e+00> : vector<256x128xf32>
    %73 = tpu.matmul %70, %72, %cst_79 {dimension_numbers = #tpu.dot_dimension_numbers<[1], [0], [0], [1], [0, 0, 1, 1], [], []>} : vector<256x128xbf16>, vector<128x128xbf16>, vector<256x128xf32> -> vector<256x128xf32>
    %74 = arith.addf %67, %73 : vector<256x128xf32>
    %c2_80 = arith.constant 2 : index
    %c2_81 = arith.constant 2 : index
    %c0_82 = arith.constant 0 : index
    %75 = vector.load %arg8[%c2_80, %c2_81, %c0_82] : memref<18x18x128xf32, #tpu.memory_space<vmem>>, vector<16x16x128xf32>
    %76 = vector.shape_cast %75 : vector<16x16x128xf32> to vector<256x128xf32>
    %77 = arith.truncf %76 : vector<256x128xf32> to vector<256x128xbf16>
    %c2_83 = arith.constant 2 : index
    %c2_84 = arith.constant 2 : index
    %c0_85 = arith.constant 0 : index
    %c0_86 = arith.constant 0 : index
    %78 = vector.load %arg5[%c2_83, %c2_84, %c0_85, %c0_86] : memref<3x3x128x128xbf16, #tpu.memory_space<vmem>>, vector<1x1x128x128xbf16>
    %79 = vector.shape_cast %78 : vector<1x1x128x128xbf16> to vector<128x128xbf16>
    %cst_87 = arith.constant dense<0.000000e+00> : vector<256x128xf32>
    %80 = tpu.matmul %77, %79, %cst_87 {dimension_numbers = #tpu.dot_dimension_numbers<[1], [0], [0], [1], [0, 0, 1, 1], [], []>} : vector<256x128xbf16>, vector<128x128xbf16>, vector<256x128xf32> -> vector<256x128xf32>
    %81 = arith.addf %74, %80 : vector<256x128xf32>
    %82 = vector.shape_cast %81 : vector<256x128xf32> to vector<16x16x128xf32>
    %c0_88 = arith.constant 0 : index
    %c0_89 = arith.constant 0 : index
    %c0_90 = arith.constant 0 : index
    %c0_91 = arith.constant 0 : index
    %83 = vector.load %arg6[%c0_88, %c0_89, %c0_90, %c0_91] : memref<1x16x16x128xf32, #tpu.memory_space<vmem>>, vector<1x16x16x128xf32>
    %84 = vector.shape_cast %83 : vector<1x16x16x128xf32> to vector<16x16x128xf32>
    %85 = vector.shape_cast %82 : vector<16x16x128xf32> to vector<1x16x16x128xf32>
    tpu.vector_store %arg6[%c0_88, %c0_89, %c0_90, %c0_91], %85 {strides = array<i32>} : memref<1x16x16x128xf32, #tpu.memory_space<vmem>>, vector<1x16x16x128xf32>,
    %cst_92 = arith.constant dense<0.000000e+00> : vector<128xf32>
    %86 = vector.multi_reduction <add>, %81, %cst_92 [0] : vector<256x128xf32> to vector<128xf32>
    %87 = vector.shape_cast %86 : vector<128xf32> to vector<1x128xf32>
    %88 = arith.mulf %81, %81 : vector<256x128xf32>
    %cst_93 = arith.constant dense<0.000000e+00> : vector<128xf32>
    %89 = vector.multi_reduction <add>, %88, %cst_93 [0] : vector<256x128xf32> to vector<128xf32>
    %90 = vector.shape_cast %89 : vector<128xf32> to vector<1x128xf32>
    %cst_94 = arith.constant 0.000000e+00 : f32
    %91 = vector.broadcast %cst_94 : f32 to vector<6x128xf32>
    %92 = tpu.concatenate %87, %90, %91 in 0 : vector<1x128xf32>, vector<1x128xf32>, vector<6x128xf32> -> vector<8x128xf32>
    %c0_95 = arith.constant 0 : index
    %c0_96 = arith.constant 0 : index
    %93 = vector.load %arg7[%c0_95, %c0_96] : memref<8x128xf32, #tpu.memory_space<vmem>>, vector<8x128xf32>
    tpu.vector_store %arg7[%c0_95, %c0_96], %92 {strides = array<i32>} : memref<8x128xf32, #tpu.memory_space<vmem>>, vector<8x128xf32>,
    return
  }
  func.func @transform_0(%arg0: i32) -> (i32, i32, i32, i32) {
    %c0_i32 = arith.constant 0 : i32
    %c0_i32_0 = arith.constant 0 : i32
    %c0_i32_1 = arith.constant 0 : i32
    %c0_i32_2 = arith.constant 0 : i32
    return %arg0, %c0_i32, %c0_i32_0, %c0_i32_1 : i32, i32, i32, i32
  }
  func.func @transform_1(%arg0: i32) -> (i32, i32) {
    %c0_i32 = arith.constant 0 : i32
    %c0_i32_0 = arith.constant 0 : i32
    %c0_i32_1 = arith.constant 0 : i32
    return %c0_i32, %c0_i32_0 : i32, i32
  }
  func.func @transform_2(%arg0: i32) -> (i32, i32) {
    %c0_i32 = arith.constant 0 : i32
    %c0_i32_0 = arith.constant 0 : i32
    %c0_i32_1 = arith.constant 0 : i32
    return %c0_i32, %c0_i32_0 : i32, i32
  }
  func.func @transform_3(%arg0: i32) -> (i32, i32) {
    %c0_i32 = arith.constant 0 : i32
    %c0_i32_0 = arith.constant 0 : i32
    %c0_i32_1 = arith.constant 0 : i32
    return %c0_i32, %c0_i32_0 : i32, i32
  }
  func.func @transform_4(%arg0: i32) -> (i32, i32, i32, i32) {
    %c0_i32 = arith.constant 0 : i32
    %c0_i32_0 = arith.constant 0 : i32
    %c0_i32_1 = arith.constant 0 : i32
    %c0_i32_2 = arith.constant 0 : i32
    %c0_i32_3 = arith.constant 0 : i32
    return %c0_i32, %c0_i32_0, %c0_i32_1, %c0_i32_2 : i32, i32, i32, i32
  }
  func.func @transform_5(%arg0: i32) -> (i32, i32, i32, i32) {
    %c0_i32 = arith.constant 0 : i32
    %c0_i32_0 = arith.constant 0 : i32
    %c0_i32_1 = arith.constant 0 : i32
    %c0_i32_2 = arith.constant 0 : i32
    return %arg0, %c0_i32, %c0_i32_0, %c0_i32_1 : i32, i32, i32, i32
  }
  func.func @transform_6(%arg0: i32) -> (i32, i32) {
    %c0_i32 = arith.constant 0 : i32
    %c0_i32_0 = arith.constant 0 : i32
    return %arg0, %c0_i32 : i32, i32
  }
}

module attributes {stable_mosaic.version = 11 : i64} {
  func.func @_conv3_stats_proj_kernel(%arg0: i32, %arg1: memref<128x128xf32, #tpu.memory_space<vmem>>, %arg2: memref<128x128xf32, #tpu.memory_space<vmem>>, %arg3: memref<1x128xf32, #tpu.memory_space<vmem>>, %arg4: memref<1x128xf32, #tpu.memory_space<vmem>>, %arg5: memref<128x128xbf16, #tpu.memory_space<vmem>>, %arg6: memref<128x128xbf16, #tpu.memory_space<vmem>>, %arg7: memref<8x128xf32, #tpu.memory_space<vmem>>) attributes {dimension_semantics = [#tpu.dimension_semantics<parallel>], iteration_bounds = array<i64: 4>, scalar_prefetch = 0 : i64, scratch_operands = 0 : i64, tpu.core_type = #tpu.core_type<tc>, window_params = [{transform_indices = @transform_0, window_bounds = array<i64: 128, 128>}, {transform_indices = @transform_1, window_bounds = array<i64: 128, 128>}, {pipeline_mode = #tpu.pipeline_mode<synchronous>, transform_indices = @transform_2, window_bounds = array<i64: 1, 128>}, {pipeline_mode = #tpu.pipeline_mode<synchronous>, transform_indices = @transform_3, window_bounds = array<i64: 1, 128>}, {pipeline_mode = #tpu.pipeline_mode<synchronous>, transform_indices = @transform_4, window_bounds = array<i64: 128, 128>}, {pipeline_mode = #tpu.pipeline_mode<synchronous>, transform_indices = @transform_5, window_bounds = array<i64: 128, 128>}, {transform_indices = @transform_6, window_bounds = array<i64: 8, 128>}]} {
    %c0 = arith.constant 0 : index
    %c0_0 = arith.constant 0 : index
    %0 = vector.load %arg1[%c0, %c0_0] : memref<128x128xf32, #tpu.memory_space<vmem>>, vector<128x128xf32>
    %c0_1 = arith.constant 0 : index
    %c0_2 = arith.constant 0 : index
    %1 = vector.load %arg3[%c0_1, %c0_2] : memref<1x128xf32, #tpu.memory_space<vmem>>, vector<1x128xf32>
    %2 = vector.broadcast %1 : vector<1x128xf32> to vector<128x128xf32>
    %3 = arith.mulf %0, %2 : vector<128x128xf32>
    %c0_3 = arith.constant 0 : index
    %c0_4 = arith.constant 0 : index
    %4 = vector.load %arg4[%c0_3, %c0_4] : memref<1x128xf32, #tpu.memory_space<vmem>>, vector<1x128xf32>
    %5 = vector.broadcast %4 : vector<1x128xf32> to vector<128x128xf32>
    %6 = arith.addf %3, %5 : vector<128x128xf32>
    %cst = arith.constant 0.000000e+00 : f32
    %7 = vector.broadcast %cst : f32 to vector<128x128xf32>
    %8 = arith.maximumf %6, %7 : vector<128x128xf32>
    %9 = arith.truncf %8 : vector<128x128xf32> to vector<128x128xbf16>
    %c0_5 = arith.constant 0 : index
    %c0_6 = arith.constant 0 : index
    %10 = vector.load %arg5[%c0_5, %c0_6] : memref<128x128xbf16, #tpu.memory_space<vmem>>, vector<128x128xbf16>
    %cst_7 = arith.constant dense<0.000000e+00> : vector<128x128xf32>
    %11 = tpu.matmul %9, %10, %cst_7 {dimension_numbers = #tpu.dot_dimension_numbers<[1], [0], [0], [1], [0, 0, 1, 1], [], []>} : vector<128x128xbf16>, vector<128x128xbf16>, vector<128x128xf32> -> vector<128x128xf32>
    %c0_8 = arith.constant 0 : index
    %c0_9 = arith.constant 0 : index
    %12 = vector.load %arg2[%c0_8, %c0_9] : memref<128x128xf32, #tpu.memory_space<vmem>>, vector<128x128xf32>
    %13 = arith.truncf %12 : vector<128x128xf32> to vector<128x128xbf16>
    %c0_10 = arith.constant 0 : index
    %c0_11 = arith.constant 0 : index
    %14 = vector.load %arg6[%c0_10, %c0_11] : memref<128x128xbf16, #tpu.memory_space<vmem>>, vector<128x128xbf16>
    %cst_12 = arith.constant dense<0.000000e+00> : vector<128x128xf32>
    %15 = tpu.matmul %13, %14, %cst_12 {dimension_numbers = #tpu.dot_dimension_numbers<[1], [0], [0], [1], [0, 0, 1, 1], [], []>} : vector<128x128xbf16>, vector<128x128xbf16>, vector<128x128xf32> -> vector<128x128xf32>
    %cst_13 = arith.constant dense<0.000000e+00> : vector<128xf32>
    %16 = vector.multi_reduction <add>, %11, %cst_13 [0] : vector<128x128xf32> to vector<128xf32>
    %17 = vector.shape_cast %16 : vector<128xf32> to vector<1x128xf32>
    %18 = arith.mulf %11, %11 : vector<128x128xf32>
    %cst_14 = arith.constant dense<0.000000e+00> : vector<128xf32>
    %19 = vector.multi_reduction <add>, %18, %cst_14 [0] : vector<128x128xf32> to vector<128xf32>
    %20 = vector.shape_cast %19 : vector<128xf32> to vector<1x128xf32>
    %cst_15 = arith.constant dense<0.000000e+00> : vector<128xf32>
    %21 = vector.multi_reduction <add>, %15, %cst_15 [0] : vector<128x128xf32> to vector<128xf32>
    %22 = vector.shape_cast %21 : vector<128xf32> to vector<1x128xf32>
    %23 = arith.mulf %15, %15 : vector<128x128xf32>
    %cst_16 = arith.constant dense<0.000000e+00> : vector<128xf32>
    %24 = vector.multi_reduction <add>, %23, %cst_16 [0] : vector<128x128xf32> to vector<128xf32>
    %25 = vector.shape_cast %24 : vector<128xf32> to vector<1x128xf32>
    %cst_17 = arith.constant 0.000000e+00 : f32
    %26 = vector.broadcast %cst_17 : f32 to vector<4x128xf32>
    %27 = tpu.concatenate %17, %20, %22, %25, %26 in 0 : vector<1x128xf32>, vector<1x128xf32>, vector<1x128xf32>, vector<1x128xf32>, vector<4x128xf32> -> vector<8x128xf32>
    %c0_18 = arith.constant 0 : index
    %c0_19 = arith.constant 0 : index
    %28 = vector.load %arg7[%c0_18, %c0_19] : memref<8x128xf32, #tpu.memory_space<vmem>>, vector<8x128xf32>
    tpu.vector_store %arg7[%c0_18, %c0_19], %27 {strides = array<i32>} : memref<8x128xf32, #tpu.memory_space<vmem>>, vector<8x128xf32>,
    return
  }
  func.func @transform_0(%arg0: i32) -> (i32, i32) {
    %c0_i32 = arith.constant 0 : i32
    %c0_i32_0 = arith.constant 0 : i32
    return %arg0, %c0_i32 : i32, i32
  }
  func.func @transform_1(%arg0: i32) -> (i32, i32) {
    %c0_i32 = arith.constant 0 : i32
    %c0_i32_0 = arith.constant 0 : i32
    return %arg0, %c0_i32 : i32, i32
  }
  func.func @transform_2(%arg0: i32) -> (i32, i32) {
    %c0_i32 = arith.constant 0 : i32
    %c0_i32_0 = arith.constant 0 : i32
    %c0_i32_1 = arith.constant 0 : i32
    return %c0_i32, %c0_i32_0 : i32, i32
  }
  func.func @transform_3(%arg0: i32) -> (i32, i32) {
    %c0_i32 = arith.constant 0 : i32
    %c0_i32_0 = arith.constant 0 : i32
    %c0_i32_1 = arith.constant 0 : i32
    return %c0_i32, %c0_i32_0 : i32, i32
  }
  func.func @transform_4(%arg0: i32) -> (i32, i32) {
    %c0_i32 = arith.constant 0 : i32
    %c0_i32_0 = arith.constant 0 : i32
    %c0_i32_1 = arith.constant 0 : i32
    return %c0_i32, %c0_i32_0 : i32, i32
  }
  func.func @transform_5(%arg0: i32) -> (i32, i32) {
    %c0_i32 = arith.constant 0 : i32
    %c0_i32_0 = arith.constant 0 : i32
    %c0_i32_1 = arith.constant 0 : i32
    return %c0_i32, %c0_i32_0 : i32, i32
  }
  func.func @transform_6(%arg0: i32) -> (i32, i32) {
    %c0_i32 = arith.constant 0 : i32
    %c0_i32_0 = arith.constant 0 : i32
    return %arg0, %c0_i32 : i32, i32
  }
}

module attributes {stable_mosaic.version = 11 : i64} {
  func.func @_final_proj_kernel(%arg0: i32, %arg1: memref<128x128xf32, #tpu.memory_space<vmem>>, %arg2: memref<128x128xf32, #tpu.memory_space<vmem>>, %arg3: memref<1x128xf32, #tpu.memory_space<vmem>>, %arg4: memref<1x128xf32, #tpu.memory_space<vmem>>, %arg5: memref<128x128xbf16, #tpu.memory_space<vmem>>, %arg6: memref<128x128xbf16, #tpu.memory_space<vmem>>, %arg7: memref<1x128xf32, #tpu.memory_space<vmem>>, %arg8: memref<1x128xf32, #tpu.memory_space<vmem>>, %arg9: memref<1x128xf32, #tpu.memory_space<vmem>>, %arg10: memref<1x128xf32, #tpu.memory_space<vmem>>, %arg11: memref<128x128xf32, #tpu.memory_space<vmem>>) attributes {dimension_semantics = [#tpu.dimension_semantics<parallel>], iteration_bounds = array<i64: 4>, scalar_prefetch = 0 : i64, scratch_operands = 0 : i64, tpu.core_type = #tpu.core_type<tc>, window_params = [{transform_indices = @transform_0, window_bounds = array<i64: 128, 128>}, {transform_indices = @transform_1, window_bounds = array<i64: 128, 128>}, {pipeline_mode = #tpu.pipeline_mode<synchronous>, transform_indices = @transform_2, window_bounds = array<i64: 1, 128>}, {pipeline_mode = #tpu.pipeline_mode<synchronous>, transform_indices = @transform_3, window_bounds = array<i64: 1, 128>}, {pipeline_mode = #tpu.pipeline_mode<synchronous>, transform_indices = @transform_4, window_bounds = array<i64: 128, 128>}, {pipeline_mode = #tpu.pipeline_mode<synchronous>, transform_indices = @transform_5, window_bounds = array<i64: 128, 128>}, {pipeline_mode = #tpu.pipeline_mode<synchronous>, transform_indices = @transform_6, window_bounds = array<i64: 1, 128>}, {pipeline_mode = #tpu.pipeline_mode<synchronous>, transform_indices = @transform_7, window_bounds = array<i64: 1, 128>}, {pipeline_mode = #tpu.pipeline_mode<synchronous>, transform_indices = @transform_8, window_bounds = array<i64: 1, 128>}, {pipeline_mode = #tpu.pipeline_mode<synchronous>, transform_indices = @transform_9, window_bounds = array<i64: 1, 128>}, {transform_indices = @transform_10, window_bounds = array<i64: 128, 128>}]} {
    %c0 = arith.constant 0 : index
    %c0_0 = arith.constant 0 : index
    %0 = vector.load %arg1[%c0, %c0_0] : memref<128x128xf32, #tpu.memory_space<vmem>>, vector<128x128xf32>
    %c0_1 = arith.constant 0 : index
    %c0_2 = arith.constant 0 : index
    %1 = vector.load %arg3[%c0_1, %c0_2] : memref<1x128xf32, #tpu.memory_space<vmem>>, vector<1x128xf32>
    %2 = vector.broadcast %1 : vector<1x128xf32> to vector<128x128xf32>
    %3 = arith.mulf %0, %2 : vector<128x128xf32>
    %c0_3 = arith.constant 0 : index
    %c0_4 = arith.constant 0 : index
    %4 = vector.load %arg4[%c0_3, %c0_4] : memref<1x128xf32, #tpu.memory_space<vmem>>, vector<1x128xf32>
    %5 = vector.broadcast %4 : vector<1x128xf32> to vector<128x128xf32>
    %6 = arith.addf %3, %5 : vector<128x128xf32>
    %cst = arith.constant 0.000000e+00 : f32
    %7 = vector.broadcast %cst : f32 to vector<128x128xf32>
    %8 = arith.maximumf %6, %7 : vector<128x128xf32>
    %9 = arith.truncf %8 : vector<128x128xf32> to vector<128x128xbf16>
    %c0_5 = arith.constant 0 : index
    %c0_6 = arith.constant 0 : index
    %10 = vector.load %arg5[%c0_5, %c0_6] : memref<128x128xbf16, #tpu.memory_space<vmem>>, vector<128x128xbf16>
    %cst_7 = arith.constant dense<0.000000e+00> : vector<128x128xf32>
    %11 = tpu.matmul %9, %10, %cst_7 {dimension_numbers = #tpu.dot_dimension_numbers<[1], [0], [0], [1], [0, 0, 1, 1], [], []>} : vector<128x128xbf16>, vector<128x128xbf16>, vector<128x128xf32> -> vector<128x128xf32>
    %c0_8 = arith.constant 0 : index
    %c0_9 = arith.constant 0 : index
    %12 = vector.load %arg2[%c0_8, %c0_9] : memref<128x128xf32, #tpu.memory_space<vmem>>, vector<128x128xf32>
    %13 = arith.truncf %12 : vector<128x128xf32> to vector<128x128xbf16>
    %c0_10 = arith.constant 0 : index
    %c0_11 = arith.constant 0 : index
    %14 = vector.load %arg6[%c0_10, %c0_11] : memref<128x128xbf16, #tpu.memory_space<vmem>>, vector<128x128xbf16>
    %cst_12 = arith.constant dense<0.000000e+00> : vector<128x128xf32>
    %15 = tpu.matmul %13, %14, %cst_12 {dimension_numbers = #tpu.dot_dimension_numbers<[1], [0], [0], [1], [0, 0, 1, 1], [], []>} : vector<128x128xbf16>, vector<128x128xbf16>, vector<128x128xf32> -> vector<128x128xf32>
    %c0_13 = arith.constant 0 : index
    %c0_14 = arith.constant 0 : index
    %16 = vector.load %arg7[%c0_13, %c0_14] : memref<1x128xf32, #tpu.memory_space<vmem>>, vector<1x128xf32>
    %17 = vector.broadcast %16 : vector<1x128xf32> to vector<128x128xf32>
    %18 = arith.mulf %11, %17 : vector<128x128xf32>
    %c0_15 = arith.constant 0 : index
    %c0_16 = arith.constant 0 : index
    %19 = vector.load %arg8[%c0_15, %c0_16] : memref<1x128xf32, #tpu.memory_space<vmem>>, vector<1x128xf32>
    %20 = vector.broadcast %19 : vector<1x128xf32> to vector<128x128xf32>
    %21 = arith.addf %18, %20 : vector<128x128xf32>
    %c0_17 = arith.constant 0 : index
    %c0_18 = arith.constant 0 : index
    %22 = vector.load %arg9[%c0_17, %c0_18] : memref<1x128xf32, #tpu.memory_space<vmem>>, vector<1x128xf32>
    %23 = vector.broadcast %22 : vector<1x128xf32> to vector<128x128xf32>
    %24 = arith.mulf %15, %23 : vector<128x128xf32>
    %25 = arith.addf %21, %24 : vector<128x128xf32>
    %c0_19 = arith.constant 0 : index
    %c0_20 = arith.constant 0 : index
    %26 = vector.load %arg10[%c0_19, %c0_20] : memref<1x128xf32, #tpu.memory_space<vmem>>, vector<1x128xf32>
    %27 = vector.broadcast %26 : vector<1x128xf32> to vector<128x128xf32>
    %28 = arith.addf %25, %27 : vector<128x128xf32>
    %cst_21 = arith.constant 0.000000e+00 : f32
    %29 = vector.broadcast %cst_21 : f32 to vector<128x128xf32>
    %30 = arith.maximumf %28, %29 : vector<128x128xf32>
    %c0_22 = arith.constant 0 : index
    %c0_23 = arith.constant 0 : index
    %31 = vector.load %arg11[%c0_22, %c0_23] : memref<128x128xf32, #tpu.memory_space<vmem>>, vector<128x128xf32>
    tpu.vector_store %arg11[%c0_22, %c0_23], %30 {strides = array<i32>} : memref<128x128xf32, #tpu.memory_space<vmem>>, vector<128x128xf32>,
    return
  }
  func.func @transform_0(%arg0: i32) -> (i32, i32) {
    %c0_i32 = arith.constant 0 : i32
    %c0_i32_0 = arith.constant 0 : i32
    return %arg0, %c0_i32 : i32, i32
  }
  func.func @transform_1(%arg0: i32) -> (i32, i32) {
    %c0_i32 = arith.constant 0 : i32
    %c0_i32_0 = arith.constant 0 : i32
    return %arg0, %c0_i32 : i32, i32
  }
  func.func @transform_2(%arg0: i32) -> (i32, i32) {
    %c0_i32 = arith.constant 0 : i32
    %c0_i32_0 = arith.constant 0 : i32
    %c0_i32_1 = arith.constant 0 : i32
    return %c0_i32, %c0_i32_0 : i32, i32
  }
  func.func @transform_3(%arg0: i32) -> (i32, i32) {
    %c0_i32 = arith.constant 0 : i32
    %c0_i32_0 = arith.constant 0 : i32
    %c0_i32_1 = arith.constant 0 : i32
    return %c0_i32, %c0_i32_0 : i32, i32
  }
  func.func @transform_4(%arg0: i32) -> (i32, i32) {
    %c0_i32 = arith.constant 0 : i32
    %c0_i32_0 = arith.constant 0 : i32
    %c0_i32_1 = arith.constant 0 : i32
    return %c0_i32, %c0_i32_0 : i32, i32
  }
  func.func @transform_5(%arg0: i32) -> (i32, i32) {
    %c0_i32 = arith.constant 0 : i32
    %c0_i32_0 = arith.constant 0 : i32
    %c0_i32_1 = arith.constant 0 : i32
    return %c0_i32, %c0_i32_0 : i32, i32
  }
  func.func @transform_6(%arg0: i32) -> (i32, i32) {
    %c0_i32 = arith.constant 0 : i32
    %c0_i32_0 = arith.constant 0 : i32
    %c0_i32_1 = arith.constant 0 : i32
    return %c0_i32, %c0_i32_0 : i32, i32
  }
  func.func @transform_7(%arg0: i32) -> (i32, i32) {
    %c0_i32 = arith.constant 0 : i32
    %c0_i32_0 = arith.constant 0 : i32
    %c0_i32_1 = arith.constant 0 : i32
    return %c0_i32, %c0_i32_0 : i32, i32
  }
  func.func @transform_8(%arg0: i32) -> (i32, i32) {
    %c0_i32 = arith.constant 0 : i32
    %c0_i32_0 = arith.constant 0 : i32
    %c0_i32_1 = arith.constant 0 : i32
    return %c0_i32, %c0_i32_0 : i32, i32
  }
  func.func @transform_9(%arg0: i32) -> (i32, i32) {
    %c0_i32 = arith.constant 0 : i32
    %c0_i32_0 = arith.constant 0 : i32
    %c0_i32_1 = arith.constant 0 : i32
    return %c0_i32, %c0_i32_0 : i32, i32
  }
  func.func @transform_10(%arg0: i32) -> (i32, i32) {
    %c0_i32 = arith.constant 0 : i32
    %c0_i32_0 = arith.constant 0 : i32
    return %arg0, %c0_i32 : i32, i32
  }
}

</mosaic_0001>

<llo_original>
// kernel: bottleneck_forward.4
$region0: #{bottleneck_forward.4}
  #allocation0 [shape = 'u32[]', space=smem, size = 0x4, offset = 0x4, fixed_abs, tag = 'smem constant byte address 0x4 - core index']
  #allocation1 [shape = 'u32[144,128]{1,0:T(1,128)}', space=vmem, size = 0x12000, scoped, tag = 'internal scratch']
  %s0 = inlined_call_operand.vmem [shape: f32[512,128], index: 0, kind: input, shape index: {}]
  %s1 = inlined_call_operand.vmem [shape: bf16[128,128], index: 1, kind: input, shape index: {}]
  %s2 = inlined_call_operand.vmem [shape: f32[32,128], index: 2, kind: output, shape index: {}]
  %s3 = sld [smem:[#allocation0]]
  $region41: #{bottleneck_forward.4} parent=0
    _
  %s5 = ssub.s32 1, %s3
  %s6 = scalar_select 0, %s5, %s3
  loop: start=0, step=1, limit=6
  $region2: #{bottleneck_forward.4} parent=0 // loop_pre_header
    _
  $region3: #{bottleneck_forward.4} parent=0 // loop_header
    %s8 = sphi 0, %s12
    %p9 = scmp.ge.s32.totalorder %s8, 6
    %s18 = sphi 0, %s20
    %s21 = sphi 0, %s18
    %s22 = sphi 0, %s21
    %s38 = sphi 0, %s22
    %s42 = sphi 0, %s42
    %s44 = sphi 0, %s42
    %s45 = sphi 0, %s44
    %s59 = sphi 0, %s45
    %s65 = sphi 0, %s67
    %s68 = sphi 0, %s65
    %s69 = sphi 0, %s68
    %s85 = sphi 0, %s69
  $region4: #{bottleneck_forward.4} parent=0 // loop_header_branch
    %11 = sbr.rel (%p9) target = $region8
  $region5: #{bottleneck_forward.4} parent=0 // loop_body
    %s13 = ssub.s32 %s8, 1
    %s14 = ssub.s32 %s8, 2
    %s15 = sadd.s32 %s8, 1
    %s16 = ssub.s32 %s8, %s15
    %p17 = scmp.eq.s32.totalorder %s16, 0
    %s19 = sadd.s32 %s18, 1
    %s20 = scalar_select %p17, %s18, %s19
    %p23 = pneg %p17
    %p24 = scmp.eq.s32.totalorder %s8, 3
    %p25 = por %p23, %p24
    %p26 = scmp.ne.s32.totalorder %s18, %s21
    %p27 = scmp.eq.s32.totalorder %s8, 0
    %p28 = por %p26, %p27
    %p29 = scmp.ne.s32.totalorder %s18, %s21
    %p30 = scmp.eq.s32.totalorder %s13, 3
    %p31 = por %p29, %p30
    %p32 = scmp.ne.s32.totalorder %s21, %s22
    %p33 = scmp.eq.s32.totalorder %s13, 0
    %p34 = por %p32, %p33
    %p35 = scmp.ne.s32.totalorder %s21, %s22
    %p36 = scmp.eq.s32.totalorder %s14, 3
    %p37 = por %p35, %p36
    %p39 = scmp.ne.s32.totalorder %s22, %s38
    %p40 = scmp.eq.s32.totalorder %s14, 0
    %p41 = por %p39, %p40
    %s43 = sadd.s32 %s42, 1
    %p46 = scmp.eq.s32.totalorder %s8, 3
    %p47 = scmp.ne.s32.totalorder %s42, %s44
    %p48 = scmp.eq.s32.totalorder %s8, 0
    %p49 = por %p47, %p48
    %p50 = scmp.ne.s32.totalorder %s42, %s44
    %p51 = scmp.eq.s32.totalorder %s13, 3
    %p52 = por %p50, %p51
    %p53 = scmp.ne.s32.totalorder %s44, %s45
    %p54 = scmp.eq.s32.totalorder %s13, 0
    %p55 = por %p53, %p54
    %p56 = scmp.ne.s32.totalorder %s44, %s45
    %p57 = scmp.eq.s32.totalorder %s14, 3
    %p58 = por %p56, %p57
    %p60 = scmp.ne.s32.totalorder %s45, %s59
    %p61 = scmp.eq.s32.totalorder %s14, 0
    %p62 = por %p60, %p61
    %s63 = ssub.s32 %s8, %s15
    %p64 = scmp.eq.s32.totalorder %s63, 0
    %s66 = sadd.s32 %s65, 1
    %s67 = scalar_select %p64, %s65, %s66
    %p70 = pneg %p64
    %p71 = scmp.eq.s32.totalorder %s8, 3
    %p72 = por %p70, %p71
    %p73 = scmp.ne.s32.totalorder %s65, %s68
    %p74 = scmp.eq.s32.totalorder %s8, 0
    %p75 = por %p73, %p74
    %p76 = scmp.ne.s32.totalorder %s65, %s68
    %p77 = scmp.eq.s32.totalorder %s13, 3
    %p78 = por %p76, %p77
    %p79 = scmp.ne.s32.totalorder %s68, %s69
    %p80 = scmp.eq.s32.totalorder %s13, 0
    %p81 = por %p79, %p80
    %p82 = scmp.ne.s32.totalorder %s68, %s69
    %p83 = scmp.eq.s32.totalorder %s14, 3
    %p84 = por %p82, %p83
    %p86 = scmp.ne.s32.totalorder %s69, %s85
    %p87 = scmp.eq.s32.totalorder %s14, 0
    %p88 = por %p86, %p87
    %p89 = scmp.le.s32.totalorder 1, %s8
    %p90 = scmp.lt.s32.totalorder %s8, 5
    %p91 = pnand %p89, %p90
    %p92 = pneg %p91
    // Predicated region
    $region9: #{bottleneck_forward.4} parent=5 // pred_check
      _
    $region10: #{bottleneck_forward.4} parent=5 // pred_check_branch
      %94 = sbr.rel (%p91) target = $region12
    $region11: #{bottleneck_forward.4} parent=5 // pred_region
      %s95 = ssub.s32 %s8, 1
      // Predicated region
      $region13: #{bottleneck_forward.4} parent=11 // pred_check
        %p96 = pneg %p55
      $region14: #{bottleneck_forward.4} parent=11 // pred_check_branch
        %98 = sbr.rel (%p96) target = $region16
      $region15: #{bottleneck_forward.4} parent=11 // pred_region
        _
      $region16: #{bottleneck_forward.4} parent=11 // pred_fallthru
        _
    $region12: #{bottleneck_forward.4} parent=5 // pred_fallthru
      _
    %p99 = scmp.lt.s32.totalorder %s8, 4
    // Predicated region
    $region17: #{bottleneck_forward.4} parent=5 // pred_check
      %p100 = pneg %p99
    $region18: #{bottleneck_forward.4} parent=5 // pred_check_branch
      %102 = sbr.rel (%p100) target = $region20
    $region19: #{bottleneck_forward.4} parent=5 // pred_region
      // Predicated region
      $region21: #{bottleneck_forward.4} parent=19 // pred_check
        %p103 = pneg %p28
      $region22: #{bottleneck_forward.4} parent=19 // pred_check_branch
        %105 = sbr.rel (%p103) target = $region24
      $region23: #{bottleneck_forward.4} parent=19 // pred_region
        %s106 = smul.u32 16, %s8
        %p107 = scmp.lt.s32.totalorder %s106, 63
        %s108 = scalar_select %p107, %s106, 63
        %s109 = smul.addr %s108, 8
        %s110 = scalar_lea.vmem %s0, %s109
        %s111 = smul.u32 16, %s8
      $region24: #{bottleneck_forward.4} parent=19 // pred_fallthru
        _
    $region20: #{bottleneck_forward.4} parent=5 // pred_fallthru
      _
    %p112 = scmp.le.s32.totalorder 1, %s8
    %p113 = scmp.lt.s32.totalorder %s8, 5
    %p114 = pnand %p112, %p113
    %p115 = pneg %p114
    // Predicated region
    $region25: #{bottleneck_forward.4} parent=5 // pred_check
      _
    $region26: #{bottleneck_forward.4} parent=5 // pred_check_branch
      %117 = sbr.rel (%p114) target = $region28
    $region27: #{bottleneck_forward.4} parent=5 // pred_region
      %s118 = ssub.s32 %s8, 1
      %s119 = smul.u32 16, %s13
      %p120 = scmp.lt.s32.totalorder %s119, 63
      %s121 = scalar_select %p120, %s119, 63
      %s122 = smul.addr %s121, 8
      %s123 = scalar_lea.vmem %s0, %s122
      %p124 = pneg %p34
      %p125 = pneg %p31
      %p126 = pneg %p55
      %p127 = pneg %p52
      %p128 = pneg %p81
      %p129 = pneg %p78
      %p130 = scmp.lt.s32.totalorder %s13, 3
      %s131 = scalar_select %p130, %s13, 3
      %s132 = smul.addr %s131, 8
      %s133 = scalar_lea.vmem %s2, %s132
      %s134 = smul.u32 16, %s13
      %p135 = scmp.lt.s32.totalorder %s134, 63
      %s136 = scalar_select %p135, %s134, 63
      %s137 = smul.addr %s136, 8
      %s138 = scalar_lea.vmem %s0, %s137
      %s139 = smul.u32 16, %s13
      %p140 = scmp.lt.s32.totalorder %s13, 3
      %s141 = scalar_select %p140, %s13, 3
      %s142 = smul.addr %s141, 8
      %s143 = scalar_lea.vmem %s2, %s142
      %v145 = vld [vmem:[%s138] sm:$0xff]
      %v146 = vld [vmem:[%s138 + $0x8] sm:$0xff]
      %v147 = vld [vmem:[%s138 + $0x10] sm:$0xff]
      %v148 = vld [vmem:[%s138 + $0x18] sm:$0xff]
      %v149 = vld [vmem:[%s138 + $0x20] sm:$0xff]
      %v150 = vld [vmem:[%s138 + $0x28] sm:$0xff]
      %v151 = vld [vmem:[%s138 + $0x30] sm:$0xff]
      %v152 = vld [vmem:[%s138 + $0x38] sm:$0xff]
      %v153 = vld [vmem:[%s138 + $0x40] sm:$0xff]
      %v154 = vld [vmem:[%s138 + $0x48] sm:$0xff]
      %v155 = vld [vmem:[%s138 + $0x50] sm:$0xff]
      %v156 = vld [vmem:[%s138 + $0x58] sm:$0xff]
      %v157 = vld [vmem:[%s138 + $0x60] sm:$0xff]
      %v158 = vld [vmem:[%s138 + $0x68] sm:$0xff]
      %v159 = vld [vmem:[%s138 + $0x70] sm:$0xff]
      %v160 = vld [vmem:[%s138 + $0x78] sm:$0xff]
      %v161 = vpack.c.bf16 %v146, %v145
      %v162 = vpack.c.bf16 %v148, %v147
      %v163 = vpack.c.bf16 %v150, %v149
      %v164 = vpack.c.bf16 %v152, %v151
      %v165 = vpack.c.bf16 %v154, %v153
      %v166 = vpack.c.bf16 %v156, %v155
      %v167 = vpack.c.bf16 %v158, %v157
      %v168 = vpack.c.bf16 %v160, %v159
      %v169 = vld [vmem:[%s1] sm:$0xf]
      %v170 = vld [vmem:[%s1 + $0x4] sm:$0xf]
      %v171 = vld [vmem:[%s1 + $0x8] sm:$0xf]
      %v172 = vld [vmem:[%s1 + $0xc] sm:$0xf]
      %v173 = vld [vmem:[%s1 + $0x10] sm:$0xf]
      %v174 = vld [vmem:[%s1 + $0x14] sm:$0xf]
      %v175 = vld [vmem:[%s1 + $0x18] sm:$0xf]
      %v176 = vld [vmem:[%s1 + $0x1c] sm:$0xf]
      %v177 = vld [vmem:[%s1 + $0x20] sm:$0xf]
      %v178 = vld [vmem:[%s1 + $0x24] sm:$0xf]
      %v179 = vld [vmem:[%s1 + $0x28] sm:$0xf]
      %v180 = vld [vmem:[%s1 + $0x2c] sm:$0xf]
      %v181 = vld [vmem:[%s1 + $0x30] sm:$0xf]
      %v182 = vld [vmem:[%s1 + $0x34] sm:$0xf]
      %v183 = vld [vmem:[%s1 + $0x38] sm:$0xf]
      %v184 = vld [vmem:[%s1 + $0x3c] sm:$0xf]
      %v201 = vunpack.c.l.b16 %v169
      %v202 = vunpack.c.l.b16 %v170
      %v203 = vunpack.c.l.b16 %v171
      %v204 = vunpack.c.l.b16 %v172
      %v205 = vunpack.c.l.b16 %v173
      %v206 = vunpack.c.l.b16 %v174
      %v207 = vunpack.c.l.b16 %v175
      %v208 = vunpack.c.l.b16 %v176
      %v209 = vunpack.c.l.b16 %v177
      %v210 = vunpack.c.l.b16 %v178
      %v211 = vunpack.c.l.b16 %v179
      %v212 = vunpack.c.l.b16 %v180
      %v213 = vunpack.c.l.b16 %v181
      %v214 = vunpack.c.l.b16 %v182
      %v215 = vunpack.c.l.b16 %v183
      %v216 = vunpack.c.l.b16 %v184
      %v217 = vpack.c.b16 %v202, %v201
      %v218 = vpack.c.b16 %v204, %v203
      %v219 = vpack.c.b16 %v206, %v205
      %v220 = vpack.c.b16 %v208, %v207
      %v221 = vpack.c.b16 %v210, %v209
      %v222 = vpack.c.b16 %v212, %v211
      %v223 = vpack.c.b16 %v214, %v213
      %v224 = vpack.c.b16 %v216, %v215
      %233 = vmatprep.subr.bf16.mxu0 0
      %234 = vmatpush1.bf16.msra.mxu0 %v217
      %235 = vmatprep.subr.bf16.mxu0 0
      %236 = vmatpush1.bf16.msra.mxu0 %v218
      %237 = vmatprep.subr.bf16.mxu0 0
      %238 = vmatpush1.bf16.msra.mxu0 %v219
      %239 = vmatprep.subr.bf16.mxu0 0
      %240 = vmatpush1.bf16.msra.mxu0 %v220
      %241 = vmatprep.subr.bf16.mxu0 0
      %242 = vmatpush1.bf16.msra.mxu0 %v221
      %243 = vmatprep.subr.bf16.mxu0 0
      %244 = vmatpush1.bf16.msra.mxu0 %v222
      %245 = vmatprep.subr.bf16.mxu0 0
      %246 = vmatpush1.bf16.msra.mxu0 %v223
      %247 = vmatprep.subr.bf16.mxu0 0
      %248 = vmatpush1.bf16.msra.mxu0 %v224
      %249 = vmatprep.subr.bf16.mxu0 0
      %250 = vmatpush1.bf16.msra.mxu0 0
      %251 = vmatprep.subr.bf16.mxu0 0
      %252 = vmatpush1.bf16.msra.mxu0 0
      %253 = vmatprep.subr.bf16.mxu0 0
      %254 = vmatpush1.bf16.msra.mxu0 0
      %255 = vmatprep.subr.bf16.mxu0 0
      %256 = vmatpush1.bf16.msra.mxu0 0
      %257 = vmatprep.subr.bf16.mxu0 0
      %258 = vmatpush1.bf16.msra.mxu0 0
      %259 = vmatprep.subr.bf16.mxu0 0
      %260 = vmatpush1.bf16.msra.mxu0 0
      %261 = vmatprep.subr.bf16.mxu0 0
      %262 = vmatpush1.bf16.msra.mxu0 0
      %263 = vmatprep.subr.bf16.mxu0 0
      %264 = vmatpush1.bf16.msra.mxu0 0
      %265 = vmatprep.mubr.bf16.mxu0 0
      %266 = vmatmul.mubr.bf16.gmra.mrb[0].mxu0 %v161
      %v267 = vpop.f32.mrb[0].mxu0
      %v268 = vadd.f32 0.0, %v267
      %v269 = vpop.f32.mrb[0].mxu0
      %v270 = vpop.f32.mrb[0].mxu0
      %v271 = vadd.f32 0.0, %v270
      %v272 = vpop.f32.mrb[0].mxu0
      %273 = vmatprep.mubr.bf16.mxu0 0
      %274 = vmatmul.mubr.bf16.gmra.mrb[0].mxu0 %v162
      %v275 = vpop.f32.mrb[0].mxu0
      %v276 = vadd.f32 0.0, %v275
      %v277 = vpop.f32.mrb[0].mxu0
      %v278 = vpop.f32.mrb[0].mxu0
      %v279 = vadd.f32 0.0, %v278
      %v280 = vpop.f32.mrb[0].mxu0
      %281 = vmatprep.mubr.bf16.mxu0 0
      %282 = vmatmul.mubr.bf16.gmra.mrb[0].mxu0 %v163
      %v283 = vpop.f32.mrb[0].mxu0
      %v284 = vadd.f32 0.0, %v283
      %v285 = vpop.f32.mrb[0].mxu0
      %v286 = vpop.f32.mrb[0].mxu0
      %v287 = vadd.f32 0.0, %v286
      %v288 = vpop.f32.mrb[0].mxu0
      %289 = vmatprep.mubr.bf16.mxu0 0
      %290 = vmatmul.mubr.bf16.gmra.mrb[0].mxu0 %v164
      %v291 = vpop.f32.mrb[0].mxu0
      %v292 = vadd.f32 0.0, %v291
      %v293 = vpop.f32.mrb[0].mxu0
      %v294 = vpop.f32.mrb[0].mxu0
      %v295 = vadd.f32 0.0, %v294
      %v296 = vpop.f32.mrb[0].mxu0
      %297 = vmatprep.mubr.bf16.mxu0 0
      %298 = vmatmul.mubr.bf16.gmra.mrb[0].mxu0 %v165
      %v299 = vpop.f32.mrb[0].mxu0
      %v300 = vadd.f32 0.0, %v299
      %v301 = vpop.f32.mrb[0].mxu0
      %v302 = vpop.f32.mrb[0].mxu0
      %v303 = vadd.f32 0.0, %v302
      %v304 = vpop.f32.mrb[0].mxu0
      %305 = vmatprep.mubr.bf16.mxu0 0
      %306 = vmatmul.mubr.bf16.gmra.mrb[0].mxu0 %v166
      %v307 = vpop.f32.mrb[0].mxu0
      %v308 = vadd.f32 0.0, %v307
      %v309 = vpop.f32.mrb[0].mxu0
      %v310 = vpop.f32.mrb[0].mxu0
      %v311 = vadd.f32 0.0, %v310
      %v312 = vpop.f32.mrb[0].mxu0
      %313 = vmatprep.mubr.bf16.mxu0 0
      %314 = vmatmul.mubr.bf16.gmra.mrb[0].mxu0 %v167
      %v315 = vpop.f32.mrb[0].mxu0
      %v316 = vadd.f32 0.0, %v315
      %v317 = vpop.f32.mrb[0].mxu0
      %v318 = vpop.f32.mrb[0].mxu0
      %v319 = vadd.f32 0.0, %v318
      %v320 = vpop.f32.mrb[0].mxu0
      %321 = vmatprep.mubr.bf16.mxu0 0
      %322 = vmatmul.mubr.bf16.gmra.mrb[0].mxu0 %v168
      %v323 = vpop.f32.mrb[0].mxu0
      %v324 = vadd.f32 0.0, %v323
      %v325 = vpop.f32.mrb[0].mxu0
      %v326 = vpop.f32.mrb[0].mxu0
      %v327 = vadd.f32 0.0, %v326
      %v328 = vpop.f32.mrb[0].mxu0
      %329 = vdwg.mxu0
      %v330 = vadd.f32 %v268, %v271
      %v331 = vadd.f32 %v330, %v276
      %v332 = vadd.f32 %v331, %v279
      %v333 = vadd.f32 %v332, %v284
      %v334 = vadd.f32 %v333, %v287
      %v335 = vadd.f32 %v334, %v292
      %v336 = vadd.f32 %v335, %v295
      %v337 = vadd.f32 %v336, %v300
      %v338 = vadd.f32 %v337, %v303
      %v339 = vadd.f32 %v338, %v308
      %v340 = vadd.f32 %v339, %v311
      %v341 = vadd.f32 %v340, %v316
      %v342 = vadd.f32 %v341, %v319
      %v343 = vadd.f32 %v342, %v324
      %v344 = vadd.f32 %v343, %v327
      %v345 = vrot.slane %v344, 4
      %v346 = vadd.f32 %v344, %v345
      %v347 = vrot.slane %v346, 2
      %v348 = vadd.f32 %v346, %v347
      %v349 = vrot.slane %v348, 1
      %v350 = vadd.f32 %v348, %v349
      %v351 = vmul.f32 %v268, %v268
      %v352 = vmul.f32 %v271, %v271
      %v353 = vmul.f32 %v276, %v276
      %v354 = vmul.f32 %v279, %v279
      %v355 = vmul.f32 %v284, %v284
      %v356 = vmul.f32 %v287, %v287
      %v357 = vmul.f32 %v292, %v292
      %v358 = vmul.f32 %v295, %v295
      %v359 = vmul.f32 %v300, %v300
      %v360 = vmul.f32 %v303, %v303
      %v361 = vmul.f32 %v308, %v308
      %v362 = vmul.f32 %v311, %v311
      %v363 = vmul.f32 %v316, %v316
      %v364 = vmul.f32 %v319, %v319
      %v365 = vmul.f32 %v324, %v324
      %v366 = vmul.f32 %v327, %v327
      %v367 = vadd.f32 %v351, %v352
      %v368 = vadd.f32 %v367, %v353
      %v369 = vadd.f32 %v368, %v354
      %v370 = vadd.f32 %v369, %v355
      %v371 = vadd.f32 %v370, %v356
      %v372 = vadd.f32 %v371, %v357
      %v373 = vadd.f32 %v372, %v358
      %v374 = vadd.f32 %v373, %v359
      %v375 = vadd.f32 %v374, %v360
      %v376 = vadd.f32 %v375, %v361
      %v377 = vadd.f32 %v376, %v362
      %v378 = vadd.f32 %v377, %v363
      %v379 = vadd.f32 %v378, %v364
      %v380 = vadd.f32 %v379, %v365
      %v381 = vadd.f32 %v380, %v366
      %v382 = vrot.slane %v381, 4
      %v383 = vadd.f32 %v381, %v382
      %v384 = vrot.slane %v383, 2
      %v385 = vadd.f32 %v383, %v384
      %v386 = vrot.slane %v385, 1
      %v387 = vadd.f32 %v385, %v386
      %vm388 = vcmask 1040384
      %v389 = vsel %vm388, %v350, %v387
      %vm390 = vcmask 1041408
      %v391 = vsel %vm390, %v389, 0.0
      %392 = vst [vmem:[%s143] sm:$0xff] %v391
      %p393 = scmp.lt.s32.totalorder %s13, 3
      %s394 = scalar_select %p393, %s13, 3
      %s395 = smul.addr %s394, 8
      %s396 = scalar_lea.vmem %s2, %s395
      // Predicated region
      $region29: #{bottleneck_forward.4} parent=27 // pred_check
        %p397 = pneg %p78
      $region30: #{bottleneck_forward.4} parent=27 // pred_check_branch
        %399 = sbr.rel (%p397) target = $region32
      $region31: #{bottleneck_forward.4} parent=27 // pred_region
        _
      $region32: #{bottleneck_forward.4} parent=27 // pred_fallthru
        _
    $region28: #{bottleneck_forward.4} parent=5 // pred_fallthru
      _
    %p400 = scmp.le.s32.totalorder 2, %s8
    // Predicated region
    $region33: #{bottleneck_forward.4} parent=5 // pred_check
      %p401 = pneg %p400
    $region34: #{bottleneck_forward.4} parent=5 // pred_check_branch
      %403 = sbr.rel (%p401) target = $region36
    $region35: #{bottleneck_forward.4} parent=5 // pred_region
      %s404 = ssub.s32 %s8, 2
      // Predicated region
      $region37: #{bottleneck_forward.4} parent=35 // pred_check
        %p405 = pneg %p84
      $region38: #{bottleneck_forward.4} parent=35 // pred_check_branch
        %407 = sbr.rel (%p405) target = $region40
      $region39: #{bottleneck_forward.4} parent=35 // pred_region
        %p408 = scmp.lt.s32.totalorder %s14, 3
        %s409 = scalar_select %p408, %s14, 3
        %s410 = smul.addr %s409, 8
        %s411 = scalar_lea.vmem %s2, %s410
      $region40: #{bottleneck_forward.4} parent=35 // pred_fallthru
        _
    $region36: #{bottleneck_forward.4} parent=5 // pred_fallthru
      _
  $region6: #{bottleneck_forward.4} parent=0 // loop_footer
    %s12 = sadd.s32 1, %s8
  $region7: #{bottleneck_forward.4} parent=0 // loop_footer_branch
    %7 = sbr.rel target = $region3
  $region8: #{bottleneck_forward.4} parent=0 // loop_exit
    _

// kernel: bottleneck_forward.6
$region0: #{bottleneck_forward.6}
  #allocation0 [shape = 'u32[]', space=smem, size = 0x4, offset = 0x4, fixed_abs, tag = 'smem constant byte address 0x4 - core index']
  #allocation1 [shape = 'u32[144,128]{1,0:T(1,128)}', space=vmem, size = 0x12000, scoped, tag = 'internal scratch']
  %s0 = inlined_call_operand.vmem [shape: f32[512,128], index: 0, kind: input, shape index: {}]
  %s1 = inlined_call_operand.vmem [shape: f32[512,128], index: 1, kind: input, shape index: {}]
  %s2 = inlined_call_operand.vmem [shape: f32[1,128], index: 2, kind: input, shape index: {}]
  %s3 = inlined_call_operand.vmem [shape: f32[1,128], index: 3, kind: input, shape index: {}]
  %s4 = inlined_call_operand.vmem [shape: bf16[128,128], index: 4, kind: input, shape index: {}]
  %s5 = inlined_call_operand.vmem [shape: bf16[128,128], index: 5, kind: input, shape index: {}]
  %s6 = inlined_call_operand.vmem [shape: f32[32,128], index: 6, kind: output, shape index: {}]
  %s7 = sld [smem:[#allocation0]]
  $region57: #{bottleneck_forward.6} parent=0
    _
  %s9 = ssub.s32 1, %s7
  %s10 = scalar_select 0, %s9, %s7
  loop: start=0, step=1, limit=6
  $region2: #{bottleneck_forward.6} parent=0 // loop_pre_header
    _
  $region3: #{bottleneck_forward.6} parent=0 // loop_header
    %s12 = sphi 0, %s16
    %p13 = scmp.ge.s32.totalorder %s12, 6
    %s22 = sphi 0, %s24
    %s25 = sphi 0, %s22
    %s26 = sphi 0, %s25
    %s42 = sphi 0, %s26
    %s48 = sphi 0, %s50
    %s51 = sphi 0, %s48
    %s52 = sphi 0, %s51
    %s68 = sphi 0, %s52
    %s72 = sphi 0, %s72
    %s74 = sphi 0, %s72
    %s75 = sphi 0, %s74
    %s89 = sphi 0, %s75
    %s93 = sphi 0, %s93
    %s95 = sphi 0, %s93
    %s96 = sphi 0, %s95
    %s110 = sphi 0, %s96
    %s114 = sphi 0, %s114
    %s116 = sphi 0, %s114
    %s117 = sphi 0, %s116
    %s131 = sphi 0, %s117
    %s135 = sphi 0, %s135
    %s137 = sphi 0, %s135
    %s138 = sphi 0, %s137
    %s152 = sphi 0, %s138
    %s158 = sphi 0, %s160
    %s161 = sphi 0, %s158
    %s162 = sphi 0, %s161
    %s178 = sphi 0, %s162
  $region4: #{bottleneck_forward.6} parent=0 // loop_header_branch
    %15 = sbr.rel (%p13) target = $region8
  $region5: #{bottleneck_forward.6} parent=0 // loop_body
    %s17 = ssub.s32 %s12, 1
    %s18 = ssub.s32 %s12, 2
    %s19 = sadd.s32 %s12, 1
    %s20 = ssub.s32 %s12, %s19
    %p21 = scmp.eq.s32.totalorder %s20, 0
    %s23 = sadd.s32 %s22, 1
    %s24 = scalar_select %p21, %s22, %s23
    %p27 = pneg %p21
    %p28 = scmp.eq.s32.totalorder %s12, 3
    %p29 = por %p27, %p28
    %p30 = scmp.ne.s32.totalorder %s22, %s25
    %p31 = scmp.eq.s32.totalorder %s12, 0
    %p32 = por %p30, %p31
    %p33 = scmp.ne.s32.totalorder %s22, %s25
    %p34 = scmp.eq.s32.totalorder %s17, 3
    %p35 = por %p33, %p34
    %p36 = scmp.ne.s32.totalorder %s25, %s26
    %p37 = scmp.eq.s32.totalorder %s17, 0
    %p38 = por %p36, %p37
    %p39 = scmp.ne.s32.totalorder %s25, %s26
    %p40 = scmp.eq.s32.totalorder %s18, 3
    %p41 = por %p39, %p40
    %p43 = scmp.ne.s32.totalorder %s26, %s42
    %p44 = scmp.eq.s32.totalorder %s18, 0
    %p45 = por %p43, %p44
    %s46 = ssub.s32 %s12, %s19
    %p47 = scmp.eq.s32.totalorder %s46, 0
    %s49 = sadd.s32 %s48, 1
    %s50 = scalar_select %p47, %s48, %s49
    %p53 = pneg %p47
    %p54 = scmp.eq.s32.totalorder %s12, 3
    %p55 = por %p53, %p54
    %p56 = scmp.ne.s32.totalorder %s48, %s51
    %p57 = scmp.eq.s32.totalorder %s12, 0
    %p58 = por %p56, %p57
    %p59 = scmp.ne.s32.totalorder %s48, %s51
    %p60 = scmp.eq.s32.totalorder %s17, 3
    %p61 = por %p59, %p60
    %p62 = scmp.ne.s32.totalorder %s51, %s52
    %p63 = scmp.eq.s32.totalorder %s17, 0
    %p64 = por %p62, %p63
    %p65 = scmp.ne.s32.totalorder %s51, %s52
    %p66 = scmp.eq.s32.totalorder %s18, 3
    %p67 = por %p65, %p66
    %p69 = scmp.ne.s32.totalorder %s52, %s68
    %p70 = scmp.eq.s32.totalorder %s18, 0
    %p71 = por %p69, %p70
    %s73 = sadd.s32 %s72, 1
    %p76 = scmp.eq.s32.totalorder %s12, 3
    %p77 = scmp.ne.s32.totalorder %s72, %s74
    %p78 = scmp.eq.s32.totalorder %s12, 0
    %p79 = por %p77, %p78
    %p80 = scmp.ne.s32.totalorder %s72, %s74
    %p81 = scmp.eq.s32.totalorder %s17, 3
    %p82 = por %p80, %p81
    %p83 = scmp.ne.s32.totalorder %s74, %s75
    %p84 = scmp.eq.s32.totalorder %s17, 0
    %p85 = por %p83, %p84
    %p86 = scmp.ne.s32.totalorder %s74, %s75
    %p87 = scmp.eq.s32.totalorder %s18, 3
    %p88 = por %p86, %p87
    %p90 = scmp.ne.s32.totalorder %s75, %s89
    %p91 = scmp.eq.s32.totalorder %s18, 0
    %p92 = por %p90, %p91
    %s94 = sadd.s32 %s93, 1
    %p97 = scmp.eq.s32.totalorder %s12, 3
    %p98 = scmp.ne.s32.totalorder %s93, %s95
    %p99 = scmp.eq.s32.totalorder %s12, 0
    %p100 = por %p98, %p99
    %p101 = scmp.ne.s32.totalorder %s93, %s95
    %p102 = scmp.eq.s32.totalorder %s17, 3
    %p103 = por %p101, %p102
    %p104 = scmp.ne.s32.totalorder %s95, %s96
    %p105 = scmp.eq.s32.totalorder %s17, 0
    %p106 = por %p104, %p105
    %p107 = scmp.ne.s32.totalorder %s95, %s96
    %p108 = scmp.eq.s32.totalorder %s18, 3
    %p109 = por %p107, %p108
    %p111 = scmp.ne.s32.totalorder %s96, %s110
    %p112 = scmp.eq.s32.totalorder %s18, 0
    %p113 = por %p111, %p112
    %s115 = sadd.s32 %s114, 1
    %p118 = scmp.eq.s32.totalorder %s12, 3
    %p119 = scmp.ne.s32.totalorder %s114, %s116
    %p120 = scmp.eq.s32.totalorder %s12, 0
    %p121 = por %p119, %p120
    %p122 = scmp.ne.s32.totalorder %s114, %s116
    %p123 = scmp.eq.s32.totalorder %s17, 3
    %p124 = por %p122, %p123
    %p125 = scmp.ne.s32.totalorder %s116, %s117
    %p126 = scmp.eq.s32.totalorder %s17, 0
    %p127 = por %p125, %p126
    %p128 = scmp.ne.s32.totalorder %s116, %s117
    %p129 = scmp.eq.s32.totalorder %s18, 3
    %p130 = por %p128, %p129
    %p132 = scmp.ne.s32.totalorder %s117, %s131
    %p133 = scmp.eq.s32.totalorder %s18, 0
    %p134 = por %p132, %p133
    %s136 = sadd.s32 %s135, 1
    %p139 = scmp.eq.s32.totalorder %s12, 3
    %p140 = scmp.ne.s32.totalorder %s135, %s137
    %p141 = scmp.eq.s32.totalorder %s12, 0
    %p142 = por %p140, %p141
    %p143 = scmp.ne.s32.totalorder %s135, %s137
    %p144 = scmp.eq.s32.totalorder %s17, 3
    %p145 = por %p143, %p144
    %p146 = scmp.ne.s32.totalorder %s137, %s138
    %p147 = scmp.eq.s32.totalorder %s17, 0
    %p148 = por %p146, %p147
    %p149 = scmp.ne.s32.totalorder %s137, %s138
    %p150 = scmp.eq.s32.totalorder %s18, 3
    %p151 = por %p149, %p150
    %p153 = scmp.ne.s32.totalorder %s138, %s152
    %p154 = scmp.eq.s32.totalorder %s18, 0
    %p155 = por %p153, %p154
    %s156 = ssub.s32 %s12, %s19
    %p157 = scmp.eq.s32.totalorder %s156, 0
    %s159 = sadd.s32 %s158, 1
    %s160 = scalar_select %p157, %s158, %s159
    %p163 = pneg %p157
    %p164 = scmp.eq.s32.totalorder %s12, 3
    %p165 = por %p163, %p164
    %p166 = scmp.ne.s32.totalorder %s158, %s161
    %p167 = scmp.eq.s32.totalorder %s12, 0
    %p168 = por %p166, %p167
    %p169 = scmp.ne.s32.totalorder %s158, %s161
    %p170 = scmp.eq.s32.totalorder %s17, 3
    %p171 = por %p169, %p170
    %p172 = scmp.ne.s32.totalorder %s161, %s162
    %p173 = scmp.eq.s32.totalorder %s17, 0
    %p174 = por %p172, %p173
    %p175 = scmp.ne.s32.totalorder %s161, %s162
    %p176 = scmp.eq.s32.totalorder %s18, 3
    %p177 = por %p175, %p176
    %p179 = scmp.ne.s32.totalorder %s162, %s178
    %p180 = scmp.eq.s32.totalorder %s18, 0
    %p181 = por %p179, %p180
    %p182 = scmp.le.s32.totalorder 1, %s12
    %p183 = scmp.lt.s32.totalorder %s12, 5
    %p184 = pnand %p182, %p183
    %p185 = pneg %p184
    // Predicated region
    $region9: #{bottleneck_forward.6} parent=5 // pred_check
      _
    $region10: #{bottleneck_forward.6} parent=5 // pred_check_branch
      %187 = sbr.rel (%p184) target = $region12
    $region11: #{bottleneck_forward.6} parent=5 // pred_region
      %s188 = ssub.s32 %s12, 1
      // Predicated region
      $region13: #{bottleneck_forward.6} parent=11 // pred_check
        %p189 = pneg %p85
      $region14: #{bottleneck_forward.6} parent=11 // pred_check_branch
        %191 = sbr.rel (%p189) target = $region16
      $region15: #{bottleneck_forward.6} parent=11 // pred_region
        _
      $region16: #{bottleneck_forward.6} parent=11 // pred_fallthru
        _
      // Predicated region
      $region17: #{bottleneck_forward.6} parent=11 // pred_check
        %p192 = pneg %p106
      $region18: #{bottleneck_forward.6} parent=11 // pred_check_branch
        %194 = sbr.rel (%p192) target = $region20
      $region19: #{bottleneck_forward.6} parent=11 // pred_region
        _
      $region20: #{bottleneck_forward.6} parent=11 // pred_fallthru
        _
      // Predicated region
      $region21: #{bottleneck_forward.6} parent=11 // pred_check
        %p195 = pneg %p127
      $region22: #{bottleneck_forward.6} parent=11 // pred_check_branch
        %197 = sbr.rel (%p195) target = $region24
      $region23: #{bottleneck_forward.6} parent=11 // pred_region
        _
      $region24: #{bottleneck_forward.6} parent=11 // pred_fallthru
        _
      // Predicated region
      $region25: #{bottleneck_forward.6} parent=11 // pred_check
        %p198 = pneg %p148
      $region26: #{bottleneck_forward.6} parent=11 // pred_check_branch
        %200 = sbr.rel (%p198) target = $region28
      $region27: #{bottleneck_forward.6} parent=11 // pred_region
        _
      $region28: #{bottleneck_forward.6} parent=11 // pred_fallthru
        _
    $region12: #{bottleneck_forward.6} parent=5 // pred_fallthru
      _
    %p201 = scmp.lt.s32.totalorder %s12, 4
    // Predicated region
    $region29: #{bottleneck_forward.6} parent=5 // pred_check
      %p202 = pneg %p201
    $region30: #{bottleneck_forward.6} parent=5 // pred_check_branch
      %204 = sbr.rel (%p202) target = $region32
    $region31: #{bottleneck_forward.6} parent=5 // pred_region
      // Predicated region
      $region33: #{bottleneck_forward.6} parent=31 // pred_check
        %p205 = pneg %p32
      $region34: #{bottleneck_forward.6} parent=31 // pred_check_branch
        %207 = sbr.rel (%p205) target = $region36
      $region35: #{bottleneck_forward.6} parent=31 // pred_region
        %s208 = smul.u32 16, %s12
        %p209 = scmp.lt.s32.totalorder %s208, 63
        %s210 = scalar_select %p209, %s208, 63
        %s211 = smul.addr %s210, 8
        %s212 = scalar_lea.vmem %s0, %s211
        %s213 = smul.u32 16, %s12
      $region36: #{bottleneck_forward.6} parent=31 // pred_fallthru
        _
      // Predicated region
      $region37: #{bottleneck_forward.6} parent=31 // pred_check
        %p214 = pneg %p58
      $region38: #{bottleneck_forward.6} parent=31 // pred_check_branch
        %216 = sbr.rel (%p214) target = $region40
      $region39: #{bottleneck_forward.6} parent=31 // pred_region
        %s217 = smul.u32 16, %s12
        %p218 = scmp.lt.s32.totalorder %s217, 63
        %s219 = scalar_select %p218, %s217, 63
        %s220 = smul.addr %s219, 8
        %s221 = scalar_lea.vmem %s1, %s220
        %s222 = smul.u32 16, %s12
      $region40: #{bottleneck_forward.6} parent=31 // pred_fallthru
        _
    $region32: #{bottleneck_forward.6} parent=5 // pred_fallthru
      _
    %p223 = scmp.le.s32.totalorder 1, %s12
    %p224 = scmp.lt.s32.totalorder %s12, 5
    %p225 = pnand %p223, %p224
    %p226 = pneg %p225
    // Predicated region
    $region41: #{bottleneck_forward.6} parent=5 // pred_check
      _
    $region42: #{bottleneck_forward.6} parent=5 // pred_check_branch
      %228 = sbr.rel (%p225) target = $region44
    $region43: #{bottleneck_forward.6} parent=5 // pred_region
      %s229 = ssub.s32 %s12, 1
      %s230 = smul.u32 16, %s17
      %p231 = scmp.lt.s32.totalorder %s230, 63
      %s232 = scalar_select %p231, %s230, 63
      %s233 = smul.addr %s232, 8
      %s234 = scalar_lea.vmem %s0, %s233
      %p235 = pneg %p38
      %p236 = pneg %p35
      %s237 = smul.u32 16, %s17
      %p238 = scmp.lt.s32.totalorder %s237, 63
      %s239 = scalar_select %p238, %s237, 63
      %s240 = smul.addr %s239, 8
      %s241 = scalar_lea.vmem %s1, %s240
      %p242 = pneg %p64
      %p243 = pneg %p61
      %p244 = pneg %p85
      %p245 = pneg %p82
      %p246 = pneg %p106
      %p247 = pneg %p103
      %p248 = pneg %p127
      %p249 = pneg %p124
      %p250 = pneg %p148
      %p251 = pneg %p145
      %p252 = pneg %p174
      %p253 = pneg %p171
      %p254 = scmp.lt.s32.totalorder %s17, 3
      %s255 = scalar_select %p254, %s17, 3
      %s256 = smul.addr %s255, 8
      %s257 = scalar_lea.vmem %s6, %s256
      %s258 = smul.u32 16, %s17
      %p259 = scmp.lt.s32.totalorder %s258, 63
      %s260 = scalar_select %p259, %s258, 63
      %s261 = smul.addr %s260, 8
      %s262 = scalar_lea.vmem %s0, %s261
      %s263 = smul.u32 16, %s17
      %s264 = smul.u32 16, %s17
      %p265 = scmp.lt.s32.totalorder %s264, 63
      %s266 = scalar_select %p265, %s264, 63
      %s267 = smul.addr %s266, 8
      %s268 = scalar_lea.vmem %s1, %s267
      %s269 = smul.u32 16, %s17
      %p270 = scmp.lt.s32.totalorder %s17, 3
      %s271 = scalar_select %p270, %s17, 3
      %s272 = smul.addr %s271, 8
      %s273 = scalar_lea.vmem %s6, %s272
      %v275 = vld [vmem:[%s262] sm:$0xff]
      %v276 = vld [vmem:[%s262 + $0x8] sm:$0xff]
      %v277 = vld [vmem:[%s262 + $0x10] sm:$0xff]
      %v278 = vld [vmem:[%s262 + $0x18] sm:$0xff]
      %v279 = vld [vmem:[%s262 + $0x20] sm:$0xff]
      %v280 = vld [vmem:[%s262 + $0x28] sm:$0xff]
      %v281 = vld [vmem:[%s262 + $0x30] sm:$0xff]
      %v282 = vld [vmem:[%s262 + $0x38] sm:$0xff]
      %v283 = vld [vmem:[%s262 + $0x40] sm:$0xff]
      %v284 = vld [vmem:[%s262 + $0x48] sm:$0xff]
      %v285 = vld [vmem:[%s262 + $0x50] sm:$0xff]
      %v286 = vld [vmem:[%s262 + $0x58] sm:$0xff]
      %v287 = vld [vmem:[%s262 + $0x60] sm:$0xff]
      %v288 = vld [vmem:[%s262 + $0x68] sm:$0xff]
      %v289 = vld [vmem:[%s262 + $0x70] sm:$0xff]
      %v290 = vld [vmem:[%s262 + $0x78] sm:$0xff]
      %v291 = vld [vmem:[%s2] sm:$0x1]
      %v293 = vlaneseq
      %v294 = vshrl.u32 %v293, 7
      %v295 = vsub.s32 0, %v294
      %v296 = vrot.slane %v291, %v295
      %v298 = vmul.f32 %v275, %v296
      %v299 = vmul.f32 %v276, %v296
      %v300 = vmul.f32 %v277, %v296
      %v301 = vmul.f32 %v278, %v296
      %v302 = vmul.f32 %v279, %v296
      %v303 = vmul.f32 %v280, %v296
      %v304 = vmul.f32 %v281, %v296
      %v305 = vmul.f32 %v282, %v296
      %v306 = vmul.f32 %v283, %v296
      %v307 = vmul.f32 %v284, %v296
      %v308 = vmul.f32 %v285, %v296
      %v309 = vmul.f32 %v286, %v296
      %v310 = vmul.f32 %v287, %v296
      %v311 = vmul.f32 %v288, %v296
      %v312 = vmul.f32 %v289, %v296
      %v313 = vmul.f32 %v290, %v296
      %v314 = vld [vmem:[%s3] sm:$0x1]
      %v316 = vlaneseq
      %v317 = vshrl.u32 %v316, 7
      %v318 = vsub.s32 0, %v317
      %v319 = vrot.slane %v314, %v318
      %v321 = vadd.f32 %v298, %v319
      %v322 = vadd.f32 %v299, %v319
      %v323 = vadd.f32 %v300, %v319
      %v324 = vadd.f32 %v301, %v319
      %v325 = vadd.f32 %v302, %v319
      %v326 = vadd.f32 %v303, %v319
      %v327 = vadd.f32 %v304, %v319
      %v328 = vadd.f32 %v305, %v319
      %v329 = vadd.f32 %v306, %v319
      %v330 = vadd.f32 %v307, %v319
      %v331 = vadd.f32 %v308, %v319
      %v332 = vadd.f32 %v309, %v319
      %v333 = vadd.f32 %v310, %v319
      %v334 = vadd.f32 %v311, %v319
      %v335 = vadd.f32 %v312, %v319
      %v336 = vadd.f32 %v313, %v319
      %v337 = vmax.f32 %v321, 0.0
      %v338 = vmax.f32 %v322, 0.0
      %v339 = vmax.f32 %v323, 0.0
      %v340 = vmax.f32 %v324, 0.0
      %v341 = vmax.f32 %v325, 0.0
      %v342 = vmax.f32 %v326, 0.0
      %v343 = vmax.f32 %v327, 0.0
      %v344 = vmax.f32 %v328, 0.0
      %v345 = vmax.f32 %v329, 0.0
      %v346 = vmax.f32 %v330, 0.0
      %v347 = vmax.f32 %v331, 0.0
      %v348 = vmax.f32 %v332, 0.0
      %v349 = vmax.f32 %v333, 0.0
      %v350 = vmax.f32 %v334, 0.0
      %v351 = vmax.f32 %v335, 0.0
      %v352 = vmax.f32 %v336, 0.0
      %v353 = vpack.c.bf16 %v338, %v337
      %v354 = vpack.c.bf16 %v340, %v339
      %v355 = vpack.c.bf16 %v342, %v341
      %v356 = vpack.c.bf16 %v344, %v343
      %v357 = vpack.c.bf16 %v346, %v345
      %v358 = vpack.c.bf16 %v348, %v347
      %v359 = vpack.c.bf16 %v350, %v349
      %v360 = vpack.c.bf16 %v352, %v351
      %v361 = vld [vmem:[%s4] sm:$0xf]
      %v362 = vld [vmem:[%s4 + $0x4] sm:$0xf]
      %v363 = vld [vmem:[%s4 + $0x8] sm:$0xf]
      %v364 = vld [vmem:[%s4 + $0xc] sm:$0xf]
      %v365 = vld [vmem:[%s4 + $0x10] sm:$0xf]
      %v366 = vld [vmem:[%s4 + $0x14] sm:$0xf]
      %v367 = vld [vmem:[%s4 + $0x18] sm:$0xf]
      %v368 = vld [vmem:[%s4 + $0x1c] sm:$0xf]
      %v369 = vld [vmem:[%s4 + $0x20] sm:$0xf]
      %v370 = vld [vmem:[%s4 + $0x24] sm:$0xf]
      %v371 = vld [vmem:[%s4 + $0x28] sm:$0xf]
      %v372 = vld [vmem:[%s4 + $0x2c] sm:$0xf]
      %v373 = vld [vmem:[%s4 + $0x30] sm:$0xf]
      %v374 = vld [vmem:[%s4 + $0x34] sm:$0xf]
      %v375 = vld [vmem:[%s4 + $0x38] sm:$0xf]
      %v376 = vld [vmem:[%s4 + $0x3c] sm:$0xf]
      %v393 = vunpack.c.l.b16 %v361
      %v394 = vunpack.c.l.b16 %v362
      %v395 = vunpack.c.l.b16 %v363
      %v396 = vunpack.c.l.b16 %v364
      %v397 = vunpack.c.l.b16 %v365
      %v398 = vunpack.c.l.b16 %v366
      %v399 = vunpack.c.l.b16 %v367
      %v400 = vunpack.c.l.b16 %v368
      %v401 = vunpack.c.l.b16 %v369
      %v402 = vunpack.c.l.b16 %v370
      %v403 = vunpack.c.l.b16 %v371
      %v404 = vunpack.c.l.b16 %v372
      %v405 = vunpack.c.l.b16 %v373
      %v406 = vunpack.c.l.b16 %v374
      %v407 = vunpack.c.l.b16 %v375
      %v408 = vunpack.c.l.b16 %v376
      %v409 = vpack.c.b16 %v394, %v393
      %v410 = vpack.c.b16 %v396, %v395
      %v411 = vpack.c.b16 %v398, %v397
      %v412 = vpack.c.b16 %v400, %v399
      %v413 = vpack.c.b16 %v402, %v401
      %v414 = vpack.c.b16 %v404, %v403
      %v415 = vpack.c.b16 %v406, %v405
      %v416 = vpack.c.b16 %v408, %v407
      %425 = vmatprep.subr.bf16.mxu0 0
      %426 = vmatpush1.bf16.msra.mxu0 %v409
      %427 = vmatprep.subr.bf16.mxu0 0
      %428 = vmatpush1.bf16.msra.mxu0 %v410
      %429 = vmatprep.subr.bf16.mxu0 0
      %430 = vmatpush1.bf16.msra.mxu0 %v411
      %431 = vmatprep.subr.bf16.mxu0 0
      %432 = vmatpush1.bf16.msra.mxu0 %v412
      %433 = vmatprep.subr.bf16.mxu0 0
      %434 = vmatpush1.bf16.msra.mxu0 %v413
      %435 = vmatprep.subr.bf16.mxu0 0
      %436 = vmatpush1.bf16.msra.mxu0 %v414
      %437 = vmatprep.subr.bf16.mxu0 0
      %438 = vmatpush1.bf16.msra.mxu0 %v415
      %439 = vmatprep.subr.bf16.mxu0 0
      %440 = vmatpush1.bf16.msra.mxu0 %v416
      %441 = vmatprep.subr.bf16.mxu0 0
      %442 = vmatpush1.bf16.msra.mxu0 0
      %443 = vmatprep.subr.bf16.mxu0 0
      %444 = vmatpush1.bf16.msra.mxu0 0
      %445 = vmatprep.subr.bf16.mxu0 0
      %446 = vmatpush1.bf16.msra.mxu0 0
      %447 = vmatprep.subr.bf16.mxu0 0
      %448 = vmatpush1.bf16.msra.mxu0 0
      %449 = vmatprep.subr.bf16.mxu0 0
      %450 = vmatpush1.bf16.msra.mxu0 0
      %451 = vmatprep.subr.bf16.mxu0 0
      %452 = vmatpush1.bf16.msra.mxu0 0
      %453 = vmatprep.subr.bf16.mxu0 0
      %454 = vmatpush1.bf16.msra.mxu0 0
      %455 = vmatprep.subr.bf16.mxu0 0
      %456 = vmatpush1.bf16.msra.mxu0 0
      %457 = vmatprep.mubr.bf16.mxu0 0
      %458 = vmatmul.mubr.bf16.gmra.mrb[0].mxu0 %v353
      %v459 = vpop.f32.mrb[0].mxu0
      %v460 = vadd.f32 0.0, %v459
      %v461 = vpop.f32.mrb[0].mxu0
      %v462 = vpop.f32.mrb[0].mxu0
      %v463 = vadd.f32 0.0, %v462
      %v464 = vpop.f32.mrb[0].mxu0
      %465 = vmatprep.mubr.bf16.mxu0 0
      %466 = vmatmul.mubr.bf16.gmra.mrb[0].mxu0 %v354
      %v467 = vpop.f32.mrb[0].mxu0
      %v468 = vadd.f32 0.0, %v467
      %v469 = vpop.f32.mrb[0].mxu0
      %v470 = vpop.f32.mrb[0].mxu0
      %v471 = vadd.f32 0.0, %v470
      %v472 = vpop.f32.mrb[0].mxu0
      %473 = vmatprep.mubr.bf16.mxu0 0
      %474 = vmatmul.mubr.bf16.gmra.mrb[0].mxu0 %v355
      %v475 = vpop.f32.mrb[0].mxu0
      %v476 = vadd.f32 0.0, %v475
      %v477 = vpop.f32.mrb[0].mxu0
      %v478 = vpop.f32.mrb[0].mxu0
      %v479 = vadd.f32 0.0, %v478
      %v480 = vpop.f32.mrb[0].mxu0
      %481 = vmatprep.mubr.bf16.mxu0 0
      %482 = vmatmul.mubr.bf16.gmra.mrb[0].mxu0 %v356
      %v483 = vpop.f32.mrb[0].mxu0
      %v484 = vadd.f32 0.0, %v483
      %v485 = vpop.f32.mrb[0].mxu0
      %v486 = vpop.f32.mrb[0].mxu0
      %v487 = vadd.f32 0.0, %v486
      %v488 = vpop.f32.mrb[0].mxu0
      %489 = vmatprep.mubr.bf16.mxu0 0
      %490 = vmatmul.mubr.bf16.gmra.mrb[0].mxu0 %v357
      %v491 = vpop.f32.mrb[0].mxu0
      %v492 = vadd.f32 0.0, %v491
      %v493 = vpop.f32.mrb[0].mxu0
      %v494 = vpop.f32.mrb[0].mxu0
      %v495 = vadd.f32 0.0, %v494
      %v496 = vpop.f32.mrb[0].mxu0
      %497 = vmatprep.mubr.bf16.mxu0 0
      %498 = vmatmul.mubr.bf16.gmra.mrb[0].mxu0 %v358
      %v499 = vpop.f32.mrb[0].mxu0
      %v500 = vadd.f32 0.0, %v499
      %v501 = vpop.f32.mrb[0].mxu0
      %v502 = vpop.f32.mrb[0].mxu0
      %v503 = vadd.f32 0.0, %v502
      %v504 = vpop.f32.mrb[0].mxu0
      %505 = vmatprep.mubr.bf16.mxu0 0
      %506 = vmatmul.mubr.bf16.gmra.mrb[0].mxu0 %v359
      %v507 = vpop.f32.mrb[0].mxu0
      %v508 = vadd.f32 0.0, %v507
      %v509 = vpop.f32.mrb[0].mxu0
      %v510 = vpop.f32.mrb[0].mxu0
      %v511 = vadd.f32 0.0, %v510
      %v512 = vpop.f32.mrb[0].mxu0
      %513 = vmatprep.mubr.bf16.mxu0 0
      %514 = vmatmul.mubr.bf16.gmra.mrb[0].mxu0 %v360
      %v515 = vpop.f32.mrb[0].mxu0
      %v516 = vadd.f32 0.0, %v515
      %v517 = vpop.f32.mrb[0].mxu0
      %v518 = vpop.f32.mrb[0].mxu0
      %v519 = vadd.f32 0.0, %v518
      %v520 = vpop.f32.mrb[0].mxu0
      %521 = vdwg.mxu0
      %v522 = vld [vmem:[%s268] sm:$0xff]
      %v523 = vld [vmem:[%s268 + $0x8] sm:$0xff]
      %v524 = vld [vmem:[%s268 + $0x10] sm:$0xff]
      %v525 = vld [vmem:[%s268 + $0x18] sm:$0xff]
      %v526 = vld [vmem:[%s268 + $0x20] sm:$0xff]
      %v527 = vld [vmem:[%s268 + $0x28] sm:$0xff]
      %v528 = vld [vmem:[%s268 + $0x30] sm:$0xff]
      %v529 = vld [vmem:[%s268 + $0x38] sm:$0xff]
      %v530 = vld [vmem:[%s268 + $0x40] sm:$0xff]
      %v531 = vld [vmem:[%s268 + $0x48] sm:$0xff]
      %v532 = vld [vmem:[%s268 + $0x50] sm:$0xff]
      %v533 = vld [vmem:[%s268 + $0x58] sm:$0xff]
      %v534 = vld [vmem:[%s268 + $0x60] sm:$0xff]
      %v535 = vld [vmem:[%s268 + $0x68] sm:$0xff]
      %v536 = vld [vmem:[%s268 + $0x70] sm:$0xff]
      %v537 = vld [vmem:[%s268 + $0x78] sm:$0xff]
      %v538 = vpack.c.bf16 %v523, %v522
      %v539 = vpack.c.bf16 %v525, %v524
      %v540 = vpack.c.bf16 %v527, %v526
      %v541 = vpack.c.bf16 %v529, %v528
      %v542 = vpack.c.bf16 %v531, %v530
      %v543 = vpack.c.bf16 %v533, %v532
      %v544 = vpack.c.bf16 %v535, %v534
      %v545 = vpack.c.bf16 %v537, %v536
      %v546 = vld [vmem:[%s5] sm:$0xf]
      %v547 = vld [vmem:[%s5 + $0x4] sm:$0xf]
      %v548 = vld [vmem:[%s5 + $0x8] sm:$0xf]
      %v549 = vld [vmem:[%s5 + $0xc] sm:$0xf]
      %v550 = vld [vmem:[%s5 + $0x10] sm:$0xf]
      %v551 = vld [vmem:[%s5 + $0x14] sm:$0xf]
      %v552 = vld [vmem:[%s5 + $0x18] sm:$0xf]
      %v553 = vld [vmem:[%s5 + $0x1c] sm:$0xf]
      %v554 = vld [vmem:[%s5 + $0x20] sm:$0xf]
      %v555 = vld [vmem:[%s5 + $0x24] sm:$0xf]
      %v556 = vld [vmem:[%s5 + $0x28] sm:$0xf]
      %v557 = vld [vmem:[%s5 + $0x2c] sm:$0xf]
      %v558 = vld [vmem:[%s5 + $0x30] sm:$0xf]
      %v559 = vld [vmem:[%s5 + $0x34] sm:$0xf]
      %v560 = vld [vmem:[%s5 + $0x38] sm:$0xf]
      %v561 = vld [vmem:[%s5 + $0x3c] sm:$0xf]
      %v578 = vunpack.c.l.b16 %v546
      %v579 = vunpack.c.l.b16 %v547
      %v580 = vunpack.c.l.b16 %v548
      %v581 = vunpack.c.l.b16 %v549
      %v582 = vunpack.c.l.b16 %v550
      %v583 = vunpack.c.l.b16 %v551
      %v584 = vunpack.c.l.b16 %v552
      %v585 = vunpack.c.l.b16 %v553
      %v586 = vunpack.c.l.b16 %v554
      %v587 = vunpack.c.l.b16 %v555
      %v588 = vunpack.c.l.b16 %v556
      %v589 = vunpack.c.l.b16 %v557
      %v590 = vunpack.c.l.b16 %v558
      %v591 = vunpack.c.l.b16 %v559
      %v592 = vunpack.c.l.b16 %v560
      %v593 = vunpack.c.l.b16 %v561
      %v594 = vpack.c.b16 %v579, %v578
      %v595 = vpack.c.b16 %v581, %v580
      %v596 = vpack.c.b16 %v583, %v582
      %v597 = vpack.c.b16 %v585, %v584
      %v598 = vpack.c.b16 %v587, %v586
      %v599 = vpack.c.b16 %v589, %v588
      %v600 = vpack.c.b16 %v591, %v590
      %v601 = vpack.c.b16 %v593, %v592
      %610 = vmatprep.subr.bf16.mxu0 0
      %611 = vmatpush1.bf16.msra.mxu0 %v594
      %612 = vmatprep.subr.bf16.mxu0 0
      %613 = vmatpush1.bf16.msra.mxu0 %v595
      %614 = vmatprep.subr.bf16.mxu0 0
      %615 = vmatpush1.bf16.msra.mxu0 %v596
      %616 = vmatprep.subr.bf16.mxu0 0
      %617 = vmatpush1.bf16.msra.mxu0 %v597
      %618 = vmatprep.subr.bf16.mxu0 0
      %619 = vmatpush1.bf16.msra.mxu0 %v598
      %620 = vmatprep.subr.bf16.mxu0 0
      %621 = vmatpush1.bf16.msra.mxu0 %v599
      %622 = vmatprep.subr.bf16.mxu0 0
      %623 = vmatpush1.bf16.msra.mxu0 %v600
      %624 = vmatprep.subr.bf16.mxu0 0
      %625 = vmatpush1.bf16.msra.mxu0 %v601
      %626 = vmatprep.subr.bf16.mxu0 0
      %627 = vmatpush1.bf16.msra.mxu0 0
      %628 = vmatprep.subr.bf16.mxu0 0
      %629 = vmatpush1.bf16.msra.mxu0 0
      %630 = vmatprep.subr.bf16.mxu0 0
      %631 = vmatpush1.bf16.msra.mxu0 0
      %632 = vmatprep.subr.bf16.mxu0 0
      %633 = vmatpush1.bf16.msra.mxu0 0
      %634 = vmatprep.subr.bf16.mxu0 0
      %635 = vmatpush1.bf16.msra.mxu0 0
      %636 = vmatprep.subr.bf16.mxu0 0
      %637 = vmatpush1.bf16.msra.mxu0 0
      %638 = vmatprep.subr.bf16.mxu0 0
      %639 = vmatpush1.bf16.msra.mxu0 0
      %640 = vmatprep.subr.bf16.mxu0 0
      %641 = vmatpush1.bf16.msra.mxu0 0
      %642 = vmatprep.mubr.bf16.mxu0 0
      %643 = vmatmul.mubr.bf16.gmra.mrb[0].mxu0 %v538
      %v644 = vpop.f32.mrb[0].mxu0
      %v645 = vadd.f32 0.0, %v644
      %v646 = vpop.f32.mrb[0].mxu0
      %v647 = vpop.f32.mrb[0].mxu0
      %v648 = vadd.f32 0.0, %v647
      %v649 = vpop.f32.mrb[0].mxu0
      %650 = vmatprep.mubr.bf16.mxu0 0
      %651 = vmatmul.mubr.bf16.gmra.mrb[0].mxu0 %v539
      %v652 = vpop.f32.mrb[0].mxu0
      %v653 = vadd.f32 0.0, %v652
      %v654 = vpop.f32.mrb[0].mxu0
      %v655 = vpop.f32.mrb[0].mxu0
      %v656 = vadd.f32 0.0, %v655
      %v657 = vpop.f32.mrb[0].mxu0
      %658 = vmatprep.mubr.bf16.mxu0 0
      %659 = vmatmul.mubr.bf16.gmra.mrb[0].mxu0 %v540
      %v660 = vpop.f32.mrb[0].mxu0
      %v661 = vadd.f32 0.0, %v660
      %v662 = vpop.f32.mrb[0].mxu0
      %v663 = vpop.f32.mrb[0].mxu0
      %v664 = vadd.f32 0.0, %v663
      %v665 = vpop.f32.mrb[0].mxu0
      %666 = vmatprep.mubr.bf16.mxu0 0
      %667 = vmatmul.mubr.bf16.gmra.mrb[0].mxu0 %v541
      %v668 = vpop.f32.mrb[0].mxu0
      %v669 = vadd.f32 0.0, %v668
      %v670 = vpop.f32.mrb[0].mxu0
      %v671 = vpop.f32.mrb[0].mxu0
      %v672 = vadd.f32 0.0, %v671
      %v673 = vpop.f32.mrb[0].mxu0
      %674 = vmatprep.mubr.bf16.mxu0 0
      %675 = vmatmul.mubr.bf16.gmra.mrb[0].mxu0 %v542
      %v676 = vpop.f32.mrb[0].mxu0
      %v677 = vadd.f32 0.0, %v676
      %v678 = vpop.f32.mrb[0].mxu0
      %v679 = vpop.f32.mrb[0].mxu0
      %v680 = vadd.f32 0.0, %v679
      %v681 = vpop.f32.mrb[0].mxu0
      %682 = vmatprep.mubr.bf16.mxu0 0
      %683 = vmatmul.mubr.bf16.gmra.mrb[0].mxu0 %v543
      %v684 = vpop.f32.mrb[0].mxu0
      %v685 = vadd.f32 0.0, %v684
      %v686 = vpop.f32.mrb[0].mxu0
      %v687 = vpop.f32.mrb[0].mxu0
      %v688 = vadd.f32 0.0, %v687
      %v689 = vpop.f32.mrb[0].mxu0
      %690 = vmatprep.mubr.bf16.mxu0 0
      %691 = vmatmul.mubr.bf16.gmra.mrb[0].mxu0 %v544
      %v692 = vpop.f32.mrb[0].mxu0
      %v693 = vadd.f32 0.0, %v692
      %v694 = vpop.f32.mrb[0].mxu0
      %v695 = vpop.f32.mrb[0].mxu0
      %v696 = vadd.f32 0.0, %v695
      %v697 = vpop.f32.mrb[0].mxu0
      %698 = vmatprep.mubr.bf16.mxu0 0
      %699 = vmatmul.mubr.bf16.gmra.mrb[0].mxu0 %v545
      %v700 = vpop.f32.mrb[0].mxu0
      %v701 = vadd.f32 0.0, %v700
      %v702 = vpop.f32.mrb[0].mxu0
      %v703 = vpop.f32.mrb[0].mxu0
      %v704 = vadd.f32 0.0, %v703
      %v705 = vpop.f32.mrb[0].mxu0
      %706 = vdwg.mxu0
      %v707 = vadd.f32 %v460, %v463
      %v708 = vadd.f32 %v707, %v468
      %v709 = vadd.f32 %v708, %v471
      %v710 = vadd.f32 %v709, %v476
      %v711 = vadd.f32 %v710, %v479
      %v712 = vadd.f32 %v711, %v484
      %v713 = vadd.f32 %v712, %v487
      %v714 = vadd.f32 %v713, %v492
      %v715 = vadd.f32 %v714, %v495
      %v716 = vadd.f32 %v715, %v500
      %v717 = vadd.f32 %v716, %v503
      %v718 = vadd.f32 %v717, %v508
      %v719 = vadd.f32 %v718, %v511
      %v720 = vadd.f32 %v719, %v516
      %v721 = vadd.f32 %v720, %v519
      %v722 = vrot.slane %v721, 4
      %v723 = vadd.f32 %v721, %v722
      %v724 = vrot.slane %v723, 2
      %v725 = vadd.f32 %v723, %v724
      %v726 = vrot.slane %v725, 1
      %v727 = vadd.f32 %v725, %v726
      %v728 = vmul.f32 %v460, %v460
      %v729 = vmul.f32 %v463, %v463
      %v730 = vmul.f32 %v468, %v468
      %v731 = vmul.f32 %v471, %v471
      %v732 = vmul.f32 %v476, %v476
      %v733 = vmul.f32 %v479, %v479
      %v734 = vmul.f32 %v484, %v484
      %v735 = vmul.f32 %v487, %v487
      %v736 = vmul.f32 %v492, %v492
      %v737 = vmul.f32 %v495, %v495
      %v738 = vmul.f32 %v500, %v500
      %v739 = vmul.f32 %v503, %v503
      %v740 = vmul.f32 %v508, %v508
      %v741 = vmul.f32 %v511, %v511
      %v742 = vmul.f32 %v516, %v516
      %v743 = vmul.f32 %v519, %v519
      %v744 = vadd.f32 %v728, %v729
      %v745 = vadd.f32 %v744, %v730
      %v746 = vadd.f32 %v745, %v731
      %v747 = vadd.f32 %v746, %v732
      %v748 = vadd.f32 %v747, %v733
      %v749 = vadd.f32 %v748, %v734
      %v750 = vadd.f32 %v749, %v735
      %v751 = vadd.f32 %v750, %v736
      %v752 = vadd.f32 %v751, %v737
      %v753 = vadd.f32 %v752, %v738
      %v754 = vadd.f32 %v753, %v739
      %v755 = vadd.f32 %v754, %v740
      %v756 = vadd.f32 %v755, %v741
      %v757 = vadd.f32 %v756, %v742
      %v758 = vadd.f32 %v757, %v743
      %v759 = vrot.slane %v758, 4
      %v760 = vadd.f32 %v758, %v759
      %v761 = vrot.slane %v760, 2
      %v762 = vadd.f32 %v760, %v761
      %v763 = vrot.slane %v762, 1
      %v764 = vadd.f32 %v762, %v763
      %v765 = vadd.f32 %v645, %v648
      %v766 = vadd.f32 %v765, %v653
      %v767 = vadd.f32 %v766, %v656
      %v768 = vadd.f32 %v767, %v661
      %v769 = vadd.f32 %v768, %v664
      %v770 = vadd.f32 %v769, %v669
      %v771 = vadd.f32 %v770, %v672
      %v772 = vadd.f32 %v771, %v677
      %v773 = vadd.f32 %v772, %v680
      %v774 = vadd.f32 %v773, %v685
      %v775 = vadd.f32 %v774, %v688
      %v776 = vadd.f32 %v775, %v693
      %v777 = vadd.f32 %v776, %v696
      %v778 = vadd.f32 %v777, %v701
      %v779 = vadd.f32 %v778, %v704
      %v780 = vrot.slane %v779, 4
      %v781 = vadd.f32 %v779, %v780
      %v782 = vrot.slane %v781, 2
      %v783 = vadd.f32 %v781, %v782
      %v784 = vrot.slane %v783, 1
      %v785 = vadd.f32 %v783, %v784
      %v786 = vmul.f32 %v645, %v645
      %v787 = vmul.f32 %v648, %v648
      %v788 = vmul.f32 %v653, %v653
      %v789 = vmul.f32 %v656, %v656
      %v790 = vmul.f32 %v661, %v661
      %v791 = vmul.f32 %v664, %v664
      %v792 = vmul.f32 %v669, %v669
      %v793 = vmul.f32 %v672, %v672
      %v794 = vmul.f32 %v677, %v677
      %v795 = vmul.f32 %v680, %v680
      %v796 = vmul.f32 %v685, %v685
      %v797 = vmul.f32 %v688, %v688
      %v798 = vmul.f32 %v693, %v693
      %v799 = vmul.f32 %v696, %v696
      %v800 = vmul.f32 %v701, %v701
      %v801 = vmul.f32 %v704, %v704
      %v802 = vadd.f32 %v786, %v787
      %v803 = vadd.f32 %v802, %v788
      %v804 = vadd.f32 %v803, %v789
      %v805 = vadd.f32 %v804, %v790
      %v806 = vadd.f32 %v805, %v791
      %v807 = vadd.f32 %v806, %v792
      %v808 = vadd.f32 %v807, %v793
      %v809 = vadd.f32 %v808, %v794
      %v810 = vadd.f32 %v809, %v795
      %v811 = vadd.f32 %v810, %v796
      %v812 = vadd.f32 %v811, %v797
      %v813 = vadd.f32 %v812, %v798
      %v814 = vadd.f32 %v813, %v799
      %v815 = vadd.f32 %v814, %v800
      %v816 = vadd.f32 %v815, %v801
      %v817 = vrot.slane %v816, 4
      %v818 = vadd.f32 %v816, %v817
      %v819 = vrot.slane %v818, 2
      %v820 = vadd.f32 %v818, %v819
      %v821 = vrot.slane %v820, 1
      %v822 = vadd.f32 %v820, %v821
      %vm823 = vcmask 1040384
      %v824 = vsel %vm823, %v727, %v764
      %vm825 = vcmask 1041408
      %v826 = vsel %vm825, %v824, %v785
      %vm827 = vcmask 1042432
      %v828 = vsel %vm827, %v826, %v822
      %vm829 = vcmask 1043456
      %v830 = vsel %vm829, %v828, 0.0
      %831 = vst [vmem:[%s273] sm:$0xff] %v830
      %p832 = scmp.lt.s32.totalorder %s17, 3
      %s833 = scalar_select %p832, %s17, 3
      %s834 = smul.addr %s833, 8
      %s835 = scalar_lea.vmem %s6, %s834
      // Predicated region
      $region45: #{bottleneck_forward.6} parent=43 // pred_check
        %p836 = pneg %p171
      $region46: #{bottleneck_forward.6} parent=43 // pred_check_branch
        %838 = sbr.rel (%p836) target = $region48
      $region47: #{bottleneck_forward.6} parent=43 // pred_region
        _
      $region48: #{bottleneck_forward.6} parent=43 // pred_fallthru
        _
    $region44: #{bottleneck_forward.6} parent=5 // pred_fallthru
      _
    %p839 = scmp.le.s32.totalorder 2, %s12
    // Predicated region
    $region49: #{bottleneck_forward.6} parent=5 // pred_check
      %p840 = pneg %p839
    $region50: #{bottleneck_forward.6} parent=5 // pred_check_branch
      %842 = sbr.rel (%p840) target = $region52
    $region51: #{bottleneck_forward.6} parent=5 // pred_region
      %s843 = ssub.s32 %s12, 2
      // Predicated region
      $region53: #{bottleneck_forward.6} parent=51 // pred_check
        %p844 = pneg %p177
      $region54: #{bottleneck_forward.6} parent=51 // pred_check_branch
        %846 = sbr.rel (%p844) target = $region56
      $region55: #{bottleneck_forward.6} parent=51 // pred_region
        %p847 = scmp.lt.s32.totalorder %s18, 3
        %s848 = scalar_select %p847, %s18, 3
        %s849 = smul.addr %s848, 8
        %s850 = scalar_lea.vmem %s6, %s849
      $region56: #{bottleneck_forward.6} parent=51 // pred_fallthru
        _
    $region52: #{bottleneck_forward.6} parent=5 // pred_fallthru
      _
  $region6: #{bottleneck_forward.6} parent=0 // loop_footer
    %s16 = sadd.s32 1, %s12
  $region7: #{bottleneck_forward.6} parent=0 // loop_footer_branch
    %11 = sbr.rel target = $region3
  $region8: #{bottleneck_forward.6} parent=0 // loop_exit
    _

// kernel: bottleneck_forward.7
$region0: #{bottleneck_forward.7}
  #allocation0 [shape = 'u32[]', space=smem, size = 0x4, offset = 0x4, fixed_abs, tag = 'smem constant byte address 0x4 - core index']
  #allocation1 [shape = 'u32[144,128]{1,0:T(1,128)}', space=vmem, size = 0x12000, scoped, tag = 'internal scratch']
  %s0 = inlined_call_operand.vmem [shape: f32[512,128], index: 0, kind: input, shape index: {}]
  %s1 = inlined_call_operand.vmem [shape: f32[512,128], index: 1, kind: input, shape index: {}]
  %s2 = inlined_call_operand.vmem [shape: f32[1,128], index: 2, kind: input, shape index: {}]
  %s3 = inlined_call_operand.vmem [shape: f32[1,128], index: 3, kind: input, shape index: {}]
  %s4 = inlined_call_operand.vmem [shape: bf16[128,128], index: 4, kind: input, shape index: {}]
  %s5 = inlined_call_operand.vmem [shape: bf16[128,128], index: 5, kind: input, shape index: {}]
  %s6 = inlined_call_operand.vmem [shape: f32[1,128], index: 6, kind: input, shape index: {}]
  %s7 = inlined_call_operand.vmem [shape: f32[1,128], index: 7, kind: input, shape index: {}]
  %s8 = inlined_call_operand.vmem [shape: f32[1,128], index: 8, kind: input, shape index: {}]
  %s9 = inlined_call_operand.vmem [shape: f32[1,128], index: 9, kind: input, shape index: {}]
  %s10 = inlined_call_operand.vmem [shape: f32[512,128], index: 10, kind: output, shape index: {}]
  %s11 = sld [smem:[#allocation0]]
  $region73: #{bottleneck_forward.7} parent=0
    _
  %s13 = ssub.s32 1, %s11
  %s14 = scalar_select 0, %s13, %s11
  loop: start=0, step=1, limit=6
  $region2: #{bottleneck_forward.7} parent=0 // loop_pre_header
    _
  $region3: #{bottleneck_forward.7} parent=0 // loop_header
    %s16 = sphi 0, %s20
    %p17 = scmp.ge.s32.totalorder %s16, 6
    %s26 = sphi 0, %s28
    %s29 = sphi 0, %s26
    %s30 = sphi 0, %s29
    %s46 = sphi 0, %s30
    %s52 = sphi 0, %s54
    %s55 = sphi 0, %s52
    %s56 = sphi 0, %s55
    %s72 = sphi 0, %s56
    %s76 = sphi 0, %s76
    %s78 = sphi 0, %s76
    %s79 = sphi 0, %s78
    %s93 = sphi 0, %s79
    %s97 = sphi 0, %s97
    %s99 = sphi 0, %s97
    %s100 = sphi 0, %s99
    %s114 = sphi 0, %s100
    %s118 = sphi 0, %s118
    %s120 = sphi 0, %s118
    %s121 = sphi 0, %s120
    %s135 = sphi 0, %s121
    %s139 = sphi 0, %s139
    %s141 = sphi 0, %s139
    %s142 = sphi 0, %s141
    %s156 = sphi 0, %s142
    %s160 = sphi 0, %s160
    %s162 = sphi 0, %s160
    %s163 = sphi 0, %s162
    %s177 = sphi 0, %s163
    %s181 = sphi 0, %s181
    %s183 = sphi 0, %s181
    %s184 = sphi 0, %s183
    %s198 = sphi 0, %s184
    %s202 = sphi 0, %s202
    %s204 = sphi 0, %s202
    %s205 = sphi 0, %s204
    %s219 = sphi 0, %s205
    %s223 = sphi 0, %s223
    %s225 = sphi 0, %s223
    %s226 = sphi 0, %s225
    %s240 = sphi 0, %s226
    %s246 = sphi 0, %s248
    %s249 = sphi 0, %s246
    %s250 = sphi 0, %s249
    %s266 = sphi 0, %s250
  $region4: #{bottleneck_forward.7} parent=0 // loop_header_branch
    %19 = sbr.rel (%p17) target = $region8
  $region5: #{bottleneck_forward.7} parent=0 // loop_body
    %s21 = ssub.s32 %s16, 1
    %s22 = ssub.s32 %s16, 2
    %s23 = sadd.s32 %s16, 1
    %s24 = ssub.s32 %s16, %s23
    %p25 = scmp.eq.s32.totalorder %s24, 0
    %s27 = sadd.s32 %s26, 1
    %s28 = scalar_select %p25, %s26, %s27
    %p31 = pneg %p25
    %p32 = scmp.eq.s32.totalorder %s16, 3
    %p33 = por %p31, %p32
    %p34 = scmp.ne.s32.totalorder %s26, %s29
    %p35 = scmp.eq.s32.totalorder %s16, 0
    %p36 = por %p34, %p35
    %p37 = scmp.ne.s32.totalorder %s26, %s29
    %p38 = scmp.eq.s32.totalorder %s21, 3
    %p39 = por %p37, %p38
    %p40 = scmp.ne.s32.totalorder %s29, %s30
    %p41 = scmp.eq.s32.totalorder %s21, 0
    %p42 = por %p40, %p41
    %p43 = scmp.ne.s32.totalorder %s29, %s30
    %p44 = scmp.eq.s32.totalorder %s22, 3
    %p45 = por %p43, %p44
    %p47 = scmp.ne.s32.totalorder %s30, %s46
    %p48 = scmp.eq.s32.totalorder %s22, 0
    %p49 = por %p47, %p48
    %s50 = ssub.s32 %s16, %s23
    %p51 = scmp.eq.s32.totalorder %s50, 0
    %s53 = sadd.s32 %s52, 1
    %s54 = scalar_select %p51, %s52, %s53
    %p57 = pneg %p51
    %p58 = scmp.eq.s32.totalorder %s16, 3
    %p59 = por %p57, %p58
    %p60 = scmp.ne.s32.totalorder %s52, %s55
    %p61 = scmp.eq.s32.totalorder %s16, 0
    %p62 = por %p60, %p61
    %p63 = scmp.ne.s32.totalorder %s52, %s55
    %p64 = scmp.eq.s32.totalorder %s21, 3
    %p65 = por %p63, %p64
    %p66 = scmp.ne.s32.totalorder %s55, %s56
    %p67 = scmp.eq.s32.totalorder %s21, 0
    %p68 = por %p66, %p67
    %p69 = scmp.ne.s32.totalorder %s55, %s56
    %p70 = scmp.eq.s32.totalorder %s22, 3
    %p71 = por %p69, %p70
    %p73 = scmp.ne.s32.totalorder %s56, %s72
    %p74 = scmp.eq.s32.totalorder %s22, 0
    %p75 = por %p73, %p74
    %s77 = sadd.s32 %s76, 1
    %p80 = scmp.eq.s32.totalorder %s16, 3
    %p81 = scmp.ne.s32.totalorder %s76, %s78
    %p82 = scmp.eq.s32.totalorder %s16, 0
    %p83 = por %p81, %p82
    %p84 = scmp.ne.s32.totalorder %s76, %s78
    %p85 = scmp.eq.s32.totalorder %s21, 3
    %p86 = por %p84, %p85
    %p87 = scmp.ne.s32.totalorder %s78, %s79
    %p88 = scmp.eq.s32.totalorder %s21, 0
    %p89 = por %p87, %p88
    %p90 = scmp.ne.s32.totalorder %s78, %s79
    %p91 = scmp.eq.s32.totalorder %s22, 3
    %p92 = por %p90, %p91
    %p94 = scmp.ne.s32.totalorder %s79, %s93
    %p95 = scmp.eq.s32.totalorder %s22, 0
    %p96 = por %p94, %p95
    %s98 = sadd.s32 %s97, 1
    %p101 = scmp.eq.s32.totalorder %s16, 3
    %p102 = scmp.ne.s32.totalorder %s97, %s99
    %p103 = scmp.eq.s32.totalorder %s16, 0
    %p104 = por %p102, %p103
    %p105 = scmp.ne.s32.totalorder %s97, %s99
    %p106 = scmp.eq.s32.totalorder %s21, 3
    %p107 = por %p105, %p106
    %p108 = scmp.ne.s32.totalorder %s99, %s100
    %p109 = scmp.eq.s32.totalorder %s21, 0
    %p110 = por %p108, %p109
    %p111 = scmp.ne.s32.totalorder %s99, %s100
    %p112 = scmp.eq.s32.totalorder %s22, 3
    %p113 = por %p111, %p112
    %p115 = scmp.ne.s32.totalorder %s100, %s114
    %p116 = scmp.eq.s32.totalorder %s22, 0
    %p117 = por %p115, %p116
    %s119 = sadd.s32 %s118, 1
    %p122 = scmp.eq.s32.totalorder %s16, 3
    %p123 = scmp.ne.s32.totalorder %s118, %s120
    %p124 = scmp.eq.s32.totalorder %s16, 0
    %p125 = por %p123, %p124
    %p126 = scmp.ne.s32.totalorder %s118, %s120
    %p127 = scmp.eq.s32.totalorder %s21, 3
    %p128 = por %p126, %p127
    %p129 = scmp.ne.s32.totalorder %s120, %s121
    %p130 = scmp.eq.s32.totalorder %s21, 0
    %p131 = por %p129, %p130
    %p132 = scmp.ne.s32.totalorder %s120, %s121
    %p133 = scmp.eq.s32.totalorder %s22, 3
    %p134 = por %p132, %p133
    %p136 = scmp.ne.s32.totalorder %s121, %s135
    %p137 = scmp.eq.s32.totalorder %s22, 0
    %p138 = por %p136, %p137
    %s140 = sadd.s32 %s139, 1
    %p143 = scmp.eq.s32.totalorder %s16, 3
    %p144 = scmp.ne.s32.totalorder %s139, %s141
    %p145 = scmp.eq.s32.totalorder %s16, 0
    %p146 = por %p144, %p145
    %p147 = scmp.ne.s32.totalorder %s139, %s141
    %p148 = scmp.eq.s32.totalorder %s21, 3
    %p149 = por %p147, %p148
    %p150 = scmp.ne.s32.totalorder %s141, %s142
    %p151 = scmp.eq.s32.totalorder %s21, 0
    %p152 = por %p150, %p151
    %p153 = scmp.ne.s32.totalorder %s141, %s142
    %p154 = scmp.eq.s32.totalorder %s22, 3
    %p155 = por %p153, %p154
    %p157 = scmp.ne.s32.totalorder %s142, %s156
    %p158 = scmp.eq.s32.totalorder %s22, 0
    %p159 = por %p157, %p158
    %s161 = sadd.s32 %s160, 1
    %p164 = scmp.eq.s32.totalorder %s16, 3
    %p165 = scmp.ne.s32.totalorder %s160, %s162
    %p166 = scmp.eq.s32.totalorder %s16, 0
    %p167 = por %p165, %p166
    %p168 = scmp.ne.s32.totalorder %s160, %s162
    %p169 = scmp.eq.s32.totalorder %s21, 3
    %p170 = por %p168, %p169
    %p171 = scmp.ne.s32.totalorder %s162, %s163
    %p172 = scmp.eq.s32.totalorder %s21, 0
    %p173 = por %p171, %p172
    %p174 = scmp.ne.s32.totalorder %s162, %s163
    %p175 = scmp.eq.s32.totalorder %s22, 3
    %p176 = por %p174, %p175
    %p178 = scmp.ne.s32.totalorder %s163, %s177
    %p179 = scmp.eq.s32.totalorder %s22, 0
    %p180 = por %p178, %p179
    %s182 = sadd.s32 %s181, 1
    %p185 = scmp.eq.s32.totalorder %s16, 3
    %p186 = scmp.ne.s32.totalorder %s181, %s183
    %p187 = scmp.eq.s32.totalorder %s16, 0
    %p188 = por %p186, %p187
    %p189 = scmp.ne.s32.totalorder %s181, %s183
    %p190 = scmp.eq.s32.totalorder %s21, 3
    %p191 = por %p189, %p190
    %p192 = scmp.ne.s32.totalorder %s183, %s184
    %p193 = scmp.eq.s32.totalorder %s21, 0
    %p194 = por %p192, %p193
    %p195 = scmp.ne.s32.totalorder %s183, %s184
    %p196 = scmp.eq.s32.totalorder %s22, 3
    %p197 = por %p195, %p196
    %p199 = scmp.ne.s32.totalorder %s184, %s198
    %p200 = scmp.eq.s32.totalorder %s22, 0
    %p201 = por %p199, %p200
    %s203 = sadd.s32 %s202, 1
    %p206 = scmp.eq.s32.totalorder %s16, 3
    %p207 = scmp.ne.s32.totalorder %s202, %s204
    %p208 = scmp.eq.s32.totalorder %s16, 0
    %p209 = por %p207, %p208
    %p210 = scmp.ne.s32.totalorder %s202, %s204
    %p211 = scmp.eq.s32.totalorder %s21, 3
    %p212 = por %p210, %p211
    %p213 = scmp.ne.s32.totalorder %s204, %s205
    %p214 = scmp.eq.s32.totalorder %s21, 0
    %p215 = por %p213, %p214
    %p216 = scmp.ne.s32.totalorder %s204, %s205
    %p217 = scmp.eq.s32.totalorder %s22, 3
    %p218 = por %p216, %p217
    %p220 = scmp.ne.s32.totalorder %s205, %s219
    %p221 = scmp.eq.s32.totalorder %s22, 0
    %p222 = por %p220, %p221
    %s224 = sadd.s32 %s223, 1
    %p227 = scmp.eq.s32.totalorder %s16, 3
    %p228 = scmp.ne.s32.totalorder %s223, %s225
    %p229 = scmp.eq.s32.totalorder %s16, 0
    %p230 = por %p228, %p229
    %p231 = scmp.ne.s32.totalorder %s223, %s225
    %p232 = scmp.eq.s32.totalorder %s21, 3
    %p233 = por %p231, %p232
    %p234 = scmp.ne.s32.totalorder %s225, %s226
    %p235 = scmp.eq.s32.totalorder %s21, 0
    %p236 = por %p234, %p235
    %p237 = scmp.ne.s32.totalorder %s225, %s226
    %p238 = scmp.eq.s32.totalorder %s22, 3
    %p239 = por %p237, %p238
    %p241 = scmp.ne.s32.totalorder %s226, %s240
    %p242 = scmp.eq.s32.totalorder %s22, 0
    %p243 = por %p241, %p242
    %s244 = ssub.s32 %s16, %s23
    %p245 = scmp.eq.s32.totalorder %s244, 0
    %s247 = sadd.s32 %s246, 1
    %s248 = scalar_select %p245, %s246, %s247
    %p251 = pneg %p245
    %p252 = scmp.eq.s32.totalorder %s16, 3
    %p253 = por %p251, %p252
    %p254 = scmp.ne.s32.totalorder %s246, %s249
    %p255 = scmp.eq.s32.totalorder %s16, 0
    %p256 = por %p254, %p255
    %p257 = scmp.ne.s32.totalorder %s246, %s249
    %p258 = scmp.eq.s32.totalorder %s21, 3
    %p259 = por %p257, %p258
    %p260 = scmp.ne.s32.totalorder %s249, %s250
    %p261 = scmp.eq.s32.totalorder %s21, 0
    %p262 = por %p260, %p261
    %p263 = scmp.ne.s32.totalorder %s249, %s250
    %p264 = scmp.eq.s32.totalorder %s22, 3
    %p265 = por %p263, %p264
    %p267 = scmp.ne.s32.totalorder %s250, %s266
    %p268 = scmp.eq.s32.totalorder %s22, 0
    %p269 = por %p267, %p268
    %p270 = scmp.le.s32.totalorder 1, %s16
    %p271 = scmp.lt.s32.totalorder %s16, 5
    %p272 = pnand %p270, %p271
    %p273 = pneg %p272
    // Predicated region
    $region9: #{bottleneck_forward.7} parent=5 // pred_check
      _
    $region10: #{bottleneck_forward.7} parent=5 // pred_check_branch
      %275 = sbr.rel (%p272) target = $region12
    $region11: #{bottleneck_forward.7} parent=5 // pred_region
      %s276 = ssub.s32 %s16, 1
      // Predicated region
      $region13: #{bottleneck_forward.7} parent=11 // pred_check
        %p277 = pneg %p89
      $region14: #{bottleneck_forward.7} parent=11 // pred_check_branch
        %279 = sbr.rel (%p277) target = $region16
      $region15: #{bottleneck_forward.7} parent=11 // pred_region
        _
      $region16: #{bottleneck_forward.7} parent=11 // pred_fallthru
        _
      // Predicated region
      $region17: #{bottleneck_forward.7} parent=11 // pred_check
        %p280 = pneg %p110
      $region18: #{bottleneck_forward.7} parent=11 // pred_check_branch
        %282 = sbr.rel (%p280) target = $region20
      $region19: #{bottleneck_forward.7} parent=11 // pred_region
        _
      $region20: #{bottleneck_forward.7} parent=11 // pred_fallthru
        _
      // Predicated region
      $region21: #{bottleneck_forward.7} parent=11 // pred_check
        %p283 = pneg %p131
      $region22: #{bottleneck_forward.7} parent=11 // pred_check_branch
        %285 = sbr.rel (%p283) target = $region24
      $region23: #{bottleneck_forward.7} parent=11 // pred_region
        _
      $region24: #{bottleneck_forward.7} parent=11 // pred_fallthru
        _
      // Predicated region
      $region25: #{bottleneck_forward.7} parent=11 // pred_check
        %p286 = pneg %p152
      $region26: #{bottleneck_forward.7} parent=11 // pred_check_branch
        %288 = sbr.rel (%p286) target = $region28
      $region27: #{bottleneck_forward.7} parent=11 // pred_region
        _
      $region28: #{bottleneck_forward.7} parent=11 // pred_fallthru
        _
      // Predicated region
      $region29: #{bottleneck_forward.7} parent=11 // pred_check
        %p289 = pneg %p173
      $region30: #{bottleneck_forward.7} parent=11 // pred_check_branch
        %291 = sbr.rel (%p289) target = $region32
      $region31: #{bottleneck_forward.7} parent=11 // pred_region
        _
      $region32: #{bottleneck_forward.7} parent=11 // pred_fallthru
        _
      // Predicated region
      $region33: #{bottleneck_forward.7} parent=11 // pred_check
        %p292 = pneg %p194
      $region34: #{bottleneck_forward.7} parent=11 // pred_check_branch
        %294 = sbr.rel (%p292) target = $region36
      $region35: #{bottleneck_forward.7} parent=11 // pred_region
        _
      $region36: #{bottleneck_forward.7} parent=11 // pred_fallthru
        _
      // Predicated region
      $region37: #{bottleneck_forward.7} parent=11 // pred_check
        %p295 = pneg %p215
      $region38: #{bottleneck_forward.7} parent=11 // pred_check_branch
        %297 = sbr.rel (%p295) target = $region40
      $region39: #{bottleneck_forward.7} parent=11 // pred_region
        _
      $region40: #{bottleneck_forward.7} parent=11 // pred_fallthru
        _
      // Predicated region
      $region41: #{bottleneck_forward.7} parent=11 // pred_check
        %p298 = pneg %p236
      $region42: #{bottleneck_forward.7} parent=11 // pred_check_branch
        %300 = sbr.rel (%p298) target = $region44
      $region43: #{bottleneck_forward.7} parent=11 // pred_region
        _
      $region44: #{bottleneck_forward.7} parent=11 // pred_fallthru
        _
    $region12: #{bottleneck_forward.7} parent=5 // pred_fallthru
      _
    %p301 = scmp.lt.s32.totalorder %s16, 4
    // Predicated region
    $region45: #{bottleneck_forward.7} parent=5 // pred_check
      %p302 = pneg %p301
    $region46: #{bottleneck_forward.7} parent=5 // pred_check_branch
      %304 = sbr.rel (%p302) target = $region48
    $region47: #{bottleneck_forward.7} parent=5 // pred_region
      // Predicated region
      $region49: #{bottleneck_forward.7} parent=47 // pred_check
        %p305 = pneg %p36
      $region50: #{bottleneck_forward.7} parent=47 // pred_check_branch
        %307 = sbr.rel (%p305) target = $region52
      $region51: #{bottleneck_forward.7} parent=47 // pred_region
        %s308 = smul.u32 16, %s16
        %p309 = scmp.lt.s32.totalorder %s308, 63
        %s310 = scalar_select %p309, %s308, 63
        %s311 = smul.addr %s310, 8
        %s312 = scalar_lea.vmem %s0, %s311
        %s313 = smul.u32 16, %s16
      $region52: #{bottleneck_forward.7} parent=47 // pred_fallthru
        _
      // Predicated region
      $region53: #{bottleneck_forward.7} parent=47 // pred_check
        %p314 = pneg %p62
      $region54: #{bottleneck_forward.7} parent=47 // pred_check_branch
        %316 = sbr.rel (%p314) target = $region56
      $region55: #{bottleneck_forward.7} parent=47 // pred_region
        %s317 = smul.u32 16, %s16
        %p318 = scmp.lt.s32.totalorder %s317, 63
        %s319 = scalar_select %p318, %s317, 63
        %s320 = smul.addr %s319, 8
        %s321 = scalar_lea.vmem %s1, %s320
        %s322 = smul.u32 16, %s16
      $region56: #{bottleneck_forward.7} parent=47 // pred_fallthru
        _
    $region48: #{bottleneck_forward.7} parent=5 // pred_fallthru
      _
    %p323 = scmp.le.s32.totalorder 1, %s16
    %p324 = scmp.lt.s32.totalorder %s16, 5
    %p325 = pnand %p323, %p324
    %p326 = pneg %p325
    // Predicated region
    $region57: #{bottleneck_forward.7} parent=5 // pred_check
      _
    $region58: #{bottleneck_forward.7} parent=5 // pred_check_branch
      %328 = sbr.rel (%p325) target = $region60
    $region59: #{bottleneck_forward.7} parent=5 // pred_region
      %s329 = ssub.s32 %s16, 1
      %s330 = smul.u32 16, %s21
      %p331 = scmp.lt.s32.totalorder %s330, 63
      %s332 = scalar_select %p331, %s330, 63
      %s333 = smul.addr %s332, 8
      %s334 = scalar_lea.vmem %s0, %s333
      %p335 = pneg %p42
      %p336 = pneg %p39
      %s337 = smul.u32 16, %s21
      %p338 = scmp.lt.s32.totalorder %s337, 63
      %s339 = scalar_select %p338, %s337, 63
      %s340 = smul.addr %s339, 8
      %s341 = scalar_lea.vmem %s1, %s340
      %p342 = pneg %p68
      %p343 = pneg %p65
      %p344 = pneg %p89
      %p345 = pneg %p86
      %p346 = pneg %p110
      %p347 = pneg %p107
      %p348 = pneg %p131
      %p349 = pneg %p128
      %p350 = pneg %p152
      %p351 = pneg %p149
      %p352 = pneg %p173
      %p353 = pneg %p170
      %p354 = pneg %p194
      %p355 = pneg %p191
      %p356 = pneg %p215
      %p357 = pneg %p212
      %p358 = pneg %p236
      %p359 = pneg %p233
      %p360 = pneg %p262
      %p361 = pneg %p259
      %s362 = smul.u32 16, %s21
      %p363 = scmp.lt.s32.totalorder %s362, 63
      %s364 = scalar_select %p363, %s362, 63
      %s365 = smul.addr %s364, 8
      %s366 = scalar_lea.vmem %s10, %s365
      %s367 = smul.u32 16, %s21
      %p368 = scmp.lt.s32.totalorder %s367, 63
      %s369 = scalar_select %p368, %s367, 63
      %s370 = smul.addr %s369, 8
      %s371 = scalar_lea.vmem %s0, %s370
      %s372 = smul.u32 16, %s21
      %s373 = smul.u32 16, %s21
      %p374 = scmp.lt.s32.totalorder %s373, 63
      %s375 = scalar_select %p374, %s373, 63
      %s376 = smul.addr %s375, 8
      %s377 = scalar_lea.vmem %s1, %s376
      %s378 = smul.u32 16, %s21
      %s379 = smul.u32 16, %s21
      %p380 = scmp.lt.s32.totalorder %s379, 63
      %s381 = scalar_select %p380, %s379, 63
      %s382 = smul.addr %s381, 8
      %s383 = scalar_lea.vmem %s10, %s382
      %s384 = smul.u32 16, %s21
      %v386 = vld [vmem:[%s371] sm:$0xff]
      %v387 = vld [vmem:[%s371 + $0x8] sm:$0xff]
      %v388 = vld [vmem:[%s371 + $0x10] sm:$0xff]
      %v389 = vld [vmem:[%s371 + $0x18] sm:$0xff]
      %v390 = vld [vmem:[%s371 + $0x20] sm:$0xff]
      %v391 = vld [vmem:[%s371 + $0x28] sm:$0xff]
      %v392 = vld [vmem:[%s371 + $0x30] sm:$0xff]
      %v393 = vld [vmem:[%s371 + $0x38] sm:$0xff]
      %v394 = vld [vmem:[%s371 + $0x40] sm:$0xff]
      %v395 = vld [vmem:[%s371 + $0x48] sm:$0xff]
      %v396 = vld [vmem:[%s371 + $0x50] sm:$0xff]
      %v397 = vld [vmem:[%s371 + $0x58] sm:$0xff]
      %v398 = vld [vmem:[%s371 + $0x60] sm:$0xff]
      %v399 = vld [vmem:[%s371 + $0x68] sm:$0xff]
      %v400 = vld [vmem:[%s371 + $0x70] sm:$0xff]
      %v401 = vld [vmem:[%s371 + $0x78] sm:$0xff]
      %v402 = vld [vmem:[%s2] sm:$0x1]
      %v404 = vlaneseq
      %v405 = vshrl.u32 %v404, 7
      %v406 = vsub.s32 0, %v405
      %v407 = vrot.slane %v402, %v406
      %v409 = vmul.f32 %v386, %v407
      %v410 = vmul.f32 %v387, %v407
      %v411 = vmul.f32 %v388, %v407
      %v412 = vmul.f32 %v389, %v407
      %v413 = vmul.f32 %v390, %v407
      %v414 = vmul.f32 %v391, %v407
      %v415 = vmul.f32 %v392, %v407
      %v416 = vmul.f32 %v393, %v407
      %v417 = vmul.f32 %v394, %v407
      %v418 = vmul.f32 %v395, %v407
      %v419 = vmul.f32 %v396, %v407
      %v420 = vmul.f32 %v397, %v407
      %v421 = vmul.f32 %v398, %v407
      %v422 = vmul.f32 %v399, %v407
      %v423 = vmul.f32 %v400, %v407
      %v424 = vmul.f32 %v401, %v407
      %v425 = vld [vmem:[%s3] sm:$0x1]
      %v427 = vlaneseq
      %v428 = vshrl.u32 %v427, 7
      %v429 = vsub.s32 0, %v428
      %v430 = vrot.slane %v425, %v429
      %v432 = vadd.f32 %v409, %v430
      %v433 = vadd.f32 %v410, %v430
      %v434 = vadd.f32 %v411, %v430
      %v435 = vadd.f32 %v412, %v430
      %v436 = vadd.f32 %v413, %v430
      %v437 = vadd.f32 %v414, %v430
      %v438 = vadd.f32 %v415, %v430
      %v439 = vadd.f32 %v416, %v430
      %v440 = vadd.f32 %v417, %v430
      %v441 = vadd.f32 %v418, %v430
      %v442 = vadd.f32 %v419, %v430
      %v443 = vadd.f32 %v420, %v430
      %v444 = vadd.f32 %v421, %v430
      %v445 = vadd.f32 %v422, %v430
      %v446 = vadd.f32 %v423, %v430
      %v447 = vadd.f32 %v424, %v430
      %v448 = vmax.f32 %v432, 0.0
      %v449 = vmax.f32 %v433, 0.0
      %v450 = vmax.f32 %v434, 0.0
      %v451 = vmax.f32 %v435, 0.0
      %v452 = vmax.f32 %v436, 0.0
      %v453 = vmax.f32 %v437, 0.0
      %v454 = vmax.f32 %v438, 0.0
      %v455 = vmax.f32 %v439, 0.0
      %v456 = vmax.f32 %v440, 0.0
      %v457 = vmax.f32 %v441, 0.0
      %v458 = vmax.f32 %v442, 0.0
      %v459 = vmax.f32 %v443, 0.0
      %v460 = vmax.f32 %v444, 0.0
      %v461 = vmax.f32 %v445, 0.0
      %v462 = vmax.f32 %v446, 0.0
      %v463 = vmax.f32 %v447, 0.0
      %v464 = vpack.c.bf16 %v449, %v448
      %v465 = vpack.c.bf16 %v451, %v450
      %v466 = vpack.c.bf16 %v453, %v452
      %v467 = vpack.c.bf16 %v455, %v454
      %v468 = vpack.c.bf16 %v457, %v456
      %v469 = vpack.c.bf16 %v459, %v458
      %v470 = vpack.c.bf16 %v461, %v460
      %v471 = vpack.c.bf16 %v463, %v462
      %v472 = vld [vmem:[%s4] sm:$0xf]
      %v473 = vld [vmem:[%s4 + $0x4] sm:$0xf]
      %v474 = vld [vmem:[%s4 + $0x8] sm:$0xf]
      %v475 = vld [vmem:[%s4 + $0xc] sm:$0xf]
      %v476 = vld [vmem:[%s4 + $0x10] sm:$0xf]
      %v477 = vld [vmem:[%s4 + $0x14] sm:$0xf]
      %v478 = vld [vmem:[%s4 + $0x18] sm:$0xf]
      %v479 = vld [vmem:[%s4 + $0x1c] sm:$0xf]
      %v480 = vld [vmem:[%s4 + $0x20] sm:$0xf]
      %v481 = vld [vmem:[%s4 + $0x24] sm:$0xf]
      %v482 = vld [vmem:[%s4 + $0x28] sm:$0xf]
      %v483 = vld [vmem:[%s4 + $0x2c] sm:$0xf]
      %v484 = vld [vmem:[%s4 + $0x30] sm:$0xf]
      %v485 = vld [vmem:[%s4 + $0x34] sm:$0xf]
      %v486 = vld [vmem:[%s4 + $0x38] sm:$0xf]
      %v487 = vld [vmem:[%s4 + $0x3c] sm:$0xf]
      %v504 = vunpack.c.l.b16 %v472
      %v505 = vunpack.c.l.b16 %v473
      %v506 = vunpack.c.l.b16 %v474
      %v507 = vunpack.c.l.b16 %v475
      %v508 = vunpack.c.l.b16 %v476
      %v509 = vunpack.c.l.b16 %v477
      %v510 = vunpack.c.l.b16 %v478
      %v511 = vunpack.c.l.b16 %v479
      %v512 = vunpack.c.l.b16 %v480
      %v513 = vunpack.c.l.b16 %v481
      %v514 = vunpack.c.l.b16 %v482
      %v515 = vunpack.c.l.b16 %v483
      %v516 = vunpack.c.l.b16 %v484
      %v517 = vunpack.c.l.b16 %v485
      %v518 = vunpack.c.l.b16 %v486
      %v519 = vunpack.c.l.b16 %v487
      %v520 = vpack.c.b16 %v505, %v504
      %v521 = vpack.c.b16 %v507, %v506
      %v522 = vpack.c.b16 %v509, %v508
      %v523 = vpack.c.b16 %v511, %v510
      %v524 = vpack.c.b16 %v513, %v512
      %v525 = vpack.c.b16 %v515, %v514
      %v526 = vpack.c.b16 %v517, %v516
      %v527 = vpack.c.b16 %v519, %v518
      %536 = vmatprep.subr.bf16.mxu0 0
      %537 = vmatpush1.bf16.msra.mxu0 %v520
      %538 = vmatprep.subr.bf16.mxu0 0
      %539 = vmatpush1.bf16.msra.mxu0 %v521
      %540 = vmatprep.subr.bf16.mxu0 0
      %541 = vmatpush1.bf16.msra.mxu0 %v522
      %542 = vmatprep.subr.bf16.mxu0 0
      %543 = vmatpush1.bf16.msra.mxu0 %v523
      %544 = vmatprep.subr.bf16.mxu0 0
      %545 = vmatpush1.bf16.msra.mxu0 %v524
      %546 = vmatprep.subr.bf16.mxu0 0
      %547 = vmatpush1.bf16.msra.mxu0 %v525
      %548 = vmatprep.subr.bf16.mxu0 0
      %549 = vmatpush1.bf16.msra.mxu0 %v526
      %550 = vmatprep.subr.bf16.mxu0 0
      %551 = vmatpush1.bf16.msra.mxu0 %v527
      %552 = vmatprep.subr.bf16.mxu0 0
      %553 = vmatpush1.bf16.msra.mxu0 0
      %554 = vmatprep.subr.bf16.mxu0 0
      %555 = vmatpush1.bf16.msra.mxu0 0
      %556 = vmatprep.subr.bf16.mxu0 0
      %557 = vmatpush1.bf16.msra.mxu0 0
      %558 = vmatprep.subr.bf16.mxu0 0
      %559 = vmatpush1.bf16.msra.mxu0 0
      %560 = vmatprep.subr.bf16.mxu0 0
      %561 = vmatpush1.bf16.msra.mxu0 0
      %562 = vmatprep.subr.bf16.mxu0 0
      %563 = vmatpush1.bf16.msra.mxu0 0
      %564 = vmatprep.subr.bf16.mxu0 0
      %565 = vmatpush1.bf16.msra.mxu0 0
      %566 = vmatprep.subr.bf16.mxu0 0
      %567 = vmatpush1.bf16.msra.mxu0 0
      %568 = vmatprep.mubr.bf16.mxu0 0
      %569 = vmatmul.mubr.bf16.gmra.mrb[0].mxu0 %v464
      %v570 = vpop.f32.mrb[0].mxu0
      %v571 = vadd.f32 0.0, %v570
      %v572 = vpop.f32.mrb[0].mxu0
      %v573 = vpop.f32.mrb[0].mxu0
      %v574 = vadd.f32 0.0, %v573
      %v575 = vpop.f32.mrb[0].mxu0
      %576 = vmatprep.mubr.bf16.mxu0 0
      %577 = vmatmul.mubr.bf16.gmra.mrb[0].mxu0 %v465
      %v578 = vpop.f32.mrb[0].mxu0
      %v579 = vadd.f32 0.0, %v578
      %v580 = vpop.f32.mrb[0].mxu0
      %v581 = vpop.f32.mrb[0].mxu0
      %v582 = vadd.f32 0.0, %v581
      %v583 = vpop.f32.mrb[0].mxu0
      %584 = vmatprep.mubr.bf16.mxu0 0
      %585 = vmatmul.mubr.bf16.gmra.mrb[0].mxu0 %v466
      %v586 = vpop.f32.mrb[0].mxu0
      %v587 = vadd.f32 0.0, %v586
      %v588 = vpop.f32.mrb[0].mxu0
      %v589 = vpop.f32.mrb[0].mxu0
      %v590 = vadd.f32 0.0, %v589
      %v591 = vpop.f32.mrb[0].mxu0
      %592 = vmatprep.mubr.bf16.mxu0 0
      %593 = vmatmul.mubr.bf16.gmra.mrb[0].mxu0 %v467
      %v594 = vpop.f32.mrb[0].mxu0
      %v595 = vadd.f32 0.0, %v594
      %v596 = vpop.f32.mrb[0].mxu0
      %v597 = vpop.f32.mrb[0].mxu0
      %v598 = vadd.f32 0.0, %v597
      %v599 = vpop.f32.mrb[0].mxu0
      %600 = vmatprep.mubr.bf16.mxu0 0
      %601 = vmatmul.mubr.bf16.gmra.mrb[0].mxu0 %v468
      %v602 = vpop.f32.mrb[0].mxu0
      %v603 = vadd.f32 0.0, %v602
      %v604 = vpop.f32.mrb[0].mxu0
      %v605 = vpop.f32.mrb[0].mxu0
      %v606 = vadd.f32 0.0, %v605
      %v607 = vpop.f32.mrb[0].mxu0
      %608 = vmatprep.mubr.bf16.mxu0 0
      %609 = vmatmul.mubr.bf16.gmra.mrb[0].mxu0 %v469
      %v610 = vpop.f32.mrb[0].mxu0
      %v611 = vadd.f32 0.0, %v610
      %v612 = vpop.f32.mrb[0].mxu0
      %v613 = vpop.f32.mrb[0].mxu0
      %v614 = vadd.f32 0.0, %v613
      %v615 = vpop.f32.mrb[0].mxu0
      %616 = vmatprep.mubr.bf16.mxu0 0
      %617 = vmatmul.mubr.bf16.gmra.mrb[0].mxu0 %v470
      %v618 = vpop.f32.mrb[0].mxu0
      %v619 = vadd.f32 0.0, %v618
      %v620 = vpop.f32.mrb[0].mxu0
      %v621 = vpop.f32.mrb[0].mxu0
      %v622 = vadd.f32 0.0, %v621
      %v623 = vpop.f32.mrb[0].mxu0
      %624 = vmatprep.mubr.bf16.mxu0 0
      %625 = vmatmul.mubr.bf16.gmra.mrb[0].mxu0 %v471
      %v626 = vpop.f32.mrb[0].mxu0
      %v627 = vadd.f32 0.0, %v626
      %v628 = vpop.f32.mrb[0].mxu0
      %v629 = vpop.f32.mrb[0].mxu0
      %v630 = vadd.f32 0.0, %v629
      %v631 = vpop.f32.mrb[0].mxu0
      %632 = vdwg.mxu0
      %v633 = vld [vmem:[%s377] sm:$0xff]
      %v634 = vld [vmem:[%s377 + $0x8] sm:$0xff]
      %v635 = vld [vmem:[%s377 + $0x10] sm:$0xff]
      %v636 = vld [vmem:[%s377 + $0x18] sm:$0xff]
      %v637 = vld [vmem:[%s377 + $0x20] sm:$0xff]
      %v638 = vld [vmem:[%s377 + $0x28] sm:$0xff]
      %v639 = vld [vmem:[%s377 + $0x30] sm:$0xff]
      %v640 = vld [vmem:[%s377 + $0x38] sm:$0xff]
      %v641 = vld [vmem:[%s377 + $0x40] sm:$0xff]
      %v642 = vld [vmem:[%s377 + $0x48] sm:$0xff]
      %v643 = vld [vmem:[%s377 + $0x50] sm:$0xff]
      %v644 = vld [vmem:[%s377 + $0x58] sm:$0xff]
      %v645 = vld [vmem:[%s377 + $0x60] sm:$0xff]
      %v646 = vld [vmem:[%s377 + $0x68] sm:$0xff]
      %v647 = vld [vmem:[%s377 + $0x70] sm:$0xff]
      %v648 = vld [vmem:[%s377 + $0x78] sm:$0xff]
      %v649 = vpack.c.bf16 %v634, %v633
      %v650 = vpack.c.bf16 %v636, %v635
      %v651 = vpack.c.bf16 %v638, %v637
      %v652 = vpack.c.bf16 %v640, %v639
      %v653 = vpack.c.bf16 %v642, %v641
      %v654 = vpack.c.bf16 %v644, %v643
      %v655 = vpack.c.bf16 %v646, %v645
      %v656 = vpack.c.bf16 %v648, %v647
      %v657 = vld [vmem:[%s5] sm:$0xf]
      %v658 = vld [vmem:[%s5 + $0x4] sm:$0xf]
      %v659 = vld [vmem:[%s5 + $0x8] sm:$0xf]
      %v660 = vld [vmem:[%s5 + $0xc] sm:$0xf]
      %v661 = vld [vmem:[%s5 + $0x10] sm:$0xf]
      %v662 = vld [vmem:[%s5 + $0x14] sm:$0xf]
      %v663 = vld [vmem:[%s5 + $0x18] sm:$0xf]
      %v664 = vld [vmem:[%s5 + $0x1c] sm:$0xf]
      %v665 = vld [vmem:[%s5 + $0x20] sm:$0xf]
      %v666 = vld [vmem:[%s5 + $0x24] sm:$0xf]
      %v667 = vld [vmem:[%s5 + $0x28] sm:$0xf]
      %v668 = vld [vmem:[%s5 + $0x2c] sm:$0xf]
      %v669 = vld [vmem:[%s5 + $0x30] sm:$0xf]
      %v670 = vld [vmem:[%s5 + $0x34] sm:$0xf]
      %v671 = vld [vmem:[%s5 + $0x38] sm:$0xf]
      %v672 = vld [vmem:[%s5 + $0x3c] sm:$0xf]
      %v689 = vunpack.c.l.b16 %v657
      %v690 = vunpack.c.l.b16 %v658
      %v691 = vunpack.c.l.b16 %v659
      %v692 = vunpack.c.l.b16 %v660
      %v693 = vunpack.c.l.b16 %v661
      %v694 = vunpack.c.l.b16 %v662
      %v695 = vunpack.c.l.b16 %v663
      %v696 = vunpack.c.l.b16 %v664
      %v697 = vunpack.c.l.b16 %v665
      %v698 = vunpack.c.l.b16 %v666
      %v699 = vunpack.c.l.b16 %v667
      %v700 = vunpack.c.l.b16 %v668
      %v701 = vunpack.c.l.b16 %v669
      %v702 = vunpack.c.l.b16 %v670
      %v703 = vunpack.c.l.b16 %v671
      %v704 = vunpack.c.l.b16 %v672
      %v705 = vpack.c.b16 %v690, %v689
      %v706 = vpack.c.b16 %v692, %v691
      %v707 = vpack.c.b16 %v694, %v693
      %v708 = vpack.c.b16 %v696, %v695
      %v709 = vpack.c.b16 %v698, %v697
      %v710 = vpack.c.b16 %v700, %v699
      %v711 = vpack.c.b16 %v702, %v701
      %v712 = vpack.c.b16 %v704, %v703
      %721 = vmatprep.subr.bf16.mxu0 0
      %722 = vmatpush1.bf16.msra.mxu0 %v705
      %723 = vmatprep.subr.bf16.mxu0 0
      %724 = vmatpush1.bf16.msra.mxu0 %v706
      %725 = vmatprep.subr.bf16.mxu0 0
      %726 = vmatpush1.bf16.msra.mxu0 %v707
      %727 = vmatprep.subr.bf16.mxu0 0
      %728 = vmatpush1.bf16.msra.mxu0 %v708
      %729 = vmatprep.subr.bf16.mxu0 0
      %730 = vmatpush1.bf16.msra.mxu0 %v709
      %731 = vmatprep.subr.bf16.mxu0 0
      %732 = vmatpush1.bf16.msra.mxu0 %v710
      %733 = vmatprep.subr.bf16.mxu0 0
      %734 = vmatpush1.bf16.msra.mxu0 %v711
      %735 = vmatprep.subr.bf16.mxu0 0
      %736 = vmatpush1.bf16.msra.mxu0 %v712
      %737 = vmatprep.subr.bf16.mxu0 0
      %738 = vmatpush1.bf16.msra.mxu0 0
      %739 = vmatprep.subr.bf16.mxu0 0
      %740 = vmatpush1.bf16.msra.mxu0 0
      %741 = vmatprep.subr.bf16.mxu0 0
      %742 = vmatpush1.bf16.msra.mxu0 0
      %743 = vmatprep.subr.bf16.mxu0 0
      %744 = vmatpush1.bf16.msra.mxu0 0
      %745 = vmatprep.subr.bf16.mxu0 0
      %746 = vmatpush1.bf16.msra.mxu0 0
      %747 = vmatprep.subr.bf16.mxu0 0
      %748 = vmatpush1.bf16.msra.mxu0 0
      %749 = vmatprep.subr.bf16.mxu0 0
      %750 = vmatpush1.bf16.msra.mxu0 0
      %751 = vmatprep.subr.bf16.mxu0 0
      %752 = vmatpush1.bf16.msra.mxu0 0
      %753 = vmatprep.mubr.bf16.mxu0 0
      %754 = vmatmul.mubr.bf16.gmra.mrb[0].mxu0 %v649
      %v755 = vpop.f32.mrb[0].mxu0
      %v756 = vadd.f32 0.0, %v755
      %v757 = vpop.f32.mrb[0].mxu0
      %v758 = vpop.f32.mrb[0].mxu0
      %v759 = vadd.f32 0.0, %v758
      %v760 = vpop.f32.mrb[0].mxu0
      %761 = vmatprep.mubr.bf16.mxu0 0
      %762 = vmatmul.mubr.bf16.gmra.mrb[0].mxu0 %v650
      %v763 = vpop.f32.mrb[0].mxu0
      %v764 = vadd.f32 0.0, %v763
      %v765 = vpop.f32.mrb[0].mxu0
      %v766 = vpop.f32.mrb[0].mxu0
      %v767 = vadd.f32 0.0, %v766
      %v768 = vpop.f32.mrb[0].mxu0
      %769 = vmatprep.mubr.bf16.mxu0 0
      %770 = vmatmul.mubr.bf16.gmra.mrb[0].mxu0 %v651
      %v771 = vpop.f32.mrb[0].mxu0
      %v772 = vadd.f32 0.0, %v771
      %v773 = vpop.f32.mrb[0].mxu0
      %v774 = vpop.f32.mrb[0].mxu0
      %v775 = vadd.f32 0.0, %v774
      %v776 = vpop.f32.mrb[0].mxu0
      %777 = vmatprep.mubr.bf16.mxu0 0
      %778 = vmatmul.mubr.bf16.gmra.mrb[0].mxu0 %v652
      %v779 = vpop.f32.mrb[0].mxu0
      %v780 = vadd.f32 0.0, %v779
      %v781 = vpop.f32.mrb[0].mxu0
      %v782 = vpop.f32.mrb[0].mxu0
      %v783 = vadd.f32 0.0, %v782
      %v784 = vpop.f32.mrb[0].mxu0
      %785 = vmatprep.mubr.bf16.mxu0 0
      %786 = vmatmul.mubr.bf16.gmra.mrb[0].mxu0 %v653
      %v787 = vpop.f32.mrb[0].mxu0
      %v788 = vadd.f32 0.0, %v787
      %v789 = vpop.f32.mrb[0].mxu0
      %v790 = vpop.f32.mrb[0].mxu0
      %v791 = vadd.f32 0.0, %v790
      %v792 = vpop.f32.mrb[0].mxu0
      %793 = vmatprep.mubr.bf16.mxu0 0
      %794 = vmatmul.mubr.bf16.gmra.mrb[0].mxu0 %v654
      %v795 = vpop.f32.mrb[0].mxu0
      %v796 = vadd.f32 0.0, %v795
      %v797 = vpop.f32.mrb[0].mxu0
      %v798 = vpop.f32.mrb[0].mxu0
      %v799 = vadd.f32 0.0, %v798
      %v800 = vpop.f32.mrb[0].mxu0
      %801 = vmatprep.mubr.bf16.mxu0 0
      %802 = vmatmul.mubr.bf16.gmra.mrb[0].mxu0 %v655
      %v803 = vpop.f32.mrb[0].mxu0
      %v804 = vadd.f32 0.0, %v803
      %v805 = vpop.f32.mrb[0].mxu0
      %v806 = vpop.f32.mrb[0].mxu0
      %v807 = vadd.f32 0.0, %v806
      %v808 = vpop.f32.mrb[0].mxu0
      %809 = vmatprep.mubr.bf16.mxu0 0
      %810 = vmatmul.mubr.bf16.gmra.mrb[0].mxu0 %v656
      %v811 = vpop.f32.mrb[0].mxu0
      %v812 = vadd.f32 0.0, %v811
      %v813 = vpop.f32.mrb[0].mxu0
      %v814 = vpop.f32.mrb[0].mxu0
      %v815 = vadd.f32 0.0, %v814
      %v816 = vpop.f32.mrb[0].mxu0
      %817 = vdwg.mxu0
      %v818 = vld [vmem:[%s6] sm:$0x1]
      %v820 = vlaneseq
      %v821 = vshrl.u32 %v820, 7
      %v822 = vsub.s32 0, %v821
      %v823 = vrot.slane %v818, %v822
      %v825 = vmul.f32 %v571, %v823
      %v826 = vmul.f32 %v574, %v823
      %v827 = vmul.f32 %v579, %v823
      %v828 = vmul.f32 %v582, %v823
      %v829 = vmul.f32 %v587, %v823
      %v830 = vmul.f32 %v590, %v823
      %v831 = vmul.f32 %v595, %v823
      %v832 = vmul.f32 %v598, %v823
      %v833 = vmul.f32 %v603, %v823
      %v834 = vmul.f32 %v606, %v823
      %v835 = vmul.f32 %v611, %v823
      %v836 = vmul.f32 %v614, %v823
      %v837 = vmul.f32 %v619, %v823
      %v838 = vmul.f32 %v622, %v823
      %v839 = vmul.f32 %v627, %v823
      %v840 = vmul.f32 %v630, %v823
      %v841 = vld [vmem:[%s7] sm:$0x1]
      %v843 = vlaneseq
      %v844 = vshrl.u32 %v843, 7
      %v845 = vsub.s32 0, %v844
      %v846 = vrot.slane %v841, %v845
      %v848 = vadd.f32 %v825, %v846
      %v849 = vadd.f32 %v826, %v846
      %v850 = vadd.f32 %v827, %v846
      %v851 = vadd.f32 %v828, %v846
      %v852 = vadd.f32 %v829, %v846
      %v853 = vadd.f32 %v830, %v846
      %v854 = vadd.f32 %v831, %v846
      %v855 = vadd.f32 %v832, %v846
      %v856 = vadd.f32 %v833, %v846
      %v857 = vadd.f32 %v834, %v846
      %v858 = vadd.f32 %v835, %v846
      %v859 = vadd.f32 %v836, %v846
      %v860 = vadd.f32 %v837, %v846
      %v861 = vadd.f32 %v838, %v846
      %v862 = vadd.f32 %v839, %v846
      %v863 = vadd.f32 %v840, %v846
      %v864 = vld [vmem:[%s8] sm:$0x1]
      %v866 = vlaneseq
      %v867 = vshrl.u32 %v866, 7
      %v868 = vsub.s32 0, %v867
      %v869 = vrot.slane %v864, %v868
      %v871 = vmul.f32 %v756, %v869
      %v872 = vmul.f32 %v759, %v869
      %v873 = vmul.f32 %v764, %v869
      %v874 = vmul.f32 %v767, %v869
      %v875 = vmul.f32 %v772, %v869
      %v876 = vmul.f32 %v775, %v869
      %v877 = vmul.f32 %v780, %v869
      %v878 = vmul.f32 %v783, %v869
      %v879 = vmul.f32 %v788, %v869
      %v880 = vmul.f32 %v791, %v869
      %v881 = vmul.f32 %v796, %v869
      %v882 = vmul.f32 %v799, %v869
      %v883 = vmul.f32 %v804, %v869
      %v884 = vmul.f32 %v807, %v869
      %v885 = vmul.f32 %v812, %v869
      %v886 = vmul.f32 %v815, %v869
      %v887 = vadd.f32 %v848, %v871
      %v888 = vadd.f32 %v849, %v872
      %v889 = vadd.f32 %v850, %v873
      %v890 = vadd.f32 %v851, %v874
      %v891 = vadd.f32 %v852, %v875
      %v892 = vadd.f32 %v853, %v876
      %v893 = vadd.f32 %v854, %v877
      %v894 = vadd.f32 %v855, %v878
      %v895 = vadd.f32 %v856, %v879
      %v896 = vadd.f32 %v857, %v880
      %v897 = vadd.f32 %v858, %v881
      %v898 = vadd.f32 %v859, %v882
      %v899 = vadd.f32 %v860, %v883
      %v900 = vadd.f32 %v861, %v884
      %v901 = vadd.f32 %v862, %v885
      %v902 = vadd.f32 %v863, %v886
      %v903 = vld [vmem:[%s9] sm:$0x1]
      %v905 = vlaneseq
      %v906 = vshrl.u32 %v905, 7
      %v907 = vsub.s32 0, %v906
      %v908 = vrot.slane %v903, %v907
      %v910 = vadd.f32 %v887, %v908
      %v911 = vadd.f32 %v888, %v908
      %v912 = vadd.f32 %v889, %v908
      %v913 = vadd.f32 %v890, %v908
      %v914 = vadd.f32 %v891, %v908
      %v915 = vadd.f32 %v892, %v908
      %v916 = vadd.f32 %v893, %v908
      %v917 = vadd.f32 %v894, %v908
      %v918 = vadd.f32 %v895, %v908
      %v919 = vadd.f32 %v896, %v908
      %v920 = vadd.f32 %v897, %v908
      %v921 = vadd.f32 %v898, %v908
      %v922 = vadd.f32 %v899, %v908
      %v923 = vadd.f32 %v900, %v908
      %v924 = vadd.f32 %v901, %v908
      %v925 = vadd.f32 %v902, %v908
      %v926 = vmax.f32 %v910, 0.0
      %v927 = vmax.f32 %v911, 0.0
      %v928 = vmax.f32 %v912, 0.0
      %v929 = vmax.f32 %v913, 0.0
      %v930 = vmax.f32 %v914, 0.0
      %v931 = vmax.f32 %v915, 0.0
      %v932 = vmax.f32 %v916, 0.0
      %v933 = vmax.f32 %v917, 0.0
      %v934 = vmax.f32 %v918, 0.0
      %v935 = vmax.f32 %v919, 0.0
      %v936 = vmax.f32 %v920, 0.0
      %v937 = vmax.f32 %v921, 0.0
      %v938 = vmax.f32 %v922, 0.0
      %v939 = vmax.f32 %v923, 0.0
      %v940 = vmax.f32 %v924, 0.0
      %v941 = vmax.f32 %v925, 0.0
      %942 = vst [vmem:[%s383] sm:$0xff] %v926
      %943 = vst [vmem:[%s383 + $0x8] sm:$0xff] %v927
      %944 = vst [vmem:[%s383 + $0x10] sm:$0xff] %v928
      %945 = vst [vmem:[%s383 + $0x18] sm:$0xff] %v929
      %946 = vst [vmem:[%s383 + $0x20] sm:$0xff] %v930
      %947 = vst [vmem:[%s383 + $0x28] sm:$0xff] %v931
      %948 = vst [vmem:[%s383 + $0x30] sm:$0xff] %v932
      %949 = vst [vmem:[%s383 + $0x38] sm:$0xff] %v933
      %950 = vst [vmem:[%s383 + $0x40] sm:$0xff] %v934
      %951 = vst [vmem:[%s383 + $0x48] sm:$0xff] %v935
      %952 = vst [vmem:[%s383 + $0x50] sm:$0xff] %v936
      %953 = vst [vmem:[%s383 + $0x58] sm:$0xff] %v937
      %954 = vst [vmem:[%s383 + $0x60] sm:$0xff] %v938
      %955 = vst [vmem:[%s383 + $0x68] sm:$0xff] %v939
      %956 = vst [vmem:[%s383 + $0x70] sm:$0xff] %v940
      %957 = vst [vmem:[%s383 + $0x78] sm:$0xff] %v941
      %s958 = smul.u32 16, %s21
      %p959 = scmp.lt.s32.totalorder %s958, 63
      %s960 = scalar_select %p959, %s958, 63
      %s961 = smul.addr %s960, 8
      %s962 = scalar_lea.vmem %s10, %s961
      // Predicated region
      $region61: #{bottleneck_forward.7} parent=59 // pred_check
        %p963 = pneg %p259
      $region62: #{bottleneck_forward.7} parent=59 // pred_check_branch
        %965 = sbr.rel (%p963) target = $region64
      $region63: #{bottleneck_forward.7} parent=59 // pred_region
        %s966 = smul.u32 16, %s21
      $region64: #{bottleneck_forward.7} parent=59 // pred_fallthru
        _
    $region60: #{bottleneck_forward.7} parent=5 // pred_fallthru
      _
    %p967 = scmp.le.s32.totalorder 2, %s16
    // Predicated region
    $region65: #{bottleneck_forward.7} parent=5 // pred_check
      %p968 = pneg %p967
    $region66: #{bottleneck_forward.7} parent=5 // pred_check_branch
      %970 = sbr.rel (%p968) target = $region68
    $region67: #{bottleneck_forward.7} parent=5 // pred_region
      %s971 = ssub.s32 %s16, 2
      // Predicated region
      $region69: #{bottleneck_forward.7} parent=67 // pred_check
        %p972 = pneg %p265
      $region70: #{bottleneck_forward.7} parent=67 // pred_check_branch
        %974 = sbr.rel (%p972) target = $region72
      $region71: #{bottleneck_forward.7} parent=67 // pred_region
        %s975 = smul.u32 16, %s22
        %p976 = scmp.lt.s32.totalorder %s975, 63
        %s977 = scalar_select %p976, %s975, 63
        %s978 = smul.addr %s977, 8
        %s979 = scalar_lea.vmem %s10, %s978
      $region72: #{bottleneck_forward.7} parent=67 // pred_fallthru
        _
    $region68: #{bottleneck_forward.7} parent=5 // pred_fallthru
      _
  $region6: #{bottleneck_forward.7} parent=0 // loop_footer
    %s20 = sadd.s32 1, %s16
  $region7: #{bottleneck_forward.7} parent=0 // loop_footer_branch
    %15 = sbr.rel target = $region3
  $region8: #{bottleneck_forward.7} parent=0 // loop_exit
    _

// kernel: bottleneck_forward.5
$region0: #{bottleneck_forward.5}
  #allocation0 [shape = 'u32[]', space=smem, size = 0x4, offset = 0x4, fixed_abs, tag = 'smem constant byte address 0x4 - core index']
  #allocation1 [shape = 'u32[144,128]{1,0:T(1,128)}', space=vmem, size = 0x12000, scoped, tag = 'internal scratch']
  #allocation2 [shape = 'f32[18,18,128]{2,1,0:T(8,128)}', space=vmem, size = 0x36000, scoped, tag = 'scratch operand']
  %s0 = inlined_call_operand.vmem [shape: f32[2,16,16,128], index: 0, kind: input, shape index: {}]
  %s1 = inlined_call_operand.vmem [shape: bf16[128,128], index: 1, kind: input, shape index: {}]
  %s2 = inlined_call_operand.vmem [shape: f32[1,128], index: 2, kind: input, shape index: {}]
  %s3 = inlined_call_operand.vmem [shape: f32[1,128], index: 3, kind: input, shape index: {}]
  %s4 = inlined_call_operand.vmem [shape: bf16[3,3,128,128], index: 4, kind: input, shape index: {}]
  %s5 = inlined_call_operand.vmem [shape: f32[2,16,16,128], index: 5, kind: output, shape index: {0}]
  %s6 = inlined_call_operand.vmem [shape: f32[16,128], index: 6, kind: output, shape index: {1}]
  %7 = xla_tuple %s5, %s6
  %s8 = sld [smem:[#allocation0]]
  $region61: #{bottleneck_forward.5} parent=0
    _
  %s10 = ssub.s32 1, %s8
  %s11 = scalar_select 0, %s10, %s8
  loop: start=0, step=1, limit=4
  $region2: #{bottleneck_forward.5} parent=0 // loop_pre_header
    _
  $region3: #{bottleneck_forward.5} parent=0 // loop_header
    %s13 = sphi 0, %s17
    %p14 = scmp.ge.s32.totalorder %s13, 4
    %s23 = sphi 0, %s25
    %s26 = sphi 0, %s23
    %s27 = sphi 0, %s26
    %s43 = sphi 0, %s27
    %s47 = sphi 0, %s47
    %s49 = sphi 0, %s47
    %s50 = sphi 0, %s49
    %s64 = sphi 0, %s50
    %s68 = sphi 0, %s68
    %s70 = sphi 0, %s68
    %s71 = sphi 0, %s70
    %s85 = sphi 0, %s71
    %s89 = sphi 0, %s89
    %s91 = sphi 0, %s89
    %s92 = sphi 0, %s91
    %s106 = sphi 0, %s92
    %s110 = sphi 0, %s110
    %s112 = sphi 0, %s110
    %s113 = sphi 0, %s112
    %s127 = sphi 0, %s113
    %s133 = sphi 0, %s135
    %s136 = sphi 0, %s133
    %s137 = sphi 0, %s136
    %s153 = sphi 0, %s137
    %s159 = sphi 0, %s161
    %s162 = sphi 0, %s159
    %s163 = sphi 0, %s162
    %s179 = sphi 0, %s163
  $region4: #{bottleneck_forward.5} parent=0 // loop_header_branch
    %16 = sbr.rel (%p14) target = $region8
  $region5: #{bottleneck_forward.5} parent=0 // loop_body
    %s18 = ssub.s32 %s13, 1
    %s19 = ssub.s32 %s13, 2
    %s20 = sadd.s32 %s13, 1
    %s21 = ssub.s32 %s13, %s20
    %p22 = scmp.eq.s32.totalorder %s21, 0
    %s24 = sadd.s32 %s23, 1
    %s25 = scalar_select %p22, %s23, %s24
    %p28 = pneg %p22
    %p29 = scmp.eq.s32.totalorder %s13, 1
    %p30 = por %p28, %p29
    %p31 = scmp.ne.s32.totalorder %s23, %s26
    %p32 = scmp.eq.s32.totalorder %s13, 0
    %p33 = por %p31, %p32
    %p34 = scmp.ne.s32.totalorder %s23, %s26
    %p35 = scmp.eq.s32.totalorder %s18, 1
    %p36 = por %p34, %p35
    %p37 = scmp.ne.s32.totalorder %s26, %s27
    %p38 = scmp.eq.s32.totalorder %s18, 0
    %p39 = por %p37, %p38
    %p40 = scmp.ne.s32.totalorder %s26, %s27
    %p41 = scmp.eq.s32.totalorder %s19, 1
    %p42 = por %p40, %p41
    %p44 = scmp.ne.s32.totalorder %s27, %s43
    %p45 = scmp.eq.s32.totalorder %s19, 0
    %p46 = por %p44, %p45
    %s48 = sadd.s32 %s47, 1
    %p51 = scmp.eq.s32.totalorder %s13, 1
    %p52 = scmp.ne.s32.totalorder %s47, %s49
    %p53 = scmp.eq.s32.totalorder %s13, 0
    %p54 = por %p52, %p53
    %p55 = scmp.ne.s32.totalorder %s47, %s49
    %p56 = scmp.eq.s32.totalorder %s18, 1
    %p57 = por %p55, %p56
    %p58 = scmp.ne.s32.totalorder %s49, %s50
    %p59 = scmp.eq.s32.totalorder %s18, 0
    %p60 = por %p58, %p59
    %p61 = scmp.ne.s32.totalorder %s49, %s50
    %p62 = scmp.eq.s32.totalorder %s19, 1
    %p63 = por %p61, %p62
    %p65 = scmp.ne.s32.totalorder %s50, %s64
    %p66 = scmp.eq.s32.totalorder %s19, 0
    %p67 = por %p65, %p66
    %s69 = sadd.s32 %s68, 1
    %p72 = scmp.eq.s32.totalorder %s13, 1
    %p73 = scmp.ne.s32.totalorder %s68, %s70
    %p74 = scmp.eq.s32.totalorder %s13, 0
    %p75 = por %p73, %p74
    %p76 = scmp.ne.s32.totalorder %s68, %s70
    %p77 = scmp.eq.s32.totalorder %s18, 1
    %p78 = por %p76, %p77
    %p79 = scmp.ne.s32.totalorder %s70, %s71
    %p80 = scmp.eq.s32.totalorder %s18, 0
    %p81 = por %p79, %p80
    %p82 = scmp.ne.s32.totalorder %s70, %s71
    %p83 = scmp.eq.s32.totalorder %s19, 1
    %p84 = por %p82, %p83
    %p86 = scmp.ne.s32.totalorder %s71, %s85
    %p87 = scmp.eq.s32.totalorder %s19, 0
    %p88 = por %p86, %p87
    %s90 = sadd.s32 %s89, 1
    %p93 = scmp.eq.s32.totalorder %s13, 1
    %p94 = scmp.ne.s32.totalorder %s89, %s91
    %p95 = scmp.eq.s32.totalorder %s13, 0
    %p96 = por %p94, %p95
    %p97 = scmp.ne.s32.totalorder %s89, %s91
    %p98 = scmp.eq.s32.totalorder %s18, 1
    %p99 = por %p97, %p98
    %p100 = scmp.ne.s32.totalorder %s91, %s92
    %p101 = scmp.eq.s32.totalorder %s18, 0
    %p102 = por %p100, %p101
    %p103 = scmp.ne.s32.totalorder %s91, %s92
    %p104 = scmp.eq.s32.totalorder %s19, 1
    %p105 = por %p103, %p104
    %p107 = scmp.ne.s32.totalorder %s92, %s106
    %p108 = scmp.eq.s32.totalorder %s19, 0
    %p109 = por %p107, %p108
    %s111 = sadd.s32 %s110, 1
    %p114 = scmp.eq.s32.totalorder %s13, 1
    %p115 = scmp.ne.s32.totalorder %s110, %s112
    %p116 = scmp.eq.s32.totalorder %s13, 0
    %p117 = por %p115, %p116
    %p118 = scmp.ne.s32.totalorder %s110, %s112
    %p119 = scmp.eq.s32.totalorder %s18, 1
    %p120 = por %p118, %p119
    %p121 = scmp.ne.s32.totalorder %s112, %s113
    %p122 = scmp.eq.s32.totalorder %s18, 0
    %p123 = por %p121, %p122
    %p124 = scmp.ne.s32.totalorder %s112, %s113
    %p125 = scmp.eq.s32.totalorder %s19, 1
    %p126 = por %p124, %p125
    %p128 = scmp.ne.s32.totalorder %s113, %s127
    %p129 = scmp.eq.s32.totalorder %s19, 0
    %p130 = por %p128, %p129
    %s131 = ssub.s32 %s13, %s20
    %p132 = scmp.eq.s32.totalorder %s131, 0
    %s134 = sadd.s32 %s133, 1
    %s135 = scalar_select %p132, %s133, %s134
    %p138 = pneg %p132
    %p139 = scmp.eq.s32.totalorder %s13, 1
    %p140 = por %p138, %p139
    %p141 = scmp.ne.s32.totalorder %s133, %s136
    %p142 = scmp.eq.s32.totalorder %s13, 0
    %p143 = por %p141, %p142
    %p144 = scmp.ne.s32.totalorder %s133, %s136
    %p145 = scmp.eq.s32.totalorder %s18, 1
    %p146 = por %p144, %p145
    %p147 = scmp.ne.s32.totalorder %s136, %s137
    %p148 = scmp.eq.s32.totalorder %s18, 0
    %p149 = por %p147, %p148
    %p150 = scmp.ne.s32.totalorder %s136, %s137
    %p151 = scmp.eq.s32.totalorder %s19, 1
    %p152 = por %p150, %p151
    %p154 = scmp.ne.s32.totalorder %s137, %s153
    %p155 = scmp.eq.s32.totalorder %s19, 0
    %p156 = por %p154, %p155
    %s157 = ssub.s32 %s13, %s20
    %p158 = scmp.eq.s32.totalorder %s157, 0
    %s160 = sadd.s32 %s159, 1
    %s161 = scalar_select %p158, %s159, %s160
    %p164 = pneg %p158
    %p165 = scmp.eq.s32.totalorder %s13, 1
    %p166 = por %p164, %p165
    %p167 = scmp.ne.s32.totalorder %s159, %s162
    %p168 = scmp.eq.s32.totalorder %s13, 0
    %p169 = por %p167, %p168
    %p170 = scmp.ne.s32.totalorder %s159, %s162
    %p171 = scmp.eq.s32.totalorder %s18, 1
    %p172 = por %p170, %p171
    %p173 = scmp.ne.s32.totalorder %s162, %s163
    %p174 = scmp.eq.s32.totalorder %s18, 0
    %p175 = por %p173, %p174
    %p176 = scmp.ne.s32.totalorder %s162, %s163
    %p177 = scmp.eq.s32.totalorder %s19, 1
    %p178 = por %p176, %p177
    %p180 = scmp.ne.s32.totalorder %s163, %s179
    %p181 = scmp.eq.s32.totalorder %s19, 0
    %p182 = por %p180, %p181
    %p183 = scmp.le.s32.totalorder 1, %s13
    %p184 = scmp.lt.s32.totalorder %s13, 3
    %p185 = pnand %p183, %p184
    %p186 = pneg %p185
    // Predicated region
    $region9: #{bottleneck_forward.5} parent=5 // pred_check
      _
    $region10: #{bottleneck_forward.5} parent=5 // pred_check_branch
      %188 = sbr.rel (%p185) target = $region12
    $region11: #{bottleneck_forward.5} parent=5 // pred_region
      %s189 = ssub.s32 %s13, 1
      // Predicated region
      $region13: #{bottleneck_forward.5} parent=11 // pred_check
        %p190 = pneg %p60
      $region14: #{bottleneck_forward.5} parent=11 // pred_check_branch
        %192 = sbr.rel (%p190) target = $region16
      $region15: #{bottleneck_forward.5} parent=11 // pred_region
        _
      $region16: #{bottleneck_forward.5} parent=11 // pred_fallthru
        _
      // Predicated region
      $region17: #{bottleneck_forward.5} parent=11 // pred_check
        %p193 = pneg %p81
      $region18: #{bottleneck_forward.5} parent=11 // pred_check_branch
        %195 = sbr.rel (%p193) target = $region20
      $region19: #{bottleneck_forward.5} parent=11 // pred_region
        _
      $region20: #{bottleneck_forward.5} parent=11 // pred_fallthru
        _
      // Predicated region
      $region21: #{bottleneck_forward.5} parent=11 // pred_check
        %p196 = pneg %p102
      $region22: #{bottleneck_forward.5} parent=11 // pred_check_branch
        %198 = sbr.rel (%p196) target = $region24
      $region23: #{bottleneck_forward.5} parent=11 // pred_region
        _
      $region24: #{bottleneck_forward.5} parent=11 // pred_fallthru
        _
      // Predicated region
      $region25: #{bottleneck_forward.5} parent=11 // pred_check
        %p199 = pneg %p123
      $region26: #{bottleneck_forward.5} parent=11 // pred_check_branch
        %201 = sbr.rel (%p199) target = $region28
      $region27: #{bottleneck_forward.5} parent=11 // pred_region
        _
      $region28: #{bottleneck_forward.5} parent=11 // pred_fallthru
        _
    $region12: #{bottleneck_forward.5} parent=5 // pred_fallthru
      _
    %p202 = scmp.lt.s32.totalorder %s13, 2
    // Predicated region
    $region29: #{bottleneck_forward.5} parent=5 // pred_check
      %p203 = pneg %p202
    $region30: #{bottleneck_forward.5} parent=5 // pred_check_branch
      %205 = sbr.rel (%p203) target = $region32
    $region31: #{bottleneck_forward.5} parent=5 // pred_region
      // Predicated region
      $region33: #{bottleneck_forward.5} parent=31 // pred_check
        %p206 = pneg %p33
      $region34: #{bottleneck_forward.5} parent=31 // pred_check_branch
        %208 = sbr.rel (%p206) target = $region36
      $region35: #{bottleneck_forward.5} parent=31 // pred_region
        %p209 = scmp.lt.s32.totalorder %s13, 1
        %s210 = scalar_select %p209, %s13, 1
        %s211 = smul.addr %s210, 32
        %s212 = smul.addr %s211, 8
        %s213 = scalar_lea.vmem %s0, %s212
      $region36: #{bottleneck_forward.5} parent=31 // pred_fallthru
        _
    $region32: #{bottleneck_forward.5} parent=5 // pred_fallthru
      _
    %p214 = scmp.le.s32.totalorder 1, %s13
    %p215 = scmp.lt.s32.totalorder %s13, 3
    %p216 = pnand %p214, %p215
    %p217 = pneg %p216
    // Predicated region
    $region37: #{bottleneck_forward.5} parent=5 // pred_check
      _
    $region38: #{bottleneck_forward.5} parent=5 // pred_check_branch
      %219 = sbr.rel (%p216) target = $region40
    $region39: #{bottleneck_forward.5} parent=5 // pred_region
      %s220 = ssub.s32 %s13, 1
      %p221 = scmp.lt.s32.totalorder %s18, 1
      %s222 = scalar_select %p221, %s18, 1
      %s223 = smul.addr %s222, 32
      %s224 = smul.addr %s223, 8
      %s225 = scalar_lea.vmem %s0, %s224
      %p226 = pneg %p39
      %p227 = pneg %p36
      %p228 = pneg %p60
      %p229 = pneg %p57
      %p230 = pneg %p81
      %p231 = pneg %p78
      %p232 = pneg %p102
      %p233 = pneg %p99
      %p234 = pneg %p123
      %p235 = pneg %p120
      %p236 = pneg %p149
      %p237 = pneg %p146
      %p238 = scmp.lt.s32.totalorder %s18, 1
      %s239 = scalar_select %p238, %s18, 1
      %s240 = smul.addr %s239, 32
      %s241 = smul.addr %s240, 8
      %s242 = scalar_lea.vmem %s5, %s241
      %p243 = pneg %p175
      %p244 = pneg %p172
      %p245 = scmp.lt.s32.totalorder %s18, 1
      %s246 = scalar_select %p245, %s18, 1
      %s247 = smul.addr %s246, 8
      %s248 = scalar_lea.vmem %s6, %s247
      %p249 = scmp.lt.s32.totalorder %s18, 1
      %s250 = scalar_select %p249, %s18, 1
      %s251 = smul.addr %s250, 32
      %s252 = smul.addr %s251, 8
      %s253 = scalar_lea.vmem %s0, %s252
      %p254 = scmp.lt.s32.totalorder %s18, 1
      %s255 = scalar_select %p254, %s18, 1
      %s256 = smul.addr %s255, 32
      %s257 = smul.addr %s256, 8
      %s258 = scalar_lea.vmem %s5, %s257
      %p259 = scmp.lt.s32.totalorder %s18, 1
      %s260 = scalar_select %p259, %s18, 1
      %s261 = smul.addr %s260, 8
      %s262 = scalar_lea.vmem %s6, %s261
      %v264 = vld [vmem:[%s253] sm:$0xff]
      %v265 = vld [vmem:[%s253 + $0x8] sm:$0xff]
      %v266 = vld [vmem:[%s253 + $0x10] sm:$0xff]
      %v267 = vld [vmem:[%s253 + $0x18] sm:$0xff]
      %v268 = vld [vmem:[%s253 + $0x20] sm:$0xff]
      %v269 = vld [vmem:[%s253 + $0x28] sm:$0xff]
      %v270 = vld [vmem:[%s253 + $0x30] sm:$0xff]
      %v271 = vld [vmem:[%s253 + $0x38] sm:$0xff]
      %v272 = vld [vmem:[%s253 + $0x40] sm:$0xff]
      %v273 = vld [vmem:[%s253 + $0x48] sm:$0xff]
      %v274 = vld [vmem:[%s253 + $0x50] sm:$0xff]
      %v275 = vld [vmem:[%s253 + $0x58] sm:$0xff]
      %v276 = vld [vmem:[%s253 + $0x60] sm:$0xff]
      %v277 = vld [vmem:[%s253 + $0x68] sm:$0xff]
      %v278 = vld [vmem:[%s253 + $0x70] sm:$0xff]
      %v279 = vld [vmem:[%s253 + $0x78] sm:$0xff]
      %v280 = vld [vmem:[%s253 + $0x80] sm:$0xff]
      %v281 = vld [vmem:[%s253 + $0x88] sm:$0xff]
      %v282 = vld [vmem:[%s253 + $0x90] sm:$0xff]
      %v283 = vld [vmem:[%s253 + $0x98] sm:$0xff]
      %v284 = vld [vmem:[%s253 + $0xa0] sm:$0xff]
      %v285 = vld [vmem:[%s253 + $0xa8] sm:$0xff]
      %v286 = vld [vmem:[%s253 + $0xb0] sm:$0xff]
      %v287 = vld [vmem:[%s253 + $0xb8] sm:$0xff]
      %v288 = vld [vmem:[%s253 + $0xc0] sm:$0xff]
      %v289 = vld [vmem:[%s253 + $0xc8] sm:$0xff]
      %v290 = vld [vmem:[%s253 + $0xd0] sm:$0xff]
      %v291 = vld [vmem:[%s253 + $0xd8] sm:$0xff]
      %v292 = vld [vmem:[%s253 + $0xe0] sm:$0xff]
      %v293 = vld [vmem:[%s253 + $0xe8] sm:$0xff]
      %v294 = vld [vmem:[%s253 + $0xf0] sm:$0xff]
      %v295 = vld [vmem:[%s253 + $0xf8] sm:$0xff]
      %v296 = vpack.c.bf16 %v265, %v264
      %v297 = vpack.c.bf16 %v267, %v266
      %v298 = vpack.c.bf16 %v269, %v268
      %v299 = vpack.c.bf16 %v271, %v270
      %v300 = vpack.c.bf16 %v273, %v272
      %v301 = vpack.c.bf16 %v275, %v274
      %v302 = vpack.c.bf16 %v277, %v276
      %v303 = vpack.c.bf16 %v279, %v278
      %v304 = vpack.c.bf16 %v281, %v280
      %v305 = vpack.c.bf16 %v283, %v282
      %v306 = vpack.c.bf16 %v285, %v284
      %v307 = vpack.c.bf16 %v287, %v286
      %v308 = vpack.c.bf16 %v289, %v288
      %v309 = vpack.c.bf16 %v291, %v290
      %v310 = vpack.c.bf16 %v293, %v292
      %v311 = vpack.c.bf16 %v295, %v294
      %v312 = vld [vmem:[%s1] sm:$0xf]
      %v313 = vld [vmem:[%s1 + $0x4] sm:$0xf]
      %v314 = vld [vmem:[%s1 + $0x8] sm:$0xf]
      %v315 = vld [vmem:[%s1 + $0xc] sm:$0xf]
      %v316 = vld [vmem:[%s1 + $0x10] sm:$0xf]
      %v317 = vld [vmem:[%s1 + $0x14] sm:$0xf]
      %v318 = vld [vmem:[%s1 + $0x18] sm:$0xf]
      %v319 = vld [vmem:[%s1 + $0x1c] sm:$0xf]
      %v320 = vld [vmem:[%s1 + $0x20] sm:$0xf]
      %v321 = vld [vmem:[%s1 + $0x24] sm:$0xf]
      %v322 = vld [vmem:[%s1 + $0x28] sm:$0xf]
      %v323 = vld [vmem:[%s1 + $0x2c] sm:$0xf]
      %v324 = vld [vmem:[%s1 + $0x30] sm:$0xf]
      %v325 = vld [vmem:[%s1 + $0x34] sm:$0xf]
      %v326 = vld [vmem:[%s1 + $0x38] sm:$0xf]
      %v327 = vld [vmem:[%s1 + $0x3c] sm:$0xf]
      %v344 = vunpack.c.l.b16 %v312
      %v345 = vunpack.c.l.b16 %v313
      %v346 = vunpack.c.l.b16 %v314
      %v347 = vunpack.c.l.b16 %v315
      %v348 = vunpack.c.l.b16 %v316
      %v349 = vunpack.c.l.b16 %v317
      %v350 = vunpack.c.l.b16 %v318
      %v351 = vunpack.c.l.b16 %v319
      %v352 = vunpack.c.l.b16 %v320
      %v353 = vunpack.c.l.b16 %v321
      %v354 = vunpack.c.l.b16 %v322
      %v355 = vunpack.c.l.b16 %v323
      %v356 = vunpack.c.l.b16 %v324
      %v357 = vunpack.c.l.b16 %v325
      %v358 = vunpack.c.l.b16 %v326
      %v359 = vunpack.c.l.b16 %v327
      %v360 = vpack.c.b16 %v345, %v344
      %v361 = vpack.c.b16 %v347, %v346
      %v362 = vpack.c.b16 %v349, %v348
      %v363 = vpack.c.b16 %v351, %v350
      %v364 = vpack.c.b16 %v353, %v352
      %v365 = vpack.c.b16 %v355, %v354
      %v366 = vpack.c.b16 %v357, %v356
      %v367 = vpack.c.b16 %v359, %v358
      %376 = vmatprep.subr.bf16.mxu0 0
      %377 = vmatpush1.bf16.msra.mxu0 %v360
      %378 = vmatprep.subr.bf16.mxu0 0
      %379 = vmatpush1.bf16.msra.mxu0 %v361
      %380 = vmatprep.subr.bf16.mxu0 0
      %381 = vmatpush1.bf16.msra.mxu0 %v362
      %382 = vmatprep.subr.bf16.mxu0 0
      %383 = vmatpush1.bf16.msra.mxu0 %v363
      %384 = vmatprep.subr.bf16.mxu0 0
      %385 = vmatpush1.bf16.msra.mxu0 %v364
      %386 = vmatprep.subr.bf16.mxu0 0
      %387 = vmatpush1.bf16.msra.mxu0 %v365
      %388 = vmatprep.subr.bf16.mxu0 0
      %389 = vmatpush1.bf16.msra.mxu0 %v366
      %390 = vmatprep.subr.bf16.mxu0 0
      %391 = vmatpush1.bf16.msra.mxu0 %v367
      %392 = vmatprep.subr.bf16.mxu0 0
      %393 = vmatpush1.bf16.msra.mxu0 0
      %394 = vmatprep.subr.bf16.mxu0 0
      %395 = vmatpush1.bf16.msra.mxu0 0
      %396 = vmatprep.subr.bf16.mxu0 0
      %397 = vmatpush1.bf16.msra.mxu0 0
      %398 = vmatprep.subr.bf16.mxu0 0
      %399 = vmatpush1.bf16.msra.mxu0 0
      %400 = vmatprep.subr.bf16.mxu0 0
      %401 = vmatpush1.bf16.msra.mxu0 0
      %402 = vmatprep.subr.bf16.mxu0 0
      %403 = vmatpush1.bf16.msra.mxu0 0
      %404 = vmatprep.subr.bf16.mxu0 0
      %405 = vmatpush1.bf16.msra.mxu0 0
      %406 = vmatprep.subr.bf16.mxu0 0
      %407 = vmatpush1.bf16.msra.mxu0 0
      %408 = vmatprep.mubr.bf16.mxu0 0
      %409 = vmatmul.mubr.bf16.gmra.mrb[0].mxu0 %v296
      %v410 = vpop.f32.mrb[0].mxu0
      %v411 = vadd.f32 0.0, %v410
      %v412 = vpop.f32.mrb[0].mxu0
      %v413 = vpop.f32.mrb[0].mxu0
      %v414 = vadd.f32 0.0, %v413
      %v415 = vpop.f32.mrb[0].mxu0
      %416 = vmatprep.mubr.bf16.mxu0 0
      %417 = vmatmul.mubr.bf16.gmra.mrb[0].mxu0 %v297
      %v418 = vpop.f32.mrb[0].mxu0
      %v419 = vadd.f32 0.0, %v418
      %v420 = vpop.f32.mrb[0].mxu0
      %v421 = vpop.f32.mrb[0].mxu0
      %v422 = vadd.f32 0.0, %v421
      %v423 = vpop.f32.mrb[0].mxu0
      %424 = vmatprep.mubr.bf16.mxu0 0
      %425 = vmatmul.mubr.bf16.gmra.mrb[0].mxu0 %v298
      %v426 = vpop.f32.mrb[0].mxu0
      %v427 = vadd.f32 0.0, %v426
      %v428 = vpop.f32.mrb[0].mxu0
      %v429 = vpop.f32.mrb[0].mxu0
      %v430 = vadd.f32 0.0, %v429
      %v431 = vpop.f32.mrb[0].mxu0
      %432 = vmatprep.mubr.bf16.mxu0 0
      %433 = vmatmul.mubr.bf16.gmra.mrb[0].mxu0 %v299
      %v434 = vpop.f32.mrb[0].mxu0
      %v435 = vadd.f32 0.0, %v434
      %v436 = vpop.f32.mrb[0].mxu0
      %v437 = vpop.f32.mrb[0].mxu0
      %v438 = vadd.f32 0.0, %v437
      %v439 = vpop.f32.mrb[0].mxu0
      %440 = vmatprep.mubr.bf16.mxu0 0
      %441 = vmatmul.mubr.bf16.gmra.mrb[0].mxu0 %v300
      %v442 = vpop.f32.mrb[0].mxu0
      %v443 = vadd.f32 0.0, %v442
      %v444 = vpop.f32.mrb[0].mxu0
      %v445 = vpop.f32.mrb[0].mxu0
      %v446 = vadd.f32 0.0, %v445
      %v447 = vpop.f32.mrb[0].mxu0
      %448 = vmatprep.mubr.bf16.mxu0 0
      %449 = vmatmul.mubr.bf16.gmra.mrb[0].mxu0 %v301
      %v450 = vpop.f32.mrb[0].mxu0
      %v451 = vadd.f32 0.0, %v450
      %v452 = vpop.f32.mrb[0].mxu0
      %v453 = vpop.f32.mrb[0].mxu0
      %v454 = vadd.f32 0.0, %v453
      %v455 = vpop.f32.mrb[0].mxu0
      %456 = vmatprep.mubr.bf16.mxu0 0
      %457 = vmatmul.mubr.bf16.gmra.mrb[0].mxu0 %v302
      %v458 = vpop.f32.mrb[0].mxu0
      %v459 = vadd.f32 0.0, %v458
      %v460 = vpop.f32.mrb[0].mxu0
      %v461 = vpop.f32.mrb[0].mxu0
      %v462 = vadd.f32 0.0, %v461
      %v463 = vpop.f32.mrb[0].mxu0
      %464 = vmatprep.mubr.bf16.mxu0 0
      %465 = vmatmul.mubr.bf16.gmra.mrb[0].mxu0 %v303
      %v466 = vpop.f32.mrb[0].mxu0
      %v467 = vadd.f32 0.0, %v466
      %v468 = vpop.f32.mrb[0].mxu0
      %v469 = vpop.f32.mrb[0].mxu0
      %v470 = vadd.f32 0.0, %v469
      %v471 = vpop.f32.mrb[0].mxu0
      %472 = vmatprep.mubr.bf16.mxu0 0
      %473 = vmatmul.mubr.bf16.gmra.mrb[0].mxu0 %v304
      %v474 = vpop.f32.mrb[0].mxu0
      %v475 = vadd.f32 0.0, %v474
      %v476 = vpop.f32.mrb[0].mxu0
      %v477 = vpop.f32.mrb[0].mxu0
      %v478 = vadd.f32 0.0, %v477
      %v479 = vpop.f32.mrb[0].mxu0
      %480 = vmatprep.mubr.bf16.mxu0 0
      %481 = vmatmul.mubr.bf16.gmra.mrb[0].mxu0 %v305
      %v482 = vpop.f32.mrb[0].mxu0
      %v483 = vadd.f32 0.0, %v482
      %v484 = vpop.f32.mrb[0].mxu0
      %v485 = vpop.f32.mrb[0].mxu0
      %v486 = vadd.f32 0.0, %v485
      %v487 = vpop.f32.mrb[0].mxu0
      %488 = vmatprep.mubr.bf16.mxu0 0
      %489 = vmatmul.mubr.bf16.gmra.mrb[0].mxu0 %v306
      %v490 = vpop.f32.mrb[0].mxu0
      %v491 = vadd.f32 0.0, %v490
      %v492 = vpop.f32.mrb[0].mxu0
      %v493 = vpop.f32.mrb[0].mxu0
      %v494 = vadd.f32 0.0, %v493
      %v495 = vpop.f32.mrb[0].mxu0
      %496 = vmatprep.mubr.bf16.mxu0 0
      %497 = vmatmul.mubr.bf16.gmra.mrb[0].mxu0 %v307
      %v498 = vpop.f32.mrb[0].mxu0
      %v499 = vadd.f32 0.0, %v498
      %v500 = vpop.f32.mrb[0].mxu0
      %v501 = vpop.f32.mrb[0].mxu0
      %v502 = vadd.f32 0.0, %v501
      %v503 = vpop.f32.mrb[0].mxu0
      %504 = vmatprep.mubr.bf16.mxu0 0
      %505 = vmatmul.mubr.bf16.gmra.mrb[0].mxu0 %v308
      %v506 = vpop.f32.mrb[0].mxu0
      %v507 = vadd.f32 0.0, %v506
      %v508 = vpop.f32.mrb[0].mxu0
      %v509 = vpop.f32.mrb[0].mxu0
      %v510 = vadd.f32 0.0, %v509
      %v511 = vpop.f32.mrb[0].mxu0
      %512 = vmatprep.mubr.bf16.mxu0 0
      %513 = vmatmul.mubr.bf16.gmra.mrb[0].mxu0 %v309
      %v514 = vpop.f32.mrb[0].mxu0
      %v515 = vadd.f32 0.0, %v514
      %v516 = vpop.f32.mrb[0].mxu0
      %v517 = vpop.f32.mrb[0].mxu0
      %v518 = vadd.f32 0.0, %v517
      %v519 = vpop.f32.mrb[0].mxu0
      %520 = vmatprep.mubr.bf16.mxu0 0
      %521 = vmatmul.mubr.bf16.gmra.mrb[0].mxu0 %v310
      %v522 = vpop.f32.mrb[0].mxu0
      %v523 = vadd.f32 0.0, %v522
      %v524 = vpop.f32.mrb[0].mxu0
      %v525 = vpop.f32.mrb[0].mxu0
      %v526 = vadd.f32 0.0, %v525
      %v527 = vpop.f32.mrb[0].mxu0
      %528 = vmatprep.mubr.bf16.mxu0 0
      %529 = vmatmul.mubr.bf16.gmra.mrb[0].mxu0 %v311
      %v530 = vpop.f32.mrb[0].mxu0
      %v531 = vadd.f32 0.0, %v530
      %v532 = vpop.f32.mrb[0].mxu0
      %v533 = vpop.f32.mrb[0].mxu0
      %v534 = vadd.f32 0.0, %v533
      %v535 = vpop.f32.mrb[0].mxu0
      %536 = vdwg.mxu0
      %v537 = vld [vmem:[%s2] sm:$0x1]
      %v539 = vlaneseq
      %v540 = vshrl.u32 %v539, 7
      %v541 = vsub.s32 0, %v540
      %v542 = vrot.slane %v537, %v541
      %v544 = vmul.f32 %v411, %v542
      %v545 = vmul.f32 %v414, %v542
      %v546 = vmul.f32 %v419, %v542
      %v547 = vmul.f32 %v422, %v542
      %v548 = vmul.f32 %v427, %v542
      %v549 = vmul.f32 %v430, %v542
      %v550 = vmul.f32 %v435, %v542
      %v551 = vmul.f32 %v438, %v542
      %v552 = vmul.f32 %v443, %v542
      %v553 = vmul.f32 %v446, %v542
      %v554 = vmul.f32 %v451, %v542
      %v555 = vmul.f32 %v454, %v542
      %v556 = vmul.f32 %v459, %v542
      %v557 = vmul.f32 %v462, %v542
      %v558 = vmul.f32 %v467, %v542
      %v559 = vmul.f32 %v470, %v542
      %v560 = vmul.f32 %v475, %v542
      %v561 = vmul.f32 %v478, %v542
      %v562 = vmul.f32 %v483, %v542
      %v563 = vmul.f32 %v486, %v542
      %v564 = vmul.f32 %v491, %v542
      %v565 = vmul.f32 %v494, %v542
      %v566 = vmul.f32 %v499, %v542
      %v567 = vmul.f32 %v502, %v542
      %v568 = vmul.f32 %v507, %v542
      %v569 = vmul.f32 %v510, %v542
      %v570 = vmul.f32 %v515, %v542
      %v571 = vmul.f32 %v518, %v542
      %v572 = vmul.f32 %v523, %v542
      %v573 = vmul.f32 %v526, %v542
      %v574 = vmul.f32 %v531, %v542
      %v575 = vmul.f32 %v534, %v542
      %v576 = vld [vmem:[%s3] sm:$0x1]
      %v578 = vlaneseq
      %v579 = vshrl.u32 %v578, 7
      %v580 = vsub.s32 0, %v579
      %v581 = vrot.slane %v576, %v580
      %v583 = vadd.f32 %v544, %v581
      %v584 = vadd.f32 %v545, %v581
      %v585 = vadd.f32 %v546, %v581
      %v586 = vadd.f32 %v547, %v581
      %v587 = vadd.f32 %v548, %v581
      %v588 = vadd.f32 %v549, %v581
      %v589 = vadd.f32 %v550, %v581
      %v590 = vadd.f32 %v551, %v581
      %v591 = vadd.f32 %v552, %v581
      %v592 = vadd.f32 %v553, %v581
      %v593 = vadd.f32 %v554, %v581
      %v594 = vadd.f32 %v555, %v581
      %v595 = vadd.f32 %v556, %v581
      %v596 = vadd.f32 %v557, %v581
      %v597 = vadd.f32 %v558, %v581
      %v598 = vadd.f32 %v559, %v581
      %v599 = vadd.f32 %v560, %v581
      %v600 = vadd.f32 %v561, %v581
      %v601 = vadd.f32 %v562, %v581
      %v602 = vadd.f32 %v563, %v581
      %v603 = vadd.f32 %v564, %v581
      %v604 = vadd.f32 %v565, %v581
      %v605 = vadd.f32 %v566, %v581
      %v606 = vadd.f32 %v567, %v581
      %v607 = vadd.f32 %v568, %v581
      %v608 = vadd.f32 %v569, %v581
      %v609 = vadd.f32 %v570, %v581
      %v610 = vadd.f32 %v571, %v581
      %v611 = vadd.f32 %v572, %v581
      %v612 = vadd.f32 %v573, %v581
      %v613 = vadd.f32 %v574, %v581
      %v614 = vadd.f32 %v575, %v581
      %v615 = vmax.f32 %v583, 0.0
      %v616 = vmax.f32 %v584, 0.0
      %v617 = vmax.f32 %v585, 0.0
      %v618 = vmax.f32 %v586, 0.0
      %v619 = vmax.f32 %v587, 0.0
      %v620 = vmax.f32 %v588, 0.0
      %v621 = vmax.f32 %v589, 0.0
      %v622 = vmax.f32 %v590, 0.0
      %v623 = vmax.f32 %v591, 0.0
      %v624 = vmax.f32 %v592, 0.0
      %v625 = vmax.f32 %v593, 0.0
      %v626 = vmax.f32 %v594, 0.0
      %v627 = vmax.f32 %v595, 0.0
      %v628 = vmax.f32 %v596, 0.0
      %v629 = vmax.f32 %v597, 0.0
      %v630 = vmax.f32 %v598, 0.0
      %v631 = vmax.f32 %v599, 0.0
      %v632 = vmax.f32 %v600, 0.0
      %v633 = vmax.f32 %v601, 0.0
      %v634 = vmax.f32 %v602, 0.0
      %v635 = vmax.f32 %v603, 0.0
      %v636 = vmax.f32 %v604, 0.0
      %v637 = vmax.f32 %v605, 0.0
      %v638 = vmax.f32 %v606, 0.0
      %v639 = vmax.f32 %v607, 0.0
      %v640 = vmax.f32 %v608, 0.0
      %v641 = vmax.f32 %v609, 0.0
      %v642 = vmax.f32 %v610, 0.0
      %v643 = vmax.f32 %v611, 0.0
      %v644 = vmax.f32 %v612, 0.0
      %v645 = vmax.f32 %v613, 0.0
      %v646 = vmax.f32 %v614, 0.0
      %647 = vst [vmem:[#allocation2] sm:$0xff] 0.0
      %648 = vst [vmem:[#allocation2 + $0x8] sm:$0xff] 0.0
      %649 = vst [vmem:[#allocation2 + $0x10] sm:$0x3] 0.0
      %650 = vst [vmem:[#allocation2 + $0x18] sm:$0xff] 0.0
      %651 = vst [vmem:[#allocation2 + $0x20] sm:$0xff] 0.0
      %652 = vst [vmem:[#allocation2 + $0x28] sm:$0x3] 0.0
      %653 = vst [vmem:[#allocation2 + $0x30] sm:$0xff] 0.0
      %654 = vst [vmem:[#allocation2 + $0x38] sm:$0xff] 0.0
      %655 = vst [vmem:[#allocation2 + $0x40] sm:$0x3] 0.0
      %656 = vst [vmem:[#allocation2 + $0x48] sm:$0xff] 0.0
      %657 = vst [vmem:[#allocation2 + $0x50] sm:$0xff] 0.0
      %658 = vst [vmem:[#allocation2 + $0x58] sm:$0x3] 0.0
      %659 = vst [vmem:[#allocation2 + $0x60] sm:$0xff] 0.0
      %660 = vst [vmem:[#allocation2 + $0x68] sm:$0xff] 0.0
      %661 = vst [vmem:[#allocation2 + $0x70] sm:$0x3] 0.0
      %662 = vst [vmem:[#allocation2 + $0x78] sm:$0xff] 0.0
      %663 = vst [vmem:[#allocation2 + $0x80] sm:$0xff] 0.0
      %664 = vst [vmem:[#allocation2 + $0x88] sm:$0x3] 0.0
      %665 = vst [vmem:[#allocation2 + $0x90] sm:$0xff] 0.0
      %666 = vst [vmem:[#allocation2 + $0x98] sm:$0xff] 0.0
      %667 = vst [vmem:[#allocation2 + $0xa0] sm:$0x3] 0.0
      %668 = vst [vmem:[#allocation2 + $0xa8] sm:$0xff] 0.0
      %669 = vst [vmem:[#allocation2 + $0xb0] sm:$0xff] 0.0
      %670 = vst [vmem:[#allocation2 + $0xb8] sm:$0x3] 0.0
      %671 = vst [vmem:[#allocation2 + $0xc0] sm:$0xff] 0.0
      %672 = vst [vmem:[#allocation2 + $0xc8] sm:$0xff] 0.0
      %673 = vst [vmem:[#allocation2 + $0xd0] sm:$0x3] 0.0
      %674 = vst [vmem:[#allocation2 + $0xd8] sm:$0xff] 0.0
      %675 = vst [vmem:[#allocation2 + $0xe0] sm:$0xff] 0.0
      %676 = vst [vmem:[#allocation2 + $0xe8] sm:$0x3] 0.0
      %677 = vst [vmem:[#allocation2 + $0xf0] sm:$0xff] 0.0
      %678 = vst [vmem:[#allocation2 + $0xf8] sm:$0xff] 0.0
      %679 = vst [vmem:[#allocation2 + $0x100] sm:$0x3] 0.0
      %680 = vst [vmem:[#allocation2 + $0x108] sm:$0xff] 0.0
      %681 = vst [vmem:[#allocation2 + $0x110] sm:$0xff] 0.0
      %682 = vst [vmem:[#allocation2 + $0x118] sm:$0x3] 0.0
      %683 = vst [vmem:[#allocation2 + $0x120] sm:$0xff] 0.0
      %684 = vst [vmem:[#allocation2 + $0x128] sm:$0xff] 0.0
      %685 = vst [vmem:[#allocation2 + $0x130] sm:$0x3] 0.0
      %686 = vst [vmem:[#allocation2 + $0x138] sm:$0xff] 0.0
      %687 = vst [vmem:[#allocation2 + $0x140] sm:$0xff] 0.0
      %688 = vst [vmem:[#allocation2 + $0x148] sm:$0x3] 0.0
      %689 = vst [vmem:[#allocation2 + $0x150] sm:$0xff] 0.0
      %690 = vst [vmem:[#allocation2 + $0x158] sm:$0xff] 0.0
      %691 = vst [vmem:[#allocation2 + $0x160] sm:$0x3] 0.0
      %692 = vst [vmem:[#allocation2 + $0x168] sm:$0xff] 0.0
      %693 = vst [vmem:[#allocation2 + $0x170] sm:$0xff] 0.0
      %694 = vst [vmem:[#allocation2 + $0x178] sm:$0x3] 0.0
      %695 = vst [vmem:[#allocation2 + $0x180] sm:$0xff] 0.0
      %696 = vst [vmem:[#allocation2 + $0x188] sm:$0xff] 0.0
      %697 = vst [vmem:[#allocation2 + $0x190] sm:$0x3] 0.0
      %698 = vst [vmem:[#allocation2 + $0x198] sm:$0xff] 0.0
      %699 = vst [vmem:[#allocation2 + $0x1a0] sm:$0xff] 0.0
      %700 = vst [vmem:[#allocation2 + $0x1a8] sm:$0x3] 0.0
      %s701 = scalar_lea.vmem [#allocation2], 24
      %702 = vst [vmem:[%s701 + $0x1] sm:$0xff] %v615
      %703 = vst [vmem:[%s701 + $0x9] sm:$0xff] %v616
      %704 = vst [vmem:[%s701 + $0x19] sm:$0xff] %v617
      %705 = vst [vmem:[%s701 + $0x21] sm:$0xff] %v618
      %706 = vst [vmem:[%s701 + $0x31] sm:$0xff] %v619
      %707 = vst [vmem:[%s701 + $0x39] sm:$0xff] %v620
      %708 = vst [vmem:[%s701 + $0x49] sm:$0xff] %v621
      %709 = vst [vmem:[%s701 + $0x51] sm:$0xff] %v622
      %710 = vst [vmem:[%s701 + $0x61] sm:$0xff] %v623
      %711 = vst [vmem:[%s701 + $0x69] sm:$0xff] %v624
      %712 = vst [vmem:[%s701 + $0x79] sm:$0xff] %v625
      %713 = vst [vmem:[%s701 + $0x81] sm:$0xff] %v626
      %714 = vst [vmem:[%s701 + $0x91] sm:$0xff] %v627
      %715 = vst [vmem:[%s701 + $0x99] sm:$0xff] %v628
      %716 = vst [vmem:[%s701 + $0xa9] sm:$0xff] %v629
      %717 = vst [vmem:[%s701 + $0xb1] sm:$0xff] %v630
      %718 = vst [vmem:[%s701 + $0xc1] sm:$0xff] %v631
      %719 = vst [vmem:[%s701 + $0xc9] sm:$0xff] %v632
      %720 = vst [vmem:[%s701 + $0xd9] sm:$0xff] %v633
      %721 = vst [vmem:[%s701 + $0xe1] sm:$0xff] %v634
      %722 = vst [vmem:[%s701 + $0xf1] sm:$0xff] %v635
      %723 = vst [vmem:[%s701 + $0xf9] sm:$0xff] %v636
      %724 = vst [vmem:[%s701 + $0x109] sm:$0xff] %v637
      %725 = vst [vmem:[%s701 + $0x111] sm:$0xff] %v638
      %726 = vst [vmem:[%s701 + $0x121] sm:$0xff] %v639
      %727 = vst [vmem:[%s701 + $0x129] sm:$0xff] %v640
      %728 = vst [vmem:[%s701 + $0x139] sm:$0xff] %v641
      %729 = vst [vmem:[%s701 + $0x141] sm:$0xff] %v642
      %730 = vst [vmem:[%s701 + $0x151] sm:$0xff] %v643
      %731 = vst [vmem:[%s701 + $0x159] sm:$0xff] %v644
      %732 = vst [vmem:[%s701 + $0x169] sm:$0xff] %v645
      %733 = vst [vmem:[%s701 + $0x171] sm:$0xff] %v646
      %v734 = vld [vmem:[#allocation2] sm:$0xff]
      %v735 = vld [vmem:[#allocation2 + $0x8] sm:$0xff]
      %v736 = vld [vmem:[#allocation2 + $0x18] sm:$0xff]
      %v737 = vld [vmem:[#allocation2 + $0x20] sm:$0xff]
      %v738 = vld [vmem:[#allocation2 + $0x30] sm:$0xff]
      %v739 = vld [vmem:[#allocation2 + $0x38] sm:$0xff]
      %v740 = vld [vmem:[#allocation2 + $0x48] sm:$0xff]
      %v741 = vld [vmem:[#allocation2 + $0x50] sm:$0xff]
      %v742 = vld [vmem:[#allocation2 + $0x60] sm:$0xff]
      %v743 = vld [vmem:[#allocation2 + $0x68] sm:$0xff]
      %v744 = vld [vmem:[#allocation2 + $0x78] sm:$0xff]
      %v745 = vld [vmem:[#allocation2 + $0x80] sm:$0xff]
      %v746 = vld [vmem:[#allocation2 + $0x90] sm:$0xff]
      %v747 = vld [vmem:[#allocation2 + $0x98] sm:$0xff]
      %v748 = vld [vmem:[#allocation2 + $0xa8] sm:$0xff]
      %v749 = vld [vmem:[#allocation2 + $0xb0] sm:$0xff]
      %v750 = vld [vmem:[#allocation2 + $0xc0] sm:$0xff]
      %v751 = vld [vmem:[#allocation2 + $0xc8] sm:$0xff]
      %v752 = vld [vmem:[#allocation2 + $0xd8] sm:$0xff]
      %v753 = vld [vmem:[#allocation2 + $0xe0] sm:$0xff]
      %v754 = vld [vmem:[#allocation2 + $0xf0] sm:$0xff]
      %v755 = vld [vmem:[#allocation2 + $0xf8] sm:$0xff]
      %v756 = vld [vmem:[#allocation2 + $0x108] sm:$0xff]
      %v757 = vld [vmem:[#allocation2 + $0x110] sm:$0xff]
      %v758 = vld [vmem:[#allocation2 + $0x120] sm:$0xff]
      %v759 = vld [vmem:[#allocation2 + $0x128] sm:$0xff]
      %v760 = vld [vmem:[#allocation2 + $0x138] sm:$0xff]
      %v761 = vld [vmem:[#allocation2 + $0x140] sm:$0xff]
      %v762 = vld [vmem:[#allocation2 + $0x150] sm:$0xff]
      %v763 = vld [vmem:[#allocation2 + $0x158] sm:$0xff]
      %v764 = vld [vmem:[#allocation2 + $0x168] sm:$0xff]
      %v765 = vld [vmem:[#allocation2 + $0x170] sm:$0xff]
      %v766 = vpack.c.bf16 %v735, %v734
      %v767 = vpack.c.bf16 %v737, %v736
      %v768 = vpack.c.bf16 %v739, %v738
      %v769 = vpack.c.bf16 %v741, %v740
      %v770 = vpack.c.bf16 %v743, %v742
      %v771 = vpack.c.bf16 %v745, %v744
      %v772 = vpack.c.bf16 %v747, %v746
      %v773 = vpack.c.bf16 %v749, %v748
      %v774 = vpack.c.bf16 %v751, %v750
      %v775 = vpack.c.bf16 %v753, %v752
      %v776 = vpack.c.bf16 %v755, %v754
      %v777 = vpack.c.bf16 %v757, %v756
      %v778 = vpack.c.bf16 %v759, %v758
      %v779 = vpack.c.bf16 %v761, %v760
      %v780 = vpack.c.bf16 %v763, %v762
      %v781 = vpack.c.bf16 %v765, %v764
      %v782 = vld [vmem:[%s4] sm:$0xf]
      %v783 = vld [vmem:[%s4 + $0x4] sm:$0xf]
      %v784 = vld [vmem:[%s4 + $0x8] sm:$0xf]
      %v785 = vld [vmem:[%s4 + $0xc] sm:$0xf]
      %v786 = vld [vmem:[%s4 + $0x10] sm:$0xf]
      %v787 = vld [vmem:[%s4 + $0x14] sm:$0xf]
      %v788 = vld [vmem:[%s4 + $0x18] sm:$0xf]
      %v789 = vld [vmem:[%s4 + $0x1c] sm:$0xf]
      %v790 = vld [vmem:[%s4 + $0x20] sm:$0xf]
      %v791 = vld [vmem:[%s4 + $0x24] sm:$0xf]
      %v792 = vld [vmem:[%s4 + $0x28] sm:$0xf]
      %v793 = vld [vmem:[%s4 + $0x2c] sm:$0xf]
      %v794 = vld [vmem:[%s4 + $0x30] sm:$0xf]
      %v795 = vld [vmem:[%s4 + $0x34] sm:$0xf]
      %v796 = vld [vmem:[%s4 + $0x38] sm:$0xf]
      %v797 = vld [vmem:[%s4 + $0x3c] sm:$0xf]
      %v798 = vld [vmem:[#allocation2 + $0x1] sm:$0xff]
      %v799 = vld [vmem:[#allocation2 + $0x9] sm:$0xff]
      %v800 = vld [vmem:[#allocation2 + $0x19] sm:$0xff]
      %v801 = vld [vmem:[#allocation2 + $0x21] sm:$0xff]
      %v802 = vld [vmem:[#allocation2 + $0x31] sm:$0xff]
      %v803 = vld [vmem:[#allocation2 + $0x39] sm:$0xff]
      %v804 = vld [vmem:[#allocation2 + $0x49] sm:$0xff]
      %v805 = vld [vmem:[#allocation2 + $0x51] sm:$0xff]
      %v806 = vld [vmem:[#allocation2 + $0x61] sm:$0xff]
      %v807 = vld [vmem:[#allocation2 + $0x69] sm:$0xff]
      %v808 = vld [vmem:[#allocation2 + $0x79] sm:$0xff]
      %v809 = vld [vmem:[#allocation2 + $0x81] sm:$0xff]
      %v810 = vld [vmem:[#allocation2 + $0x91] sm:$0xff]
      %v811 = vld [vmem:[#allocation2 + $0x99] sm:$0xff]
      %v812 = vld [vmem:[#allocation2 + $0xa9] sm:$0xff]
      %v813 = vld [vmem:[#allocation2 + $0xb1] sm:$0xff]
      %v814 = vld [vmem:[#allocation2 + $0xc1] sm:$0xff]
      %v815 = vld [vmem:[#allocation2 + $0xc9] sm:$0xff]
      %v816 = vld [vmem:[#allocation2 + $0xd9] sm:$0xff]
      %v817 = vld [vmem:[#allocation2 + $0xe1] sm:$0xff]
      %v818 = vld [vmem:[#allocation2 + $0xf1] sm:$0xff]
      %v819 = vld [vmem:[#allocation2 + $0xf9] sm:$0xff]
      %v820 = vld [vmem:[#allocation2 + $0x109] sm:$0xff]
      %v821 = vld [vmem:[#allocation2 + $0x111] sm:$0xff]
      %v822 = vld [vmem:[#allocation2 + $0x121] sm:$0xff]
      %v823 = vld [vmem:[#allocation2 + $0x129] sm:$0xff]
      %v824 = vld [vmem:[#allocation2 + $0x139] sm:$0xff]
      %v825 = vld [vmem:[#allocation2 + $0x141] sm:$0xff]
      %v826 = vld [vmem:[#allocation2 + $0x151] sm:$0xff]
      %v827 = vld [vmem:[#allocation2 + $0x159] sm:$0xff]
      %v828 = vld [vmem:[#allocation2 + $0x169] sm:$0xff]
      %v829 = vld [vmem:[#allocation2 + $0x171] sm:$0xff]
      %v830 = vpack.c.bf16 %v799, %v798
      %v831 = vpack.c.bf16 %v801, %v800
      %v832 = vpack.c.bf16 %v803, %v802
      %v833 = vpack.c.bf16 %v805, %v804
      %v834 = vpack.c.bf16 %v807, %v806
      %v835 = vpack.c.bf16 %v809, %v808
      %v836 = vpack.c.bf16 %v811, %v810
      %v837 = vpack.c.bf16 %v813, %v812
      %v838 = vpack.c.bf16 %v815, %v814
      %v839 = vpack.c.bf16 %v817, %v816
      %v840 = vpack.c.bf16 %v819, %v818
      %v841 = vpack.c.bf16 %v821, %v820
      %v842 = vpack.c.bf16 %v823, %v822
      %v843 = vpack.c.bf16 %v825, %v824
      %v844 = vpack.c.bf16 %v827, %v826
      %v845 = vpack.c.bf16 %v829, %v828
      %s846 = scalar_lea.vmem %s4, 64
      %v847 = vld [vmem:[%s846] sm:$0xf]
      %v848 = vld [vmem:[%s846 + $0x4] sm:$0xf]
      %v849 = vld [vmem:[%s846 + $0x8] sm:$0xf]
      %v850 = vld [vmem:[%s846 + $0xc] sm:$0xf]
      %v851 = vld [vmem:[%s846 + $0x10] sm:$0xf]
      %v852 = vld [vmem:[%s846 + $0x14] sm:$0xf]
      %v853 = vld [vmem:[%s846 + $0x18] sm:$0xf]
      %v854 = vld [vmem:[%s846 + $0x1c] sm:$0xf]
      %v855 = vld [vmem:[%s846 + $0x20] sm:$0xf]
      %v856 = vld [vmem:[%s846 + $0x24] sm:$0xf]
      %v857 = vld [vmem:[%s846 + $0x28] sm:$0xf]
      %v858 = vld [vmem:[%s846 + $0x2c] sm:$0xf]
      %v859 = vld [vmem:[%s846 + $0x30] sm:$0xf]
      %v860 = vld [vmem:[%s846 + $0x34] sm:$0xf]
      %v861 = vld [vmem:[%s846 + $0x38] sm:$0xf]
      %v862 = vld [vmem:[%s846 + $0x3c] sm:$0xf]
      %v879 = vunpack.c.l.b16 %v847
      %v880 = vunpack.c.l.b16 %v848
      %v881 = vunpack.c.l.b16 %v849
      %v882 = vunpack.c.l.b16 %v850
      %v883 = vunpack.c.l.b16 %v851
      %v884 = vunpack.c.l.b16 %v852
      %v885 = vunpack.c.l.b16 %v853
      %v886 = vunpack.c.l.b16 %v854
      %v887 = vunpack.c.l.b16 %v855
      %v888 = vunpack.c.l.b16 %v856
      %v889 = vunpack.c.l.b16 %v857
      %v890 = vunpack.c.l.b16 %v858
      %v891 = vunpack.c.l.b16 %v859
      %v892 = vunpack.c.l.b16 %v860
      %v893 = vunpack.c.l.b16 %v861
      %v894 = vunpack.c.l.b16 %v862
      %v895 = vpack.c.b16 %v880, %v879
      %v896 = vpack.c.b16 %v882, %v881
      %v897 = vpack.c.b16 %v884, %v883
      %v898 = vpack.c.b16 %v886, %v885
      %v899 = vpack.c.b16 %v888, %v887
      %v900 = vpack.c.b16 %v890, %v889
      %v901 = vpack.c.b16 %v892, %v891
      %v902 = vpack.c.b16 %v894, %v893
      %911 = vmatprep.subr.bf16.mxu0 0
      %912 = vmatpush1.bf16.msra.mxu0 %v895
      %913 = vmatprep.subr.bf16.mxu0 0
      %914 = vmatpush1.bf16.msra.mxu0 %v896
      %915 = vmatprep.subr.bf16.mxu0 0
      %916 = vmatpush1.bf16.msra.mxu0 %v897
      %917 = vmatprep.subr.bf16.mxu0 0
      %918 = vmatpush1.bf16.msra.mxu0 %v898
      %919 = vmatprep.subr.bf16.mxu0 0
      %920 = vmatpush1.bf16.msra.mxu0 %v899
      %921 = vmatprep.subr.bf16.mxu0 0
      %922 = vmatpush1.bf16.msra.mxu0 %v900
      %923 = vmatprep.subr.bf16.mxu0 0
      %924 = vmatpush1.bf16.msra.mxu0 %v901
      %925 = vmatprep.subr.bf16.mxu0 0
      %926 = vmatpush1.bf16.msra.mxu0 %v902
      %927 = vmatprep.subr.bf16.mxu0 0
      %928 = vmatpush1.bf16.msra.mxu0 0
      %929 = vmatprep.subr.bf16.mxu0 0
      %930 = vmatpush1.bf16.msra.mxu0 0
      %931 = vmatprep.subr.bf16.mxu0 0
      %932 = vmatpush1.bf16.msra.mxu0 0
      %933 = vmatprep.subr.bf16.mxu0 0
      %934 = vmatpush1.bf16.msra.mxu0 0
      %935 = vmatprep.subr.bf16.mxu0 0
      %936 = vmatpush1.bf16.msra.mxu0 0
      %937 = vmatprep.subr.bf16.mxu0 0
      %938 = vmatpush1.bf16.msra.mxu0 0
      %939 = vmatprep.subr.bf16.mxu0 0
      %940 = vmatpush1.bf16.msra.mxu0 0
      %941 = vmatprep.subr.bf16.mxu0 0
      %942 = vmatpush1.bf16.msra.mxu0 0
      %943 = vmatprep.mubr.bf16.mxu0 0
      %944 = vmatmul.mubr.bf16.gmra.mrb[0].mxu0 %v830
      %v945 = vpop.f32.mrb[0].mxu0
      %v946 = vadd.f32 0.0, %v945
      %v947 = vpop.f32.mrb[0].mxu0
      %v948 = vpop.f32.mrb[0].mxu0
      %v949 = vadd.f32 0.0, %v948
      %v950 = vpop.f32.mrb[0].mxu0
      %951 = vmatprep.mubr.bf16.mxu0 0
      %952 = vmatmul.mubr.bf16.gmra.mrb[0].mxu0 %v831
      %v953 = vpop.f32.mrb[0].mxu0
      %v954 = vadd.f32 0.0, %v953
      %v955 = vpop.f32.mrb[0].mxu0
      %v956 = vpop.f32.mrb[0].mxu0
      %v957 = vadd.f32 0.0, %v956
      %v958 = vpop.f32.mrb[0].mxu0
      %959 = vmatprep.mubr.bf16.mxu0 0
      %960 = vmatmul.mubr.bf16.gmra.mrb[0].mxu0 %v832
      %v961 = vpop.f32.mrb[0].mxu0
      %v962 = vadd.f32 0.0, %v961
      %v963 = vpop.f32.mrb[0].mxu0
      %v964 = vpop.f32.mrb[0].mxu0
      %v965 = vadd.f32 0.0, %v964
      %v966 = vpop.f32.mrb[0].mxu0
      %967 = vmatprep.mubr.bf16.mxu0 0
      %968 = vmatmul.mubr.bf16.gmra.mrb[0].mxu0 %v833
      %v969 = vpop.f32.mrb[0].mxu0
      %v970 = vadd.f32 0.0, %v969
      %v971 = vpop.f32.mrb[0].mxu0
      %v972 = vpop.f32.mrb[0].mxu0
      %v973 = vadd.f32 0.0, %v972
      %v974 = vpop.f32.mrb[0].mxu0
      %975 = vmatprep.mubr.bf16.mxu0 0
      %976 = vmatmul.mubr.bf16.gmra.mrb[0].mxu0 %v834
      %v977 = vpop.f32.mrb[0].mxu0
      %v978 = vadd.f32 0.0, %v977
      %v979 = vpop.f32.mrb[0].mxu0
      %v980 = vpop.f32.mrb[0].mxu0
      %v981 = vadd.f32 0.0, %v980
      %v982 = vpop.f32.mrb[0].mxu0
      %983 = vmatprep.mubr.bf16.mxu0 0
      %984 = vmatmul.mubr.bf16.gmra.mrb[0].mxu0 %v835
      %v985 = vpop.f32.mrb[0].mxu0
      %v986 = vadd.f32 0.0, %v985
      %v987 = vpop.f32.mrb[0].mxu0
      %v988 = vpop.f32.mrb[0].mxu0
      %v989 = vadd.f32 0.0, %v988
      %v990 = vpop.f32.mrb[0].mxu0
      %991 = vmatprep.mubr.bf16.mxu0 0
      %992 = vmatmul.mubr.bf16.gmra.mrb[0].mxu0 %v836
      %v993 = vpop.f32.mrb[0].mxu0
      %v994 = vadd.f32 0.0, %v993
      %v995 = vpop.f32.mrb[0].mxu0
      %v996 = vpop.f32.mrb[0].mxu0
      %v997 = vadd.f32 0.0, %v996
      %v998 = vpop.f32.mrb[0].mxu0
      %999 = vmatprep.mubr.bf16.mxu0 0
      %1000 = vmatmul.mubr.bf16.gmra.mrb[0].mxu0 %v837
      %v1001 = vpop.f32.mrb[0].mxu0
      %v1002 = vadd.f32 0.0, %v1001
      %v1003 = vpop.f32.mrb[0].mxu0
      %v1004 = vpop.f32.mrb[0].mxu0
      %v1005 = vadd.f32 0.0, %v1004
      %v1006 = vpop.f32.mrb[0].mxu0
      %1007 = vmatprep.mubr.bf16.mxu0 0
      %1008 = vmatmul.mubr.bf16.gmra.mrb[0].mxu0 %v838
      %v1009 = vpop.f32.mrb[0].mxu0
      %v1010 = vadd.f32 0.0, %v1009
      %v1011 = vpop.f32.mrb[0].mxu0
      %v1012 = vpop.f32.mrb[0].mxu0
      %v1013 = vadd.f32 0.0, %v1012
      %v1014 = vpop.f32.mrb[0].mxu0
      %1015 = vmatprep.mubr.bf16.mxu0 0
      %1016 = vmatmul.mubr.bf16.gmra.mrb[0].mxu0 %v839
      %v1017 = vpop.f32.mrb[0].mxu0
      %v1018 = vadd.f32 0.0, %v1017
      %v1019 = vpop.f32.mrb[0].mxu0
      %v1020 = vpop.f32.mrb[0].mxu0
      %v1021 = vadd.f32 0.0, %v1020
      %v1022 = vpop.f32.mrb[0].mxu0
      %1023 = vmatprep.mubr.bf16.mxu0 0
      %1024 = vmatmul.mubr.bf16.gmra.mrb[0].mxu0 %v840
      %v1025 = vpop.f32.mrb[0].mxu0
      %v1026 = vadd.f32 0.0, %v1025
      %v1027 = vpop.f32.mrb[0].mxu0
      %v1028 = vpop.f32.mrb[0].mxu0
      %v1029 = vadd.f32 0.0, %v1028
      %v1030 = vpop.f32.mrb[0].mxu0
      %1031 = vmatprep.mubr.bf16.mxu0 0
      %1032 = vmatmul.mubr.bf16.gmra.mrb[0].mxu0 %v841
      %v1033 = vpop.f32.mrb[0].mxu0
      %v1034 = vadd.f32 0.0, %v1033
      %v1035 = vpop.f32.mrb[0].mxu0
      %v1036 = vpop.f32.mrb[0].mxu0
      %v1037 = vadd.f32 0.0, %v1036
      %v1038 = vpop.f32.mrb[0].mxu0
      %1039 = vmatprep.mubr.bf16.mxu0 0
      %1040 = vmatmul.mubr.bf16.gmra.mrb[0].mxu0 %v842
      %v1041 = vpop.f32.mrb[0].mxu0
      %v1042 = vadd.f32 0.0, %v1041
      %v1043 = vpop.f32.mrb[0].mxu0
      %v1044 = vpop.f32.mrb[0].mxu0
      %v1045 = vadd.f32 0.0, %v1044
      %v1046 = vpop.f32.mrb[0].mxu0
      %1047 = vmatprep.mubr.bf16.mxu0 0
      %1048 = vmatmul.mubr.bf16.gmra.mrb[0].mxu0 %v843
      %v1049 = vpop.f32.mrb[0].mxu0
      %v1050 = vadd.f32 0.0, %v1049
      %v1051 = vpop.f32.mrb[0].mxu0
      %v1052 = vpop.f32.mrb[0].mxu0
      %v1053 = vadd.f32 0.0, %v1052
      %v1054 = vpop.f32.mrb[0].mxu0
      %1055 = vmatprep.mubr.bf16.mxu0 0
      %1056 = vmatmul.mubr.bf16.gmra.mrb[0].mxu0 %v844
      %v1057 = vpop.f32.mrb[0].mxu0
      %v1058 = vadd.f32 0.0, %v1057
      %v1059 = vpop.f32.mrb[0].mxu0
      %v1060 = vpop.f32.mrb[0].mxu0
      %v1061 = vadd.f32 0.0, %v1060
      %v1062 = vpop.f32.mrb[0].mxu0
      %1063 = vmatprep.mubr.bf16.mxu0 0
      %1064 = vmatmul.mubr.bf16.gmra.mrb[0].mxu0 %v845
      %v1065 = vpop.f32.mrb[0].mxu0
      %v1066 = vadd.f32 0.0, %v1065
      %v1067 = vpop.f32.mrb[0].mxu0
      %v1068 = vpop.f32.mrb[0].mxu0
      %v1069 = vadd.f32 0.0, %v1068
      %v1070 = vpop.f32.mrb[0].mxu0
      %1071 = vdwg.mxu0
      %v1088 = vunpack.c.l.b16 %v782
      %v1089 = vunpack.c.l.b16 %v783
      %v1090 = vunpack.c.l.b16 %v784
      %v1091 = vunpack.c.l.b16 %v785
      %v1092 = vunpack.c.l.b16 %v786
      %v1093 = vunpack.c.l.b16 %v787
      %v1094 = vunpack.c.l.b16 %v788
      %v1095 = vunpack.c.l.b16 %v789
      %v1096 = vunpack.c.l.b16 %v790
      %v1097 = vunpack.c.l.b16 %v791
      %v1098 = vunpack.c.l.b16 %v792
      %v1099 = vunpack.c.l.b16 %v793
      %v1100 = vunpack.c.l.b16 %v794
      %v1101 = vunpack.c.l.b16 %v795
      %v1102 = vunpack.c.l.b16 %v796
      %v1103 = vunpack.c.l.b16 %v797
      %v1104 = vpack.c.b16 %v1089, %v1088
      %v1105 = vpack.c.b16 %v1091, %v1090
      %v1106 = vpack.c.b16 %v1093, %v1092
      %v1107 = vpack.c.b16 %v1095, %v1094
      %v1108 = vpack.c.b16 %v1097, %v1096
      %v1109 = vpack.c.b16 %v1099, %v1098
      %v1110 = vpack.c.b16 %v1101, %v1100
      %v1111 = vpack.c.b16 %v1103, %v1102
      %1120 = vmatprep.subr.bf16.mxu0 0
      %1121 = vmatpush1.bf16.msra.mxu0 %v1104
      %1122 = vmatprep.subr.bf16.mxu0 0
      %1123 = vmatpush1.bf16.msra.mxu0 %v1105
      %1124 = vmatprep.subr.bf16.mxu0 0
      %1125 = vmatpush1.bf16.msra.mxu0 %v1106
      %1126 = vmatprep.subr.bf16.mxu0 0
      %1127 = vmatpush1.bf16.msra.mxu0 %v1107
      %1128 = vmatprep.subr.bf16.mxu0 0
      %1129 = vmatpush1.bf16.msra.mxu0 %v1108
      %1130 = vmatprep.subr.bf16.mxu0 0
      %1131 = vmatpush1.bf16.msra.mxu0 %v1109
      %1132 = vmatprep.subr.bf16.mxu0 0
      %1133 = vmatpush1.bf16.msra.mxu0 %v1110
      %1134 = vmatprep.subr.bf16.mxu0 0
      %1135 = vmatpush1.bf16.msra.mxu0 %v1111
      %1136 = vmatprep.subr.bf16.mxu0 0
      %1137 = vmatpush1.bf16.msra.mxu0 0
      %1138 = vmatprep.subr.bf16.mxu0 0
      %1139 = vmatpush1.bf16.msra.mxu0 0
      %1140 = vmatprep.subr.bf16.mxu0 0
      %1141 = vmatpush1.bf16.msra.mxu0 0
      %1142 = vmatprep.subr.bf16.mxu0 0
      %1143 = vmatpush1.bf16.msra.mxu0 0
      %1144 = vmatprep.subr.bf16.mxu0 0
      %1145 = vmatpush1.bf16.msra.mxu0 0
      %1146 = vmatprep.subr.bf16.mxu0 0
      %1147 = vmatpush1.bf16.msra.mxu0 0
      %1148 = vmatprep.subr.bf16.mxu0 0
      %1149 = vmatpush1.bf16.msra.mxu0 0
      %1150 = vmatprep.subr.bf16.mxu0 0
      %1151 = vmatpush1.bf16.msra.mxu0 0
      %1152 = vmatprep.mubr.bf16.mxu0 0
      %1153 = vmatmul.mubr.bf16.gmra.mrb[0].mxu0 %v766
      %v1154 = vpop.f32.mrb[0].mxu0
      %v1155 = vadd.f32 %v946, %v1154
      %v1156 = vpop.f32.mrb[0].mxu0
      %v1157 = vpop.f32.mrb[0].mxu0
      %v1158 = vadd.f32 %v949, %v1157
      %v1159 = vpop.f32.mrb[0].mxu0
      %1160 = vmatprep.mubr.bf16.mxu0 0
      %1161 = vmatmul.mubr.bf16.gmra.mrb[0].mxu0 %v767
      %v1162 = vpop.f32.mrb[0].mxu0
      %v1163 = vadd.f32 %v954, %v1162
      %v1164 = vpop.f32.mrb[0].mxu0
      %v1165 = vpop.f32.mrb[0].mxu0
      %v1166 = vadd.f32 %v957, %v1165
      %v1167 = vpop.f32.mrb[0].mxu0
      %1168 = vmatprep.mubr.bf16.mxu0 0
      %1169 = vmatmul.mubr.bf16.gmra.mrb[0].mxu0 %v768
      %v1170 = vpop.f32.mrb[0].mxu0
      %v1171 = vadd.f32 %v962, %v1170
      %v1172 = vpop.f32.mrb[0].mxu0
      %v1173 = vpop.f32.mrb[0].mxu0
      %v1174 = vadd.f32 %v965, %v1173
      %v1175 = vpop.f32.mrb[0].mxu0
      %1176 = vmatprep.mubr.bf16.mxu0 0
      %1177 = vmatmul.mubr.bf16.gmra.mrb[0].mxu0 %v769
      %v1178 = vpop.f32.mrb[0].mxu0
      %v1179 = vadd.f32 %v970, %v1178
      %v1180 = vpop.f32.mrb[0].mxu0
      %v1181 = vpop.f32.mrb[0].mxu0
      %v1182 = vadd.f32 %v973, %v1181
      %v1183 = vpop.f32.mrb[0].mxu0
      %1184 = vmatprep.mubr.bf16.mxu0 0
      %1185 = vmatmul.mubr.bf16.gmra.mrb[0].mxu0 %v770
      %v1186 = vpop.f32.mrb[0].mxu0
      %v1187 = vadd.f32 %v978, %v1186
      %v1188 = vpop.f32.mrb[0].mxu0
      %v1189 = vpop.f32.mrb[0].mxu0
      %v1190 = vadd.f32 %v981, %v1189
      %v1191 = vpop.f32.mrb[0].mxu0
      %1192 = vmatprep.mubr.bf16.mxu0 0
      %1193 = vmatmul.mubr.bf16.gmra.mrb[0].mxu0 %v771
      %v1194 = vpop.f32.mrb[0].mxu0
      %v1195 = vadd.f32 %v986, %v1194
      %v1196 = vpop.f32.mrb[0].mxu0
      %v1197 = vpop.f32.mrb[0].mxu0
      %v1198 = vadd.f32 %v989, %v1197
      %v1199 = vpop.f32.mrb[0].mxu0
      %1200 = vmatprep.mubr.bf16.mxu0 0
      %1201 = vmatmul.mubr.bf16.gmra.mrb[0].mxu0 %v772
      %v1202 = vpop.f32.mrb[0].mxu0
      %v1203 = vadd.f32 %v994, %v1202
      %v1204 = vpop.f32.mrb[0].mxu0
      %v1205 = vpop.f32.mrb[0].mxu0
      %v1206 = vadd.f32 %v997, %v1205
      %v1207 = vpop.f32.mrb[0].mxu0
      %1208 = vmatprep.mubr.bf16.mxu0 0
      %1209 = vmatmul.mubr.bf16.gmra.mrb[0].mxu0 %v773
      %v1210 = vpop.f32.mrb[0].mxu0
      %v1211 = vadd.f32 %v1002, %v1210
      %v1212 = vpop.f32.mrb[0].mxu0
      %v1213 = vpop.f32.mrb[0].mxu0
      %v1214 = vadd.f32 %v1005, %v1213
      %v1215 = vpop.f32.mrb[0].mxu0
      %1216 = vmatprep.mubr.bf16.mxu0 0
      %1217 = vmatmul.mubr.bf16.gmra.mrb[0].mxu0 %v774
      %v1218 = vpop.f32.mrb[0].mxu0
      %v1219 = vadd.f32 %v1010, %v1218
      %v1220 = vpop.f32.mrb[0].mxu0
      %v1221 = vpop.f32.mrb[0].mxu0
      %v1222 = vadd.f32 %v1013, %v1221
      %v1223 = vpop.f32.mrb[0].mxu0
      %1224 = vmatprep.mubr.bf16.mxu0 0
      %1225 = vmatmul.mubr.bf16.gmra.mrb[0].mxu0 %v775
      %v1226 = vpop.f32.mrb[0].mxu0
      %v1227 = vadd.f32 %v1018, %v1226
      %v1228 = vpop.f32.mrb[0].mxu0
      %v1229 = vpop.f32.mrb[0].mxu0
      %v1230 = vadd.f32 %v1021, %v1229
      %v1231 = vpop.f32.mrb[0].mxu0
      %1232 = vmatprep.mubr.bf16.mxu0 0
      %1233 = vmatmul.mubr.bf16.gmra.mrb[0].mxu0 %v776
      %v1234 = vpop.f32.mrb[0].mxu0
      %v1235 = vadd.f32 %v1026, %v1234
      %v1236 = vpop.f32.mrb[0].mxu0
      %v1237 = vpop.f32.mrb[0].mxu0
      %v1238 = vadd.f32 %v1029, %v1237
      %v1239 = vpop.f32.mrb[0].mxu0
      %1240 = vmatprep.mubr.bf16.mxu0 0
      %1241 = vmatmul.mubr.bf16.gmra.mrb[0].mxu0 %v777
      %v1242 = vpop.f32.mrb[0].mxu0
      %v1243 = vadd.f32 %v1034, %v1242
      %v1244 = vpop.f32.mrb[0].mxu0
      %v1245 = vpop.f32.mrb[0].mxu0
      %v1246 = vadd.f32 %v1037, %v1245
      %v1247 = vpop.f32.mrb[0].mxu0
      %1248 = vmatprep.mubr.bf16.mxu0 0
      %1249 = vmatmul.mubr.bf16.gmra.mrb[0].mxu0 %v778
      %v1250 = vpop.f32.mrb[0].mxu0
      %v1251 = vadd.f32 %v1042, %v1250
      %v1252 = vpop.f32.mrb[0].mxu0
      %v1253 = vpop.f32.mrb[0].mxu0
      %v1254 = vadd.f32 %v1045, %v1253
      %v1255 = vpop.f32.mrb[0].mxu0
      %1256 = vmatprep.mubr.bf16.mxu0 0
      %1257 = vmatmul.mubr.bf16.gmra.mrb[0].mxu0 %v779
      %v1258 = vpop.f32.mrb[0].mxu0
      %v1259 = vadd.f32 %v1050, %v1258
      %v1260 = vpop.f32.mrb[0].mxu0
      %v1261 = vpop.f32.mrb[0].mxu0
      %v1262 = vadd.f32 %v1053, %v1261
      %v1263 = vpop.f32.mrb[0].mxu0
      %1264 = vmatprep.mubr.bf16.mxu0 0
      %1265 = vmatmul.mubr.bf16.gmra.mrb[0].mxu0 %v780
      %v1266 = vpop.f32.mrb[0].mxu0
      %v1267 = vadd.f32 %v1058, %v1266
      %v1268 = vpop.f32.mrb[0].mxu0
      %v1269 = vpop.f32.mrb[0].mxu0
      %v1270 = vadd.f32 %v1061, %v1269
      %v1271 = vpop.f32.mrb[0].mxu0
      %1272 = vmatprep.mubr.bf16.mxu0 0
      %1273 = vmatmul.mubr.bf16.gmra.mrb[0].mxu0 %v781
      %v1274 = vpop.f32.mrb[0].mxu0
      %v1275 = vadd.f32 %v1066, %v1274
      %v1276 = vpop.f32.mrb[0].mxu0
      %v1277 = vpop.f32.mrb[0].mxu0
      %v1278 = vadd.f32 %v1069, %v1277
      %v1279 = vpop.f32.mrb[0].mxu0
      %1280 = vdwg.mxu0
      %v1281 = vld [vmem:[#allocation2 + $0x2] sm:$0xff]
      %v1282 = vld [vmem:[#allocation2 + $0xa] sm:$0xff]
      %v1283 = vld [vmem:[#allocation2 + $0x1a] sm:$0xff]
      %v1284 = vld [vmem:[#allocation2 + $0x22] sm:$0xff]
      %v1285 = vld [vmem:[#allocation2 + $0x32] sm:$0xff]
      %v1286 = vld [vmem:[#allocation2 + $0x3a] sm:$0xff]
      %v1287 = vld [vmem:[#allocation2 + $0x4a] sm:$0xff]
      %v1288 = vld [vmem:[#allocation2 + $0x52] sm:$0xff]
      %v1289 = vld [vmem:[#allocation2 + $0x62] sm:$0xff]
      %v1290 = vld [vmem:[#allocation2 + $0x6a] sm:$0xff]
      %v1291 = vld [vmem:[#allocation2 + $0x7a] sm:$0xff]
      %v1292 = vld [vmem:[#allocation2 + $0x82] sm:$0xff]
      %v1293 = vld [vmem:[#allocation2 + $0x92] sm:$0xff]
      %v1294 = vld [vmem:[#allocation2 + $0x9a] sm:$0xff]
      %v1295 = vld [vmem:[#allocation2 + $0xaa] sm:$0xff]
      %v1296 = vld [vmem:[#allocation2 + $0xb2] sm:$0xff]
      %v1297 = vld [vmem:[#allocation2 + $0xc2] sm:$0xff]
      %v1298 = vld [vmem:[#allocation2 + $0xca] sm:$0xff]
      %v1299 = vld [vmem:[#allocation2 + $0xda] sm:$0xff]
      %v1300 = vld [vmem:[#allocation2 + $0xe2] sm:$0xff]
      %v1301 = vld [vmem:[#allocation2 + $0xf2] sm:$0xff]
      %v1302 = vld [vmem:[#allocation2 + $0xfa] sm:$0xff]
      %v1303 = vld [vmem:[#allocation2 + $0x10a] sm:$0xff]
      %v1304 = vld [vmem:[#allocation2 + $0x112] sm:$0xff]
      %v1305 = vld [vmem:[#allocation2 + $0x122] sm:$0xff]
      %v1306 = vld [vmem:[#allocation2 + $0x12a] sm:$0xff]
      %v1307 = vld [vmem:[#allocation2 + $0x13a] sm:$0xff]
      %v1308 = vld [vmem:[#allocation2 + $0x142] sm:$0xff]
      %v1309 = vld [vmem:[#allocation2 + $0x152] sm:$0xff]
      %v1310 = vld [vmem:[#allocation2 + $0x15a] sm:$0xff]
      %v1311 = vld [vmem:[#allocation2 + $0x16a] sm:$0xff]
      %v1312 = vld [vmem:[#allocation2 + $0x172] sm:$0xff]
      %v1313 = vpack.c.bf16 %v1282, %v1281
      %v1314 = vpack.c.bf16 %v1284, %v1283
      %v1315 = vpack.c.bf16 %v1286, %v1285
      %v1316 = vpack.c.bf16 %v1288, %v1287
      %v1317 = vpack.c.bf16 %v1290, %v1289
      %v1318 = vpack.c.bf16 %v1292, %v1291
      %v1319 = vpack.c.bf16 %v1294, %v1293
      %v1320 = vpack.c.bf16 %v1296, %v1295
      %v1321 = vpack.c.bf16 %v1298, %v1297
      %v1322 = vpack.c.bf16 %v1300, %v1299
      %v1323 = vpack.c.bf16 %v1302, %v1301
      %v1324 = vpack.c.bf16 %v1304, %v1303
      %v1325 = vpack.c.bf16 %v1306, %v1305
      %v1326 = vpack.c.bf16 %v1308, %v1307
      %v1327 = vpack.c.bf16 %v1310, %v1309
      %v1328 = vpack.c.bf16 %v1312, %v1311
      %s1329 = scalar_lea.vmem %s4, 128
      %v1330 = vld [vmem:[%s1329] sm:$0xf]
      %v1331 = vld [vmem:[%s1329 + $0x4] sm:$0xf]
      %v1332 = vld [vmem:[%s1329 + $0x8] sm:$0xf]
      %v1333 = vld [vmem:[%s1329 + $0xc] sm:$0xf]
      %v1334 = vld [vmem:[%s1329 + $0x10] sm:$0xf]
      %v1335 = vld [vmem:[%s1329 + $0x14] sm:$0xf]
      %v1336 = vld [vmem:[%s1329 + $0x18] sm:$0xf]
      %v1337 = vld [vmem:[%s1329 + $0x1c] sm:$0xf]
      %v1338 = vld [vmem:[%s1329 + $0x20] sm:$0xf]
      %v1339 = vld [vmem:[%s1329 + $0x24] sm:$0xf]
      %v1340 = vld [vmem:[%s1329 + $0x28] sm:$0xf]
      %v1341 = vld [vmem:[%s1329 + $0x2c] sm:$0xf]
      %v1342 = vld [vmem:[%s1329 + $0x30] sm:$0xf]
      %v1343 = vld [vmem:[%s1329 + $0x34] sm:$0xf]
      %v1344 = vld [vmem:[%s1329 + $0x38] sm:$0xf]
      %v1345 = vld [vmem:[%s1329 + $0x3c] sm:$0xf]
      %v1362 = vunpack.c.l.b16 %v1330
      %v1363 = vunpack.c.l.b16 %v1331
      %v1364 = vunpack.c.l.b16 %v1332
      %v1365 = vunpack.c.l.b16 %v1333
      %v1366 = vunpack.c.l.b16 %v1334
      %v1367 = vunpack.c.l.b16 %v1335
      %v1368 = vunpack.c.l.b16 %v1336
      %v1369 = vunpack.c.l.b16 %v1337
      %v1370 = vunpack.c.l.b16 %v1338
      %v1371 = vunpack.c.l.b16 %v1339
      %v1372 = vunpack.c.l.b16 %v1340
      %v1373 = vunpack.c.l.b16 %v1341
      %v1374 = vunpack.c.l.b16 %v1342
      %v1375 = vunpack.c.l.b16 %v1343
      %v1376 = vunpack.c.l.b16 %v1344
      %v1377 = vunpack.c.l.b16 %v1345
      %v1378 = vpack.c.b16 %v1363, %v1362
      %v1379 = vpack.c.b16 %v1365, %v1364
      %v1380 = vpack.c.b16 %v1367, %v1366
      %v1381 = vpack.c.b16 %v1369, %v1368
      %v1382 = vpack.c.b16 %v1371, %v1370
      %v1383 = vpack.c.b16 %v1373, %v1372
      %v1384 = vpack.c.b16 %v1375, %v1374
      %v1385 = vpack.c.b16 %v1377, %v1376
      %1394 = vmatprep.subr.bf16.mxu0 0
      %1395 = vmatpush1.bf16.msra.mxu0 %v1378
      %1396 = vmatprep.subr.bf16.mxu0 0
      %1397 = vmatpush1.bf16.msra.mxu0 %v1379
      %1398 = vmatprep.subr.bf16.mxu0 0
      %1399 = vmatpush1.bf16.msra.mxu0 %v1380
      %1400 = vmatprep.subr.bf16.mxu0 0
      %1401 = vmatpush1.bf16.msra.mxu0 %v1381
      %1402 = vmatprep.subr.bf16.mxu0 0
      %1403 = vmatpush1.bf16.msra.mxu0 %v1382
      %1404 = vmatprep.subr.bf16.mxu0 0
      %1405 = vmatpush1.bf16.msra.mxu0 %v1383
      %1406 = vmatprep.subr.bf16.mxu0 0
      %1407 = vmatpush1.bf16.msra.mxu0 %v1384
      %1408 = vmatprep.subr.bf16.mxu0 0
      %1409 = vmatpush1.bf16.msra.mxu0 %v1385
      %1410 = vmatprep.subr.bf16.mxu0 0
      %1411 = vmatpush1.bf16.msra.mxu0 0
      %1412 = vmatprep.subr.bf16.mxu0 0
      %1413 = vmatpush1.bf16.msra.mxu0 0
      %1414 = vmatprep.subr.bf16.mxu0 0
      %1415 = vmatpush1.bf16.msra.mxu0 0
      %1416 = vmatprep.subr.bf16.mxu0 0
      %1417 = vmatpush1.bf16.msra.mxu0 0
      %1418 = vmatprep.subr.bf16.mxu0 0
      %1419 = vmatpush1.bf16.msra.mxu0 0
      %1420 = vmatprep.subr.bf16.mxu0 0
      %1421 = vmatpush1.bf16.msra.mxu0 0
      %1422 = vmatprep.subr.bf16.mxu0 0
      %1423 = vmatpush1.bf16.msra.mxu0 0
      %1424 = vmatprep.subr.bf16.mxu0 0
      %1425 = vmatpush1.bf16.msra.mxu0 0
      %1426 = vmatprep.mubr.bf16.mxu0 0
      %1427 = vmatmul.mubr.bf16.gmra.mrb[0].mxu0 %v1313
      %v1428 = vpop.f32.mrb[0].mxu0
      %v1429 = vadd.f32 0.0, %v1428
      %v1430 = vpop.f32.mrb[0].mxu0
      %v1431 = vpop.f32.mrb[0].mxu0
      %v1432 = vadd.f32 0.0, %v1431
      %v1433 = vpop.f32.mrb[0].mxu0
      %1434 = vmatprep.mubr.bf16.mxu0 0
      %1435 = vmatmul.mubr.bf16.gmra.mrb[0].mxu0 %v1314
      %v1436 = vpop.f32.mrb[0].mxu0
      %v1437 = vadd.f32 0.0, %v1436
      %v1438 = vpop.f32.mrb[0].mxu0
      %v1439 = vpop.f32.mrb[0].mxu0
      %v1440 = vadd.f32 0.0, %v1439
      %v1441 = vpop.f32.mrb[0].mxu0
      %1442 = vmatprep.mubr.bf16.mxu0 0
      %1443 = vmatmul.mubr.bf16.gmra.mrb[0].mxu0 %v1315
      %v1444 = vpop.f32.mrb[0].mxu0
      %v1445 = vadd.f32 0.0, %v1444
      %v1446 = vpop.f32.mrb[0].mxu0
      %v1447 = vpop.f32.mrb[0].mxu0
      %v1448 = vadd.f32 0.0, %v1447
      %v1449 = vpop.f32.mrb[0].mxu0
      %1450 = vmatprep.mubr.bf16.mxu0 0
      %1451 = vmatmul.mubr.bf16.gmra.mrb[0].mxu0 %v1316
      %v1452 = vpop.f32.mrb[0].mxu0
      %v1453 = vadd.f32 0.0, %v1452
      %v1454 = vpop.f32.mrb[0].mxu0
      %v1455 = vpop.f32.mrb[0].mxu0
      %v1456 = vadd.f32 0.0, %v1455
      %v1457 = vpop.f32.mrb[0].mxu0
      %1458 = vmatprep.mubr.bf16.mxu0 0
      %1459 = vmatmul.mubr.bf16.gmra.mrb[0].mxu0 %v1317
      %v1460 = vpop.f32.mrb[0].mxu0
      %v1461 = vadd.f32 0.0, %v1460
      %v1462 = vpop.f32.mrb[0].mxu0
      %v1463 = vpop.f32.mrb[0].mxu0
      %v1464 = vadd.f32 0.0, %v1463
      %v1465 = vpop.f32.mrb[0].mxu0
      %1466 = vmatprep.mubr.bf16.mxu0 0
      %1467 = vmatmul.mubr.bf16.gmra.mrb[0].mxu0 %v1318
      %v1468 = vpop.f32.mrb[0].mxu0
      %v1469 = vadd.f32 0.0, %v1468
      %v1470 = vpop.f32.mrb[0].mxu0
      %v1471 = vpop.f32.mrb[0].mxu0
      %v1472 = vadd.f32 0.0, %v1471
      %v1473 = vpop.f32.mrb[0].mxu0
      %1474 = vmatprep.mubr.bf16.mxu0 0
      %1475 = vmatmul.mubr.bf16.gmra.mrb[0].mxu0 %v1319
      %v1476 = vpop.f32.mrb[0].mxu0
      %v1477 = vadd.f32 0.0, %v1476
      %v1478 = vpop.f32.mrb[0].mxu0
      %v1479 = vpop.f32.mrb[0].mxu0
      %v1480 = vadd.f32 0.0, %v1479
      %v1481 = vpop.f32.mrb[0].mxu0
      %1482 = vmatprep.mubr.bf16.mxu0 0
      %1483 = vmatmul.mubr.bf16.gmra.mrb[0].mxu0 %v1320
      %v1484 = vpop.f32.mrb[0].mxu0
      %v1485 = vadd.f32 0.0, %v1484
      %v1486 = vpop.f32.mrb[0].mxu0
      %v1487 = vpop.f32.mrb[0].mxu0
      %v1488 = vadd.f32 0.0, %v1487
      %v1489 = vpop.f32.mrb[0].mxu0
      %1490 = vmatprep.mubr.bf16.mxu0 0
      %1491 = vmatmul.mubr.bf16.gmra.mrb[0].mxu0 %v1321
      %v1492 = vpop.f32.mrb[0].mxu0
      %v1493 = vadd.f32 0.0, %v1492
      %v1494 = vpop.f32.mrb[0].mxu0
      %v1495 = vpop.f32.mrb[0].mxu0
      %v1496 = vadd.f32 0.0, %v1495
      %v1497 = vpop.f32.mrb[0].mxu0
      %1498 = vmatprep.mubr.bf16.mxu0 0
      %1499 = vmatmul.mubr.bf16.gmra.mrb[0].mxu0 %v1322
      %v1500 = vpop.f32.mrb[0].mxu0
      %v1501 = vadd.f32 0.0, %v1500
      %v1502 = vpop.f32.mrb[0].mxu0
      %v1503 = vpop.f32.mrb[0].mxu0
      %v1504 = vadd.f32 0.0, %v1503
      %v1505 = vpop.f32.mrb[0].mxu0
      %1506 = vmatprep.mubr.bf16.mxu0 0
      %1507 = vmatmul.mubr.bf16.gmra.mrb[0].mxu0 %v1323
      %v1508 = vpop.f32.mrb[0].mxu0
      %v1509 = vadd.f32 0.0, %v1508
      %v1510 = vpop.f32.mrb[0].mxu0
      %v1511 = vpop.f32.mrb[0].mxu0
      %v1512 = vadd.f32 0.0, %v1511
      %v1513 = vpop.f32.mrb[0].mxu0
      %1514 = vmatprep.mubr.bf16.mxu0 0
      %1515 = vmatmul.mubr.bf16.gmra.mrb[0].mxu0 %v1324
      %v1516 = vpop.f32.mrb[0].mxu0
      %v1517 = vadd.f32 0.0, %v1516
      %v1518 = vpop.f32.mrb[0].mxu0
      %v1519 = vpop.f32.mrb[0].mxu0
      %v1520 = vadd.f32 0.0, %v1519
      %v1521 = vpop.f32.mrb[0].mxu0
      %1522 = vmatprep.mubr.bf16.mxu0 0
      %1523 = vmatmul.mubr.bf16.gmra.mrb[0].mxu0 %v1325
      %v1524 = vpop.f32.mrb[0].mxu0
      %v1525 = vadd.f32 0.0, %v1524
      %v1526 = vpop.f32.mrb[0].mxu0
      %v1527 = vpop.f32.mrb[0].mxu0
      %v1528 = vadd.f32 0.0, %v1527
      %v1529 = vpop.f32.mrb[0].mxu0
      %1530 = vmatprep.mubr.bf16.mxu0 0
      %1531 = vmatmul.mubr.bf16.gmra.mrb[0].mxu0 %v1326
      %v1532 = vpop.f32.mrb[0].mxu0
      %v1533 = vadd.f32 0.0, %v1532
      %v1534 = vpop.f32.mrb[0].mxu0
      %v1535 = vpop.f32.mrb[0].mxu0
      %v1536 = vadd.f32 0.0, %v1535
      %v1537 = vpop.f32.mrb[0].mxu0
      %1538 = vmatprep.mubr.bf16.mxu0 0
      %1539 = vmatmul.mubr.bf16.gmra.mrb[0].mxu0 %v1327
      %v1540 = vpop.f32.mrb[0].mxu0
      %v1541 = vadd.f32 0.0, %v1540
      %v1542 = vpop.f32.mrb[0].mxu0
      %v1543 = vpop.f32.mrb[0].mxu0
      %v1544 = vadd.f32 0.0, %v1543
      %v1545 = vpop.f32.mrb[0].mxu0
      %1546 = vmatprep.mubr.bf16.mxu0 0
      %1547 = vmatmul.mubr.bf16.gmra.mrb[0].mxu0 %v1328
      %v1548 = vpop.f32.mrb[0].mxu0
      %v1549 = vadd.f32 0.0, %v1548
      %v1550 = vpop.f32.mrb[0].mxu0
      %v1551 = vpop.f32.mrb[0].mxu0
      %v1552 = vadd.f32 0.0, %v1551
      %v1553 = vpop.f32.mrb[0].mxu0
      %1554 = vdwg.mxu0
      %v1555 = vadd.f32 %v1155, %v1429
      %v1556 = vadd.f32 %v1158, %v1432
      %v1557 = vadd.f32 %v1163, %v1437
      %v1558 = vadd.f32 %v1166, %v1440
      %v1559 = vadd.f32 %v1171, %v1445
      %v1560 = vadd.f32 %v1174, %v1448
      %v1561 = vadd.f32 %v1179, %v1453
      %v1562 = vadd.f32 %v1182, %v1456
      %v1563 = vadd.f32 %v1187, %v1461
      %v1564 = vadd.f32 %v1190, %v1464
      %v1565 = vadd.f32 %v1195, %v1469
      %v1566 = vadd.f32 %v1198, %v1472
      %v1567 = vadd.f32 %v1203, %v1477
      %v1568 = vadd.f32 %v1206, %v1480
      %v1569 = vadd.f32 %v1211, %v1485
      %v1570 = vadd.f32 %v1214, %v1488
      %v1571 = vadd.f32 %v1219, %v1493
      %v1572 = vadd.f32 %v1222, %v1496
      %v1573 = vadd.f32 %v1227, %v1501
      %v1574 = vadd.f32 %v1230, %v1504
      %v1575 = vadd.f32 %v1235, %v1509
      %v1576 = vadd.f32 %v1238, %v1512
      %v1577 = vadd.f32 %v1243, %v1517
      %v1578 = vadd.f32 %v1246, %v1520
      %v1579 = vadd.f32 %v1251, %v1525
      %v1580 = vadd.f32 %v1254, %v1528
      %v1581 = vadd.f32 %v1259, %v1533
      %v1582 = vadd.f32 %v1262, %v1536
      %v1583 = vadd.f32 %v1267, %v1541
      %v1584 = vadd.f32 %v1270, %v1544
      %v1585 = vadd.f32 %v1275, %v1549
      %v1586 = vadd.f32 %v1278, %v1552
      %v1587 = vld [vmem:[%s701] sm:$0xff]
      %v1588 = vld [vmem:[%s701 + $0x8] sm:$0xff]
      %v1589 = vld [vmem:[%s701 + $0x18] sm:$0xff]
      %v1590 = vld [vmem:[%s701 + $0x20] sm:$0xff]
      %v1591 = vld [vmem:[%s701 + $0x30] sm:$0xff]
      %v1592 = vld [vmem:[%s701 + $0x38] sm:$0xff]
      %v1593 = vld [vmem:[%s701 + $0x48] sm:$0xff]
      %v1594 = vld [vmem:[%s701 + $0x50] sm:$0xff]
      %v1595 = vld [vmem:[%s701 + $0x60] sm:$0xff]
      %v1596 = vld [vmem:[%s701 + $0x68] sm:$0xff]
      %v1597 = vld [vmem:[%s701 + $0x78] sm:$0xff]
      %v1598 = vld [vmem:[%s701 + $0x80] sm:$0xff]
      %v1599 = vld [vmem:[%s701 + $0x90] sm:$0xff]
      %v1600 = vld [vmem:[%s701 + $0x98] sm:$0xff]
      %v1601 = vld [vmem:[%s701 + $0xa8] sm:$0xff]
      %v1602 = vld [vmem:[%s701 + $0xb0] sm:$0xff]
      %v1603 = vld [vmem:[%s701 + $0xc0] sm:$0xff]
      %v1604 = vld [vmem:[%s701 + $0xc8] sm:$0xff]
      %v1605 = vld [vmem:[%s701 + $0xd8] sm:$0xff]
      %v1606 = vld [vmem:[%s701 + $0xe0] sm:$0xff]
      %v1607 = vld [vmem:[%s701 + $0xf0] sm:$0xff]
      %v1608 = vld [vmem:[%s701 + $0xf8] sm:$0xff]
      %v1609 = vld [vmem:[%s701 + $0x108] sm:$0xff]
      %v1610 = vld [vmem:[%s701 + $0x110] sm:$0xff]
      %v1611 = vld [vmem:[%s701 + $0x120] sm:$0xff]
      %v1612 = vld [vmem:[%s701 + $0x128] sm:$0xff]
      %v1613 = vld [vmem:[%s701 + $0x138] sm:$0xff]
      %v1614 = vld [vmem:[%s701 + $0x140] sm:$0xff]
      %v1615 = vld [vmem:[%s701 + $0x150] sm:$0xff]
      %v1616 = vld [vmem:[%s701 + $0x158] sm:$0xff]
      %v1617 = vld [vmem:[%s701 + $0x168] sm:$0xff]
      %v1618 = vld [vmem:[%s701 + $0x170] sm:$0xff]
      %v1619 = vpack.c.bf16 %v1588, %v1587
      %v1620 = vpack.c.bf16 %v1590, %v1589
      %v1621 = vpack.c.bf16 %v1592, %v1591
      %v1622 = vpack.c.bf16 %v1594, %v1593
      %v1623 = vpack.c.bf16 %v1596, %v1595
      %v1624 = vpack.c.bf16 %v1598, %v1597
      %v1625 = vpack.c.bf16 %v1600, %v1599
      %v1626 = vpack.c.bf16 %v1602, %v1601
      %v1627 = vpack.c.bf16 %v1604, %v1603
      %v1628 = vpack.c.bf16 %v1606, %v1605
      %v1629 = vpack.c.bf16 %v1608, %v1607
      %v1630 = vpack.c.bf16 %v1610, %v1609
      %v1631 = vpack.c.bf16 %v1612, %v1611
      %v1632 = vpack.c.bf16 %v1614, %v1613
      %v1633 = vpack.c.bf16 %v1616, %v1615
      %v1634 = vpack.c.bf16 %v1618, %v1617
      %s1635 = scalar_lea.vmem %s4, 192
      %v1636 = vld [vmem:[%s1635] sm:$0xf]
      %v1637 = vld [vmem:[%s1635 + $0x4] sm:$0xf]
      %v1638 = vld [vmem:[%s1635 + $0x8] sm:$0xf]
      %v1639 = vld [vmem:[%s1635 + $0xc] sm:$0xf]
      %v1640 = vld [vmem:[%s1635 + $0x10] sm:$0xf]
      %v1641 = vld [vmem:[%s1635 + $0x14] sm:$0xf]
      %v1642 = vld [vmem:[%s1635 + $0x18] sm:$0xf]
      %v1643 = vld [vmem:[%s1635 + $0x1c] sm:$0xf]
      %v1644 = vld [vmem:[%s1635 + $0x20] sm:$0xf]
      %v1645 = vld [vmem:[%s1635 + $0x24] sm:$0xf]
      %v1646 = vld [vmem:[%s1635 + $0x28] sm:$0xf]
      %v1647 = vld [vmem:[%s1635 + $0x2c] sm:$0xf]
      %v1648 = vld [vmem:[%s1635 + $0x30] sm:$0xf]
      %v1649 = vld [vmem:[%s1635 + $0x34] sm:$0xf]
      %v1650 = vld [vmem:[%s1635 + $0x38] sm:$0xf]
      %v1651 = vld [vmem:[%s1635 + $0x3c] sm:$0xf]
      %v1668 = vunpack.c.l.b16 %v1636
      %v1669 = vunpack.c.l.b16 %v1637
      %v1670 = vunpack.c.l.b16 %v1638
      %v1671 = vunpack.c.l.b16 %v1639
      %v1672 = vunpack.c.l.b16 %v1640
      %v1673 = vunpack.c.l.b16 %v1641
      %v1674 = vunpack.c.l.b16 %v1642
      %v1675 = vunpack.c.l.b16 %v1643
      %v1676 = vunpack.c.l.b16 %v1644
      %v1677 = vunpack.c.l.b16 %v1645
      %v1678 = vunpack.c.l.b16 %v1646
      %v1679 = vunpack.c.l.b16 %v1647
      %v1680 = vunpack.c.l.b16 %v1648
      %v1681 = vunpack.c.l.b16 %v1649
      %v1682 = vunpack.c.l.b16 %v1650
      %v1683 = vunpack.c.l.b16 %v1651
      %v1684 = vpack.c.b16 %v1669, %v1668
      %v1685 = vpack.c.b16 %v1671, %v1670
      %v1686 = vpack.c.b16 %v1673, %v1672
      %v1687 = vpack.c.b16 %v1675, %v1674
      %v1688 = vpack.c.b16 %v1677, %v1676
      %v1689 = vpack.c.b16 %v1679, %v1678
      %v1690 = vpack.c.b16 %v1681, %v1680
      %v1691 = vpack.c.b16 %v1683, %v1682
      %1700 = vmatprep.subr.bf16.mxu0 0
      %1701 = vmatpush1.bf16.msra.mxu0 %v1684
      %1702 = vmatprep.subr.bf16.mxu0 0
      %1703 = vmatpush1.bf16.msra.mxu0 %v1685
      %1704 = vmatprep.subr.bf16.mxu0 0
      %1705 = vmatpush1.bf16.msra.mxu0 %v1686
      %1706 = vmatprep.subr.bf16.mxu0 0
      %1707 = vmatpush1.bf16.msra.mxu0 %v1687
      %1708 = vmatprep.subr.bf16.mxu0 0
      %1709 = vmatpush1.bf16.msra.mxu0 %v1688
      %1710 = vmatprep.subr.bf16.mxu0 0
      %1711 = vmatpush1.bf16.msra.mxu0 %v1689
      %1712 = vmatprep.subr.bf16.mxu0 0
      %1713 = vmatpush1.bf16.msra.mxu0 %v1690
      %1714 = vmatprep.subr.bf16.mxu0 0
      %1715 = vmatpush1.bf16.msra.mxu0 %v1691
      %1716 = vmatprep.subr.bf16.mxu0 0
      %1717 = vmatpush1.bf16.msra.mxu0 0
      %1718 = vmatprep.subr.bf16.mxu0 0
      %1719 = vmatpush1.bf16.msra.mxu0 0
      %1720 = vmatprep.subr.bf16.mxu0 0
      %1721 = vmatpush1.bf16.msra.mxu0 0
      %1722 = vmatprep.subr.bf16.mxu0 0
      %1723 = vmatpush1.bf16.msra.mxu0 0
      %1724 = vmatprep.subr.bf16.mxu0 0
      %1725 = vmatpush1.bf16.msra.mxu0 0
      %1726 = vmatprep.subr.bf16.mxu0 0
      %1727 = vmatpush1.bf16.msra.mxu0 0
      %1728 = vmatprep.subr.bf16.mxu0 0
      %1729 = vmatpush1.bf16.msra.mxu0 0
      %1730 = vmatprep.subr.bf16.mxu0 0
      %1731 = vmatpush1.bf16.msra.mxu0 0
      %1732 = vmatprep.mubr.bf16.mxu0 0
      %1733 = vmatmul.mubr.bf16.gmra.mrb[0].mxu0 %v1619
      %v1734 = vpop.f32.mrb[0].mxu0
      %v1735 = vadd.f32 0.0, %v1734
      %v1736 = vpop.f32.mrb[0].mxu0
      %v1737 = vpop.f32.mrb[0].mxu0
      %v1738 = vadd.f32 0.0, %v1737
      %v1739 = vpop.f32.mrb[0].mxu0
      %1740 = vmatprep.mubr.bf16.mxu0 0
      %1741 = vmatmul.mubr.bf16.gmra.mrb[0].mxu0 %v1620
      %v1742 = vpop.f32.mrb[0].mxu0
      %v1743 = vadd.f32 0.0, %v1742
      %v1744 = vpop.f32.mrb[0].mxu0
      %v1745 = vpop.f32.mrb[0].mxu0
      %v1746 = vadd.f32 0.0, %v1745
      %v1747 = vpop.f32.mrb[0].mxu0
      %1748 = vmatprep.mubr.bf16.mxu0 0
      %1749 = vmatmul.mubr.bf16.gmra.mrb[0].mxu0 %v1621
      %v1750 = vpop.f32.mrb[0].mxu0
      %v1751 = vadd.f32 0.0, %v1750
      %v1752 = vpop.f32.mrb[0].mxu0
      %v1753 = vpop.f32.mrb[0].mxu0
      %v1754 = vadd.f32 0.0, %v1753
      %v1755 = vpop.f32.mrb[0].mxu0
      %1756 = vmatprep.mubr.bf16.mxu0 0
      %1757 = vmatmul.mubr.bf16.gmra.mrb[0].mxu0 %v1622
      %v1758 = vpop.f32.mrb[0].mxu0
      %v1759 = vadd.f32 0.0, %v1758
      %v1760 = vpop.f32.mrb[0].mxu0
      %v1761 = vpop.f32.mrb[0].mxu0
      %v1762 = vadd.f32 0.0, %v1761
      %v1763 = vpop.f32.mrb[0].mxu0
      %1764 = vmatprep.mubr.bf16.mxu0 0
      %1765 = vmatmul.mubr.bf16.gmra.mrb[0].mxu0 %v1623
      %v1766 = vpop.f32.mrb[0].mxu0
      %v1767 = vadd.f32 0.0, %v1766
      %v1768 = vpop.f32.mrb[0].mxu0
      %v1769 = vpop.f32.mrb[0].mxu0
      %v1770 = vadd.f32 0.0, %v1769
      %v1771 = vpop.f32.mrb[0].mxu0
      %1772 = vmatprep.mubr.bf16.mxu0 0
      %1773 = vmatmul.mubr.bf16.gmra.mrb[0].mxu0 %v1624
      %v1774 = vpop.f32.mrb[0].mxu0
      %v1775 = vadd.f32 0.0, %v1774
      %v1776 = vpop.f32.mrb[0].mxu0
      %v1777 = vpop.f32.mrb[0].mxu0
      %v1778 = vadd.f32 0.0, %v1777
      %v1779 = vpop.f32.mrb[0].mxu0
      %1780 = vmatprep.mubr.bf16.mxu0 0
      %1781 = vmatmul.mubr.bf16.gmra.mrb[0].mxu0 %v1625
      %v1782 = vpop.f32.mrb[0].mxu0
      %v1783 = vadd.f32 0.0, %v1782
      %v1784 = vpop.f32.mrb[0].mxu0
      %v1785 = vpop.f32.mrb[0].mxu0
      %v1786 = vadd.f32 0.0, %v1785
      %v1787 = vpop.f32.mrb[0].mxu0
      %1788 = vmatprep.mubr.bf16.mxu0 0
      %1789 = vmatmul.mubr.bf16.gmra.mrb[0].mxu0 %v1626
      %v1790 = vpop.f32.mrb[0].mxu0
      %v1791 = vadd.f32 0.0, %v1790
      %v1792 = vpop.f32.mrb[0].mxu0
      %v1793 = vpop.f32.mrb[0].mxu0
      %v1794 = vadd.f32 0.0, %v1793
      %v1795 = vpop.f32.mrb[0].mxu0
      %1796 = vmatprep.mubr.bf16.mxu0 0
      %1797 = vmatmul.mubr.bf16.gmra.mrb[0].mxu0 %v1627
      %v1798 = vpop.f32.mrb[0].mxu0
      %v1799 = vadd.f32 0.0, %v1798
      %v1800 = vpop.f32.mrb[0].mxu0
      %v1801 = vpop.f32.mrb[0].mxu0
      %v1802 = vadd.f32 0.0, %v1801
      %v1803 = vpop.f32.mrb[0].mxu0
      %1804 = vmatprep.mubr.bf16.mxu0 0
      %1805 = vmatmul.mubr.bf16.gmra.mrb[0].mxu0 %v1628
      %v1806 = vpop.f32.mrb[0].mxu0
      %v1807 = vadd.f32 0.0, %v1806
      %v1808 = vpop.f32.mrb[0].mxu0
      %v1809 = vpop.f32.mrb[0].mxu0
      %v1810 = vadd.f32 0.0, %v1809
      %v1811 = vpop.f32.mrb[0].mxu0
      %1812 = vmatprep.mubr.bf16.mxu0 0
      %1813 = vmatmul.mubr.bf16.gmra.mrb[0].mxu0 %v1629
      %v1814 = vpop.f32.mrb[0].mxu0
      %v1815 = vadd.f32 0.0, %v1814
      %v1816 = vpop.f32.mrb[0].mxu0
      %v1817 = vpop.f32.mrb[0].mxu0
      %v1818 = vadd.f32 0.0, %v1817
      %v1819 = vpop.f32.mrb[0].mxu0
      %1820 = vmatprep.mubr.bf16.mxu0 0
      %1821 = vmatmul.mubr.bf16.gmra.mrb[0].mxu0 %v1630
      %v1822 = vpop.f32.mrb[0].mxu0
      %v1823 = vadd.f32 0.0, %v1822
      %v1824 = vpop.f32.mrb[0].mxu0
      %v1825 = vpop.f32.mrb[0].mxu0
      %v1826 = vadd.f32 0.0, %v1825
      %v1827 = vpop.f32.mrb[0].mxu0
      %1828 = vmatprep.mubr.bf16.mxu0 0
      %1829 = vmatmul.mubr.bf16.gmra.mrb[0].mxu0 %v1631
      %v1830 = vpop.f32.mrb[0].mxu0
      %v1831 = vadd.f32 0.0, %v1830
      %v1832 = vpop.f32.mrb[0].mxu0
      %v1833 = vpop.f32.mrb[0].mxu0
      %v1834 = vadd.f32 0.0, %v1833
      %v1835 = vpop.f32.mrb[0].mxu0
      %1836 = vmatprep.mubr.bf16.mxu0 0
      %1837 = vmatmul.mubr.bf16.gmra.mrb[0].mxu0 %v1632
      %v1838 = vpop.f32.mrb[0].mxu0
      %v1839 = vadd.f32 0.0, %v1838
      %v1840 = vpop.f32.mrb[0].mxu0
      %v1841 = vpop.f32.mrb[0].mxu0
      %v1842 = vadd.f32 0.0, %v1841
      %v1843 = vpop.f32.mrb[0].mxu0
      %1844 = vmatprep.mubr.bf16.mxu0 0
      %1845 = vmatmul.mubr.bf16.gmra.mrb[0].mxu0 %v1633
      %v1846 = vpop.f32.mrb[0].mxu0
      %v1847 = vadd.f32 0.0, %v1846
      %v1848 = vpop.f32.mrb[0].mxu0
      %v1849 = vpop.f32.mrb[0].mxu0
      %v1850 = vadd.f32 0.0, %v1849
      %v1851 = vpop.f32.mrb[0].mxu0
      %1852 = vmatprep.mubr.bf16.mxu0 0
      %1853 = vmatmul.mubr.bf16.gmra.mrb[0].mxu0 %v1634
      %v1854 = vpop.f32.mrb[0].mxu0
      %v1855 = vadd.f32 0.0, %v1854
      %v1856 = vpop.f32.mrb[0].mxu0
      %v1857 = vpop.f32.mrb[0].mxu0
      %v1858 = vadd.f32 0.0, %v1857
      %v1859 = vpop.f32.mrb[0].mxu0
      %1860 = vdwg.mxu0
      %v1861 = vadd.f32 %v1555, %v1735
      %v1862 = vadd.f32 %v1556, %v1738
      %v1863 = vadd.f32 %v1557, %v1743
      %v1864 = vadd.f32 %v1558, %v1746
      %v1865 = vadd.f32 %v1559, %v1751
      %v1866 = vadd.f32 %v1560, %v1754
      %v1867 = vadd.f32 %v1561, %v1759
      %v1868 = vadd.f32 %v1562, %v1762
      %v1869 = vadd.f32 %v1563, %v1767
      %v1870 = vadd.f32 %v1564, %v1770
      %v1871 = vadd.f32 %v1565, %v1775
      %v1872 = vadd.f32 %v1566, %v1778
      %v1873 = vadd.f32 %v1567, %v1783
      %v1874 = vadd.f32 %v1568, %v1786
      %v1875 = vadd.f32 %v1569, %v1791
      %v1876 = vadd.f32 %v1570, %v1794
      %v1877 = vadd.f32 %v1571, %v1799
      %v1878 = vadd.f32 %v1572, %v1802
      %v1879 = vadd.f32 %v1573, %v1807
      %v1880 = vadd.f32 %v1574, %v1810
      %v1881 = vadd.f32 %v1575, %v1815
      %v1882 = vadd.f32 %v1576, %v1818
      %v1883 = vadd.f32 %v1577, %v1823
      %v1884 = vadd.f32 %v1578, %v1826
      %v1885 = vadd.f32 %v1579, %v1831
      %v1886 = vadd.f32 %v1580, %v1834
      %v1887 = vadd.f32 %v1581, %v1839
      %v1888 = vadd.f32 %v1582, %v1842
      %v1889 = vadd.f32 %v1583, %v1847
      %v1890 = vadd.f32 %v1584, %v1850
      %v1891 = vadd.f32 %v1585, %v1855
      %v1892 = vadd.f32 %v1586, %v1858
      %v1893 = vld [vmem:[%s701 + $0x1] sm:$0xff]
      %v1894 = vld [vmem:[%s701 + $0x9] sm:$0xff]
      %v1895 = vld [vmem:[%s701 + $0x19] sm:$0xff]
      %v1896 = vld [vmem:[%s701 + $0x21] sm:$0xff]
      %v1897 = vld [vmem:[%s701 + $0x31] sm:$0xff]
      %v1898 = vld [vmem:[%s701 + $0x39] sm:$0xff]
      %v1899 = vld [vmem:[%s701 + $0x49] sm:$0xff]
      %v1900 = vld [vmem:[%s701 + $0x51] sm:$0xff]
      %v1901 = vld [vmem:[%s701 + $0x61] sm:$0xff]
      %v1902 = vld [vmem:[%s701 + $0x69] sm:$0xff]
      %v1903 = vld [vmem:[%s701 + $0x79] sm:$0xff]
      %v1904 = vld [vmem:[%s701 + $0x81] sm:$0xff]
      %v1905 = vld [vmem:[%s701 + $0x91] sm:$0xff]
      %v1906 = vld [vmem:[%s701 + $0x99] sm:$0xff]
      %v1907 = vld [vmem:[%s701 + $0xa9] sm:$0xff]
      %v1908 = vld [vmem:[%s701 + $0xb1] sm:$0xff]
      %v1909 = vld [vmem:[%s701 + $0xc1] sm:$0xff]
      %v1910 = vld [vmem:[%s701 + $0xc9] sm:$0xff]
      %v1911 = vld [vmem:[%s701 + $0xd9] sm:$0xff]
      %v1912 = vld [vmem:[%s701 + $0xe1] sm:$0xff]
      %v1913 = vld [vmem:[%s701 + $0xf1] sm:$0xff]
      %v1914 = vld [vmem:[%s701 + $0xf9] sm:$0xff]
      %v1915 = vld [vmem:[%s701 + $0x109] sm:$0xff]
      %v1916 = vld [vmem:[%s701 + $0x111] sm:$0xff]
      %v1917 = vld [vmem:[%s701 + $0x121] sm:$0xff]
      %v1918 = vld [vmem:[%s701 + $0x129] sm:$0xff]
      %v1919 = vld [vmem:[%s701 + $0x139] sm:$0xff]
      %v1920 = vld [vmem:[%s701 + $0x141] sm:$0xff]
      %v1921 = vld [vmem:[%s701 + $0x151] sm:$0xff]
      %v1922 = vld [vmem:[%s701 + $0x159] sm:$0xff]
      %v1923 = vld [vmem:[%s701 + $0x169] sm:$0xff]
      %v1924 = vld [vmem:[%s701 + $0x171] sm:$0xff]
      %v1925 = vpack.c.bf16 %v1894, %v1893
      %v1926 = vpack.c.bf16 %v1896, %v1895
      %v1927 = vpack.c.bf16 %v1898, %v1897
      %v1928 = vpack.c.bf16 %v1900, %v1899
      %v1929 = vpack.c.bf16 %v1902, %v1901
      %v1930 = vpack.c.bf16 %v1904, %v1903
      %v1931 = vpack.c.bf16 %v1906, %v1905
      %v1932 = vpack.c.bf16 %v1908, %v1907
      %v1933 = vpack.c.bf16 %v1910, %v1909
      %v1934 = vpack.c.bf16 %v1912, %v1911
      %v1935 = vpack.c.bf16 %v1914, %v1913
      %v1936 = vpack.c.bf16 %v1916, %v1915
      %v1937 = vpack.c.bf16 %v1918, %v1917
      %v1938 = vpack.c.bf16 %v1920, %v1919
      %v1939 = vpack.c.bf16 %v1922, %v1921
      %v1940 = vpack.c.bf16 %v1924, %v1923
      %s1941 = scalar_lea.vmem %s4, 256
      %v1942 = vld [vmem:[%s1941] sm:$0xf]
      %v1943 = vld [vmem:[%s1941 + $0x4] sm:$0xf]
      %v1944 = vld [vmem:[%s1941 + $0x8] sm:$0xf]
      %v1945 = vld [vmem:[%s1941 + $0xc] sm:$0xf]
      %v1946 = vld [vmem:[%s1941 + $0x10] sm:$0xf]
      %v1947 = vld [vmem:[%s1941 + $0x14] sm:$0xf]
      %v1948 = vld [vmem:[%s1941 + $0x18] sm:$0xf]
      %v1949 = vld [vmem:[%s1941 + $0x1c] sm:$0xf]
      %v1950 = vld [vmem:[%s1941 + $0x20] sm:$0xf]
      %v1951 = vld [vmem:[%s1941 + $0x24] sm:$0xf]
      %v1952 = vld [vmem:[%s1941 + $0x28] sm:$0xf]
      %v1953 = vld [vmem:[%s1941 + $0x2c] sm:$0xf]
      %v1954 = vld [vmem:[%s1941 + $0x30] sm:$0xf]
      %v1955 = vld [vmem:[%s1941 + $0x34] sm:$0xf]
      %v1956 = vld [vmem:[%s1941 + $0x38] sm:$0xf]
      %v1957 = vld [vmem:[%s1941 + $0x3c] sm:$0xf]
      %v1974 = vunpack.c.l.b16 %v1942
      %v1975 = vunpack.c.l.b16 %v1943
      %v1976 = vunpack.c.l.b16 %v1944
      %v1977 = vunpack.c.l.b16 %v1945
      %v1978 = vunpack.c.l.b16 %v1946
      %v1979 = vunpack.c.l.b16 %v1947
      %v1980 = vunpack.c.l.b16 %v1948
      %v1981 = vunpack.c.l.b16 %v1949
      %v1982 = vunpack.c.l.b16 %v1950
      %v1983 = vunpack.c.l.b16 %v1951
      %v1984 = vunpack.c.l.b16 %v1952
      %v1985 = vunpack.c.l.b16 %v1953
      %v1986 = vunpack.c.l.b16 %v1954
      %v1987 = vunpack.c.l.b16 %v1955
      %v1988 = vunpack.c.l.b16 %v1956
      %v1989 = vunpack.c.l.b16 %v1957
      %v1990 = vpack.c.b16 %v1975, %v1974
      %v1991 = vpack.c.b16 %v1977, %v1976
      %v1992 = vpack.c.b16 %v1979, %v1978
      %v1993 = vpack.c.b16 %v1981, %v1980
      %v1994 = vpack.c.b16 %v1983, %v1982
      %v1995 = vpack.c.b16 %v1985, %v1984
      %v1996 = vpack.c.b16 %v1987, %v1986
      %v1997 = vpack.c.b16 %v1989, %v1988
      %2006 = vmatprep.subr.bf16.mxu0 0
      %2007 = vmatpush1.bf16.msra.mxu0 %v1990
      %2008 = vmatprep.subr.bf16.mxu0 0
      %2009 = vmatpush1.bf16.msra.mxu0 %v1991
      %2010 = vmatprep.subr.bf16.mxu0 0
      %2011 = vmatpush1.bf16.msra.mxu0 %v1992
      %2012 = vmatprep.subr.bf16.mxu0 0
      %2013 = vmatpush1.bf16.msra.mxu0 %v1993
      %2014 = vmatprep.subr.bf16.mxu0 0
      %2015 = vmatpush1.bf16.msra.mxu0 %v1994
      %2016 = vmatprep.subr.bf16.mxu0 0
      %2017 = vmatpush1.bf16.msra.mxu0 %v1995
      %2018 = vmatprep.subr.bf16.mxu0 0
      %2019 = vmatpush1.bf16.msra.mxu0 %v1996
      %2020 = vmatprep.subr.bf16.mxu0 0
      %2021 = vmatpush1.bf16.msra.mxu0 %v1997
      %2022 = vmatprep.subr.bf16.mxu0 0
      %2023 = vmatpush1.bf16.msra.mxu0 0
      %2024 = vmatprep.subr.bf16.mxu0 0
      %2025 = vmatpush1.bf16.msra.mxu0 0
      %2026 = vmatprep.subr.bf16.mxu0 0
      %2027 = vmatpush1.bf16.msra.mxu0 0
      %2028 = vmatprep.subr.bf16.mxu0 0
      %2029 = vmatpush1.bf16.msra.mxu0 0
      %2030 = vmatprep.subr.bf16.mxu0 0
      %2031 = vmatpush1.bf16.msra.mxu0 0
      %2032 = vmatprep.subr.bf16.mxu0 0
      %2033 = vmatpush1.bf16.msra.mxu0 0
      %2034 = vmatprep.subr.bf16.mxu0 0
      %2035 = vmatpush1.bf16.msra.mxu0 0
      %2036 = vmatprep.subr.bf16.mxu0 0
      %2037 = vmatpush1.bf16.msra.mxu0 0
      %2038 = vmatprep.mubr.bf16.mxu0 0
      %2039 = vmatmul.mubr.bf16.gmra.mrb[0].mxu0 %v1925
      %v2040 = vpop.f32.mrb[0].mxu0
      %v2041 = vadd.f32 0.0, %v2040
      %v2042 = vpop.f32.mrb[0].mxu0
      %v2043 = vpop.f32.mrb[0].mxu0
      %v2044 = vadd.f32 0.0, %v2043
      %v2045 = vpop.f32.mrb[0].mxu0
      %2046 = vmatprep.mubr.bf16.mxu0 0
      %2047 = vmatmul.mubr.bf16.gmra.mrb[0].mxu0 %v1926
      %v2048 = vpop.f32.mrb[0].mxu0
      %v2049 = vadd.f32 0.0, %v2048
      %v2050 = vpop.f32.mrb[0].mxu0
      %v2051 = vpop.f32.mrb[0].mxu0
      %v2052 = vadd.f32 0.0, %v2051
      %v2053 = vpop.f32.mrb[0].mxu0
      %2054 = vmatprep.mubr.bf16.mxu0 0
      %2055 = vmatmul.mubr.bf16.gmra.mrb[0].mxu0 %v1927
      %v2056 = vpop.f32.mrb[0].mxu0
      %v2057 = vadd.f32 0.0, %v2056
      %v2058 = vpop.f32.mrb[0].mxu0
      %v2059 = vpop.f32.mrb[0].mxu0
      %v2060 = vadd.f32 0.0, %v2059
      %v2061 = vpop.f32.mrb[0].mxu0
      %2062 = vmatprep.mubr.bf16.mxu0 0
      %2063 = vmatmul.mubr.bf16.gmra.mrb[0].mxu0 %v1928
      %v2064 = vpop.f32.mrb[0].mxu0
      %v2065 = vadd.f32 0.0, %v2064
      %v2066 = vpop.f32.mrb[0].mxu0
      %v2067 = vpop.f32.mrb[0].mxu0
      %v2068 = vadd.f32 0.0, %v2067
      %v2069 = vpop.f32.mrb[0].mxu0
      %2070 = vmatprep.mubr.bf16.mxu0 0
      %2071 = vmatmul.mubr.bf16.gmra.mrb[0].mxu0 %v1929
      %v2072 = vpop.f32.mrb[0].mxu0
      %v2073 = vadd.f32 0.0, %v2072
      %v2074 = vpop.f32.mrb[0].mxu0
      %v2075 = vpop.f32.mrb[0].mxu0
      %v2076 = vadd.f32 0.0, %v2075
      %v2077 = vpop.f32.mrb[0].mxu0
      %2078 = vmatprep.mubr.bf16.mxu0 0
      %2079 = vmatmul.mubr.bf16.gmra.mrb[0].mxu0 %v1930
      %v2080 = vpop.f32.mrb[0].mxu0
      %v2081 = vadd.f32 0.0, %v2080
      %v2082 = vpop.f32.mrb[0].mxu0
      %v2083 = vpop.f32.mrb[0].mxu0
      %v2084 = vadd.f32 0.0, %v2083
      %v2085 = vpop.f32.mrb[0].mxu0
      %2086 = vmatprep.mubr.bf16.mxu0 0
      %2087 = vmatmul.mubr.bf16.gmra.mrb[0].mxu0 %v1931
      %v2088 = vpop.f32.mrb[0].mxu0
      %v2089 = vadd.f32 0.0, %v2088
      %v2090 = vpop.f32.mrb[0].mxu0
      %v2091 = vpop.f32.mrb[0].mxu0
      %v2092 = vadd.f32 0.0, %v2091
      %v2093 = vpop.f32.mrb[0].mxu0
      %2094 = vmatprep.mubr.bf16.mxu0 0
      %2095 = vmatmul.mubr.bf16.gmra.mrb[0].mxu0 %v1932
      %v2096 = vpop.f32.mrb[0].mxu0
      %v2097 = vadd.f32 0.0, %v2096
      %v2098 = vpop.f32.mrb[0].mxu0
      %v2099 = vpop.f32.mrb[0].mxu0
      %v2100 = vadd.f32 0.0, %v2099
      %v2101 = vpop.f32.mrb[0].mxu0
      %2102 = vmatprep.mubr.bf16.mxu0 0
      %2103 = vmatmul.mubr.bf16.gmra.mrb[0].mxu0 %v1933
      %v2104 = vpop.f32.mrb[0].mxu0
      %v2105 = vadd.f32 0.0, %v2104
      %v2106 = vpop.f32.mrb[0].mxu0
      %v2107 = vpop.f32.mrb[0].mxu0
      %v2108 = vadd.f32 0.0, %v2107
      %v2109 = vpop.f32.mrb[0].mxu0
      %2110 = vmatprep.mubr.bf16.mxu0 0
      %2111 = vmatmul.mubr.bf16.gmra.mrb[0].mxu0 %v1934
      %v2112 = vpop.f32.mrb[0].mxu0
      %v2113 = vadd.f32 0.0, %v2112
      %v2114 = vpop.f32.mrb[0].mxu0
      %v2115 = vpop.f32.mrb[0].mxu0
      %v2116 = vadd.f32 0.0, %v2115
      %v2117 = vpop.f32.mrb[0].mxu0
      %2118 = vmatprep.mubr.bf16.mxu0 0
      %2119 = vmatmul.mubr.bf16.gmra.mrb[0].mxu0 %v1935
      %v2120 = vpop.f32.mrb[0].mxu0
      %v2121 = vadd.f32 0.0, %v2120
      %v2122 = vpop.f32.mrb[0].mxu0
      %v2123 = vpop.f32.mrb[0].mxu0
      %v2124 = vadd.f32 0.0, %v2123
      %v2125 = vpop.f32.mrb[0].mxu0
      %2126 = vmatprep.mubr.bf16.mxu0 0
      %2127 = vmatmul.mubr.bf16.gmra.mrb[0].mxu0 %v1936
      %v2128 = vpop.f32.mrb[0].mxu0
      %v2129 = vadd.f32 0.0, %v2128
      %v2130 = vpop.f32.mrb[0].mxu0
      %v2131 = vpop.f32.mrb[0].mxu0
      %v2132 = vadd.f32 0.0, %v2131
      %v2133 = vpop.f32.mrb[0].mxu0
      %2134 = vmatprep.mubr.bf16.mxu0 0
      %2135 = vmatmul.mubr.bf16.gmra.mrb[0].mxu0 %v1937
      %v2136 = vpop.f32.mrb[0].mxu0
      %v2137 = vadd.f32 0.0, %v2136
      %v2138 = vpop.f32.mrb[0].mxu0
      %v2139 = vpop.f32.mrb[0].mxu0
      %v2140 = vadd.f32 0.0, %v2139
      %v2141 = vpop.f32.mrb[0].mxu0
      %2142 = vmatprep.mubr.bf16.mxu0 0
      %2143 = vmatmul.mubr.bf16.gmra.mrb[0].mxu0 %v1938
      %v2144 = vpop.f32.mrb[0].mxu0
      %v2145 = vadd.f32 0.0, %v2144
      %v2146 = vpop.f32.mrb[0].mxu0
      %v2147 = vpop.f32.mrb[0].mxu0
      %v2148 = vadd.f32 0.0, %v2147
      %v2149 = vpop.f32.mrb[0].mxu0
      %2150 = vmatprep.mubr.bf16.mxu0 0
      %2151 = vmatmul.mubr.bf16.gmra.mrb[0].mxu0 %v1939
      %v2152 = vpop.f32.mrb[0].mxu0
      %v2153 = vadd.f32 0.0, %v2152
      %v2154 = vpop.f32.mrb[0].mxu0
      %v2155 = vpop.f32.mrb[0].mxu0
      %v2156 = vadd.f32 0.0, %v2155
      %v2157 = vpop.f32.mrb[0].mxu0
      %2158 = vmatprep.mubr.bf16.mxu0 0
      %2159 = vmatmul.mubr.bf16.gmra.mrb[0].mxu0 %v1940
      %v2160 = vpop.f32.mrb[0].mxu0
      %v2161 = vadd.f32 0.0, %v2160
      %v2162 = vpop.f32.mrb[0].mxu0
      %v2163 = vpop.f32.mrb[0].mxu0
      %v2164 = vadd.f32 0.0, %v2163
      %v2165 = vpop.f32.mrb[0].mxu0
      %2166 = vdwg.mxu0
      %v2167 = vadd.f32 %v1861, %v2041
      %v2168 = vadd.f32 %v1862, %v2044
      %v2169 = vadd.f32 %v1863, %v2049
      %v2170 = vadd.f32 %v1864, %v2052
      %v2171 = vadd.f32 %v1865, %v2057
      %v2172 = vadd.f32 %v1866, %v2060
      %v2173 = vadd.f32 %v1867, %v2065
      %v2174 = vadd.f32 %v1868, %v2068
      %v2175 = vadd.f32 %v1869, %v2073
      %v2176 = vadd.f32 %v1870, %v2076
      %v2177 = vadd.f32 %v1871, %v2081
      %v2178 = vadd.f32 %v1872, %v2084
      %v2179 = vadd.f32 %v1873, %v2089
      %v2180 = vadd.f32 %v1874, %v2092
      %v2181 = vadd.f32 %v1875, %v2097
      %v2182 = vadd.f32 %v1876, %v2100
      %v2183 = vadd.f32 %v1877, %v2105
      %v2184 = vadd.f32 %v1878, %v2108
      %v2185 = vadd.f32 %v1879, %v2113
      %v2186 = vadd.f32 %v1880, %v2116
      %v2187 = vadd.f32 %v1881, %v2121
      %v2188 = vadd.f32 %v1882, %v2124
      %v2189 = vadd.f32 %v1883, %v2129
      %v2190 = vadd.f32 %v1884, %v2132
      %v2191 = vadd.f32 %v1885, %v2137
      %v2192 = vadd.f32 %v1886, %v2140
      %v2193 = vadd.f32 %v1887, %v2145
      %v2194 = vadd.f32 %v1888, %v2148
      %v2195 = vadd.f32 %v1889, %v2153
      %v2196 = vadd.f32 %v1890, %v2156
      %v2197 = vadd.f32 %v1891, %v2161
      %v2198 = vadd.f32 %v1892, %v2164
      %v2199 = vld [vmem:[%s701 + $0x2] sm:$0xff]
      %v2200 = vld [vmem:[%s701 + $0xa] sm:$0xff]
      %v2201 = vld [vmem:[%s701 + $0x1a] sm:$0xff]
      %v2202 = vld [vmem:[%s701 + $0x22] sm:$0xff]
      %v2203 = vld [vmem:[%s701 + $0x32] sm:$0xff]
      %v2204 = vld [vmem:[%s701 + $0x3a] sm:$0xff]
      %v2205 = vld [vmem:[%s701 + $0x4a] sm:$0xff]
      %v2206 = vld [vmem:[%s701 + $0x52] sm:$0xff]
      %v2207 = vld [vmem:[%s701 + $0x62] sm:$0xff]
      %v2208 = vld [vmem:[%s701 + $0x6a] sm:$0xff]
      %v2209 = vld [vmem:[%s701 + $0x7a] sm:$0xff]
      %v2210 = vld [vmem:[%s701 + $0x82] sm:$0xff]
      %v2211 = vld [vmem:[%s701 + $0x92] sm:$0xff]
      %v2212 = vld [vmem:[%s701 + $0x9a] sm:$0xff]
      %v2213 = vld [vmem:[%s701 + $0xaa] sm:$0xff]
      %v2214 = vld [vmem:[%s701 + $0xb2] sm:$0xff]
      %v2215 = vld [vmem:[%s701 + $0xc2] sm:$0xff]
      %v2216 = vld [vmem:[%s701 + $0xca] sm:$0xff]
      %v2217 = vld [vmem:[%s701 + $0xda] sm:$0xff]
      %v2218 = vld [vmem:[%s701 + $0xe2] sm:$0xff]
      %v2219 = vld [vmem:[%s701 + $0xf2] sm:$0xff]
      %v2220 = vld [vmem:[%s701 + $0xfa] sm:$0xff]
      %v2221 = vld [vmem:[%s701 + $0x10a] sm:$0xff]
      %v2222 = vld [vmem:[%s701 + $0x112] sm:$0xff]
      %v2223 = vld [vmem:[%s701 + $0x122] sm:$0xff]
      %v2224 = vld [vmem:[%s701 + $0x12a] sm:$0xff]
      %v2225 = vld [vmem:[%s701 + $0x13a] sm:$0xff]
      %v2226 = vld [vmem:[%s701 + $0x142] sm:$0xff]
      %v2227 = vld [vmem:[%s701 + $0x152] sm:$0xff]
      %v2228 = vld [vmem:[%s701 + $0x15a] sm:$0xff]
      %v2229 = vld [vmem:[%s701 + $0x16a] sm:$0xff]
      %v2230 = vld [vmem:[%s701 + $0x172] sm:$0xff]
      %v2231 = vpack.c.bf16 %v2200, %v2199
      %v2232 = vpack.c.bf16 %v2202, %v2201
      %v2233 = vpack.c.bf16 %v2204, %v2203
      %v2234 = vpack.c.bf16 %v2206, %v2205
      %v2235 = vpack.c.bf16 %v2208, %v2207
      %v2236 = vpack.c.bf16 %v2210, %v2209
      %v2237 = vpack.c.bf16 %v2212, %v2211
      %v2238 = vpack.c.bf16 %v2214, %v2213
      %v2239 = vpack.c.bf16 %v2216, %v2215
      %v2240 = vpack.c.bf16 %v2218, %v2217
      %v2241 = vpack.c.bf16 %v2220, %v2219
      %v2242 = vpack.c.bf16 %v2222, %v2221
      %v2243 = vpack.c.bf16 %v2224, %v2223
      %v2244 = vpack.c.bf16 %v2226, %v2225
      %v2245 = vpack.c.bf16 %v2228, %v2227
      %v2246 = vpack.c.bf16 %v2230, %v2229
      %s2247 = scalar_lea.vmem %s4, 320
      %v2248 = vld [vmem:[%s2247] sm:$0xf]
      %v2249 = vld [vmem:[%s2247 + $0x4] sm:$0xf]
      %v2250 = vld [vmem:[%s2247 + $0x8] sm:$0xf]
      %v2251 = vld [vmem:[%s2247 + $0xc] sm:$0xf]
      %v2252 = vld [vmem:[%s2247 + $0x10] sm:$0xf]
      %v2253 = vld [vmem:[%s2247 + $0x14] sm:$0xf]
      %v2254 = vld [vmem:[%s2247 + $0x18] sm:$0xf]
      %v2255 = vld [vmem:[%s2247 + $0x1c] sm:$0xf]
      %v2256 = vld [vmem:[%s2247 + $0x20] sm:$0xf]
      %v2257 = vld [vmem:[%s2247 + $0x24] sm:$0xf]
      %v2258 = vld [vmem:[%s2247 + $0x28] sm:$0xf]
      %v2259 = vld [vmem:[%s2247 + $0x2c] sm:$0xf]
      %v2260 = vld [vmem:[%s2247 + $0x30] sm:$0xf]
      %v2261 = vld [vmem:[%s2247 + $0x34] sm:$0xf]
      %v2262 = vld [vmem:[%s2247 + $0x38] sm:$0xf]
      %v2263 = vld [vmem:[%s2247 + $0x3c] sm:$0xf]
      %v2280 = vunpack.c.l.b16 %v2248
      %v2281 = vunpack.c.l.b16 %v2249
      %v2282 = vunpack.c.l.b16 %v2250
      %v2283 = vunpack.c.l.b16 %v2251
      %v2284 = vunpack.c.l.b16 %v2252
      %v2285 = vunpack.c.l.b16 %v2253
      %v2286 = vunpack.c.l.b16 %v2254
      %v2287 = vunpack.c.l.b16 %v2255
      %v2288 = vunpack.c.l.b16 %v2256
      %v2289 = vunpack.c.l.b16 %v2257
      %v2290 = vunpack.c.l.b16 %v2258
      %v2291 = vunpack.c.l.b16 %v2259
      %v2292 = vunpack.c.l.b16 %v2260
      %v2293 = vunpack.c.l.b16 %v2261
      %v2294 = vunpack.c.l.b16 %v2262
      %v2295 = vunpack.c.l.b16 %v2263
      %v2296 = vpack.c.b16 %v2281, %v2280
      %v2297 = vpack.c.b16 %v2283, %v2282
      %v2298 = vpack.c.b16 %v2285, %v2284
      %v2299 = vpack.c.b16 %v2287, %v2286
      %v2300 = vpack.c.b16 %v2289, %v2288
      %v2301 = vpack.c.b16 %v2291, %v2290
      %v2302 = vpack.c.b16 %v2293, %v2292
      %v2303 = vpack.c.b16 %v2295, %v2294
      %2312 = vmatprep.subr.bf16.mxu0 0
      %2313 = vmatpush1.bf16.msra.mxu0 %v2296
      %2314 = vmatprep.subr.bf16.mxu0 0
      %2315 = vmatpush1.bf16.msra.mxu0 %v2297
      %2316 = vmatprep.subr.bf16.mxu0 0
      %2317 = vmatpush1.bf16.msra.mxu0 %v2298
      %2318 = vmatprep.subr.bf16.mxu0 0
      %2319 = vmatpush1.bf16.msra.mxu0 %v2299
      %2320 = vmatprep.subr.bf16.mxu0 0
      %2321 = vmatpush1.bf16.msra.mxu0 %v2300
      %2322 = vmatprep.subr.bf16.mxu0 0
      %2323 = vmatpush1.bf16.msra.mxu0 %v2301
      %2324 = vmatprep.subr.bf16.mxu0 0
      %2325 = vmatpush1.bf16.msra.mxu0 %v2302
      %2326 = vmatprep.subr.bf16.mxu0 0
      %2327 = vmatpush1.bf16.msra.mxu0 %v2303
      %2328 = vmatprep.subr.bf16.mxu0 0
      %2329 = vmatpush1.bf16.msra.mxu0 0
      %2330 = vmatprep.subr.bf16.mxu0 0
      %2331 = vmatpush1.bf16.msra.mxu0 0
      %2332 = vmatprep.subr.bf16.mxu0 0
      %2333 = vmatpush1.bf16.msra.mxu0 0
      %2334 = vmatprep.subr.bf16.mxu0 0
      %2335 = vmatpush1.bf16.msra.mxu0 0
      %2336 = vmatprep.subr.bf16.mxu0 0
      %2337 = vmatpush1.bf16.msra.mxu0 0
      %2338 = vmatprep.subr.bf16.mxu0 0
      %2339 = vmatpush1.bf16.msra.mxu0 0
      %2340 = vmatprep.subr.bf16.mxu0 0
      %2341 = vmatpush1.bf16.msra.mxu0 0
      %2342 = vmatprep.subr.bf16.mxu0 0
      %2343 = vmatpush1.bf16.msra.mxu0 0
      %2344 = vmatprep.mubr.bf16.mxu0 0
      %2345 = vmatmul.mubr.bf16.gmra.mrb[0].mxu0 %v2231
      %v2346 = vpop.f32.mrb[0].mxu0
      %v2347 = vadd.f32 0.0, %v2346
      %v2348 = vpop.f32.mrb[0].mxu0
      %v2349 = vpop.f32.mrb[0].mxu0
      %v2350 = vadd.f32 0.0, %v2349
      %v2351 = vpop.f32.mrb[0].mxu0
      %2352 = vmatprep.mubr.bf16.mxu0 0
      %2353 = vmatmul.mubr.bf16.gmra.mrb[0].mxu0 %v2232
      %v2354 = vpop.f32.mrb[0].mxu0
      %v2355 = vadd.f32 0.0, %v2354
      %v2356 = vpop.f32.mrb[0].mxu0
      %v2357 = vpop.f32.mrb[0].mxu0
      %v2358 = vadd.f32 0.0, %v2357
      %v2359 = vpop.f32.mrb[0].mxu0
      %2360 = vmatprep.mubr.bf16.mxu0 0
      %2361 = vmatmul.mubr.bf16.gmra.mrb[0].mxu0 %v2233
      %v2362 = vpop.f32.mrb[0].mxu0
      %v2363 = vadd.f32 0.0, %v2362
      %v2364 = vpop.f32.mrb[0].mxu0
      %v2365 = vpop.f32.mrb[0].mxu0
      %v2366 = vadd.f32 0.0, %v2365
      %v2367 = vpop.f32.mrb[0].mxu0
      %2368 = vmatprep.mubr.bf16.mxu0 0
      %2369 = vmatmul.mubr.bf16.gmra.mrb[0].mxu0 %v2234
      %v2370 = vpop.f32.mrb[0].mxu0
      %v2371 = vadd.f32 0.0, %v2370
      %v2372 = vpop.f32.mrb[0].mxu0
      %v2373 = vpop.f32.mrb[0].mxu0
      %v2374 = vadd.f32 0.0, %v2373
      %v2375 = vpop.f32.mrb[0].mxu0
      %2376 = vmatprep.mubr.bf16.mxu0 0
      %2377 = vmatmul.mubr.bf16.gmra.mrb[0].mxu0 %v2235
      %v2378 = vpop.f32.mrb[0].mxu0
      %v2379 = vadd.f32 0.0, %v2378
      %v2380 = vpop.f32.mrb[0].mxu0
      %v2381 = vpop.f32.mrb[0].mxu0
      %v2382 = vadd.f32 0.0, %v2381
      %v2383 = vpop.f32.mrb[0].mxu0
      %2384 = vmatprep.mubr.bf16.mxu0 0
      %2385 = vmatmul.mubr.bf16.gmra.mrb[0].mxu0 %v2236
      %v2386 = vpop.f32.mrb[0].mxu0
      %v2387 = vadd.f32 0.0, %v2386
      %v2388 = vpop.f32.mrb[0].mxu0
      %v2389 = vpop.f32.mrb[0].mxu0
      %v2390 = vadd.f32 0.0, %v2389
      %v2391 = vpop.f32.mrb[0].mxu0
      %2392 = vmatprep.mubr.bf16.mxu0 0
      %2393 = vmatmul.mubr.bf16.gmra.mrb[0].mxu0 %v2237
      %v2394 = vpop.f32.mrb[0].mxu0
      %v2395 = vadd.f32 0.0, %v2394
      %v2396 = vpop.f32.mrb[0].mxu0
      %v2397 = vpop.f32.mrb[0].mxu0
      %v2398 = vadd.f32 0.0, %v2397
      %v2399 = vpop.f32.mrb[0].mxu0
      %2400 = vmatprep.mubr.bf16.mxu0 0
      %2401 = vmatmul.mubr.bf16.gmra.mrb[0].mxu0 %v2238
      %v2402 = vpop.f32.mrb[0].mxu0
      %v2403 = vadd.f32 0.0, %v2402
      %v2404 = vpop.f32.mrb[0].mxu0
      %v2405 = vpop.f32.mrb[0].mxu0
      %v2406 = vadd.f32 0.0, %v2405
      %v2407 = vpop.f32.mrb[0].mxu0
      %2408 = vmatprep.mubr.bf16.mxu0 0
      %2409 = vmatmul.mubr.bf16.gmra.mrb[0].mxu0 %v2239
      %v2410 = vpop.f32.mrb[0].mxu0
      %v2411 = vadd.f32 0.0, %v2410
      %v2412 = vpop.f32.mrb[0].mxu0
      %v2413 = vpop.f32.mrb[0].mxu0
      %v2414 = vadd.f32 0.0, %v2413
      %v2415 = vpop.f32.mrb[0].mxu0
      %2416 = vmatprep.mubr.bf16.mxu0 0
      %2417 = vmatmul.mubr.bf16.gmra.mrb[0].mxu0 %v2240
      %v2418 = vpop.f32.mrb[0].mxu0
      %v2419 = vadd.f32 0.0, %v2418
      %v2420 = vpop.f32.mrb[0].mxu0
      %v2421 = vpop.f32.mrb[0].mxu0
      %v2422 = vadd.f32 0.0, %v2421
      %v2423 = vpop.f32.mrb[0].mxu0
      %2424 = vmatprep.mubr.bf16.mxu0 0
      %2425 = vmatmul.mubr.bf16.gmra.mrb[0].mxu0 %v2241
      %v2426 = vpop.f32.mrb[0].mxu0
      %v2427 = vadd.f32 0.0, %v2426
      %v2428 = vpop.f32.mrb[0].mxu0
      %v2429 = vpop.f32.mrb[0].mxu0
      %v2430 = vadd.f32 0.0, %v2429
      %v2431 = vpop.f32.mrb[0].mxu0
      %2432 = vmatprep.mubr.bf16.mxu0 0
      %2433 = vmatmul.mubr.bf16.gmra.mrb[0].mxu0 %v2242
      %v2434 = vpop.f32.mrb[0].mxu0
      %v2435 = vadd.f32 0.0, %v2434
      %v2436 = vpop.f32.mrb[0].mxu0
      %v2437 = vpop.f32.mrb[0].mxu0
      %v2438 = vadd.f32 0.0, %v2437
      %v2439 = vpop.f32.mrb[0].mxu0
      %2440 = vmatprep.mubr.bf16.mxu0 0
      %2441 = vmatmul.mubr.bf16.gmra.mrb[0].mxu0 %v2243
      %v2442 = vpop.f32.mrb[0].mxu0
      %v2443 = vadd.f32 0.0, %v2442
      %v2444 = vpop.f32.mrb[0].mxu0
      %v2445 = vpop.f32.mrb[0].mxu0
      %v2446 = vadd.f32 0.0, %v2445
      %v2447 = vpop.f32.mrb[0].mxu0
      %2448 = vmatprep.mubr.bf16.mxu0 0
      %2449 = vmatmul.mubr.bf16.gmra.mrb[0].mxu0 %v2244
      %v2450 = vpop.f32.mrb[0].mxu0
      %v2451 = vadd.f32 0.0, %v2450
      %v2452 = vpop.f32.mrb[0].mxu0
      %v2453 = vpop.f32.mrb[0].mxu0
      %v2454 = vadd.f32 0.0, %v2453
      %v2455 = vpop.f32.mrb[0].mxu0
      %2456 = vmatprep.mubr.bf16.mxu0 0
      %2457 = vmatmul.mubr.bf16.gmra.mrb[0].mxu0 %v2245
      %v2458 = vpop.f32.mrb[0].mxu0
      %v2459 = vadd.f32 0.0, %v2458
      %v2460 = vpop.f32.mrb[0].mxu0
      %v2461 = vpop.f32.mrb[0].mxu0
      %v2462 = vadd.f32 0.0, %v2461
      %v2463 = vpop.f32.mrb[0].mxu0
      %2464 = vmatprep.mubr.bf16.mxu0 0
      %2465 = vmatmul.mubr.bf16.gmra.mrb[0].mxu0 %v2246
      %v2466 = vpop.f32.mrb[0].mxu0
      %v2467 = vadd.f32 0.0, %v2466
      %v2468 = vpop.f32.mrb[0].mxu0
      %v2469 = vpop.f32.mrb[0].mxu0
      %v2470 = vadd.f32 0.0, %v2469
      %v2471 = vpop.f32.mrb[0].mxu0
      %2472 = vdwg.mxu0
      %v2473 = vadd.f32 %v2167, %v2347
      %v2474 = vadd.f32 %v2168, %v2350
      %v2475 = vadd.f32 %v2169, %v2355
      %v2476 = vadd.f32 %v2170, %v2358
      %v2477 = vadd.f32 %v2171, %v2363
      %v2478 = vadd.f32 %v2172, %v2366
      %v2479 = vadd.f32 %v2173, %v2371
      %v2480 = vadd.f32 %v2174, %v2374
      %v2481 = vadd.f32 %v2175, %v2379
      %v2482 = vadd.f32 %v2176, %v2382
      %v2483 = vadd.f32 %v2177, %v2387
      %v2484 = vadd.f32 %v2178, %v2390
      %v2485 = vadd.f32 %v2179, %v2395
      %v2486 = vadd.f32 %v2180, %v2398
      %v2487 = vadd.f32 %v2181, %v2403
      %v2488 = vadd.f32 %v2182, %v2406
      %v2489 = vadd.f32 %v2183, %v2411
      %v2490 = vadd.f32 %v2184, %v2414
      %v2491 = vadd.f32 %v2185, %v2419
      %v2492 = vadd.f32 %v2186, %v2422
      %v2493 = vadd.f32 %v2187, %v2427
      %v2494 = vadd.f32 %v2188, %v2430
      %v2495 = vadd.f32 %v2189, %v2435
      %v2496 = vadd.f32 %v2190, %v2438
      %v2497 = vadd.f32 %v2191, %v2443
      %v2498 = vadd.f32 %v2192, %v2446
      %v2499 = vadd.f32 %v2193, %v2451
      %v2500 = vadd.f32 %v2194, %v2454
      %v2501 = vadd.f32 %v2195, %v2459
      %v2502 = vadd.f32 %v2196, %v2462
      %v2503 = vadd.f32 %v2197, %v2467
      %v2504 = vadd.f32 %v2198, %v2470
      %s2505 = scalar_lea.vmem [#allocation2], 48
      %v2506 = vld [vmem:[%s2505] sm:$0xff]
      %v2507 = vld [vmem:[%s2505 + $0x8] sm:$0xff]
      %v2508 = vld [vmem:[%s2505 + $0x18] sm:$0xff]
      %v2509 = vld [vmem:[%s2505 + $0x20] sm:$0xff]
      %v2510 = vld [vmem:[%s2505 + $0x30] sm:$0xff]
      %v2511 = vld [vmem:[%s2505 + $0x38] sm:$0xff]
      %v2512 = vld [vmem:[%s2505 + $0x48] sm:$0xff]
      %v2513 = vld [vmem:[%s2505 + $0x50] sm:$0xff]
      %v2514 = vld [vmem:[%s2505 + $0x60] sm:$0xff]
      %v2515 = vld [vmem:[%s2505 + $0x68] sm:$0xff]
      %v2516 = vld [vmem:[%s2505 + $0x78] sm:$0xff]
      %v2517 = vld [vmem:[%s2505 + $0x80] sm:$0xff]
      %v2518 = vld [vmem:[%s2505 + $0x90] sm:$0xff]
      %v2519 = vld [vmem:[%s2505 + $0x98] sm:$0xff]
      %v2520 = vld [vmem:[%s2505 + $0xa8] sm:$0xff]
      %v2521 = vld [vmem:[%s2505 + $0xb0] sm:$0xff]
      %v2522 = vld [vmem:[%s2505 + $0xc0] sm:$0xff]
      %v2523 = vld [vmem:[%s2505 + $0xc8] sm:$0xff]
      %v2524 = vld [vmem:[%s2505 + $0xd8] sm:$0xff]
      %v2525 = vld [vmem:[%s2505 + $0xe0] sm:$0xff]
      %v2526 = vld [vmem:[%s2505 + $0xf0] sm:$0xff]
      %v2527 = vld [vmem:[%s2505 + $0xf8] sm:$0xff]
      %v2528 = vld [vmem:[%s2505 + $0x108] sm:$0xff]
      %v2529 = vld [vmem:[%s2505 + $0x110] sm:$0xff]
      %v2530 = vld [vmem:[%s2505 + $0x120] sm:$0xff]
      %v2531 = vld [vmem:[%s2505 + $0x128] sm:$0xff]
      %v2532 = vld [vmem:[%s2505 + $0x138] sm:$0xff]
      %v2533 = vld [vmem:[%s2505 + $0x140] sm:$0xff]
      %v2534 = vld [vmem:[%s2505 + $0x150] sm:$0xff]
      %v2535 = vld [vmem:[%s2505 + $0x158] sm:$0xff]
      %v2536 = vld [vmem:[%s2505 + $0x168] sm:$0xff]
      %v2537 = vld [vmem:[%s2505 + $0x170] sm:$0xff]
      %v2538 = vpack.c.bf16 %v2507, %v2506
      %v2539 = vpack.c.bf16 %v2509, %v2508
      %v2540 = vpack.c.bf16 %v2511, %v2510
      %v2541 = vpack.c.bf16 %v2513, %v2512
      %v2542 = vpack.c.bf16 %v2515, %v2514
      %v2543 = vpack.c.bf16 %v2517, %v2516
      %v2544 = vpack.c.bf16 %v2519, %v2518
      %v2545 = vpack.c.bf16 %v2521, %v2520
      %v2546 = vpack.c.bf16 %v2523, %v2522
      %v2547 = vpack.c.bf16 %v2525, %v2524
      %v2548 = vpack.c.bf16 %v2527, %v2526
      %v2549 = vpack.c.bf16 %v2529, %v2528
      %v2550 = vpack.c.bf16 %v2531, %v2530
      %v2551 = vpack.c.bf16 %v2533, %v2532
      %v2552 = vpack.c.bf16 %v2535, %v2534
      %v2553 = vpack.c.bf16 %v2537, %v2536
      %s2554 = scalar_lea.vmem %s4, 384
      %v2555 = vld [vmem:[%s2554] sm:$0xf]
      %v2556 = vld [vmem:[%s2554 + $0x4] sm:$0xf]
      %v2557 = vld [vmem:[%s2554 + $0x8] sm:$0xf]
      %v2558 = vld [vmem:[%s2554 + $0xc] sm:$0xf]
      %v2559 = vld [vmem:[%s2554 + $0x10] sm:$0xf]
      %v2560 = vld [vmem:[%s2554 + $0x14] sm:$0xf]
      %v2561 = vld [vmem:[%s2554 + $0x18] sm:$0xf]
      %v2562 = vld [vmem:[%s2554 + $0x1c] sm:$0xf]
      %v2563 = vld [vmem:[%s2554 + $0x20] sm:$0xf]
      %v2564 = vld [vmem:[%s2554 + $0x24] sm:$0xf]
      %v2565 = vld [vmem:[%s2554 + $0x28] sm:$0xf]
      %v2566 = vld [vmem:[%s2554 + $0x2c] sm:$0xf]
      %v2567 = vld [vmem:[%s2554 + $0x30] sm:$0xf]
      %v2568 = vld [vmem:[%s2554 + $0x34] sm:$0xf]
      %v2569 = vld [vmem:[%s2554 + $0x38] sm:$0xf]
      %v2570 = vld [vmem:[%s2554 + $0x3c] sm:$0xf]
      %v2587 = vunpack.c.l.b16 %v2555
      %v2588 = vunpack.c.l.b16 %v2556
      %v2589 = vunpack.c.l.b16 %v2557
      %v2590 = vunpack.c.l.b16 %v2558
      %v2591 = vunpack.c.l.b16 %v2559
      %v2592 = vunpack.c.l.b16 %v2560
      %v2593 = vunpack.c.l.b16 %v2561
      %v2594 = vunpack.c.l.b16 %v2562
      %v2595 = vunpack.c.l.b16 %v2563
      %v2596 = vunpack.c.l.b16 %v2564
      %v2597 = vunpack.c.l.b16 %v2565
      %v2598 = vunpack.c.l.b16 %v2566
      %v2599 = vunpack.c.l.b16 %v2567
      %v2600 = vunpack.c.l.b16 %v2568
      %v2601 = vunpack.c.l.b16 %v2569
      %v2602 = vunpack.c.l.b16 %v2570
      %v2603 = vpack.c.b16 %v2588, %v2587
      %v2604 = vpack.c.b16 %v2590, %v2589
      %v2605 = vpack.c.b16 %v2592, %v2591
      %v2606 = vpack.c.b16 %v2594, %v2593
      %v2607 = vpack.c.b16 %v2596, %v2595
      %v2608 = vpack.c.b16 %v2598, %v2597
      %v2609 = vpack.c.b16 %v2600, %v2599
      %v2610 = vpack.c.b16 %v2602, %v2601
      %2619 = vmatprep.subr.bf16.mxu0 0
      %2620 = vmatpush1.bf16.msra.mxu0 %v2603
      %2621 = vmatprep.subr.bf16.mxu0 0
      %2622 = vmatpush1.bf16.msra.mxu0 %v2604
      %2623 = vmatprep.subr.bf16.mxu0 0
      %2624 = vmatpush1.bf16.msra.mxu0 %v2605
      %2625 = vmatprep.subr.bf16.mxu0 0
      %2626 = vmatpush1.bf16.msra.mxu0 %v2606
      %2627 = vmatprep.subr.bf16.mxu0 0
      %2628 = vmatpush1.bf16.msra.mxu0 %v2607
      %2629 = vmatprep.subr.bf16.mxu0 0
      %2630 = vmatpush1.bf16.msra.mxu0 %v2608
      %2631 = vmatprep.subr.bf16.mxu0 0
      %2632 = vmatpush1.bf16.msra.mxu0 %v2609
      %2633 = vmatprep.subr.bf16.mxu0 0
      %2634 = vmatpush1.bf16.msra.mxu0 %v2610
      %2635 = vmatprep.subr.bf16.mxu0 0
      %2636 = vmatpush1.bf16.msra.mxu0 0
      %2637 = vmatprep.subr.bf16.mxu0 0
      %2638 = vmatpush1.bf16.msra.mxu0 0
      %2639 = vmatprep.subr.bf16.mxu0 0
      %2640 = vmatpush1.bf16.msra.mxu0 0
      %2641 = vmatprep.subr.bf16.mxu0 0
      %2642 = vmatpush1.bf16.msra.mxu0 0
      %2643 = vmatprep.subr.bf16.mxu0 0
      %2644 = vmatpush1.bf16.msra.mxu0 0
      %2645 = vmatprep.subr.bf16.mxu0 0
      %2646 = vmatpush1.bf16.msra.mxu0 0
      %2647 = vmatprep.subr.bf16.mxu0 0
      %2648 = vmatpush1.bf16.msra.mxu0 0
      %2649 = vmatprep.subr.bf16.mxu0 0
      %2650 = vmatpush1.bf16.msra.mxu0 0
      %2651 = vmatprep.mubr.bf16.mxu0 0
      %2652 = vmatmul.mubr.bf16.gmra.mrb[0].mxu0 %v2538
      %v2653 = vpop.f32.mrb[0].mxu0
      %v2654 = vadd.f32 0.0, %v2653
      %v2655 = vpop.f32.mrb[0].mxu0
      %v2656 = vpop.f32.mrb[0].mxu0
      %v2657 = vadd.f32 0.0, %v2656
      %v2658 = vpop.f32.mrb[0].mxu0
      %2659 = vmatprep.mubr.bf16.mxu0 0
      %2660 = vmatmul.mubr.bf16.gmra.mrb[0].mxu0 %v2539
      %v2661 = vpop.f32.mrb[0].mxu0
      %v2662 = vadd.f32 0.0, %v2661
      %v2663 = vpop.f32.mrb[0].mxu0
      %v2664 = vpop.f32.mrb[0].mxu0
      %v2665 = vadd.f32 0.0, %v2664
      %v2666 = vpop.f32.mrb[0].mxu0
      %2667 = vmatprep.mubr.bf16.mxu0 0
      %2668 = vmatmul.mubr.bf16.gmra.mrb[0].mxu0 %v2540
      %v2669 = vpop.f32.mrb[0].mxu0
      %v2670 = vadd.f32 0.0, %v2669
      %v2671 = vpop.f32.mrb[0].mxu0
      %v2672 = vpop.f32.mrb[0].mxu0
      %v2673 = vadd.f32 0.0, %v2672
      %v2674 = vpop.f32.mrb[0].mxu0
      %2675 = vmatprep.mubr.bf16.mxu0 0
      %2676 = vmatmul.mubr.bf16.gmra.mrb[0].mxu0 %v2541
      %v2677 = vpop.f32.mrb[0].mxu0
      %v2678 = vadd.f32 0.0, %v2677
      %v2679 = vpop.f32.mrb[0].mxu0
      %v2680 = vpop.f32.mrb[0].mxu0
      %v2681 = vadd.f32 0.0, %v2680
      %v2682 = vpop.f32.mrb[0].mxu0
      %2683 = vmatprep.mubr.bf16.mxu0 0
      %2684 = vmatmul.mubr.bf16.gmra.mrb[0].mxu0 %v2542
      %v2685 = vpop.f32.mrb[0].mxu0
      %v2686 = vadd.f32 0.0, %v2685
      %v2687 = vpop.f32.mrb[0].mxu0
      %v2688 = vpop.f32.mrb[0].mxu0
      %v2689 = vadd.f32 0.0, %v2688
      %v2690 = vpop.f32.mrb[0].mxu0
      %2691 = vmatprep.mubr.bf16.mxu0 0
      %2692 = vmatmul.mubr.bf16.gmra.mrb[0].mxu0 %v2543
      %v2693 = vpop.f32.mrb[0].mxu0
      %v2694 = vadd.f32 0.0, %v2693
      %v2695 = vpop.f32.mrb[0].mxu0
      %v2696 = vpop.f32.mrb[0].mxu0
      %v2697 = vadd.f32 0.0, %v2696
      %v2698 = vpop.f32.mrb[0].mxu0
      %2699 = vmatprep.mubr.bf16.mxu0 0
      %2700 = vmatmul.mubr.bf16.gmra.mrb[0].mxu0 %v2544
      %v2701 = vpop.f32.mrb[0].mxu0
      %v2702 = vadd.f32 0.0, %v2701
      %v2703 = vpop.f32.mrb[0].mxu0
      %v2704 = vpop.f32.mrb[0].mxu0
      %v2705 = vadd.f32 0.0, %v2704
      %v2706 = vpop.f32.mrb[0].mxu0
      %2707 = vmatprep.mubr.bf16.mxu0 0
      %2708 = vmatmul.mubr.bf16.gmra.mrb[0].mxu0 %v2545
      %v2709 = vpop.f32.mrb[0].mxu0
      %v2710 = vadd.f32 0.0, %v2709
      %v2711 = vpop.f32.mrb[0].mxu0
      %v2712 = vpop.f32.mrb[0].mxu0
      %v2713 = vadd.f32 0.0, %v2712
      %v2714 = vpop.f32.mrb[0].mxu0
      %2715 = vmatprep.mubr.bf16.mxu0 0
      %2716 = vmatmul.mubr.bf16.gmra.mrb[0].mxu0 %v2546
      %v2717 = vpop.f32.mrb[0].mxu0
      %v2718 = vadd.f32 0.0, %v2717
      %v2719 = vpop.f32.mrb[0].mxu0
      %v2720 = vpop.f32.mrb[0].mxu0
      %v2721 = vadd.f32 0.0, %v2720
      %v2722 = vpop.f32.mrb[0].mxu0
      %2723 = vmatprep.mubr.bf16.mxu0 0
      %2724 = vmatmul.mubr.bf16.gmra.mrb[0].mxu0 %v2547
      %v2725 = vpop.f32.mrb[0].mxu0
      %v2726 = vadd.f32 0.0, %v2725
      %v2727 = vpop.f32.mrb[0].mxu0
      %v2728 = vpop.f32.mrb[0].mxu0
      %v2729 = vadd.f32 0.0, %v2728
      %v2730 = vpop.f32.mrb[0].mxu0
      %2731 = vmatprep.mubr.bf16.mxu0 0
      %2732 = vmatmul.mubr.bf16.gmra.mrb[0].mxu0 %v2548
      %v2733 = vpop.f32.mrb[0].mxu0
      %v2734 = vadd.f32 0.0, %v2733
      %v2735 = vpop.f32.mrb[0].mxu0
      %v2736 = vpop.f32.mrb[0].mxu0
      %v2737 = vadd.f32 0.0, %v2736
      %v2738 = vpop.f32.mrb[0].mxu0
      %2739 = vmatprep.mubr.bf16.mxu0 0
      %2740 = vmatmul.mubr.bf16.gmra.mrb[0].mxu0 %v2549
      %v2741 = vpop.f32.mrb[0].mxu0
      %v2742 = vadd.f32 0.0, %v2741
      %v2743 = vpop.f32.mrb[0].mxu0
      %v2744 = vpop.f32.mrb[0].mxu0
      %v2745 = vadd.f32 0.0, %v2744
      %v2746 = vpop.f32.mrb[0].mxu0
      %2747 = vmatprep.mubr.bf16.mxu0 0
      %2748 = vmatmul.mubr.bf16.gmra.mrb[0].mxu0 %v2550
      %v2749 = vpop.f32.mrb[0].mxu0
      %v2750 = vadd.f32 0.0, %v2749
      %v2751 = vpop.f32.mrb[0].mxu0
      %v2752 = vpop.f32.mrb[0].mxu0
      %v2753 = vadd.f32 0.0, %v2752
      %v2754 = vpop.f32.mrb[0].mxu0
      %2755 = vmatprep.mubr.bf16.mxu0 0
      %2756 = vmatmul.mubr.bf16.gmra.mrb[0].mxu0 %v2551
      %v2757 = vpop.f32.mrb[0].mxu0
      %v2758 = vadd.f32 0.0, %v2757
      %v2759 = vpop.f32.mrb[0].mxu0
      %v2760 = vpop.f32.mrb[0].mxu0
      %v2761 = vadd.f32 0.0, %v2760
      %v2762 = vpop.f32.mrb[0].mxu0
      %2763 = vmatprep.mubr.bf16.mxu0 0
      %2764 = vmatmul.mubr.bf16.gmra.mrb[0].mxu0 %v2552
      %v2765 = vpop.f32.mrb[0].mxu0
      %v2766 = vadd.f32 0.0, %v2765
      %v2767 = vpop.f32.mrb[0].mxu0
      %v2768 = vpop.f32.mrb[0].mxu0
      %v2769 = vadd.f32 0.0, %v2768
      %v2770 = vpop.f32.mrb[0].mxu0
      %2771 = vmatprep.mubr.bf16.mxu0 0
      %2772 = vmatmul.mubr.bf16.gmra.mrb[0].mxu0 %v2553
      %v2773 = vpop.f32.mrb[0].mxu0
      %v2774 = vadd.f32 0.0, %v2773
      %v2775 = vpop.f32.mrb[0].mxu0
      %v2776 = vpop.f32.mrb[0].mxu0
      %v2777 = vadd.f32 0.0, %v2776
      %v2778 = vpop.f32.mrb[0].mxu0
      %2779 = vdwg.mxu0
      %v2780 = vadd.f32 %v2473, %v2654
      %v2781 = vadd.f32 %v2474, %v2657
      %v2782 = vadd.f32 %v2475, %v2662
      %v2783 = vadd.f32 %v2476, %v2665
      %v2784 = vadd.f32 %v2477, %v2670
      %v2785 = vadd.f32 %v2478, %v2673
      %v2786 = vadd.f32 %v2479, %v2678
      %v2787 = vadd.f32 %v2480, %v2681
      %v2788 = vadd.f32 %v2481, %v2686
      %v2789 = vadd.f32 %v2482, %v2689
      %v2790 = vadd.f32 %v2483, %v2694
      %v2791 = vadd.f32 %v2484, %v2697
      %v2792 = vadd.f32 %v2485, %v2702
      %v2793 = vadd.f32 %v2486, %v2705
      %v2794 = vadd.f32 %v2487, %v2710
      %v2795 = vadd.f32 %v2488, %v2713
      %v2796 = vadd.f32 %v2489, %v2718
      %v2797 = vadd.f32 %v2490, %v2721
      %v2798 = vadd.f32 %v2491, %v2726
      %v2799 = vadd.f32 %v2492, %v2729
      %v2800 = vadd.f32 %v2493, %v2734
      %v2801 = vadd.f32 %v2494, %v2737
      %v2802 = vadd.f32 %v2495, %v2742
      %v2803 = vadd.f32 %v2496, %v2745
      %v2804 = vadd.f32 %v2497, %v2750
      %v2805 = vadd.f32 %v2498, %v2753
      %v2806 = vadd.f32 %v2499, %v2758
      %v2807 = vadd.f32 %v2500, %v2761
      %v2808 = vadd.f32 %v2501, %v2766
      %v2809 = vadd.f32 %v2502, %v2769
      %v2810 = vadd.f32 %v2503, %v2774
      %v2811 = vadd.f32 %v2504, %v2777
      %v2812 = vld [vmem:[%s2505 + $0x1] sm:$0xff]
      %v2813 = vld [vmem:[%s2505 + $0x9] sm:$0xff]
      %v2814 = vld [vmem:[%s2505 + $0x19] sm:$0xff]
      %v2815 = vld [vmem:[%s2505 + $0x21] sm:$0xff]
      %v2816 = vld [vmem:[%s2505 + $0x31] sm:$0xff]
      %v2817 = vld [vmem:[%s2505 + $0x39] sm:$0xff]
      %v2818 = vld [vmem:[%s2505 + $0x49] sm:$0xff]
      %v2819 = vld [vmem:[%s2505 + $0x51] sm:$0xff]
      %v2820 = vld [vmem:[%s2505 + $0x61] sm:$0xff]
      %v2821 = vld [vmem:[%s2505 + $0x69] sm:$0xff]
      %v2822 = vld [vmem:[%s2505 + $0x79] sm:$0xff]
      %v2823 = vld [vmem:[%s2505 + $0x81] sm:$0xff]
      %v2824 = vld [vmem:[%s2505 + $0x91] sm:$0xff]
      %v2825 = vld [vmem:[%s2505 + $0x99] sm:$0xff]
      %v2826 = vld [vmem:[%s2505 + $0xa9] sm:$0xff]
      %v2827 = vld [vmem:[%s2505 + $0xb1] sm:$0xff]
      %v2828 = vld [vmem:[%s2505 + $0xc1] sm:$0xff]
      %v2829 = vld [vmem:[%s2505 + $0xc9] sm:$0xff]
      %v2830 = vld [vmem:[%s2505 + $0xd9] sm:$0xff]
      %v2831 = vld [vmem:[%s2505 + $0xe1] sm:$0xff]
      %v2832 = vld [vmem:[%s2505 + $0xf1] sm:$0xff]
      %v2833 = vld [vmem:[%s2505 + $0xf9] sm:$0xff]
      %v2834 = vld [vmem:[%s2505 + $0x109] sm:$0xff]
      %v2835 = vld [vmem:[%s2505 + $0x111] sm:$0xff]
      %v2836 = vld [vmem:[%s2505 + $0x121] sm:$0xff]
      %v2837 = vld [vmem:[%s2505 + $0x129] sm:$0xff]
      %v2838 = vld [vmem:[%s2505 + $0x139] sm:$0xff]
      %v2839 = vld [vmem:[%s2505 + $0x141] sm:$0xff]
      %v2840 = vld [vmem:[%s2505 + $0x151] sm:$0xff]
      %v2841 = vld [vmem:[%s2505 + $0x159] sm:$0xff]
      %v2842 = vld [vmem:[%s2505 + $0x169] sm:$0xff]
      %v2843 = vld [vmem:[%s2505 + $0x171] sm:$0xff]
      %v2844 = vpack.c.bf16 %v2813, %v2812
      %v2845 = vpack.c.bf16 %v2815, %v2814
      %v2846 = vpack.c.bf16 %v2817, %v2816
      %v2847 = vpack.c.bf16 %v2819, %v2818
      %v2848 = vpack.c.bf16 %v2821, %v2820
      %v2849 = vpack.c.bf16 %v2823, %v2822
      %v2850 = vpack.c.bf16 %v2825, %v2824
      %v2851 = vpack.c.bf16 %v2827, %v2826
      %v2852 = vpack.c.bf16 %v2829, %v2828
      %v2853 = vpack.c.bf16 %v2831, %v2830
      %v2854 = vpack.c.bf16 %v2833, %v2832
      %v2855 = vpack.c.bf16 %v2835, %v2834
      %v2856 = vpack.c.bf16 %v2837, %v2836
      %v2857 = vpack.c.bf16 %v2839, %v2838
      %v2858 = vpack.c.bf16 %v2841, %v2840
      %v2859 = vpack.c.bf16 %v2843, %v2842
      %s2860 = scalar_lea.vmem %s4, 448
      %v2861 = vld [vmem:[%s2860] sm:$0xf]
      %v2862 = vld [vmem:[%s2860 + $0x4] sm:$0xf]
      %v2863 = vld [vmem:[%s2860 + $0x8] sm:$0xf]
      %v2864 = vld [vmem:[%s2860 + $0xc] sm:$0xf]
      %v2865 = vld [vmem:[%s2860 + $0x10] sm:$0xf]
      %v2866 = vld [vmem:[%s2860 + $0x14] sm:$0xf]
      %v2867 = vld [vmem:[%s2860 + $0x18] sm:$0xf]
      %v2868 = vld [vmem:[%s2860 + $0x1c] sm:$0xf]
      %v2869 = vld [vmem:[%s2860 + $0x20] sm:$0xf]
      %v2870 = vld [vmem:[%s2860 + $0x24] sm:$0xf]
      %v2871 = vld [vmem:[%s2860 + $0x28] sm:$0xf]
      %v2872 = vld [vmem:[%s2860 + $0x2c] sm:$0xf]
      %v2873 = vld [vmem:[%s2860 + $0x30] sm:$0xf]
      %v2874 = vld [vmem:[%s2860 + $0x34] sm:$0xf]
      %v2875 = vld [vmem:[%s2860 + $0x38] sm:$0xf]
      %v2876 = vld [vmem:[%s2860 + $0x3c] sm:$0xf]
      %v2893 = vunpack.c.l.b16 %v2861
      %v2894 = vunpack.c.l.b16 %v2862
      %v2895 = vunpack.c.l.b16 %v2863
      %v2896 = vunpack.c.l.b16 %v2864
      %v2897 = vunpack.c.l.b16 %v2865
      %v2898 = vunpack.c.l.b16 %v2866
      %v2899 = vunpack.c.l.b16 %v2867
      %v2900 = vunpack.c.l.b16 %v2868
      %v2901 = vunpack.c.l.b16 %v2869
      %v2902 = vunpack.c.l.b16 %v2870
      %v2903 = vunpack.c.l.b16 %v2871
      %v2904 = vunpack.c.l.b16 %v2872
      %v2905 = vunpack.c.l.b16 %v2873
      %v2906 = vunpack.c.l.b16 %v2874
      %v2907 = vunpack.c.l.b16 %v2875
      %v2908 = vunpack.c.l.b16 %v2876
      %v2909 = vpack.c.b16 %v2894, %v2893
      %v2910 = vpack.c.b16 %v2896, %v2895
      %v2911 = vpack.c.b16 %v2898, %v2897
      %v2912 = vpack.c.b16 %v2900, %v2899
      %v2913 = vpack.c.b16 %v2902, %v2901
      %v2914 = vpack.c.b16 %v2904, %v2903
      %v2915 = vpack.c.b16 %v2906, %v2905
      %v2916 = vpack.c.b16 %v2908, %v2907
      %2925 = vmatprep.subr.bf16.mxu0 0
      %2926 = vmatpush1.bf16.msra.mxu0 %v2909
      %2927 = vmatprep.subr.bf16.mxu0 0
      %2928 = vmatpush1.bf16.msra.mxu0 %v2910
      %2929 = vmatprep.subr.bf16.mxu0 0
      %2930 = vmatpush1.bf16.msra.mxu0 %v2911
      %2931 = vmatprep.subr.bf16.mxu0 0
      %2932 = vmatpush1.bf16.msra.mxu0 %v2912
      %2933 = vmatprep.subr.bf16.mxu0 0
      %2934 = vmatpush1.bf16.msra.mxu0 %v2913
      %2935 = vmatprep.subr.bf16.mxu0 0
      %2936 = vmatpush1.bf16.msra.mxu0 %v2914
      %2937 = vmatprep.subr.bf16.mxu0 0
      %2938 = vmatpush1.bf16.msra.mxu0 %v2915
      %2939 = vmatprep.subr.bf16.mxu0 0
      %2940 = vmatpush1.bf16.msra.mxu0 %v2916
      %2941 = vmatprep.subr.bf16.mxu0 0
      %2942 = vmatpush1.bf16.msra.mxu0 0
      %2943 = vmatprep.subr.bf16.mxu0 0
      %2944 = vmatpush1.bf16.msra.mxu0 0
      %2945 = vmatprep.subr.bf16.mxu0 0
      %2946 = vmatpush1.bf16.msra.mxu0 0
      %2947 = vmatprep.subr.bf16.mxu0 0
      %2948 = vmatpush1.bf16.msra.mxu0 0
      %2949 = vmatprep.subr.bf16.mxu0 0
      %2950 = vmatpush1.bf16.msra.mxu0 0
      %2951 = vmatprep.subr.bf16.mxu0 0
      %2952 = vmatpush1.bf16.msra.mxu0 0
      %2953 = vmatprep.subr.bf16.mxu0 0
      %2954 = vmatpush1.bf16.msra.mxu0 0
      %2955 = vmatprep.subr.bf16.mxu0 0
      %2956 = vmatpush1.bf16.msra.mxu0 0
      %2957 = vmatprep.mubr.bf16.mxu0 0
      %2958 = vmatmul.mubr.bf16.gmra.mrb[0].mxu0 %v2844
      %v2959 = vpop.f32.mrb[0].mxu0
      %v2960 = vadd.f32 0.0, %v2959
      %v2961 = vpop.f32.mrb[0].mxu0
      %v2962 = vpop.f32.mrb[0].mxu0
      %v2963 = vadd.f32 0.0, %v2962
      %v2964 = vpop.f32.mrb[0].mxu0
      %2965 = vmatprep.mubr.bf16.mxu0 0
      %2966 = vmatmul.mubr.bf16.gmra.mrb[0].mxu0 %v2845
      %v2967 = vpop.f32.mrb[0].mxu0
      %v2968 = vadd.f32 0.0, %v2967
      %v2969 = vpop.f32.mrb[0].mxu0
      %v2970 = vpop.f32.mrb[0].mxu0
      %v2971 = vadd.f32 0.0, %v2970
      %v2972 = vpop.f32.mrb[0].mxu0
      %2973 = vmatprep.mubr.bf16.mxu0 0
      %2974 = vmatmul.mubr.bf16.gmra.mrb[0].mxu0 %v2846
      %v2975 = vpop.f32.mrb[0].mxu0
      %v2976 = vadd.f32 0.0, %v2975
      %v2977 = vpop.f32.mrb[0].mxu0
      %v2978 = vpop.f32.mrb[0].mxu0
      %v2979 = vadd.f32 0.0, %v2978
      %v2980 = vpop.f32.mrb[0].mxu0
      %2981 = vmatprep.mubr.bf16.mxu0 0
      %2982 = vmatmul.mubr.bf16.gmra.mrb[0].mxu0 %v2847
      %v2983 = vpop.f32.mrb[0].mxu0
      %v2984 = vadd.f32 0.0, %v2983
      %v2985 = vpop.f32.mrb[0].mxu0
      %v2986 = vpop.f32.mrb[0].mxu0
      %v2987 = vadd.f32 0.0, %v2986
      %v2988 = vpop.f32.mrb[0].mxu0
      %2989 = vmatprep.mubr.bf16.mxu0 0
      %2990 = vmatmul.mubr.bf16.gmra.mrb[0].mxu0 %v2848
      %v2991 = vpop.f32.mrb[0].mxu0
      %v2992 = vadd.f32 0.0, %v2991
      %v2993 = vpop.f32.mrb[0].mxu0
      %v2994 = vpop.f32.mrb[0].mxu0
      %v2995 = vadd.f32 0.0, %v2994
      %v2996 = vpop.f32.mrb[0].mxu0
      %2997 = vmatprep.mubr.bf16.mxu0 0
      %2998 = vmatmul.mubr.bf16.gmra.mrb[0].mxu0 %v2849
      %v2999 = vpop.f32.mrb[0].mxu0
      %v3000 = vadd.f32 0.0, %v2999
      %v3001 = vpop.f32.mrb[0].mxu0
      %v3002 = vpop.f32.mrb[0].mxu0
      %v3003 = vadd.f32 0.0, %v3002
      %v3004 = vpop.f32.mrb[0].mxu0
      %3005 = vmatprep.mubr.bf16.mxu0 0
      %3006 = vmatmul.mubr.bf16.gmra.mrb[0].mxu0 %v2850
      %v3007 = vpop.f32.mrb[0].mxu0
      %v3008 = vadd.f32 0.0, %v3007
      %v3009 = vpop.f32.mrb[0].mxu0
      %v3010 = vpop.f32.mrb[0].mxu0
      %v3011 = vadd.f32 0.0, %v3010
      %v3012 = vpop.f32.mrb[0].mxu0
      %3013 = vmatprep.mubr.bf16.mxu0 0
      %3014 = vmatmul.mubr.bf16.gmra.mrb[0].mxu0 %v2851
      %v3015 = vpop.f32.mrb[0].mxu0
      %v3016 = vadd.f32 0.0, %v3015
      %v3017 = vpop.f32.mrb[0].mxu0
      %v3018 = vpop.f32.mrb[0].mxu0
      %v3019 = vadd.f32 0.0, %v3018
      %v3020 = vpop.f32.mrb[0].mxu0
      %3021 = vmatprep.mubr.bf16.mxu0 0
      %3022 = vmatmul.mubr.bf16.gmra.mrb[0].mxu0 %v2852
      %v3023 = vpop.f32.mrb[0].mxu0
      %v3024 = vadd.f32 0.0, %v3023
      %v3025 = vpop.f32.mrb[0].mxu0
      %v3026 = vpop.f32.mrb[0].mxu0
      %v3027 = vadd.f32 0.0, %v3026
      %v3028 = vpop.f32.mrb[0].mxu0
      %3029 = vmatprep.mubr.bf16.mxu0 0
      %3030 = vmatmul.mubr.bf16.gmra.mrb[0].mxu0 %v2853
      %v3031 = vpop.f32.mrb[0].mxu0
      %v3032 = vadd.f32 0.0, %v3031
      %v3033 = vpop.f32.mrb[0].mxu0
      %v3034 = vpop.f32.mrb[0].mxu0
      %v3035 = vadd.f32 0.0, %v3034
      %v3036 = vpop.f32.mrb[0].mxu0
      %3037 = vmatprep.mubr.bf16.mxu0 0
      %3038 = vmatmul.mubr.bf16.gmra.mrb[0].mxu0 %v2854
      %v3039 = vpop.f32.mrb[0].mxu0
      %v3040 = vadd.f32 0.0, %v3039
      %v3041 = vpop.f32.mrb[0].mxu0
      %v3042 = vpop.f32.mrb[0].mxu0
      %v3043 = vadd.f32 0.0, %v3042
      %v3044 = vpop.f32.mrb[0].mxu0
      %3045 = vmatprep.mubr.bf16.mxu0 0
      %3046 = vmatmul.mubr.bf16.gmra.mrb[0].mxu0 %v2855
      %v3047 = vpop.f32.mrb[0].mxu0
      %v3048 = vadd.f32 0.0, %v3047
      %v3049 = vpop.f32.mrb[0].mxu0
      %v3050 = vpop.f32.mrb[0].mxu0
      %v3051 = vadd.f32 0.0, %v3050
      %v3052 = vpop.f32.mrb[0].mxu0
      %3053 = vmatprep.mubr.bf16.mxu0 0
      %3054 = vmatmul.mubr.bf16.gmra.mrb[0].mxu0 %v2856
      %v3055 = vpop.f32.mrb[0].mxu0
      %v3056 = vadd.f32 0.0, %v3055
      %v3057 = vpop.f32.mrb[0].mxu0
      %v3058 = vpop.f32.mrb[0].mxu0
      %v3059 = vadd.f32 0.0, %v3058
      %v3060 = vpop.f32.mrb[0].mxu0
      %3061 = vmatprep.mubr.bf16.mxu0 0
      %3062 = vmatmul.mubr.bf16.gmra.mrb[0].mxu0 %v2857
      %v3063 = vpop.f32.mrb[0].mxu0
      %v3064 = vadd.f32 0.0, %v3063
      %v3065 = vpop.f32.mrb[0].mxu0
      %v3066 = vpop.f32.mrb[0].mxu0
      %v3067 = vadd.f32 0.0, %v3066
      %v3068 = vpop.f32.mrb[0].mxu0
      %3069 = vmatprep.mubr.bf16.mxu0 0
      %3070 = vmatmul.mubr.bf16.gmra.mrb[0].mxu0 %v2858
      %v3071 = vpop.f32.mrb[0].mxu0
      %v3072 = vadd.f32 0.0, %v3071
      %v3073 = vpop.f32.mrb[0].mxu0
      %v3074 = vpop.f32.mrb[0].mxu0
      %v3075 = vadd.f32 0.0, %v3074
      %v3076 = vpop.f32.mrb[0].mxu0
      %3077 = vmatprep.mubr.bf16.mxu0 0
      %3078 = vmatmul.mubr.bf16.gmra.mrb[0].mxu0 %v2859
      %v3079 = vpop.f32.mrb[0].mxu0
      %v3080 = vadd.f32 0.0, %v3079
      %v3081 = vpop.f32.mrb[0].mxu0
      %v3082 = vpop.f32.mrb[0].mxu0
      %v3083 = vadd.f32 0.0, %v3082
      %v3084 = vpop.f32.mrb[0].mxu0
      %3085 = vdwg.mxu0
      %v3086 = vadd.f32 %v2780, %v2960
      %v3087 = vadd.f32 %v2781, %v2963
      %v3088 = vadd.f32 %v2782, %v2968
      %v3089 = vadd.f32 %v2783, %v2971
      %v3090 = vadd.f32 %v2784, %v2976
      %v3091 = vadd.f32 %v2785, %v2979
      %v3092 = vadd.f32 %v2786, %v2984
      %v3093 = vadd.f32 %v2787, %v2987
      %v3094 = vadd.f32 %v2788, %v2992
      %v3095 = vadd.f32 %v2789, %v2995
      %v3096 = vadd.f32 %v2790, %v3000
      %v3097 = vadd.f32 %v2791, %v3003
      %v3098 = vadd.f32 %v2792, %v3008
      %v3099 = vadd.f32 %v2793, %v3011
      %v3100 = vadd.f32 %v2794, %v3016
      %v3101 = vadd.f32 %v2795, %v3019
      %v3102 = vadd.f32 %v2796, %v3024
      %v3103 = vadd.f32 %v2797, %v3027
      %v3104 = vadd.f32 %v2798, %v3032
      %v3105 = vadd.f32 %v2799, %v3035
      %v3106 = vadd.f32 %v2800, %v3040
      %v3107 = vadd.f32 %v2801, %v3043
      %v3108 = vadd.f32 %v2802, %v3048
      %v3109 = vadd.f32 %v2803, %v3051
      %v3110 = vadd.f32 %v2804, %v3056
      %v3111 = vadd.f32 %v2805, %v3059
      %v3112 = vadd.f32 %v2806, %v3064
      %v3113 = vadd.f32 %v2807, %v3067
      %v3114 = vadd.f32 %v2808, %v3072
      %v3115 = vadd.f32 %v2809, %v3075
      %v3116 = vadd.f32 %v2810, %v3080
      %v3117 = vadd.f32 %v2811, %v3083
      %v3118 = vld [vmem:[%s2505 + $0x2] sm:$0xff]
      %v3119 = vld [vmem:[%s2505 + $0xa] sm:$0xff]
      %v3120 = vld [vmem:[%s2505 + $0x1a] sm:$0xff]
      %v3121 = vld [vmem:[%s2505 + $0x22] sm:$0xff]
      %v3122 = vld [vmem:[%s2505 + $0x32] sm:$0xff]
      %v3123 = vld [vmem:[%s2505 + $0x3a] sm:$0xff]
      %v3124 = vld [vmem:[%s2505 + $0x4a] sm:$0xff]
      %v3125 = vld [vmem:[%s2505 + $0x52] sm:$0xff]
      %v3126 = vld [vmem:[%s2505 + $0x62] sm:$0xff]
      %v3127 = vld [vmem:[%s2505 + $0x6a] sm:$0xff]
      %v3128 = vld [vmem:[%s2505 + $0x7a] sm:$0xff]
      %v3129 = vld [vmem:[%s2505 + $0x82] sm:$0xff]
      %v3130 = vld [vmem:[%s2505 + $0x92] sm:$0xff]
      %v3131 = vld [vmem:[%s2505 + $0x9a] sm:$0xff]
      %v3132 = vld [vmem:[%s2505 + $0xaa] sm:$0xff]
      %v3133 = vld [vmem:[%s2505 + $0xb2] sm:$0xff]
      %v3134 = vld [vmem:[%s2505 + $0xc2] sm:$0xff]
      %v3135 = vld [vmem:[%s2505 + $0xca] sm:$0xff]
      %v3136 = vld [vmem:[%s2505 + $0xda] sm:$0xff]
      %v3137 = vld [vmem:[%s2505 + $0xe2] sm:$0xff]
      %v3138 = vld [vmem:[%s2505 + $0xf2] sm:$0xff]
      %v3139 = vld [vmem:[%s2505 + $0xfa] sm:$0xff]
      %v3140 = vld [vmem:[%s2505 + $0x10a] sm:$0xff]
      %v3141 = vld [vmem:[%s2505 + $0x112] sm:$0xff]
      %v3142 = vld [vmem:[%s2505 + $0x122] sm:$0xff]
      %v3143 = vld [vmem:[%s2505 + $0x12a] sm:$0xff]
      %v3144 = vld [vmem:[%s2505 + $0x13a] sm:$0xff]
      %v3145 = vld [vmem:[%s2505 + $0x142] sm:$0xff]
      %v3146 = vld [vmem:[%s2505 + $0x152] sm:$0xff]
      %v3147 = vld [vmem:[%s2505 + $0x15a] sm:$0xff]
      %v3148 = vld [vmem:[%s2505 + $0x16a] sm:$0xff]
      %v3149 = vld [vmem:[%s2505 + $0x172] sm:$0xff]
      %v3150 = vpack.c.bf16 %v3119, %v3118
      %v3151 = vpack.c.bf16 %v3121, %v3120
      %v3152 = vpack.c.bf16 %v3123, %v3122
      %v3153 = vpack.c.bf16 %v3125, %v3124
      %v3154 = vpack.c.bf16 %v3127, %v3126
      %v3155 = vpack.c.bf16 %v3129, %v3128
      %v3156 = vpack.c.bf16 %v3131, %v3130
      %v3157 = vpack.c.bf16 %v3133, %v3132
      %v3158 = vpack.c.bf16 %v3135, %v3134
      %v3159 = vpack.c.bf16 %v3137, %v3136
      %v3160 = vpack.c.bf16 %v3139, %v3138
      %v3161 = vpack.c.bf16 %v3141, %v3140
      %v3162 = vpack.c.bf16 %v3143, %v3142
      %v3163 = vpack.c.bf16 %v3145, %v3144
      %v3164 = vpack.c.bf16 %v3147, %v3146
      %v3165 = vpack.c.bf16 %v3149, %v3148
      %s3166 = scalar_lea.vmem %s4, 512
      %v3167 = vld [vmem:[%s3166] sm:$0xf]
      %v3168 = vld [vmem:[%s3166 + $0x4] sm:$0xf]
      %v3169 = vld [vmem:[%s3166 + $0x8] sm:$0xf]
      %v3170 = vld [vmem:[%s3166 + $0xc] sm:$0xf]
      %v3171 = vld [vmem:[%s3166 + $0x10] sm:$0xf]
      %v3172 = vld [vmem:[%s3166 + $0x14] sm:$0xf]
      %v3173 = vld [vmem:[%s3166 + $0x18] sm:$0xf]
      %v3174 = vld [vmem:[%s3166 + $0x1c] sm:$0xf]
      %v3175 = vld [vmem:[%s3166 + $0x20] sm:$0xf]
      %v3176 = vld [vmem:[%s3166 + $0x24] sm:$0xf]
      %v3177 = vld [vmem:[%s3166 + $0x28] sm:$0xf]
      %v3178 = vld [vmem:[%s3166 + $0x2c] sm:$0xf]
      %v3179 = vld [vmem:[%s3166 + $0x30] sm:$0xf]
      %v3180 = vld [vmem:[%s3166 + $0x34] sm:$0xf]
      %v3181 = vld [vmem:[%s3166 + $0x38] sm:$0xf]
      %v3182 = vld [vmem:[%s3166 + $0x3c] sm:$0xf]
      %v3199 = vunpack.c.l.b16 %v3167
      %v3200 = vunpack.c.l.b16 %v3168
      %v3201 = vunpack.c.l.b16 %v3169
      %v3202 = vunpack.c.l.b16 %v3170
      %v3203 = vunpack.c.l.b16 %v3171
      %v3204 = vunpack.c.l.b16 %v3172
      %v3205 = vunpack.c.l.b16 %v3173
      %v3206 = vunpack.c.l.b16 %v3174
      %v3207 = vunpack.c.l.b16 %v3175
      %v3208 = vunpack.c.l.b16 %v3176
      %v3209 = vunpack.c.l.b16 %v3177
      %v3210 = vunpack.c.l.b16 %v3178
      %v3211 = vunpack.c.l.b16 %v3179
      %v3212 = vunpack.c.l.b16 %v3180
      %v3213 = vunpack.c.l.b16 %v3181
      %v3214 = vunpack.c.l.b16 %v3182
      %v3215 = vpack.c.b16 %v3200, %v3199
      %v3216 = vpack.c.b16 %v3202, %v3201
      %v3217 = vpack.c.b16 %v3204, %v3203
      %v3218 = vpack.c.b16 %v3206, %v3205
      %v3219 = vpack.c.b16 %v3208, %v3207
      %v3220 = vpack.c.b16 %v3210, %v3209
      %v3221 = vpack.c.b16 %v3212, %v3211
      %v3222 = vpack.c.b16 %v3214, %v3213
      %3231 = vmatprep.subr.bf16.mxu0 0
      %3232 = vmatpush1.bf16.msra.mxu0 %v3215
      %3233 = vmatprep.subr.bf16.mxu0 0
      %3234 = vmatpush1.bf16.msra.mxu0 %v3216
      %3235 = vmatprep.subr.bf16.mxu0 0
      %3236 = vmatpush1.bf16.msra.mxu0 %v3217
      %3237 = vmatprep.subr.bf16.mxu0 0
      %3238 = vmatpush1.bf16.msra.mxu0 %v3218
      %3239 = vmatprep.subr.bf16.mxu0 0
      %3240 = vmatpush1.bf16.msra.mxu0 %v3219
      %3241 = vmatprep.subr.bf16.mxu0 0
      %3242 = vmatpush1.bf16.msra.mxu0 %v3220
      %3243 = vmatprep.subr.bf16.mxu0 0
      %3244 = vmatpush1.bf16.msra.mxu0 %v3221
      %3245 = vmatprep.subr.bf16.mxu0 0
      %3246 = vmatpush1.bf16.msra.mxu0 %v3222
      %3247 = vmatprep.subr.bf16.mxu0 0
      %3248 = vmatpush1.bf16.msra.mxu0 0
      %3249 = vmatprep.subr.bf16.mxu0 0
      %3250 = vmatpush1.bf16.msra.mxu0 0
      %3251 = vmatprep.subr.bf16.mxu0 0
      %3252 = vmatpush1.bf16.msra.mxu0 0
      %3253 = vmatprep.subr.bf16.mxu0 0
      %3254 = vmatpush1.bf16.msra.mxu0 0
      %3255 = vmatprep.subr.bf16.mxu0 0
      %3256 = vmatpush1.bf16.msra.mxu0 0
      %3257 = vmatprep.subr.bf16.mxu0 0
      %3258 = vmatpush1.bf16.msra.mxu0 0
      %3259 = vmatprep.subr.bf16.mxu0 0
      %3260 = vmatpush1.bf16.msra.mxu0 0
      %3261 = vmatprep.subr.bf16.mxu0 0
      %3262 = vmatpush1.bf16.msra.mxu0 0
      %3263 = vmatprep.mubr.bf16.mxu0 0
      %3264 = vmatmul.mubr.bf16.gmra.mrb[0].mxu0 %v3150
      %v3265 = vpop.f32.mrb[0].mxu0
      %v3266 = vadd.f32 0.0, %v3265
      %v3267 = vpop.f32.mrb[0].mxu0
      %v3268 = vpop.f32.mrb[0].mxu0
      %v3269 = vadd.f32 0.0, %v3268
      %v3270 = vpop.f32.mrb[0].mxu0
      %3271 = vmatprep.mubr.bf16.mxu0 0
      %3272 = vmatmul.mubr.bf16.gmra.mrb[0].mxu0 %v3151
      %v3273 = vpop.f32.mrb[0].mxu0
      %v3274 = vadd.f32 0.0, %v3273
      %v3275 = vpop.f32.mrb[0].mxu0
      %v3276 = vpop.f32.mrb[0].mxu0
      %v3277 = vadd.f32 0.0, %v3276
      %v3278 = vpop.f32.mrb[0].mxu0
      %3279 = vmatprep.mubr.bf16.mxu0 0
      %3280 = vmatmul.mubr.bf16.gmra.mrb[0].mxu0 %v3152
      %v3281 = vpop.f32.mrb[0].mxu0
      %v3282 = vadd.f32 0.0, %v3281
      %v3283 = vpop.f32.mrb[0].mxu0
      %v3284 = vpop.f32.mrb[0].mxu0
      %v3285 = vadd.f32 0.0, %v3284
      %v3286 = vpop.f32.mrb[0].mxu0
      %3287 = vmatprep.mubr.bf16.mxu0 0
      %3288 = vmatmul.mubr.bf16.gmra.mrb[0].mxu0 %v3153
      %v3289 = vpop.f32.mrb[0].mxu0
      %v3290 = vadd.f32 0.0, %v3289
      %v3291 = vpop.f32.mrb[0].mxu0
      %v3292 = vpop.f32.mrb[0].mxu0
      %v3293 = vadd.f32 0.0, %v3292
      %v3294 = vpop.f32.mrb[0].mxu0
      %3295 = vmatprep.mubr.bf16.mxu0 0
      %3296 = vmatmul.mubr.bf16.gmra.mrb[0].mxu0 %v3154
      %v3297 = vpop.f32.mrb[0].mxu0
      %v3298 = vadd.f32 0.0, %v3297
      %v3299 = vpop.f32.mrb[0].mxu0
      %v3300 = vpop.f32.mrb[0].mxu0
      %v3301 = vadd.f32 0.0, %v3300
      %v3302 = vpop.f32.mrb[0].mxu0
      %3303 = vmatprep.mubr.bf16.mxu0 0
      %3304 = vmatmul.mubr.bf16.gmra.mrb[0].mxu0 %v3155
      %v3305 = vpop.f32.mrb[0].mxu0
      %v3306 = vadd.f32 0.0, %v3305
      %v3307 = vpop.f32.mrb[0].mxu0
      %v3308 = vpop.f32.mrb[0].mxu0
      %v3309 = vadd.f32 0.0, %v3308
      %v3310 = vpop.f32.mrb[0].mxu0
      %3311 = vmatprep.mubr.bf16.mxu0 0
      %3312 = vmatmul.mubr.bf16.gmra.mrb[0].mxu0 %v3156
      %v3313 = vpop.f32.mrb[0].mxu0
      %v3314 = vadd.f32 0.0, %v3313
      %v3315 = vpop.f32.mrb[0].mxu0
      %v3316 = vpop.f32.mrb[0].mxu0
      %v3317 = vadd.f32 0.0, %v3316
      %v3318 = vpop.f32.mrb[0].mxu0
      %3319 = vmatprep.mubr.bf16.mxu0 0
      %3320 = vmatmul.mubr.bf16.gmra.mrb[0].mxu0 %v3157
      %v3321 = vpop.f32.mrb[0].mxu0
      %v3322 = vadd.f32 0.0, %v3321
      %v3323 = vpop.f32.mrb[0].mxu0
      %v3324 = vpop.f32.mrb[0].mxu0
      %v3325 = vadd.f32 0.0, %v3324
      %v3326 = vpop.f32.mrb[0].mxu0
      %3327 = vmatprep.mubr.bf16.mxu0 0
      %3328 = vmatmul.mubr.bf16.gmra.mrb[0].mxu0 %v3158
      %v3329 = vpop.f32.mrb[0].mxu0
      %v3330 = vadd.f32 0.0, %v3329
      %v3331 = vpop.f32.mrb[0].mxu0
      %v3332 = vpop.f32.mrb[0].mxu0
      %v3333 = vadd.f32 0.0, %v3332
      %v3334 = vpop.f32.mrb[0].mxu0
      %3335 = vmatprep.mubr.bf16.mxu0 0
      %3336 = vmatmul.mubr.bf16.gmra.mrb[0].mxu0 %v3159
      %v3337 = vpop.f32.mrb[0].mxu0
      %v3338 = vadd.f32 0.0, %v3337
      %v3339 = vpop.f32.mrb[0].mxu0
      %v3340 = vpop.f32.mrb[0].mxu0
      %v3341 = vadd.f32 0.0, %v3340
      %v3342 = vpop.f32.mrb[0].mxu0
      %3343 = vmatprep.mubr.bf16.mxu0 0
      %3344 = vmatmul.mubr.bf16.gmra.mrb[0].mxu0 %v3160
      %v3345 = vpop.f32.mrb[0].mxu0
      %v3346 = vadd.f32 0.0, %v3345
      %v3347 = vpop.f32.mrb[0].mxu0
      %v3348 = vpop.f32.mrb[0].mxu0
      %v3349 = vadd.f32 0.0, %v3348
      %v3350 = vpop.f32.mrb[0].mxu0
      %3351 = vmatprep.mubr.bf16.mxu0 0
      %3352 = vmatmul.mubr.bf16.gmra.mrb[0].mxu0 %v3161
      %v3353 = vpop.f32.mrb[0].mxu0
      %v3354 = vadd.f32 0.0, %v3353
      %v3355 = vpop.f32.mrb[0].mxu0
      %v3356 = vpop.f32.mrb[0].mxu0
      %v3357 = vadd.f32 0.0, %v3356
      %v3358 = vpop.f32.mrb[0].mxu0
      %3359 = vmatprep.mubr.bf16.mxu0 0
      %3360 = vmatmul.mubr.bf16.gmra.mrb[0].mxu0 %v3162
      %v3361 = vpop.f32.mrb[0].mxu0
      %v3362 = vadd.f32 0.0, %v3361
      %v3363 = vpop.f32.mrb[0].mxu0
      %v3364 = vpop.f32.mrb[0].mxu0
      %v3365 = vadd.f32 0.0, %v3364
      %v3366 = vpop.f32.mrb[0].mxu0
      %3367 = vmatprep.mubr.bf16.mxu0 0
      %3368 = vmatmul.mubr.bf16.gmra.mrb[0].mxu0 %v3163
      %v3369 = vpop.f32.mrb[0].mxu0
      %v3370 = vadd.f32 0.0, %v3369
      %v3371 = vpop.f32.mrb[0].mxu0
      %v3372 = vpop.f32.mrb[0].mxu0
      %v3373 = vadd.f32 0.0, %v3372
      %v3374 = vpop.f32.mrb[0].mxu0
      %3375 = vmatprep.mubr.bf16.mxu0 0
      %3376 = vmatmul.mubr.bf16.gmra.mrb[0].mxu0 %v3164
      %v3377 = vpop.f32.mrb[0].mxu0
      %v3378 = vadd.f32 0.0, %v3377
      %v3379 = vpop.f32.mrb[0].mxu0
      %v3380 = vpop.f32.mrb[0].mxu0
      %v3381 = vadd.f32 0.0, %v3380
      %v3382 = vpop.f32.mrb[0].mxu0
      %3383 = vmatprep.mubr.bf16.mxu0 0
      %3384 = vmatmul.mubr.bf16.gmra.mrb[0].mxu0 %v3165
      %v3385 = vpop.f32.mrb[0].mxu0
      %v3386 = vadd.f32 0.0, %v3385
      %v3387 = vpop.f32.mrb[0].mxu0
      %v3388 = vpop.f32.mrb[0].mxu0
      %v3389 = vadd.f32 0.0, %v3388
      %v3390 = vpop.f32.mrb[0].mxu0
      %3391 = vdwg.mxu0
      %v3392 = vadd.f32 %v3086, %v3266
      %v3393 = vadd.f32 %v3087, %v3269
      %v3394 = vadd.f32 %v3088, %v3274
      %v3395 = vadd.f32 %v3089, %v3277
      %v3396 = vadd.f32 %v3090, %v3282
      %v3397 = vadd.f32 %v3091, %v3285
      %v3398 = vadd.f32 %v3092, %v3290
      %v3399 = vadd.f32 %v3093, %v3293
      %v3400 = vadd.f32 %v3094, %v3298
      %v3401 = vadd.f32 %v3095, %v3301
      %v3402 = vadd.f32 %v3096, %v3306
      %v3403 = vadd.f32 %v3097, %v3309
      %v3404 = vadd.f32 %v3098, %v3314
      %v3405 = vadd.f32 %v3099, %v3317
      %v3406 = vadd.f32 %v3100, %v3322
      %v3407 = vadd.f32 %v3101, %v3325
      %v3408 = vadd.f32 %v3102, %v3330
      %v3409 = vadd.f32 %v3103, %v3333
      %v3410 = vadd.f32 %v3104, %v3338
      %v3411 = vadd.f32 %v3105, %v3341
      %v3412 = vadd.f32 %v3106, %v3346
      %v3413 = vadd.f32 %v3107, %v3349
      %v3414 = vadd.f32 %v3108, %v3354
      %v3415 = vadd.f32 %v3109, %v3357
      %v3416 = vadd.f32 %v3110, %v3362
      %v3417 = vadd.f32 %v3111, %v3365
      %v3418 = vadd.f32 %v3112, %v3370
      %v3419 = vadd.f32 %v3113, %v3373
      %v3420 = vadd.f32 %v3114, %v3378
      %v3421 = vadd.f32 %v3115, %v3381
      %v3422 = vadd.f32 %v3116, %v3386
      %v3423 = vadd.f32 %v3117, %v3389
      %3424 = vst [vmem:[%s258] sm:$0xff] %v3392
      %3425 = vst [vmem:[%s258 + $0x8] sm:$0xff] %v3393
      %3426 = vst [vmem:[%s258 + $0x10] sm:$0xff] %v3394
      %3427 = vst [vmem:[%s258 + $0x18] sm:$0xff] %v3395
      %3428 = vst [vmem:[%s258 + $0x20] sm:$0xff] %v3396
      %3429 = vst [vmem:[%s258 + $0x28] sm:$0xff] %v3397
      %3430 = vst [vmem:[%s258 + $0x30] sm:$0xff] %v3398
      %3431 = vst [vmem:[%s258 + $0x38] sm:$0xff] %v3399
      %3432 = vst [vmem:[%s258 + $0x40] sm:$0xff] %v3400
      %3433 = vst [vmem:[%s258 + $0x48] sm:$0xff] %v3401
      %3434 = vst [vmem:[%s258 + $0x50] sm:$0xff] %v3402
      %3435 = vst [vmem:[%s258 + $0x58] sm:$0xff] %v3403
      %3436 = vst [vmem:[%s258 + $0x60] sm:$0xff] %v3404
      %3437 = vst [vmem:[%s258 + $0x68] sm:$0xff] %v3405
      %3438 = vst [vmem:[%s258 + $0x70] sm:$0xff] %v3406
      %3439 = vst [vmem:[%s258 + $0x78] sm:$0xff] %v3407
      %3440 = vst [vmem:[%s258 + $0x80] sm:$0xff] %v3408
      %3441 = vst [vmem:[%s258 + $0x88] sm:$0xff] %v3409
      %3442 = vst [vmem:[%s258 + $0x90] sm:$0xff] %v3410
      %3443 = vst [vmem:[%s258 + $0x98] sm:$0xff] %v3411
      %3444 = vst [vmem:[%s258 + $0xa0] sm:$0xff] %v3412
      %3445 = vst [vmem:[%s258 + $0xa8] sm:$0xff] %v3413
      %3446 = vst [vmem:[%s258 + $0xb0] sm:$0xff] %v3414
      %3447 = vst [vmem:[%s258 + $0xb8] sm:$0xff] %v3415
      %3448 = vst [vmem:[%s258 + $0xc0] sm:$0xff] %v3416
      %3449 = vst [vmem:[%s258 + $0xc8] sm:$0xff] %v3417
      %3450 = vst [vmem:[%s258 + $0xd0] sm:$0xff] %v3418
      %3451 = vst [vmem:[%s258 + $0xd8] sm:$0xff] %v3419
      %3452 = vst [vmem:[%s258 + $0xe0] sm:$0xff] %v3420
      %3453 = vst [vmem:[%s258 + $0xe8] sm:$0xff] %v3421
      %3454 = vst [vmem:[%s258 + $0xf0] sm:$0xff] %v3422
      %3455 = vst [vmem:[%s258 + $0xf8] sm:$0xff] %v3423
      %v3456 = vadd.f32 %v3392, %v3393
      %v3457 = vadd.f32 %v3456, %v3394
      %v3458 = vadd.f32 %v3457, %v3395
      %v3459 = vadd.f32 %v3458, %v3396
      %v3460 = vadd.f32 %v3459, %v3397
      %v3461 = vadd.f32 %v3460, %v3398
      %v3462 = vadd.f32 %v3461, %v3399
      %v3463 = vadd.f32 %v3462, %v3400
      %v3464 = vadd.f32 %v3463, %v3401
      %v3465 = vadd.f32 %v3464, %v3402
      %v3466 = vadd.f32 %v3465, %v3403
      %v3467 = vadd.f32 %v3466, %v3404
      %v3468 = vadd.f32 %v3467, %v3405
      %v3469 = vadd.f32 %v3468, %v3406
      %v3470 = vadd.f32 %v3469, %v3407
      %v3471 = vadd.f32 %v3470, %v3408
      %v3472 = vadd.f32 %v3471, %v3409
      %v3473 = vadd.f32 %v3472, %v3410
      %v3474 = vadd.f32 %v3473, %v3411
      %v3475 = vadd.f32 %v3474, %v3412
      %v3476 = vadd.f32 %v3475, %v3413
      %v3477 = vadd.f32 %v3476, %v3414
      %v3478 = vadd.f32 %v3477, %v3415
      %v3479 = vadd.f32 %v3478, %v3416
      %v3480 = vadd.f32 %v3479, %v3417
      %v3481 = vadd.f32 %v3480, %v3418
      %v3482 = vadd.f32 %v3481, %v3419
      %v3483 = vadd.f32 %v3482, %v3420
      %v3484 = vadd.f32 %v3483, %v3421
      %v3485 = vadd.f32 %v3484, %v3422
      %v3486 = vadd.f32 %v3485, %v3423
      %v3487 = vrot.slane %v3486, 4
      %v3488 = vadd.f32 %v3486, %v3487
      %v3489 = vrot.slane %v3488, 2
      %v3490 = vadd.f32 %v3488, %v3489
      %v3491 = vrot.slane %v3490, 1
      %v3492 = vadd.f32 %v3490, %v3491
      %v3493 = vmul.f32 %v3392, %v3392
      %v3494 = vmul.f32 %v3393, %v3393
      %v3495 = vmul.f32 %v3394, %v3394
      %v3496 = vmul.f32 %v3395, %v3395
      %v3497 = vmul.f32 %v3396, %v3396
      %v3498 = vmul.f32 %v3397, %v3397
      %v3499 = vmul.f32 %v3398, %v3398
      %v3500 = vmul.f32 %v3399, %v3399
      %v3501 = vmul.f32 %v3400, %v3400
      %v3502 = vmul.f32 %v3401, %v3401
      %v3503 = vmul.f32 %v3402, %v3402
      %v3504 = vmul.f32 %v3403, %v3403
      %v3505 = vmul.f32 %v3404, %v3404
      %v3506 = vmul.f32 %v3405, %v3405
      %v3507 = vmul.f32 %v3406, %v3406
      %v3508 = vmul.f32 %v3407, %v3407
      %v3509 = vmul.f32 %v3408, %v3408
      %v3510 = vmul.f32 %v3409, %v3409
      %v3511 = vmul.f32 %v3410, %v3410
      %v3512 = vmul.f32 %v3411, %v3411
      %v3513 = vmul.f32 %v3412, %v3412
      %v3514 = vmul.f32 %v3413, %v3413
      %v3515 = vmul.f32 %v3414, %v3414
      %v3516 = vmul.f32 %v3415, %v3415
      %v3517 = vmul.f32 %v3416, %v3416
      %v3518 = vmul.f32 %v3417, %v3417
      %v3519 = vmul.f32 %v3418, %v3418
      %v3520 = vmul.f32 %v3419, %v3419
      %v3521 = vmul.f32 %v3420, %v3420
      %v3522 = vmul.f32 %v3421, %v3421
      %v3523 = vmul.f32 %v3422, %v3422
      %v3524 = vmul.f32 %v3423, %v3423
      %v3525 = vadd.f32 %v3493, %v3494
      %v3526 = vadd.f32 %v3525, %v3495
      %v3527 = vadd.f32 %v3526, %v3496
      %v3528 = vadd.f32 %v3527, %v3497
      %v3529 = vadd.f32 %v3528, %v3498
      %v3530 = vadd.f32 %v3529, %v3499
      %v3531 = vadd.f32 %v3530, %v3500
      %v3532 = vadd.f32 %v3531, %v3501
      %v3533 = vadd.f32 %v3532, %v3502
      %v3534 = vadd.f32 %v3533, %v3503
      %v3535 = vadd.f32 %v3534, %v3504
      %v3536 = vadd.f32 %v3535, %v3505
      %v3537 = vadd.f32 %v3536, %v3506
      %v3538 = vadd.f32 %v3537, %v3507
      %v3539 = vadd.f32 %v3538, %v3508
      %v3540 = vadd.f32 %v3539, %v3509
      %v3541 = vadd.f32 %v3540, %v3510
      %v3542 = vadd.f32 %v3541, %v3511
      %v3543 = vadd.f32 %v3542, %v3512
      %v3544 = vadd.f32 %v3543, %v3513
      %v3545 = vadd.f32 %v3544, %v3514
      %v3546 = vadd.f32 %v3545, %v3515
      %v3547 = vadd.f32 %v3546, %v3516
      %v3548 = vadd.f32 %v3547, %v3517
      %v3549 = vadd.f32 %v3548, %v3518
      %v3550 = vadd.f32 %v3549, %v3519
      %v3551 = vadd.f32 %v3550, %v3520
      %v3552 = vadd.f32 %v3551, %v3521
      %v3553 = vadd.f32 %v3552, %v3522
      %v3554 = vadd.f32 %v3553, %v3523
      %v3555 = vadd.f32 %v3554, %v3524
      %v3556 = vrot.slane %v3555, 4
      %v3557 = vadd.f32 %v3555, %v3556
      %v3558 = vrot.slane %v3557, 2
      %v3559 = vadd.f32 %v3557, %v3558
      %v3560 = vrot.slane %v3559, 1
      %v3561 = vadd.f32 %v3559, %v3560
      %vm3562 = vcmask 1040384
      %v3563 = vsel %vm3562, %v3492, %v3561
      %vm3564 = vcmask 1041408
      %v3565 = vsel %vm3564, %v3563, 0.0
      %3566 = vst [vmem:[%s262] sm:$0xff] %v3565
      %p3567 = scmp.lt.s32.totalorder %s18, 1
      %s3568 = scalar_select %p3567, %s18, 1
      %s3569 = smul.addr %s3568, 32
      %s3570 = smul.addr %s3569, 8
      %s3571 = scalar_lea.vmem %s5, %s3570
      %p3572 = scmp.lt.s32.totalorder %s18, 1
      %s3573 = scalar_select %p3572, %s18, 1
      %s3574 = smul.addr %s3573, 8
      %s3575 = scalar_lea.vmem %s6, %s3574
      // Predicated region
      $region41: #{bottleneck_forward.5} parent=39 // pred_check
        %p3576 = pneg %p146
      $region42: #{bottleneck_forward.5} parent=39 // pred_check_branch
        %3578 = sbr.rel (%p3576) target = $region44
      $region43: #{bottleneck_forward.5} parent=39 // pred_region
        _
      $region44: #{bottleneck_forward.5} parent=39 // pred_fallthru
        _
      // Predicated region
      $region45: #{bottleneck_forward.5} parent=39 // pred_check
        %p3579 = pneg %p172
      $region46: #{bottleneck_forward.5} parent=39 // pred_check_branch
        %3581 = sbr.rel (%p3579) target = $region48
      $region47: #{bottleneck_forward.5} parent=39 // pred_region
        _
      $region48: #{bottleneck_forward.5} parent=39 // pred_fallthru
        _
    $region40: #{bottleneck_forward.5} parent=5 // pred_fallthru
      _
    %p3582 = scmp.le.s32.totalorder 2, %s13
    // Predicated region
    $region49: #{bottleneck_forward.5} parent=5 // pred_check
      %p3583 = pneg %p3582
    $region50: #{bottleneck_forward.5} parent=5 // pred_check_branch
      %3585 = sbr.rel (%p3583) target = $region52
    $region51: #{bottleneck_forward.5} parent=5 // pred_region
      %s3586 = ssub.s32 %s13, 2
      // Predicated region
      $region53: #{bottleneck_forward.5} parent=51 // pred_check
        %p3587 = pneg %p152
      $region54: #{bottleneck_forward.5} parent=51 // pred_check_branch
        %3589 = sbr.rel (%p3587) target = $region56
      $region55: #{bottleneck_forward.5} parent=51 // pred_region
        %p3590 = scmp.lt.s32.totalorder %s19, 1
        %s3591 = scalar_select %p3590, %s19, 1
        %s3592 = smul.addr %s3591, 32
        %s3593 = smul.addr %s3592, 8
        %s3594 = scalar_lea.vmem %s5, %s3593
      $region56: #{bottleneck_forward.5} parent=51 // pred_fallthru
        _
      // Predicated region
      $region57: #{bottleneck_forward.5} parent=51 // pred_check
        %p3595 = pneg %p178
      $region58: #{bottleneck_forward.5} parent=51 // pred_check_branch
        %3597 = sbr.rel (%p3595) target = $region60
      $region59: #{bottleneck_forward.5} parent=51 // pred_region
        %p3598 = scmp.lt.s32.totalorder %s19, 1
        %s3599 = scalar_select %p3598, %s19, 1
        %s3600 = smul.addr %s3599, 8
        %s3601 = scalar_lea.vmem %s6, %s3600
      $region60: #{bottleneck_forward.5} parent=51 // pred_fallthru
        _
    $region52: #{bottleneck_forward.5} parent=5 // pred_fallthru
      _
  $region6: #{bottleneck_forward.5} parent=0 // loop_footer
    %s17 = sadd.s32 1, %s13
  $region7: #{bottleneck_forward.5} parent=0 // loop_footer_branch
    %12 = sbr.rel target = $region3
  $region8: #{bottleneck_forward.5} parent=0 // loop_exit
    _

</llo_original>
